<compile_context>
chip_gen: v7x
topology: tpu7x:2x2x1
jax: 0.10.0
libtpu: 0.0.40
codegen_flags: <defaults>
</compile_context>

<pallas_src>
import jax
import jax.numpy as jnp
import numpy as np
from jax.experimental import pallas as pl
from jax.experimental.pallas import tpu as pltpu

EPS = 1e-5  # nn.InstanceNorm3d default eps


def _round_up(n, m):
    return (n + m - 1) // m * m


# ----------------------------------------------------------------------------
# Pallas kernel (one sample per grid step)
# ----------------------------------------------------------------------------
def _make_kernel(conv_type, k, cin_p, wp, hw, sp_pad, chunk, n_valid, x_width):
    inv_n = 1.0 / float(n_valid)

    def stats(v, width):
        # v: (C, width) f32 whose invalid columns are exactly 0.0.
        # Two-pass (mean-subtracted) variance over the n_valid valid columns;
        # the (width - n_valid) structural-zero columns each contribute
        # (0 - mu)^2 = mu^2 to the squared sum, removed in closed form, so no
        # elementwise mask multiply is needed inside the reductions.
        mu = jnp.sum(v, axis=1, keepdims=True) * inv_n
        d = v - mu
        ss = jnp.sum(d * d, axis=1, keepdims=True)
        var = jnp.maximum((ss - (width - n_valid) * mu * mu) * inv_n, 0.0)
        return mu, jax.lax.rsqrt(var + EPS)

    def conv_all_chunks(src_ref, w_stk, xstk_ref, emit):
        # src_ref: (Cin_p, x_width) bf16 ref holding the zero-padded,
        # flat-extended conv input.  For each lane chunk, stack the k^3
        # shifted slices into the (k^3*Cin_p, chunk) scratch (taps along the
        # contraction) and do one MXU dot with f32 accumulation.
        # NOTE(v5e): with a 128-deep MXU, grouping ~16 taps per dot (K~=128)
        # may be preferable; one full-K dot is best on v6e/v7x (256-deep).
        for c0 in range(0, sp_pad, chunk):
            cw = min(chunk, sp_pad - c0)
            tap = 0
            for kd in range(k):
                for kh in range(k):
                    for kw_ in range(k):
                        s = kd * hw + kh * wp + kw_ + c0
                        xstk_ref[tap * cin_p:(tap + 1) * cin_p, :cw] = (
                            src_ref[:, s:s + cw])
                        tap += 1
            y = jnp.dot(w_stk, xstk_ref[:, :cw],
                        preferred_element_type=jnp.float32)
            emit(c0, cw, y)

    if conv_type == 'plain':
        def kernel(x_ref, w_ref, b_ref, o_ref, xstk_ref):
            w_stk = w_ref[...]
            bias = b_ref[...]

            def emit(c0, cw, y):
                o_ref[:, c0:c0 + cw] = y + bias

            conv_all_chunks(x_ref, w_stk, xstk_ref, emit)
        return kernel

    if conv_type == 'cba':
        def kernel(x_ref, w_ref, g_ref, bt_ref, m_ref, o_ref, xstk_ref):
            w_stk = w_ref[...]

            def emit(c0, cw, y):
                # Zero non-valid output columns on write so the IN stats can
                # skip mask multiplies.  The conv bias is skipped entirely:
                # it is cancelled by the IN mean subtraction.
                o_ref[:, c0:c0 + cw] = y * m_ref[:, c0:c0 + cw]

            conv_all_chunks(x_ref, w_stk, xstk_ref, emit)

            yv = o_ref[...]                      # (Cout_p, sp_pad) f32
            mu, inv = stats(yv, sp_pad)
            scale = inv * g_ref[...]
            o_ref[...] = jnp.maximum((yv - mu) * scale + bt_ref[...], 0.0)
        return kernel

    # conv_type == 'bac'
    def kernel(x_ref, w_ref, b_ref, g_ref, bt_ref, m_ref, o_ref,
               xstk_ref, xn_ref):
        x = x_ref[...]                           # (Cin_p, x_width) f32
        mu, inv = stats(x, x_width)
        scale = inv * g_ref[...]
        # IN + ReLU in f32, re-zero padding so the conv sees zero padding,
        # single cast to bf16 into the normalized-x scratch (MXU operand).
        xn = jnp.maximum((x - mu) * scale + bt_ref[...], 0.0) * m_ref[...]
        xn_ref[...] = xn.astype(jnp.bfloat16)

        w_stk = w_ref[...]
        bias = b_ref[...]

        def emit(c0, cw, y):
            o_ref[:, c0:c0 + cw] = y + bias

        conv_all_chunks(xn_ref, w_stk, xstk_ref, emit)
    return kernel


# ----------------------------------------------------------------------------
# Wrapper: layout prep + pallas_call
# ----------------------------------------------------------------------------
def conv_layer_forward(x, params, conv_type='plain'):
    """x: (B, Cin, D, H, W) f32 -> (B, Cout, D, H, W) f32  (ConvLayer.forward)."""
    if conv_type not in ('plain', 'cba', 'bac'):
        raise NotImplementedError(conv_type)
    w, b = params['w'], params['b']
    B, cin, D, H, W = x.shape
    cout = w.shape[0]
    k = w.shape[-1]
    assert k % 2 == 1, "odd kernel_size required for 'same' conv"
    p = k // 2

    dp, hp_, wp = D + 2 * p, H + 2 * p, W + 2 * p
    hw = hp_ * wp
    sp = dp * hw                              # padded-volume voxel count
    sp_pad = _round_up(sp, 128)               # lane-dense output width
    maxoff = p * hw + p * wp + p              # largest neighbour offset
    s_ext = _round_up(sp_pad + 2 * maxoff, 128)

    cin_p = _round_up(cin, 8)                 # sublane-align channel dims
    cout_p = _round_up(cout, 8)
    kstk = (k ** 3) * cin_p                   # folded contraction depth
    chunk = min(512, sp_pad)                  # lane chunk (multiple of 128)
    n_valid = D * H * W

    # ---- host-side layout prep (tiny, plain JAX) ----------------------------
    # 'bac' keeps x in f32 (InstanceNorm precision); 'plain'/'cba' ship bf16
    # to halve the per-sample HBM->VMEM DMA (the conv operand is bf16 anyway).
    x_dtype = jnp.float32 if conv_type == 'bac' else jnp.bfloat16
    xpad = jnp.pad(x.astype(jnp.float32),
                   ((0, 0), (0, cin_p - cin), (p, p), (p, p), (p, p)))
    x_ext = jnp.pad(xpad.reshape(B, cin_p, sp),
                    ((0, 0), (0, 0), (maxoff, s_ext - sp - maxoff))
                    ).astype(x_dtype)

    # Stacked conv weight (Cout_p, k^3*Cin_p): column = tap*Cin_p + cin with
    # taps ordered (kd, kh, kw) -- matches the in-kernel scratch fill order.
    w_p = jnp.pad(w.astype(jnp.float32),
                  ((0, cout_p - cout), (0, cin_p - cin), (0, 0), (0, 0), (0, 0)))
    w_stk = jnp.transpose(w_p, (0, 2, 3, 4, 1)).reshape(cout_p, kstk)
    w_stk = w_stk.astype(jnp.bfloat16)
    b_col = jnp.pad(b.astype(jnp.float32), (0, cout_p - cout)).reshape(cout_p, 1)

    kernel = _make_kernel(conv_type, k, cin_p, wp, hw, sp_pad, chunk,
                          float(n_valid), s_ext)

    def shared(a):
        nd = a.ndim
        return pl.BlockSpec(tuple(a.shape), lambda bb, _nd=nd: (0,) * _nd)

    x_spec = pl.BlockSpec((None, cin_p, s_ext), lambda bb: (bb, 0, 0))
    out_spec = pl.BlockSpec((None, cout_p, sp_pad), lambda bb: (bb, 0, 0))

    inputs = [x_ext, w_stk]
    in_specs = [x_spec, shared(w_stk)]
    scratch = [pltpu.VMEM((kstk, chunk), jnp.bfloat16)]   # tap-stacked operand

    if conv_type in ('plain', 'bac'):
        inputs.append(b_col)
        in_specs.append(shared(b_col))
    if conv_type in ('cba', 'bac'):
        cn, cn_p = (cin, cin_p) if conv_type == 'bac' else (cout, cout_p)
        g_col = jnp.pad(params['gamma'].astype(jnp.float32), (0, cn_p - cn),
                        constant_values=1.0).reshape(cn_p, 1)
        bt_col = jnp.pad(params['beta'].astype(jnp.float32),
                         (0, cn_p - cn)).reshape(cn_p, 1)
        # valid-voxel mask (1.0 at un-padded voxels of the flat layout)
        m_full = jnp.pad(jnp.ones((D, H, W), jnp.float32),
                         ((p, p), (p, p), (p, p))).reshape(1, sp)
        m_ext = jnp.pad(m_full, ((0, 0), (maxoff, s_ext - sp - maxoff)))
        m = m_ext if conv_type == 'bac' else m_ext[:, maxoff:maxoff + sp_pad]
        inputs += [g_col, bt_col, m]
        in_specs += [shared(g_col), shared(bt_col), shared(m)]
    if conv_type == 'bac':
        scratch.append(pltpu.VMEM((cin_p, s_ext), jnp.bfloat16))  # normalized x

    # VMEM budget: double-buffered per-sample in/out blocks + shared params +
    # scratch + working values, with headroom.  Capped at 48 MiB so the
    # request also fits v7x's 64 MiB/TC with compiler-scratch headroom.
    xbytes = 4 if conv_type == 'bac' else 2
    est = (2 * cin_p * s_ext * xbytes
           + 2 * cout_p * sp_pad * 4
           + 2 * cout_p * kstk * 2
           + _round_up(kstk, 16) * chunk * 2
           + (cin_p * s_ext * 2 if conv_type == 'bac' else 0)
           + s_ext * 4 + 4 * cout_p * chunk * 4
           + (4 << 20))
    vmem_limit = int(min(48 * 1024 * 1024, max(32 * 1024 * 1024, est)))

    out_pad = pl.pallas_call(
        kernel,
        out_shape=jax.ShapeDtypeStruct((B, cout_p, sp_pad), jnp.float32),
        grid=(B,),
        in_specs=in_specs,
        out_specs=out_spec,
        scratch_shapes=scratch,
        compiler_params=pltpu.CompilerParams(
            dimension_semantics=("parallel",),
            vmem_limit_bytes=vmem_limit),
    )(*inputs)

    # drop lane padding / padded channels, extract valid voxels
    out = out_pad[:, :cout, :sp].reshape(B, cout, dp, hp_, wp)
    return out[:, :, p:p + D, p:p + H, p:p + W]


# ----------------------------------------------------------------------------
# Pure-JAX reference (PyTorch ConvLayer semantics) for the numerical check
# ----------------------------------------------------------------------------
def conv_layer_ref(x, params, conv_type, quantize_like_kernel=False):
    """With quantize_like_kernel=True the conv operands are rounded to bf16
    (same recipe as the kernel's MXU path) while everything else stays f32."""
    w, b = params['w'], params['b']
    k = w.shape[-1]
    p = k // 2
    q = ((lambda a: a.astype(jnp.bfloat16).astype(jnp.float32))
         if quantize_like_kernel else (lambda a: a))

    def conv(inp):
        return jax.lax.conv_general_dilated(
            q(inp), q(w), window_strides=(1, 1, 1), padding=[(p, p)] * 3,
            dimension_numbers=('NCDHW', 'OIDHW', 'NCDHW'),
            precision=jax.lax.Precision.HIGHEST)

    def inorm(y, gamma, beta):
        mu = jnp.mean(y, axis=(2, 3, 4), keepdims=True)
        var = jnp.mean((y - mu) ** 2, axis=(2, 3, 4), keepdims=True)
        yhat = (y - mu) * jax.lax.rsqrt(var + EPS)
        return yhat * gamma.reshape(1, -1, 1, 1, 1) + beta.reshape(1, -1, 1, 1, 1)

    bias = b.reshape(1, -1, 1, 1, 1)
    if conv_type == 'plain':
        return conv(x) + bias
    if conv_type == 'cba':
        return jnp.maximum(inorm(conv(x) + bias, params['gamma'], params['beta']), 0.0)
    if conv_type == 'bac':
        xn = jnp.maximum(inorm(x, params['gamma'], params['beta']), 0.0)
        return conv(xn) + bias
    raise NotImplementedError(conv_type)


# ----------------------------------------------------------------------------
if __name__ == "__main__":
    B, Cin, Cout, D, H, W, K = 2, 4, 32, 8, 16, 16, 3

    key = jax.random.PRNGKey(0)
    kx, kw, kb, kg, kbt = jax.random.split(key, 5)
    x = jax.random.normal(kx, (B, Cin, D, H, W), jnp.float32)
    w = jax.random.normal(kw, (Cout, Cin, K, K, K), jnp.float32) / np.sqrt(Cin * K ** 3)
    b = 0.1 * jax.random.normal(kb, (Cout,), jnp.float32)

    for conv_type in ('cba', 'plain', 'bac'):
        cn = Cin if conv_type == 'bac' else Cout
        params = dict(
            w=w, b=b,
            gamma=1.0 + 0.1 * jax.random.normal(kg, (cn,), jnp.float32),
            beta=0.1 * jax.random.normal(kbt, (cn,), jnp.float32))

        out = jax.block_until_ready(conv_layer_forward(x, params, conv_type))
        assert out.shape == (B, Cout, D, H, W), (conv_type, out.shape)
        assert bool(jnp.all(jnp.isfinite(out))), conv_type

        # structural check: reference with the same bf16-operand / f32-accumulate recipe
        ref_q = conv_layer_ref(x, params, conv_type, quantize_like_kernel=True)
        np.testing.assert_allclose(np.asarray(out), np.asarray(ref_q),
                                   rtol=5e-3, atol=5e-3, err_msg=conv_type)
        # sanity check against exact f32 PyTorch semantics (bf16 quantization bound)
        ref_f = conv_layer_ref(x, params, conv_type, quantize_like_kernel=False)
        np.testing.assert_allclose(np.asarray(out), np.asarray(ref_f),
                                   rtol=1e-1, atol=1e-1, err_msg=conv_type)

    print("KERNEL_OK")
</pallas_src>

<mosaic_0001>
module attributes {stable_mosaic.version = 11 : i64} {
  func.func @kernel(%arg0: i32, %arg1: memref<1x8x4096xbf16, #tpu.memory_space<vmem>>, %arg2: memref<32x216xbf16, #tpu.memory_space<vmem>>, %arg3: memref<32x1xf32, #tpu.memory_space<vmem>>, %arg4: memref<32x1xf32, #tpu.memory_space<vmem>>, %arg5: memref<1x3328xf32, #tpu.memory_space<vmem>>, %arg6: memref<1x32x3328xf32, #tpu.memory_space<vmem>>, %arg7: memref<216x512xbf16, #tpu.memory_space<vmem>>) attributes {dimension_semantics = [#tpu.dimension_semantics<parallel>], iteration_bounds = array<i64: 2>, scalar_prefetch = 0 : i64, scratch_operands = 1 : i64, tpu.core_type = #tpu.core_type<tc>, window_params = [{transform_indices = @transform_0, window_bounds = array<i64: 1, 8, 4096>}, {pipeline_mode = #tpu.pipeline_mode<synchronous>, transform_indices = @transform_1, window_bounds = array<i64: 32, 216>}, {pipeline_mode = #tpu.pipeline_mode<synchronous>, transform_indices = @transform_2, window_bounds = array<i64: 32, 1>}, {pipeline_mode = #tpu.pipeline_mode<synchronous>, transform_indices = @transform_3, window_bounds = array<i64: 32, 1>}, {pipeline_mode = #tpu.pipeline_mode<synchronous>, transform_indices = @transform_4, window_bounds = array<i64: 1, 3328>}, {transform_indices = @transform_5, window_bounds = array<i64: 1, 32, 3328>}]} {
    %c0 = arith.constant 0 : index
    %c0_0 = arith.constant 0 : index
    %0 = vector.load %arg2[%c0, %c0_0] : memref<32x216xbf16, #tpu.memory_space<vmem>>, vector<32x216xbf16>
    %c0_1 = arith.constant 0 : index
    %c0_2 = arith.constant 0 : index
    %c0_3 = arith.constant 0 : index
    %1 = vector.load %arg1[%c0_1, %c0_2, %c0_3] : memref<1x8x4096xbf16, #tpu.memory_space<vmem>>, vector<1x8x512xbf16>
    %2 = vector.shape_cast %1 : vector<1x8x512xbf16> to vector<8x512xbf16>
    %c0_4 = arith.constant 0 : index
    %c0_5 = arith.constant 0 : index
    %3 = vector.load %arg7[%c0_4, %c0_5] : memref<216x512xbf16, #tpu.memory_space<vmem>>, vector<8x512xbf16>
    tpu.vector_store %arg7[%c0_4, %c0_5], %2 {strides = array<i32>} : memref<216x512xbf16, #tpu.memory_space<vmem>>, vector<8x512xbf16>,
    %c0_6 = arith.constant 0 : index
    %c0_7 = arith.constant 0 : index
    %c1 = arith.constant 1 : index
    %4 = vector.load %arg1[%c0_6, %c0_7, %c1] : memref<1x8x4096xbf16, #tpu.memory_space<vmem>>, vector<1x8x512xbf16>
    %5 = vector.shape_cast %4 : vector<1x8x512xbf16> to vector<8x512xbf16>
    %c8 = arith.constant 8 : index
    %c0_8 = arith.constant 0 : index
    %6 = vector.load %arg7[%c8, %c0_8] : memref<216x512xbf16, #tpu.memory_space<vmem>>, vector<8x512xbf16>
    tpu.vector_store %arg7[%c8, %c0_8], %5 {strides = array<i32>} : memref<216x512xbf16, #tpu.memory_space<vmem>>, vector<8x512xbf16>,
    %c0_9 = arith.constant 0 : index
    %c0_10 = arith.constant 0 : index
    %c2 = arith.constant 2 : index
    %7 = vector.load %arg1[%c0_9, %c0_10, %c2] : memref<1x8x4096xbf16, #tpu.memory_space<vmem>>, vector<1x8x512xbf16>
    %8 = vector.shape_cast %7 : vector<1x8x512xbf16> to vector<8x512xbf16>
    %c16 = arith.constant 16 : index
    %c0_11 = arith.constant 0 : index
    %9 = vector.load %arg7[%c16, %c0_11] : memref<216x512xbf16, #tpu.memory_space<vmem>>, vector<8x512xbf16>
    tpu.vector_store %arg7[%c16, %c0_11], %8 {strides = array<i32>} : memref<216x512xbf16, #tpu.memory_space<vmem>>, vector<8x512xbf16>,
    %c0_12 = arith.constant 0 : index
    %c0_13 = arith.constant 0 : index
    %c18 = arith.constant 18 : index
    %10 = vector.load %arg1[%c0_12, %c0_13, %c18] : memref<1x8x4096xbf16, #tpu.memory_space<vmem>>, vector<1x8x512xbf16>
    %11 = vector.shape_cast %10 : vector<1x8x512xbf16> to vector<8x512xbf16>
    %c24 = arith.constant 24 : index
    %c0_14 = arith.constant 0 : index
    %12 = vector.load %arg7[%c24, %c0_14] : memref<216x512xbf16, #tpu.memory_space<vmem>>, vector<8x512xbf16>
    tpu.vector_store %arg7[%c24, %c0_14], %11 {strides = array<i32>} : memref<216x512xbf16, #tpu.memory_space<vmem>>, vector<8x512xbf16>,
    %c0_15 = arith.constant 0 : index
    %c0_16 = arith.constant 0 : index
    %c19 = arith.constant 19 : index
    %13 = vector.load %arg1[%c0_15, %c0_16, %c19] : memref<1x8x4096xbf16, #tpu.memory_space<vmem>>, vector<1x8x512xbf16>
    %14 = vector.shape_cast %13 : vector<1x8x512xbf16> to vector<8x512xbf16>
    %c32 = arith.constant 32 : index
    %c0_17 = arith.constant 0 : index
    %15 = vector.load %arg7[%c32, %c0_17] : memref<216x512xbf16, #tpu.memory_space<vmem>>, vector<8x512xbf16>
    tpu.vector_store %arg7[%c32, %c0_17], %14 {strides = array<i32>} : memref<216x512xbf16, #tpu.memory_space<vmem>>, vector<8x512xbf16>,
    %c0_18 = arith.constant 0 : index
    %c0_19 = arith.constant 0 : index
    %c20 = arith.constant 20 : index
    %16 = vector.load %arg1[%c0_18, %c0_19, %c20] : memref<1x8x4096xbf16, #tpu.memory_space<vmem>>, vector<1x8x512xbf16>
    %17 = vector.shape_cast %16 : vector<1x8x512xbf16> to vector<8x512xbf16>
    %c40 = arith.constant 40 : index
    %c0_20 = arith.constant 0 : index
    %18 = vector.load %arg7[%c40, %c0_20] : memref<216x512xbf16, #tpu.memory_space<vmem>>, vector<8x512xbf16>
    tpu.vector_store %arg7[%c40, %c0_20], %17 {strides = array<i32>} : memref<216x512xbf16, #tpu.memory_space<vmem>>, vector<8x512xbf16>,
    %c0_21 = arith.constant 0 : index
    %c0_22 = arith.constant 0 : index
    %c36 = arith.constant 36 : index
    %19 = vector.load %arg1[%c0_21, %c0_22, %c36] : memref<1x8x4096xbf16, #tpu.memory_space<vmem>>, vector<1x8x512xbf16>
    %20 = vector.shape_cast %19 : vector<1x8x512xbf16> to vector<8x512xbf16>
    %c48 = arith.constant 48 : index
    %c0_23 = arith.constant 0 : index
    %21 = vector.load %arg7[%c48, %c0_23] : memref<216x512xbf16, #tpu.memory_space<vmem>>, vector<8x512xbf16>
    tpu.vector_store %arg7[%c48, %c0_23], %20 {strides = array<i32>} : memref<216x512xbf16, #tpu.memory_space<vmem>>, vector<8x512xbf16>,
    %c0_24 = arith.constant 0 : index
    %c0_25 = arith.constant 0 : index
    %c37 = arith.constant 37 : index
    %22 = vector.load %arg1[%c0_24, %c0_25, %c37] : memref<1x8x4096xbf16, #tpu.memory_space<vmem>>, vector<1x8x512xbf16>
    %23 = vector.shape_cast %22 : vector<1x8x512xbf16> to vector<8x512xbf16>
    %c56 = arith.constant 56 : index
    %c0_26 = arith.constant 0 : index
    %24 = vector.load %arg7[%c56, %c0_26] : memref<216x512xbf16, #tpu.memory_space<vmem>>, vector<8x512xbf16>
    tpu.vector_store %arg7[%c56, %c0_26], %23 {strides = array<i32>} : memref<216x512xbf16, #tpu.memory_space<vmem>>, vector<8x512xbf16>,
    %c0_27 = arith.constant 0 : index
    %c0_28 = arith.constant 0 : index
    %c38 = arith.constant 38 : index
    %25 = vector.load %arg1[%c0_27, %c0_28, %c38] : memref<1x8x4096xbf16, #tpu.memory_space<vmem>>, vector<1x8x512xbf16>
    %26 = vector.shape_cast %25 : vector<1x8x512xbf16> to vector<8x512xbf16>
    %c64 = arith.constant 64 : index
    %c0_29 = arith.constant 0 : index
    %27 = vector.load %arg7[%c64, %c0_29] : memref<216x512xbf16, #tpu.memory_space<vmem>>, vector<8x512xbf16>
    tpu.vector_store %arg7[%c64, %c0_29], %26 {strides = array<i32>} : memref<216x512xbf16, #tpu.memory_space<vmem>>, vector<8x512xbf16>,
    %c0_30 = arith.constant 0 : index
    %c0_31 = arith.constant 0 : index
    %c324 = arith.constant 324 : index
    %28 = vector.load %arg1[%c0_30, %c0_31, %c324] : memref<1x8x4096xbf16, #tpu.memory_space<vmem>>, vector<1x8x512xbf16>
    %29 = vector.shape_cast %28 : vector<1x8x512xbf16> to vector<8x512xbf16>
    %c72 = arith.constant 72 : index
    %c0_32 = arith.constant 0 : index
    %30 = vector.load %arg7[%c72, %c0_32] : memref<216x512xbf16, #tpu.memory_space<vmem>>, vector<8x512xbf16>
    tpu.vector_store %arg7[%c72, %c0_32], %29 {strides = array<i32>} : memref<216x512xbf16, #tpu.memory_space<vmem>>, vector<8x512xbf16>,
    %c0_33 = arith.constant 0 : index
    %c0_34 = arith.constant 0 : index
    %c325 = arith.constant 325 : index
    %31 = vector.load %arg1[%c0_33, %c0_34, %c325] : memref<1x8x4096xbf16, #tpu.memory_space<vmem>>, vector<1x8x512xbf16>
    %32 = vector.shape_cast %31 : vector<1x8x512xbf16> to vector<8x512xbf16>
    %c80 = arith.constant 80 : index
    %c0_35 = arith.constant 0 : index
    %33 = vector.load %arg7[%c80, %c0_35] : memref<216x512xbf16, #tpu.memory_space<vmem>>, vector<8x512xbf16>
    tpu.vector_store %arg7[%c80, %c0_35], %32 {strides = array<i32>} : memref<216x512xbf16, #tpu.memory_space<vmem>>, vector<8x512xbf16>,
    %c0_36 = arith.constant 0 : index
    %c0_37 = arith.constant 0 : index
    %c326 = arith.constant 326 : index
    %34 = vector.load %arg1[%c0_36, %c0_37, %c326] : memref<1x8x4096xbf16, #tpu.memory_space<vmem>>, vector<1x8x512xbf16>
    %35 = vector.shape_cast %34 : vector<1x8x512xbf16> to vector<8x512xbf16>
    %c88 = arith.constant 88 : index
    %c0_38 = arith.constant 0 : index
    %36 = vector.load %arg7[%c88, %c0_38] : memref<216x512xbf16, #tpu.memory_space<vmem>>, vector<8x512xbf16>
    tpu.vector_store %arg7[%c88, %c0_38], %35 {strides = array<i32>} : memref<216x512xbf16, #tpu.memory_space<vmem>>, vector<8x512xbf16>,
    %c0_39 = arith.constant 0 : index
    %c0_40 = arith.constant 0 : index
    %c342 = arith.constant 342 : index
    %37 = vector.load %arg1[%c0_39, %c0_40, %c342] : memref<1x8x4096xbf16, #tpu.memory_space<vmem>>, vector<1x8x512xbf16>
    %38 = vector.shape_cast %37 : vector<1x8x512xbf16> to vector<8x512xbf16>
    %c96 = arith.constant 96 : index
    %c0_41 = arith.constant 0 : index
    %39 = vector.load %arg7[%c96, %c0_41] : memref<216x512xbf16, #tpu.memory_space<vmem>>, vector<8x512xbf16>
    tpu.vector_store %arg7[%c96, %c0_41], %38 {strides = array<i32>} : memref<216x512xbf16, #tpu.memory_space<vmem>>, vector<8x512xbf16>,
    %c0_42 = arith.constant 0 : index
    %c0_43 = arith.constant 0 : index
    %c343 = arith.constant 343 : index
    %40 = vector.load %arg1[%c0_42, %c0_43, %c343] : memref<1x8x4096xbf16, #tpu.memory_space<vmem>>, vector<1x8x512xbf16>
    %41 = vector.shape_cast %40 : vector<1x8x512xbf16> to vector<8x512xbf16>
    %c104 = arith.constant 104 : index
    %c0_44 = arith.constant 0 : index
    %42 = vector.load %arg7[%c104, %c0_44] : memref<216x512xbf16, #tpu.memory_space<vmem>>, vector<8x512xbf16>
    tpu.vector_store %arg7[%c104, %c0_44], %41 {strides = array<i32>} : memref<216x512xbf16, #tpu.memory_space<vmem>>, vector<8x512xbf16>,
    %c0_45 = arith.constant 0 : index
    %c0_46 = arith.constant 0 : index
    %c344 = arith.constant 344 : index
    %43 = vector.load %arg1[%c0_45, %c0_46, %c344] : memref<1x8x4096xbf16, #tpu.memory_space<vmem>>, vector<1x8x512xbf16>
    %44 = vector.shape_cast %43 : vector<1x8x512xbf16> to vector<8x512xbf16>
    %c112 = arith.constant 112 : index
    %c0_47 = arith.constant 0 : index
    %45 = vector.load %arg7[%c112, %c0_47] : memref<216x512xbf16, #tpu.memory_space<vmem>>, vector<8x512xbf16>
    tpu.vector_store %arg7[%c112, %c0_47], %44 {strides = array<i32>} : memref<216x512xbf16, #tpu.memory_space<vmem>>, vector<8x512xbf16>,
    %c0_48 = arith.constant 0 : index
    %c0_49 = arith.constant 0 : index
    %c360 = arith.constant 360 : index
    %46 = vector.load %arg1[%c0_48, %c0_49, %c360] : memref<1x8x4096xbf16, #tpu.memory_space<vmem>>, vector<1x8x512xbf16>
    %47 = vector.shape_cast %46 : vector<1x8x512xbf16> to vector<8x512xbf16>
    %c120 = arith.constant 120 : index
    %c0_50 = arith.constant 0 : index
    %48 = vector.load %arg7[%c120, %c0_50] : memref<216x512xbf16, #tpu.memory_space<vmem>>, vector<8x512xbf16>
    tpu.vector_store %arg7[%c120, %c0_50], %47 {strides = array<i32>} : memref<216x512xbf16, #tpu.memory_space<vmem>>, vector<8x512xbf16>,
    %c0_51 = arith.constant 0 : index
    %c0_52 = arith.constant 0 : index
    %c361 = arith.constant 361 : index
    %49 = vector.load %arg1[%c0_51, %c0_52, %c361] : memref<1x8x4096xbf16, #tpu.memory_space<vmem>>, vector<1x8x512xbf16>
    %50 = vector.shape_cast %49 : vector<1x8x512xbf16> to vector<8x512xbf16>
    %c128 = arith.constant 128 : index
    %c0_53 = arith.constant 0 : index
    %51 = vector.load %arg7[%c128, %c0_53] : memref<216x512xbf16, #tpu.memory_space<vmem>>, vector<8x512xbf16>
    tpu.vector_store %arg7[%c128, %c0_53], %50 {strides = array<i32>} : memref<216x512xbf16, #tpu.memory_space<vmem>>, vector<8x512xbf16>,
    %c0_54 = arith.constant 0 : index
    %c0_55 = arith.constant 0 : index
    %c362 = arith.constant 362 : index
    %52 = vector.load %arg1[%c0_54, %c0_55, %c362] : memref<1x8x4096xbf16, #tpu.memory_space<vmem>>, vector<1x8x512xbf16>
    %53 = vector.shape_cast %52 : vector<1x8x512xbf16> to vector<8x512xbf16>
    %c136 = arith.constant 136 : index
    %c0_56 = arith.constant 0 : index
    %54 = vector.load %arg7[%c136, %c0_56] : memref<216x512xbf16, #tpu.memory_space<vmem>>, vector<8x512xbf16>
    tpu.vector_store %arg7[%c136, %c0_56], %53 {strides = array<i32>} : memref<216x512xbf16, #tpu.memory_space<vmem>>, vector<8x512xbf16>,
    %c0_57 = arith.constant 0 : index
    %c0_58 = arith.constant 0 : index
    %c648 = arith.constant 648 : index
    %55 = vector.load %arg1[%c0_57, %c0_58, %c648] : memref<1x8x4096xbf16, #tpu.memory_space<vmem>>, vector<1x8x512xbf16>
    %56 = vector.shape_cast %55 : vector<1x8x512xbf16> to vector<8x512xbf16>
    %c144 = arith.constant 144 : index
    %c0_59 = arith.constant 0 : index
    %57 = vector.load %arg7[%c144, %c0_59] : memref<216x512xbf16, #tpu.memory_space<vmem>>, vector<8x512xbf16>
    tpu.vector_store %arg7[%c144, %c0_59], %56 {strides = array<i32>} : memref<216x512xbf16, #tpu.memory_space<vmem>>, vector<8x512xbf16>,
    %c0_60 = arith.constant 0 : index
    %c0_61 = arith.constant 0 : index
    %c649 = arith.constant 649 : index
    %58 = vector.load %arg1[%c0_60, %c0_61, %c649] : memref<1x8x4096xbf16, #tpu.memory_space<vmem>>, vector<1x8x512xbf16>
    %59 = vector.shape_cast %58 : vector<1x8x512xbf16> to vector<8x512xbf16>
    %c152 = arith.constant 152 : index
    %c0_62 = arith.constant 0 : index
    %60 = vector.load %arg7[%c152, %c0_62] : memref<216x512xbf16, #tpu.memory_space<vmem>>, vector<8x512xbf16>
    tpu.vector_store %arg7[%c152, %c0_62], %59 {strides = array<i32>} : memref<216x512xbf16, #tpu.memory_space<vmem>>, vector<8x512xbf16>,
    %c0_63 = arith.constant 0 : index
    %c0_64 = arith.constant 0 : index
    %c650 = arith.constant 650 : index
    %61 = vector.load %arg1[%c0_63, %c0_64, %c650] : memref<1x8x4096xbf16, #tpu.memory_space<vmem>>, vector<1x8x512xbf16>
    %62 = vector.shape_cast %61 : vector<1x8x512xbf16> to vector<8x512xbf16>
    %c160 = arith.constant 160 : index
    %c0_65 = arith.constant 0 : index
    %63 = vector.load %arg7[%c160, %c0_65] : memref<216x512xbf16, #tpu.memory_space<vmem>>, vector<8x512xbf16>
    tpu.vector_store %arg7[%c160, %c0_65], %62 {strides = array<i32>} : memref<216x512xbf16, #tpu.memory_space<vmem>>, vector<8x512xbf16>,
    %c0_66 = arith.constant 0 : index
    %c0_67 = arith.constant 0 : index
    %c666 = arith.constant 666 : index
    %64 = vector.load %arg1[%c0_66, %c0_67, %c666] : memref<1x8x4096xbf16, #tpu.memory_space<vmem>>, vector<1x8x512xbf16>
    %65 = vector.shape_cast %64 : vector<1x8x512xbf16> to vector<8x512xbf16>
    %c168 = arith.constant 168 : index
    %c0_68 = arith.constant 0 : index
    %66 = vector.load %arg7[%c168, %c0_68] : memref<216x512xbf16, #tpu.memory_space<vmem>>, vector<8x512xbf16>
    tpu.vector_store %arg7[%c168, %c0_68], %65 {strides = array<i32>} : memref<216x512xbf16, #tpu.memory_space<vmem>>, vector<8x512xbf16>,
    %c0_69 = arith.constant 0 : index
    %c0_70 = arith.constant 0 : index
    %c667 = arith.constant 667 : index
    %67 = vector.load %arg1[%c0_69, %c0_70, %c667] : memref<1x8x4096xbf16, #tpu.memory_space<vmem>>, vector<1x8x512xbf16>
    %68 = vector.shape_cast %67 : vector<1x8x512xbf16> to vector<8x512xbf16>
    %c176 = arith.constant 176 : index
    %c0_71 = arith.constant 0 : index
    %69 = vector.load %arg7[%c176, %c0_71] : memref<216x512xbf16, #tpu.memory_space<vmem>>, vector<8x512xbf16>
    tpu.vector_store %arg7[%c176, %c0_71], %68 {strides = array<i32>} : memref<216x512xbf16, #tpu.memory_space<vmem>>, vector<8x512xbf16>,
    %c0_72 = arith.constant 0 : index
    %c0_73 = arith.constant 0 : index
    %c668 = arith.constant 668 : index
    %70 = vector.load %arg1[%c0_72, %c0_73, %c668] : memref<1x8x4096xbf16, #tpu.memory_space<vmem>>, vector<1x8x512xbf16>
    %71 = vector.shape_cast %70 : vector<1x8x512xbf16> to vector<8x512xbf16>
    %c184 = arith.constant 184 : index
    %c0_74 = arith.constant 0 : index
    %72 = vector.load %arg7[%c184, %c0_74] : memref<216x512xbf16, #tpu.memory_space<vmem>>, vector<8x512xbf16>
    tpu.vector_store %arg7[%c184, %c0_74], %71 {strides = array<i32>} : memref<216x512xbf16, #tpu.memory_space<vmem>>, vector<8x512xbf16>,
    %c0_75 = arith.constant 0 : index
    %c0_76 = arith.constant 0 : index
    %c684 = arith.constant 684 : index
    %73 = vector.load %arg1[%c0_75, %c0_76, %c684] : memref<1x8x4096xbf16, #tpu.memory_space<vmem>>, vector<1x8x512xbf16>
    %74 = vector.shape_cast %73 : vector<1x8x512xbf16> to vector<8x512xbf16>
    %c192 = arith.constant 192 : index
    %c0_77 = arith.constant 0 : index
    %75 = vector.load %arg7[%c192, %c0_77] : memref<216x512xbf16, #tpu.memory_space<vmem>>, vector<8x512xbf16>
    tpu.vector_store %arg7[%c192, %c0_77], %74 {strides = array<i32>} : memref<216x512xbf16, #tpu.memory_space<vmem>>, vector<8x512xbf16>,
    %c0_78 = arith.constant 0 : index
    %c0_79 = arith.constant 0 : index
    %c685 = arith.constant 685 : index
    %76 = vector.load %arg1[%c0_78, %c0_79, %c685] : memref<1x8x4096xbf16, #tpu.memory_space<vmem>>, vector<1x8x512xbf16>
    %77 = vector.shape_cast %76 : vector<1x8x512xbf16> to vector<8x512xbf16>
    %c200 = arith.constant 200 : index
    %c0_80 = arith.constant 0 : index
    %78 = vector.load %arg7[%c200, %c0_80] : memref<216x512xbf16, #tpu.memory_space<vmem>>, vector<8x512xbf16>
    tpu.vector_store %arg7[%c200, %c0_80], %77 {strides = array<i32>} : memref<216x512xbf16, #tpu.memory_space<vmem>>, vector<8x512xbf16>,
    %c0_81 = arith.constant 0 : index
    %c0_82 = arith.constant 0 : index
    %c686 = arith.constant 686 : index
    %79 = vector.load %arg1[%c0_81, %c0_82, %c686] : memref<1x8x4096xbf16, #tpu.memory_space<vmem>>, vector<1x8x512xbf16>
    %80 = vector.shape_cast %79 : vector<1x8x512xbf16> to vector<8x512xbf16>
    %c208 = arith.constant 208 : index
    %c0_83 = arith.constant 0 : index
    %81 = vector.load %arg7[%c208, %c0_83] : memref<216x512xbf16, #tpu.memory_space<vmem>>, vector<8x512xbf16>
    tpu.vector_store %arg7[%c208, %c0_83], %80 {strides = array<i32>} : memref<216x512xbf16, #tpu.memory_space<vmem>>, vector<8x512xbf16>,
    %c0_84 = arith.constant 0 : index
    %c0_85 = arith.constant 0 : index
    %82 = vector.load %arg7[%c0_84, %c0_85] : memref<216x512xbf16, #tpu.memory_space<vmem>>, vector<216x512xbf16>
    %cst = arith.constant dense<0.000000e+00> : vector<32x512xf32>
    %83 = tpu.matmul %0, %82, %cst {dimension_numbers = #tpu.dot_dimension_numbers<[1], [0], [0], [1], [0, 0, 1, 1], [], []>} : vector<32x216xbf16>, vector<216x512xbf16>, vector<32x512xf32> -> vector<32x512xf32>
    %c0_86 = arith.constant 0 : index
    %c0_87 = arith.constant 0 : index
    %84 = vector.load %arg5[%c0_86, %c0_87] : memref<1x3328xf32, #tpu.memory_space<vmem>>, vector<1x512xf32>
    %85 = vector.broadcast %84 : vector<1x512xf32> to vector<32x512xf32>
    %86 = arith.mulf %83, %85 : vector<32x512xf32>
    %c0_88 = arith.constant 0 : index
    %c0_89 = arith.constant 0 : index
    %c0_90 = arith.constant 0 : index
    %87 = vector.load %arg6[%c0_88, %c0_89, %c0_90] : memref<1x32x3328xf32, #tpu.memory_space<vmem>>, vector<1x32x512xf32>
    %88 = vector.shape_cast %87 : vector<1x32x512xf32> to vector<32x512xf32>
    %89 = vector.shape_cast %86 : vector<32x512xf32> to vector<1x32x512xf32>
    tpu.vector_store %arg6[%c0_88, %c0_89, %c0_90], %89 {strides = array<i32>} : memref<1x32x3328xf32, #tpu.memory_space<vmem>>, vector<1x32x512xf32>,
    %c0_91 = arith.constant 0 : index
    %c0_92 = arith.constant 0 : index
    %c512 = arith.constant 512 : index
    %90 = vector.load %arg1[%c0_91, %c0_92, %c512] : memref<1x8x4096xbf16, #tpu.memory_space<vmem>>, vector<1x8x512xbf16>
    %91 = vector.shape_cast %90 : vector<1x8x512xbf16> to vector<8x512xbf16>
    %c0_93 = arith.constant 0 : index
    %c0_94 = arith.constant 0 : index
    %92 = vector.load %arg7[%c0_93, %c0_94] : memref<216x512xbf16, #tpu.memory_space<vmem>>, vector<8x512xbf16>
    tpu.vector_store %arg7[%c0_93, %c0_94], %91 {strides = array<i32>} : memref<216x512xbf16, #tpu.memory_space<vmem>>, vector<8x512xbf16>,
    %c0_95 = arith.constant 0 : index
    %c0_96 = arith.constant 0 : index
    %c513 = arith.constant 513 : index
    %93 = vector.load %arg1[%c0_95, %c0_96, %c513] : memref<1x8x4096xbf16, #tpu.memory_space<vmem>>, vector<1x8x512xbf16>
    %94 = vector.shape_cast %93 : vector<1x8x512xbf16> to vector<8x512xbf16>
    %c8_97 = arith.constant 8 : index
    %c0_98 = arith.constant 0 : index
    %95 = vector.load %arg7[%c8_97, %c0_98] : memref<216x512xbf16, #tpu.memory_space<vmem>>, vector<8x512xbf16>
    tpu.vector_store %arg7[%c8_97, %c0_98], %94 {strides = array<i32>} : memref<216x512xbf16, #tpu.memory_space<vmem>>, vector<8x512xbf16>,
    %c0_99 = arith.constant 0 : index
    %c0_100 = arith.constant 0 : index
    %c514 = arith.constant 514 : index
    %96 = vector.load %arg1[%c0_99, %c0_100, %c514] : memref<1x8x4096xbf16, #tpu.memory_space<vmem>>, vector<1x8x512xbf16>
    %97 = vector.shape_cast %96 : vector<1x8x512xbf16> to vector<8x512xbf16>
    %c16_101 = arith.constant 16 : index
    %c0_102 = arith.constant 0 : index
    %98 = vector.load %arg7[%c16_101, %c0_102] : memref<216x512xbf16, #tpu.memory_space<vmem>>, vector<8x512xbf16>
    tpu.vector_store %arg7[%c16_101, %c0_102], %97 {strides = array<i32>} : memref<216x512xbf16, #tpu.memory_space<vmem>>, vector<8x512xbf16>,
    %c0_103 = arith.constant 0 : index
    %c0_104 = arith.constant 0 : index
    %c530 = arith.constant 530 : index
    %99 = vector.load %arg1[%c0_103, %c0_104, %c530] : memref<1x8x4096xbf16, #tpu.memory_space<vmem>>, vector<1x8x512xbf16>
    %100 = vector.shape_cast %99 : vector<1x8x512xbf16> to vector<8x512xbf16>
    %c24_105 = arith.constant 24 : index
    %c0_106 = arith.constant 0 : index
    %101 = vector.load %arg7[%c24_105, %c0_106] : memref<216x512xbf16, #tpu.memory_space<vmem>>, vector<8x512xbf16>
    tpu.vector_store %arg7[%c24_105, %c0_106], %100 {strides = array<i32>} : memref<216x512xbf16, #tpu.memory_space<vmem>>, vector<8x512xbf16>,
    %c0_107 = arith.constant 0 : index
    %c0_108 = arith.constant 0 : index
    %c531 = arith.constant 531 : index
    %102 = vector.load %arg1[%c0_107, %c0_108, %c531] : memref<1x8x4096xbf16, #tpu.memory_space<vmem>>, vector<1x8x512xbf16>
    %103 = vector.shape_cast %102 : vector<1x8x512xbf16> to vector<8x512xbf16>
    %c32_109 = arith.constant 32 : index
    %c0_110 = arith.constant 0 : index
    %104 = vector.load %arg7[%c32_109, %c0_110] : memref<216x512xbf16, #tpu.memory_space<vmem>>, vector<8x512xbf16>
    tpu.vector_store %arg7[%c32_109, %c0_110], %103 {strides = array<i32>} : memref<216x512xbf16, #tpu.memory_space<vmem>>, vector<8x512xbf16>,
    %c0_111 = arith.constant 0 : index
    %c0_112 = arith.constant 0 : index
    %c532 = arith.constant 532 : index
    %105 = vector.load %arg1[%c0_111, %c0_112, %c532] : memref<1x8x4096xbf16, #tpu.memory_space<vmem>>, vector<1x8x512xbf16>
    %106 = vector.shape_cast %105 : vector<1x8x512xbf16> to vector<8x512xbf16>
    %c40_113 = arith.constant 40 : index
    %c0_114 = arith.constant 0 : index
    %107 = vector.load %arg7[%c40_113, %c0_114] : memref<216x512xbf16, #tpu.memory_space<vmem>>, vector<8x512xbf16>
    tpu.vector_store %arg7[%c40_113, %c0_114], %106 {strides = array<i32>} : memref<216x512xbf16, #tpu.memory_space<vmem>>, vector<8x512xbf16>,
    %c0_115 = arith.constant 0 : index
    %c0_116 = arith.constant 0 : index
    %c548 = arith.constant 548 : index
    %108 = vector.load %arg1[%c0_115, %c0_116, %c548] : memref<1x8x4096xbf16, #tpu.memory_space<vmem>>, vector<1x8x512xbf16>
    %109 = vector.shape_cast %108 : vector<1x8x512xbf16> to vector<8x512xbf16>
    %c48_117 = arith.constant 48 : index
    %c0_118 = arith.constant 0 : index
    %110 = vector.load %arg7[%c48_117, %c0_118] : memref<216x512xbf16, #tpu.memory_space<vmem>>, vector<8x512xbf16>
    tpu.vector_store %arg7[%c48_117, %c0_118], %109 {strides = array<i32>} : memref<216x512xbf16, #tpu.memory_space<vmem>>, vector<8x512xbf16>,
    %c0_119 = arith.constant 0 : index
    %c0_120 = arith.constant 0 : index
    %c549 = arith.constant 549 : index
    %111 = vector.load %arg1[%c0_119, %c0_120, %c549] : memref<1x8x4096xbf16, #tpu.memory_space<vmem>>, vector<1x8x512xbf16>
    %112 = vector.shape_cast %111 : vector<1x8x512xbf16> to vector<8x512xbf16>
    %c56_121 = arith.constant 56 : index
    %c0_122 = arith.constant 0 : index
    %113 = vector.load %arg7[%c56_121, %c0_122] : memref<216x512xbf16, #tpu.memory_space<vmem>>, vector<8x512xbf16>
    tpu.vector_store %arg7[%c56_121, %c0_122], %112 {strides = array<i32>} : memref<216x512xbf16, #tpu.memory_space<vmem>>, vector<8x512xbf16>,
    %c0_123 = arith.constant 0 : index
    %c0_124 = arith.constant 0 : index
    %c550 = arith.constant 550 : index
    %114 = vector.load %arg1[%c0_123, %c0_124, %c550] : memref<1x8x4096xbf16, #tpu.memory_space<vmem>>, vector<1x8x512xbf16>
    %115 = vector.shape_cast %114 : vector<1x8x512xbf16> to vector<8x512xbf16>
    %c64_125 = arith.constant 64 : index
    %c0_126 = arith.constant 0 : index
    %116 = vector.load %arg7[%c64_125, %c0_126] : memref<216x512xbf16, #tpu.memory_space<vmem>>, vector<8x512xbf16>
    tpu.vector_store %arg7[%c64_125, %c0_126], %115 {strides = array<i32>} : memref<216x512xbf16, #tpu.memory_space<vmem>>, vector<8x512xbf16>,
    %c0_127 = arith.constant 0 : index
    %c0_128 = arith.constant 0 : index
    %c836 = arith.constant 836 : index
    %117 = vector.load %arg1[%c0_127, %c0_128, %c836] : memref<1x8x4096xbf16, #tpu.memory_space<vmem>>, vector<1x8x512xbf16>
    %118 = vector.shape_cast %117 : vector<1x8x512xbf16> to vector<8x512xbf16>
    %c72_129 = arith.constant 72 : index
    %c0_130 = arith.constant 0 : index
    %119 = vector.load %arg7[%c72_129, %c0_130] : memref<216x512xbf16, #tpu.memory_space<vmem>>, vector<8x512xbf16>
    tpu.vector_store %arg7[%c72_129, %c0_130], %118 {strides = array<i32>} : memref<216x512xbf16, #tpu.memory_space<vmem>>, vector<8x512xbf16>,
    %c0_131 = arith.constant 0 : index
    %c0_132 = arith.constant 0 : index
    %c837 = arith.constant 837 : index
    %120 = vector.load %arg1[%c0_131, %c0_132, %c837] : memref<1x8x4096xbf16, #tpu.memory_space<vmem>>, vector<1x8x512xbf16>
    %121 = vector.shape_cast %120 : vector<1x8x512xbf16> to vector<8x512xbf16>
    %c80_133 = arith.constant 80 : index
    %c0_134 = arith.constant 0 : index
    %122 = vector.load %arg7[%c80_133, %c0_134] : memref<216x512xbf16, #tpu.memory_space<vmem>>, vector<8x512xbf16>
    tpu.vector_store %arg7[%c80_133, %c0_134], %121 {strides = array<i32>} : memref<216x512xbf16, #tpu.memory_space<vmem>>, vector<8x512xbf16>,
    %c0_135 = arith.constant 0 : index
    %c0_136 = arith.constant 0 : index
    %c838 = arith.constant 838 : index
    %123 = vector.load %arg1[%c0_135, %c0_136, %c838] : memref<1x8x4096xbf16, #tpu.memory_space<vmem>>, vector<1x8x512xbf16>
    %124 = vector.shape_cast %123 : vector<1x8x512xbf16> to vector<8x512xbf16>
    %c88_137 = arith.constant 88 : index
    %c0_138 = arith.constant 0 : index
    %125 = vector.load %arg7[%c88_137, %c0_138] : memref<216x512xbf16, #tpu.memory_space<vmem>>, vector<8x512xbf16>
    tpu.vector_store %arg7[%c88_137, %c0_138], %124 {strides = array<i32>} : memref<216x512xbf16, #tpu.memory_space<vmem>>, vector<8x512xbf16>,
    %c0_139 = arith.constant 0 : index
    %c0_140 = arith.constant 0 : index
    %c854 = arith.constant 854 : index
    %126 = vector.load %arg1[%c0_139, %c0_140, %c854] : memref<1x8x4096xbf16, #tpu.memory_space<vmem>>, vector<1x8x512xbf16>
    %127 = vector.shape_cast %126 : vector<1x8x512xbf16> to vector<8x512xbf16>
    %c96_141 = arith.constant 96 : index
    %c0_142 = arith.constant 0 : index
    %128 = vector.load %arg7[%c96_141, %c0_142] : memref<216x512xbf16, #tpu.memory_space<vmem>>, vector<8x512xbf16>
    tpu.vector_store %arg7[%c96_141, %c0_142], %127 {strides = array<i32>} : memref<216x512xbf16, #tpu.memory_space<vmem>>, vector<8x512xbf16>,
    %c0_143 = arith.constant 0 : index
    %c0_144 = arith.constant 0 : index
    %c855 = arith.constant 855 : index
    %129 = vector.load %arg1[%c0_143, %c0_144, %c855] : memref<1x8x4096xbf16, #tpu.memory_space<vmem>>, vector<1x8x512xbf16>
    %130 = vector.shape_cast %129 : vector<1x8x512xbf16> to vector<8x512xbf16>
    %c104_145 = arith.constant 104 : index
    %c0_146 = arith.constant 0 : index
    %131 = vector.load %arg7[%c104_145, %c0_146] : memref<216x512xbf16, #tpu.memory_space<vmem>>, vector<8x512xbf16>
    tpu.vector_store %arg7[%c104_145, %c0_146], %130 {strides = array<i32>} : memref<216x512xbf16, #tpu.memory_space<vmem>>, vector<8x512xbf16>,
    %c0_147 = arith.constant 0 : index
    %c0_148 = arith.constant 0 : index
    %c856 = arith.constant 856 : index
    %132 = vector.load %arg1[%c0_147, %c0_148, %c856] : memref<1x8x4096xbf16, #tpu.memory_space<vmem>>, vector<1x8x512xbf16>
    %133 = vector.shape_cast %132 : vector<1x8x512xbf16> to vector<8x512xbf16>
    %c112_149 = arith.constant 112 : index
    %c0_150 = arith.constant 0 : index
    %134 = vector.load %arg7[%c112_149, %c0_150] : memref<216x512xbf16, #tpu.memory_space<vmem>>, vector<8x512xbf16>
    tpu.vector_store %arg7[%c112_149, %c0_150], %133 {strides = array<i32>} : memref<216x512xbf16, #tpu.memory_space<vmem>>, vector<8x512xbf16>,
    %c0_151 = arith.constant 0 : index
    %c0_152 = arith.constant 0 : index
    %c872 = arith.constant 872 : index
    %135 = vector.load %arg1[%c0_151, %c0_152, %c872] : memref<1x8x4096xbf16, #tpu.memory_space<vmem>>, vector<1x8x512xbf16>
    %136 = vector.shape_cast %135 : vector<1x8x512xbf16> to vector<8x512xbf16>
    %c120_153 = arith.constant 120 : index
    %c0_154 = arith.constant 0 : index
    %137 = vector.load %arg7[%c120_153, %c0_154] : memref<216x512xbf16, #tpu.memory_space<vmem>>, vector<8x512xbf16>
    tpu.vector_store %arg7[%c120_153, %c0_154], %136 {strides = array<i32>} : memref<216x512xbf16, #tpu.memory_space<vmem>>, vector<8x512xbf16>,
    %c0_155 = arith.constant 0 : index
    %c0_156 = arith.constant 0 : index
    %c873 = arith.constant 873 : index
    %138 = vector.load %arg1[%c0_155, %c0_156, %c873] : memref<1x8x4096xbf16, #tpu.memory_space<vmem>>, vector<1x8x512xbf16>
    %139 = vector.shape_cast %138 : vector<1x8x512xbf16> to vector<8x512xbf16>
    %c128_157 = arith.constant 128 : index
    %c0_158 = arith.constant 0 : index
    %140 = vector.load %arg7[%c128_157, %c0_158] : memref<216x512xbf16, #tpu.memory_space<vmem>>, vector<8x512xbf16>
    tpu.vector_store %arg7[%c128_157, %c0_158], %139 {strides = array<i32>} : memref<216x512xbf16, #tpu.memory_space<vmem>>, vector<8x512xbf16>,
    %c0_159 = arith.constant 0 : index
    %c0_160 = arith.constant 0 : index
    %c874 = arith.constant 874 : index
    %141 = vector.load %arg1[%c0_159, %c0_160, %c874] : memref<1x8x4096xbf16, #tpu.memory_space<vmem>>, vector<1x8x512xbf16>
    %142 = vector.shape_cast %141 : vector<1x8x512xbf16> to vector<8x512xbf16>
    %c136_161 = arith.constant 136 : index
    %c0_162 = arith.constant 0 : index
    %143 = vector.load %arg7[%c136_161, %c0_162] : memref<216x512xbf16, #tpu.memory_space<vmem>>, vector<8x512xbf16>
    tpu.vector_store %arg7[%c136_161, %c0_162], %142 {strides = array<i32>} : memref<216x512xbf16, #tpu.memory_space<vmem>>, vector<8x512xbf16>,
    %c0_163 = arith.constant 0 : index
    %c0_164 = arith.constant 0 : index
    %c1160 = arith.constant 1160 : index
    %144 = vector.load %arg1[%c0_163, %c0_164, %c1160] : memref<1x8x4096xbf16, #tpu.memory_space<vmem>>, vector<1x8x512xbf16>
    %145 = vector.shape_cast %144 : vector<1x8x512xbf16> to vector<8x512xbf16>
    %c144_165 = arith.constant 144 : index
    %c0_166 = arith.constant 0 : index
    %146 = vector.load %arg7[%c144_165, %c0_166] : memref<216x512xbf16, #tpu.memory_space<vmem>>, vector<8x512xbf16>
    tpu.vector_store %arg7[%c144_165, %c0_166], %145 {strides = array<i32>} : memref<216x512xbf16, #tpu.memory_space<vmem>>, vector<8x512xbf16>,
    %c0_167 = arith.constant 0 : index
    %c0_168 = arith.constant 0 : index
    %c1161 = arith.constant 1161 : index
    %147 = vector.load %arg1[%c0_167, %c0_168, %c1161] : memref<1x8x4096xbf16, #tpu.memory_space<vmem>>, vector<1x8x512xbf16>
    %148 = vector.shape_cast %147 : vector<1x8x512xbf16> to vector<8x512xbf16>
    %c152_169 = arith.constant 152 : index
    %c0_170 = arith.constant 0 : index
    %149 = vector.load %arg7[%c152_169, %c0_170] : memref<216x512xbf16, #tpu.memory_space<vmem>>, vector<8x512xbf16>
    tpu.vector_store %arg7[%c152_169, %c0_170], %148 {strides = array<i32>} : memref<216x512xbf16, #tpu.memory_space<vmem>>, vector<8x512xbf16>,
    %c0_171 = arith.constant 0 : index
    %c0_172 = arith.constant 0 : index
    %c1162 = arith.constant 1162 : index
    %150 = vector.load %arg1[%c0_171, %c0_172, %c1162] : memref<1x8x4096xbf16, #tpu.memory_space<vmem>>, vector<1x8x512xbf16>
    %151 = vector.shape_cast %150 : vector<1x8x512xbf16> to vector<8x512xbf16>
    %c160_173 = arith.constant 160 : index
    %c0_174 = arith.constant 0 : index
    %152 = vector.load %arg7[%c160_173, %c0_174] : memref<216x512xbf16, #tpu.memory_space<vmem>>, vector<8x512xbf16>
    tpu.vector_store %arg7[%c160_173, %c0_174], %151 {strides = array<i32>} : memref<216x512xbf16, #tpu.memory_space<vmem>>, vector<8x512xbf16>,
    %c0_175 = arith.constant 0 : index
    %c0_176 = arith.constant 0 : index
    %c1178 = arith.constant 1178 : index
    %153 = vector.load %arg1[%c0_175, %c0_176, %c1178] : memref<1x8x4096xbf16, #tpu.memory_space<vmem>>, vector<1x8x512xbf16>
    %154 = vector.shape_cast %153 : vector<1x8x512xbf16> to vector<8x512xbf16>
    %c168_177 = arith.constant 168 : index
    %c0_178 = arith.constant 0 : index
    %155 = vector.load %arg7[%c168_177, %c0_178] : memref<216x512xbf16, #tpu.memory_space<vmem>>, vector<8x512xbf16>
    tpu.vector_store %arg7[%c168_177, %c0_178], %154 {strides = array<i32>} : memref<216x512xbf16, #tpu.memory_space<vmem>>, vector<8x512xbf16>,
    %c0_179 = arith.constant 0 : index
    %c0_180 = arith.constant 0 : index
    %c1179 = arith.constant 1179 : index
    %156 = vector.load %arg1[%c0_179, %c0_180, %c1179] : memref<1x8x4096xbf16, #tpu.memory_space<vmem>>, vector<1x8x512xbf16>
    %157 = vector.shape_cast %156 : vector<1x8x512xbf16> to vector<8x512xbf16>
    %c176_181 = arith.constant 176 : index
    %c0_182 = arith.constant 0 : index
    %158 = vector.load %arg7[%c176_181, %c0_182] : memref<216x512xbf16, #tpu.memory_space<vmem>>, vector<8x512xbf16>
    tpu.vector_store %arg7[%c176_181, %c0_182], %157 {strides = array<i32>} : memref<216x512xbf16, #tpu.memory_space<vmem>>, vector<8x512xbf16>,
    %c0_183 = arith.constant 0 : index
    %c0_184 = arith.constant 0 : index
    %c1180 = arith.constant 1180 : index
    %159 = vector.load %arg1[%c0_183, %c0_184, %c1180] : memref<1x8x4096xbf16, #tpu.memory_space<vmem>>, vector<1x8x512xbf16>
    %160 = vector.shape_cast %159 : vector<1x8x512xbf16> to vector<8x512xbf16>
    %c184_185 = arith.constant 184 : index
    %c0_186 = arith.constant 0 : index
    %161 = vector.load %arg7[%c184_185, %c0_186] : memref<216x512xbf16, #tpu.memory_space<vmem>>, vector<8x512xbf16>
    tpu.vector_store %arg7[%c184_185, %c0_186], %160 {strides = array<i32>} : memref<216x512xbf16, #tpu.memory_space<vmem>>, vector<8x512xbf16>,
    %c0_187 = arith.constant 0 : index
    %c0_188 = arith.constant 0 : index
    %c1196 = arith.constant 1196 : index
    %162 = vector.load %arg1[%c0_187, %c0_188, %c1196] : memref<1x8x4096xbf16, #tpu.memory_space<vmem>>, vector<1x8x512xbf16>
    %163 = vector.shape_cast %162 : vector<1x8x512xbf16> to vector<8x512xbf16>
    %c192_189 = arith.constant 192 : index
    %c0_190 = arith.constant 0 : index
    %164 = vector.load %arg7[%c192_189, %c0_190] : memref<216x512xbf16, #tpu.memory_space<vmem>>, vector<8x512xbf16>
    tpu.vector_store %arg7[%c192_189, %c0_190], %163 {strides = array<i32>} : memref<216x512xbf16, #tpu.memory_space<vmem>>, vector<8x512xbf16>,
    %c0_191 = arith.constant 0 : index
    %c0_192 = arith.constant 0 : index
    %c1197 = arith.constant 1197 : index
    %165 = vector.load %arg1[%c0_191, %c0_192, %c1197] : memref<1x8x4096xbf16, #tpu.memory_space<vmem>>, vector<1x8x512xbf16>
    %166 = vector.shape_cast %165 : vector<1x8x512xbf16> to vector<8x512xbf16>
    %c200_193 = arith.constant 200 : index
    %c0_194 = arith.constant 0 : index
    %167 = vector.load %arg7[%c200_193, %c0_194] : memref<216x512xbf16, #tpu.memory_space<vmem>>, vector<8x512xbf16>
    tpu.vector_store %arg7[%c200_193, %c0_194], %166 {strides = array<i32>} : memref<216x512xbf16, #tpu.memory_space<vmem>>, vector<8x512xbf16>,
    %c0_195 = arith.constant 0 : index
    %c0_196 = arith.constant 0 : index
    %c1198 = arith.constant 1198 : index
    %168 = vector.load %arg1[%c0_195, %c0_196, %c1198] : memref<1x8x4096xbf16, #tpu.memory_space<vmem>>, vector<1x8x512xbf16>
    %169 = vector.shape_cast %168 : vector<1x8x512xbf16> to vector<8x512xbf16>
    %c208_197 = arith.constant 208 : index
    %c0_198 = arith.constant 0 : index
    %170 = vector.load %arg7[%c208_197, %c0_198] : memref<216x512xbf16, #tpu.memory_space<vmem>>, vector<8x512xbf16>
    tpu.vector_store %arg7[%c208_197, %c0_198], %169 {strides = array<i32>} : memref<216x512xbf16, #tpu.memory_space<vmem>>, vector<8x512xbf16>,
    %c0_199 = arith.constant 0 : index
    %c0_200 = arith.constant 0 : index
    %171 = vector.load %arg7[%c0_199, %c0_200] : memref<216x512xbf16, #tpu.memory_space<vmem>>, vector<216x512xbf16>
    %cst_201 = arith.constant dense<0.000000e+00> : vector<32x512xf32>
    %172 = tpu.matmul %0, %171, %cst_201 {dimension_numbers = #tpu.dot_dimension_numbers<[1], [0], [0], [1], [0, 0, 1, 1], [], []>} : vector<32x216xbf16>, vector<216x512xbf16>, vector<32x512xf32> -> vector<32x512xf32>
    %c0_202 = arith.constant 0 : index
    %c512_203 = arith.constant 512 : index
    %173 = vector.load %arg5[%c0_202, %c512_203] : memref<1x3328xf32, #tpu.memory_space<vmem>>, vector<1x512xf32>
    %174 = vector.broadcast %173 : vector<1x512xf32> to vector<32x512xf32>
    %175 = arith.mulf %172, %174 : vector<32x512xf32>
    %c0_204 = arith.constant 0 : index
    %c0_205 = arith.constant 0 : index
    %c512_206 = arith.constant 512 : index
    %176 = vector.load %arg6[%c0_204, %c0_205, %c512_206] : memref<1x32x3328xf32, #tpu.memory_space<vmem>>, vector<1x32x512xf32>
    %177 = vector.shape_cast %176 : vector<1x32x512xf32> to vector<32x512xf32>
    %178 = vector.shape_cast %175 : vector<32x512xf32> to vector<1x32x512xf32>
    tpu.vector_store %arg6[%c0_204, %c0_205, %c512_206], %178 {strides = array<i32>} : memref<1x32x3328xf32, #tpu.memory_space<vmem>>, vector<1x32x512xf32>,
    %c0_207 = arith.constant 0 : index
    %c0_208 = arith.constant 0 : index
    %c1024 = arith.constant 1024 : index
    %179 = vector.load %arg1[%c0_207, %c0_208, %c1024] : memref<1x8x4096xbf16, #tpu.memory_space<vmem>>, vector<1x8x512xbf16>
    %180 = vector.shape_cast %179 : vector<1x8x512xbf16> to vector<8x512xbf16>
    %c0_209 = arith.constant 0 : index
    %c0_210 = arith.constant 0 : index
    %181 = vector.load %arg7[%c0_209, %c0_210] : memref<216x512xbf16, #tpu.memory_space<vmem>>, vector<8x512xbf16>
    tpu.vector_store %arg7[%c0_209, %c0_210], %180 {strides = array<i32>} : memref<216x512xbf16, #tpu.memory_space<vmem>>, vector<8x512xbf16>,
    %c0_211 = arith.constant 0 : index
    %c0_212 = arith.constant 0 : index
    %c1025 = arith.constant 1025 : index
    %182 = vector.load %arg1[%c0_211, %c0_212, %c1025] : memref<1x8x4096xbf16, #tpu.memory_space<vmem>>, vector<1x8x512xbf16>
    %183 = vector.shape_cast %182 : vector<1x8x512xbf16> to vector<8x512xbf16>
    %c8_213 = arith.constant 8 : index
    %c0_214 = arith.constant 0 : index
    %184 = vector.load %arg7[%c8_213, %c0_214] : memref<216x512xbf16, #tpu.memory_space<vmem>>, vector<8x512xbf16>
    tpu.vector_store %arg7[%c8_213, %c0_214], %183 {strides = array<i32>} : memref<216x512xbf16, #tpu.memory_space<vmem>>, vector<8x512xbf16>,
    %c0_215 = arith.constant 0 : index
    %c0_216 = arith.constant 0 : index
    %c1026 = arith.constant 1026 : index
    %185 = vector.load %arg1[%c0_215, %c0_216, %c1026] : memref<1x8x4096xbf16, #tpu.memory_space<vmem>>, vector<1x8x512xbf16>
    %186 = vector.shape_cast %185 : vector<1x8x512xbf16> to vector<8x512xbf16>
    %c16_217 = arith.constant 16 : index
    %c0_218 = arith.constant 0 : index
    %187 = vector.load %arg7[%c16_217, %c0_218] : memref<216x512xbf16, #tpu.memory_space<vmem>>, vector<8x512xbf16>
    tpu.vector_store %arg7[%c16_217, %c0_218], %186 {strides = array<i32>} : memref<216x512xbf16, #tpu.memory_space<vmem>>, vector<8x512xbf16>,
    %c0_219 = arith.constant 0 : index
    %c0_220 = arith.constant 0 : index
    %c1042 = arith.constant 1042 : index
    %188 = vector.load %arg1[%c0_219, %c0_220, %c1042] : memref<1x8x4096xbf16, #tpu.memory_space<vmem>>, vector<1x8x512xbf16>
    %189 = vector.shape_cast %188 : vector<1x8x512xbf16> to vector<8x512xbf16>
    %c24_221 = arith.constant 24 : index
    %c0_222 = arith.constant 0 : index
    %190 = vector.load %arg7[%c24_221, %c0_222] : memref<216x512xbf16, #tpu.memory_space<vmem>>, vector<8x512xbf16>
    tpu.vector_store %arg7[%c24_221, %c0_222], %189 {strides = array<i32>} : memref<216x512xbf16, #tpu.memory_space<vmem>>, vector<8x512xbf16>,
    %c0_223 = arith.constant 0 : index
    %c0_224 = arith.constant 0 : index
    %c1043 = arith.constant 1043 : index
    %191 = vector.load %arg1[%c0_223, %c0_224, %c1043] : memref<1x8x4096xbf16, #tpu.memory_space<vmem>>, vector<1x8x512xbf16>
    %192 = vector.shape_cast %191 : vector<1x8x512xbf16> to vector<8x512xbf16>
    %c32_225 = arith.constant 32 : index
    %c0_226 = arith.constant 0 : index
    %193 = vector.load %arg7[%c32_225, %c0_226] : memref<216x512xbf16, #tpu.memory_space<vmem>>, vector<8x512xbf16>
    tpu.vector_store %arg7[%c32_225, %c0_226], %192 {strides = array<i32>} : memref<216x512xbf16, #tpu.memory_space<vmem>>, vector<8x512xbf16>,
    %c0_227 = arith.constant 0 : index
    %c0_228 = arith.constant 0 : index
    %c1044 = arith.constant 1044 : index
    %194 = vector.load %arg1[%c0_227, %c0_228, %c1044] : memref<1x8x4096xbf16, #tpu.memory_space<vmem>>, vector<1x8x512xbf16>
    %195 = vector.shape_cast %194 : vector<1x8x512xbf16> to vector<8x512xbf16>
    %c40_229 = arith.constant 40 : index
    %c0_230 = arith.constant 0 : index
    %196 = vector.load %arg7[%c40_229, %c0_230] : memref<216x512xbf16, #tpu.memory_space<vmem>>, vector<8x512xbf16>
    tpu.vector_store %arg7[%c40_229, %c0_230], %195 {strides = array<i32>} : memref<216x512xbf16, #tpu.memory_space<vmem>>, vector<8x512xbf16>,
    %c0_231 = arith.constant 0 : index
    %c0_232 = arith.constant 0 : index
    %c1060 = arith.constant 1060 : index
    %197 = vector.load %arg1[%c0_231, %c0_232, %c1060] : memref<1x8x4096xbf16, #tpu.memory_space<vmem>>, vector<1x8x512xbf16>
    %198 = vector.shape_cast %197 : vector<1x8x512xbf16> to vector<8x512xbf16>
    %c48_233 = arith.constant 48 : index
    %c0_234 = arith.constant 0 : index
    %199 = vector.load %arg7[%c48_233, %c0_234] : memref<216x512xbf16, #tpu.memory_space<vmem>>, vector<8x512xbf16>
    tpu.vector_store %arg7[%c48_233, %c0_234], %198 {strides = array<i32>} : memref<216x512xbf16, #tpu.memory_space<vmem>>, vector<8x512xbf16>,
    %c0_235 = arith.constant 0 : index
    %c0_236 = arith.constant 0 : index
    %c1061 = arith.constant 1061 : index
    %200 = vector.load %arg1[%c0_235, %c0_236, %c1061] : memref<1x8x4096xbf16, #tpu.memory_space<vmem>>, vector<1x8x512xbf16>
    %201 = vector.shape_cast %200 : vector<1x8x512xbf16> to vector<8x512xbf16>
    %c56_237 = arith.constant 56 : index
    %c0_238 = arith.constant 0 : index
    %202 = vector.load %arg7[%c56_237, %c0_238] : memref<216x512xbf16, #tpu.memory_space<vmem>>, vector<8x512xbf16>
    tpu.vector_store %arg7[%c56_237, %c0_238], %201 {strides = array<i32>} : memref<216x512xbf16, #tpu.memory_space<vmem>>, vector<8x512xbf16>,
    %c0_239 = arith.constant 0 : index
    %c0_240 = arith.constant 0 : index
    %c1062 = arith.constant 1062 : index
    %203 = vector.load %arg1[%c0_239, %c0_240, %c1062] : memref<1x8x4096xbf16, #tpu.memory_space<vmem>>, vector<1x8x512xbf16>
    %204 = vector.shape_cast %203 : vector<1x8x512xbf16> to vector<8x512xbf16>
    %c64_241 = arith.constant 64 : index
    %c0_242 = arith.constant 0 : index
    %205 = vector.load %arg7[%c64_241, %c0_242] : memref<216x512xbf16, #tpu.memory_space<vmem>>, vector<8x512xbf16>
    tpu.vector_store %arg7[%c64_241, %c0_242], %204 {strides = array<i32>} : memref<216x512xbf16, #tpu.memory_space<vmem>>, vector<8x512xbf16>,
    %c0_243 = arith.constant 0 : index
    %c0_244 = arith.constant 0 : index
    %c1348 = arith.constant 1348 : index
    %206 = vector.load %arg1[%c0_243, %c0_244, %c1348] : memref<1x8x4096xbf16, #tpu.memory_space<vmem>>, vector<1x8x512xbf16>
    %207 = vector.shape_cast %206 : vector<1x8x512xbf16> to vector<8x512xbf16>
    %c72_245 = arith.constant 72 : index
    %c0_246 = arith.constant 0 : index
    %208 = vector.load %arg7[%c72_245, %c0_246] : memref<216x512xbf16, #tpu.memory_space<vmem>>, vector<8x512xbf16>
    tpu.vector_store %arg7[%c72_245, %c0_246], %207 {strides = array<i32>} : memref<216x512xbf16, #tpu.memory_space<vmem>>, vector<8x512xbf16>,
    %c0_247 = arith.constant 0 : index
    %c0_248 = arith.constant 0 : index
    %c1349 = arith.constant 1349 : index
    %209 = vector.load %arg1[%c0_247, %c0_248, %c1349] : memref<1x8x4096xbf16, #tpu.memory_space<vmem>>, vector<1x8x512xbf16>
    %210 = vector.shape_cast %209 : vector<1x8x512xbf16> to vector<8x512xbf16>
    %c80_249 = arith.constant 80 : index
    %c0_250 = arith.constant 0 : index
    %211 = vector.load %arg7[%c80_249, %c0_250] : memref<216x512xbf16, #tpu.memory_space<vmem>>, vector<8x512xbf16>
    tpu.vector_store %arg7[%c80_249, %c0_250], %210 {strides = array<i32>} : memref<216x512xbf16, #tpu.memory_space<vmem>>, vector<8x512xbf16>,
    %c0_251 = arith.constant 0 : index
    %c0_252 = arith.constant 0 : index
    %c1350 = arith.constant 1350 : index
    %212 = vector.load %arg1[%c0_251, %c0_252, %c1350] : memref<1x8x4096xbf16, #tpu.memory_space<vmem>>, vector<1x8x512xbf16>
    %213 = vector.shape_cast %212 : vector<1x8x512xbf16> to vector<8x512xbf16>
    %c88_253 = arith.constant 88 : index
    %c0_254 = arith.constant 0 : index
    %214 = vector.load %arg7[%c88_253, %c0_254] : memref<216x512xbf16, #tpu.memory_space<vmem>>, vector<8x512xbf16>
    tpu.vector_store %arg7[%c88_253, %c0_254], %213 {strides = array<i32>} : memref<216x512xbf16, #tpu.memory_space<vmem>>, vector<8x512xbf16>,
    %c0_255 = arith.constant 0 : index
    %c0_256 = arith.constant 0 : index
    %c1366 = arith.constant 1366 : index
    %215 = vector.load %arg1[%c0_255, %c0_256, %c1366] : memref<1x8x4096xbf16, #tpu.memory_space<vmem>>, vector<1x8x512xbf16>
    %216 = vector.shape_cast %215 : vector<1x8x512xbf16> to vector<8x512xbf16>
    %c96_257 = arith.constant 96 : index
    %c0_258 = arith.constant 0 : index
    %217 = vector.load %arg7[%c96_257, %c0_258] : memref<216x512xbf16, #tpu.memory_space<vmem>>, vector<8x512xbf16>
    tpu.vector_store %arg7[%c96_257, %c0_258], %216 {strides = array<i32>} : memref<216x512xbf16, #tpu.memory_space<vmem>>, vector<8x512xbf16>,
    %c0_259 = arith.constant 0 : index
    %c0_260 = arith.constant 0 : index
    %c1367 = arith.constant 1367 : index
    %218 = vector.load %arg1[%c0_259, %c0_260, %c1367] : memref<1x8x4096xbf16, #tpu.memory_space<vmem>>, vector<1x8x512xbf16>
    %219 = vector.shape_cast %218 : vector<1x8x512xbf16> to vector<8x512xbf16>
    %c104_261 = arith.constant 104 : index
    %c0_262 = arith.constant 0 : index
    %220 = vector.load %arg7[%c104_261, %c0_262] : memref<216x512xbf16, #tpu.memory_space<vmem>>, vector<8x512xbf16>
    tpu.vector_store %arg7[%c104_261, %c0_262], %219 {strides = array<i32>} : memref<216x512xbf16, #tpu.memory_space<vmem>>, vector<8x512xbf16>,
    %c0_263 = arith.constant 0 : index
    %c0_264 = arith.constant 0 : index
    %c1368 = arith.constant 1368 : index
    %221 = vector.load %arg1[%c0_263, %c0_264, %c1368] : memref<1x8x4096xbf16, #tpu.memory_space<vmem>>, vector<1x8x512xbf16>
    %222 = vector.shape_cast %221 : vector<1x8x512xbf16> to vector<8x512xbf16>
    %c112_265 = arith.constant 112 : index
    %c0_266 = arith.constant 0 : index
    %223 = vector.load %arg7[%c112_265, %c0_266] : memref<216x512xbf16, #tpu.memory_space<vmem>>, vector<8x512xbf16>
    tpu.vector_store %arg7[%c112_265, %c0_266], %222 {strides = array<i32>} : memref<216x512xbf16, #tpu.memory_space<vmem>>, vector<8x512xbf16>,
    %c0_267 = arith.constant 0 : index
    %c0_268 = arith.constant 0 : index
    %c1384 = arith.constant 1384 : index
    %224 = vector.load %arg1[%c0_267, %c0_268, %c1384] : memref<1x8x4096xbf16, #tpu.memory_space<vmem>>, vector<1x8x512xbf16>
    %225 = vector.shape_cast %224 : vector<1x8x512xbf16> to vector<8x512xbf16>
    %c120_269 = arith.constant 120 : index
    %c0_270 = arith.constant 0 : index
    %226 = vector.load %arg7[%c120_269, %c0_270] : memref<216x512xbf16, #tpu.memory_space<vmem>>, vector<8x512xbf16>
    tpu.vector_store %arg7[%c120_269, %c0_270], %225 {strides = array<i32>} : memref<216x512xbf16, #tpu.memory_space<vmem>>, vector<8x512xbf16>,
    %c0_271 = arith.constant 0 : index
    %c0_272 = arith.constant 0 : index
    %c1385 = arith.constant 1385 : index
    %227 = vector.load %arg1[%c0_271, %c0_272, %c1385] : memref<1x8x4096xbf16, #tpu.memory_space<vmem>>, vector<1x8x512xbf16>
    %228 = vector.shape_cast %227 : vector<1x8x512xbf16> to vector<8x512xbf16>
    %c128_273 = arith.constant 128 : index
    %c0_274 = arith.constant 0 : index
    %229 = vector.load %arg7[%c128_273, %c0_274] : memref<216x512xbf16, #tpu.memory_space<vmem>>, vector<8x512xbf16>
    tpu.vector_store %arg7[%c128_273, %c0_274], %228 {strides = array<i32>} : memref<216x512xbf16, #tpu.memory_space<vmem>>, vector<8x512xbf16>,
    %c0_275 = arith.constant 0 : index
    %c0_276 = arith.constant 0 : index
    %c1386 = arith.constant 1386 : index
    %230 = vector.load %arg1[%c0_275, %c0_276, %c1386] : memref<1x8x4096xbf16, #tpu.memory_space<vmem>>, vector<1x8x512xbf16>
    %231 = vector.shape_cast %230 : vector<1x8x512xbf16> to vector<8x512xbf16>
    %c136_277 = arith.constant 136 : index
    %c0_278 = arith.constant 0 : index
    %232 = vector.load %arg7[%c136_277, %c0_278] : memref<216x512xbf16, #tpu.memory_space<vmem>>, vector<8x512xbf16>
    tpu.vector_store %arg7[%c136_277, %c0_278], %231 {strides = array<i32>} : memref<216x512xbf16, #tpu.memory_space<vmem>>, vector<8x512xbf16>,
    %c0_279 = arith.constant 0 : index
    %c0_280 = arith.constant 0 : index
    %c1672 = arith.constant 1672 : index
    %233 = vector.load %arg1[%c0_279, %c0_280, %c1672] : memref<1x8x4096xbf16, #tpu.memory_space<vmem>>, vector<1x8x512xbf16>
    %234 = vector.shape_cast %233 : vector<1x8x512xbf16> to vector<8x512xbf16>
    %c144_281 = arith.constant 144 : index
    %c0_282 = arith.constant 0 : index
    %235 = vector.load %arg7[%c144_281, %c0_282] : memref<216x512xbf16, #tpu.memory_space<vmem>>, vector<8x512xbf16>
    tpu.vector_store %arg7[%c144_281, %c0_282], %234 {strides = array<i32>} : memref<216x512xbf16, #tpu.memory_space<vmem>>, vector<8x512xbf16>,
    %c0_283 = arith.constant 0 : index
    %c0_284 = arith.constant 0 : index
    %c1673 = arith.constant 1673 : index
    %236 = vector.load %arg1[%c0_283, %c0_284, %c1673] : memref<1x8x4096xbf16, #tpu.memory_space<vmem>>, vector<1x8x512xbf16>
    %237 = vector.shape_cast %236 : vector<1x8x512xbf16> to vector<8x512xbf16>
    %c152_285 = arith.constant 152 : index
    %c0_286 = arith.constant 0 : index
    %238 = vector.load %arg7[%c152_285, %c0_286] : memref<216x512xbf16, #tpu.memory_space<vmem>>, vector<8x512xbf16>
    tpu.vector_store %arg7[%c152_285, %c0_286], %237 {strides = array<i32>} : memref<216x512xbf16, #tpu.memory_space<vmem>>, vector<8x512xbf16>,
    %c0_287 = arith.constant 0 : index
    %c0_288 = arith.constant 0 : index
    %c1674 = arith.constant 1674 : index
    %239 = vector.load %arg1[%c0_287, %c0_288, %c1674] : memref<1x8x4096xbf16, #tpu.memory_space<vmem>>, vector<1x8x512xbf16>
    %240 = vector.shape_cast %239 : vector<1x8x512xbf16> to vector<8x512xbf16>
    %c160_289 = arith.constant 160 : index
    %c0_290 = arith.constant 0 : index
    %241 = vector.load %arg7[%c160_289, %c0_290] : memref<216x512xbf16, #tpu.memory_space<vmem>>, vector<8x512xbf16>
    tpu.vector_store %arg7[%c160_289, %c0_290], %240 {strides = array<i32>} : memref<216x512xbf16, #tpu.memory_space<vmem>>, vector<8x512xbf16>,
    %c0_291 = arith.constant 0 : index
    %c0_292 = arith.constant 0 : index
    %c1690 = arith.constant 1690 : index
    %242 = vector.load %arg1[%c0_291, %c0_292, %c1690] : memref<1x8x4096xbf16, #tpu.memory_space<vmem>>, vector<1x8x512xbf16>
    %243 = vector.shape_cast %242 : vector<1x8x512xbf16> to vector<8x512xbf16>
    %c168_293 = arith.constant 168 : index
    %c0_294 = arith.constant 0 : index
    %244 = vector.load %arg7[%c168_293, %c0_294] : memref<216x512xbf16, #tpu.memory_space<vmem>>, vector<8x512xbf16>
    tpu.vector_store %arg7[%c168_293, %c0_294], %243 {strides = array<i32>} : memref<216x512xbf16, #tpu.memory_space<vmem>>, vector<8x512xbf16>,
    %c0_295 = arith.constant 0 : index
    %c0_296 = arith.constant 0 : index
    %c1691 = arith.constant 1691 : index
    %245 = vector.load %arg1[%c0_295, %c0_296, %c1691] : memref<1x8x4096xbf16, #tpu.memory_space<vmem>>, vector<1x8x512xbf16>
    %246 = vector.shape_cast %245 : vector<1x8x512xbf16> to vector<8x512xbf16>
    %c176_297 = arith.constant 176 : index
    %c0_298 = arith.constant 0 : index
    %247 = vector.load %arg7[%c176_297, %c0_298] : memref<216x512xbf16, #tpu.memory_space<vmem>>, vector<8x512xbf16>
    tpu.vector_store %arg7[%c176_297, %c0_298], %246 {strides = array<i32>} : memref<216x512xbf16, #tpu.memory_space<vmem>>, vector<8x512xbf16>,
    %c0_299 = arith.constant 0 : index
    %c0_300 = arith.constant 0 : index
    %c1692 = arith.constant 1692 : index
    %248 = vector.load %arg1[%c0_299, %c0_300, %c1692] : memref<1x8x4096xbf16, #tpu.memory_space<vmem>>, vector<1x8x512xbf16>
    %249 = vector.shape_cast %248 : vector<1x8x512xbf16> to vector<8x512xbf16>
    %c184_301 = arith.constant 184 : index
    %c0_302 = arith.constant 0 : index
    %250 = vector.load %arg7[%c184_301, %c0_302] : memref<216x512xbf16, #tpu.memory_space<vmem>>, vector<8x512xbf16>
    tpu.vector_store %arg7[%c184_301, %c0_302], %249 {strides = array<i32>} : memref<216x512xbf16, #tpu.memory_space<vmem>>, vector<8x512xbf16>,
    %c0_303 = arith.constant 0 : index
    %c0_304 = arith.constant 0 : index
    %c1708 = arith.constant 1708 : index
    %251 = vector.load %arg1[%c0_303, %c0_304, %c1708] : memref<1x8x4096xbf16, #tpu.memory_space<vmem>>, vector<1x8x512xbf16>
    %252 = vector.shape_cast %251 : vector<1x8x512xbf16> to vector<8x512xbf16>
    %c192_305 = arith.constant 192 : index
    %c0_306 = arith.constant 0 : index
    %253 = vector.load %arg7[%c192_305, %c0_306] : memref<216x512xbf16, #tpu.memory_space<vmem>>, vector<8x512xbf16>
    tpu.vector_store %arg7[%c192_305, %c0_306], %252 {strides = array<i32>} : memref<216x512xbf16, #tpu.memory_space<vmem>>, vector<8x512xbf16>,
    %c0_307 = arith.constant 0 : index
    %c0_308 = arith.constant 0 : index
    %c1709 = arith.constant 1709 : index
    %254 = vector.load %arg1[%c0_307, %c0_308, %c1709] : memref<1x8x4096xbf16, #tpu.memory_space<vmem>>, vector<1x8x512xbf16>
    %255 = vector.shape_cast %254 : vector<1x8x512xbf16> to vector<8x512xbf16>
    %c200_309 = arith.constant 200 : index
    %c0_310 = arith.constant 0 : index
    %256 = vector.load %arg7[%c200_309, %c0_310] : memref<216x512xbf16, #tpu.memory_space<vmem>>, vector<8x512xbf16>
    tpu.vector_store %arg7[%c200_309, %c0_310], %255 {strides = array<i32>} : memref<216x512xbf16, #tpu.memory_space<vmem>>, vector<8x512xbf16>,
    %c0_311 = arith.constant 0 : index
    %c0_312 = arith.constant 0 : index
    %c1710 = arith.constant 1710 : index
    %257 = vector.load %arg1[%c0_311, %c0_312, %c1710] : memref<1x8x4096xbf16, #tpu.memory_space<vmem>>, vector<1x8x512xbf16>
    %258 = vector.shape_cast %257 : vector<1x8x512xbf16> to vector<8x512xbf16>
    %c208_313 = arith.constant 208 : index
    %c0_314 = arith.constant 0 : index
    %259 = vector.load %arg7[%c208_313, %c0_314] : memref<216x512xbf16, #tpu.memory_space<vmem>>, vector<8x512xbf16>
    tpu.vector_store %arg7[%c208_313, %c0_314], %258 {strides = array<i32>} : memref<216x512xbf16, #tpu.memory_space<vmem>>, vector<8x512xbf16>,
    %c0_315 = arith.constant 0 : index
    %c0_316 = arith.constant 0 : index
    %260 = vector.load %arg7[%c0_315, %c0_316] : memref<216x512xbf16, #tpu.memory_space<vmem>>, vector<216x512xbf16>
    %cst_317 = arith.constant dense<0.000000e+00> : vector<32x512xf32>
    %261 = tpu.matmul %0, %260, %cst_317 {dimension_numbers = #tpu.dot_dimension_numbers<[1], [0], [0], [1], [0, 0, 1, 1], [], []>} : vector<32x216xbf16>, vector<216x512xbf16>, vector<32x512xf32> -> vector<32x512xf32>
    %c0_318 = arith.constant 0 : index
    %c1024_319 = arith.constant 1024 : index
    %262 = vector.load %arg5[%c0_318, %c1024_319] : memref<1x3328xf32, #tpu.memory_space<vmem>>, vector<1x512xf32>
    %263 = vector.broadcast %262 : vector<1x512xf32> to vector<32x512xf32>
    %264 = arith.mulf %261, %263 : vector<32x512xf32>
    %c0_320 = arith.constant 0 : index
    %c0_321 = arith.constant 0 : index
    %c1024_322 = arith.constant 1024 : index
    %265 = vector.load %arg6[%c0_320, %c0_321, %c1024_322] : memref<1x32x3328xf32, #tpu.memory_space<vmem>>, vector<1x32x512xf32>
    %266 = vector.shape_cast %265 : vector<1x32x512xf32> to vector<32x512xf32>
    %267 = vector.shape_cast %264 : vector<32x512xf32> to vector<1x32x512xf32>
    tpu.vector_store %arg6[%c0_320, %c0_321, %c1024_322], %267 {strides = array<i32>} : memref<1x32x3328xf32, #tpu.memory_space<vmem>>, vector<1x32x512xf32>,
    %c0_323 = arith.constant 0 : index
    %c0_324 = arith.constant 0 : index
    %c1536 = arith.constant 1536 : index
    %268 = vector.load %arg1[%c0_323, %c0_324, %c1536] : memref<1x8x4096xbf16, #tpu.memory_space<vmem>>, vector<1x8x512xbf16>
    %269 = vector.shape_cast %268 : vector<1x8x512xbf16> to vector<8x512xbf16>
    %c0_325 = arith.constant 0 : index
    %c0_326 = arith.constant 0 : index
    %270 = vector.load %arg7[%c0_325, %c0_326] : memref<216x512xbf16, #tpu.memory_space<vmem>>, vector<8x512xbf16>
    tpu.vector_store %arg7[%c0_325, %c0_326], %269 {strides = array<i32>} : memref<216x512xbf16, #tpu.memory_space<vmem>>, vector<8x512xbf16>,
    %c0_327 = arith.constant 0 : index
    %c0_328 = arith.constant 0 : index
    %c1537 = arith.constant 1537 : index
    %271 = vector.load %arg1[%c0_327, %c0_328, %c1537] : memref<1x8x4096xbf16, #tpu.memory_space<vmem>>, vector<1x8x512xbf16>
    %272 = vector.shape_cast %271 : vector<1x8x512xbf16> to vector<8x512xbf16>
    %c8_329 = arith.constant 8 : index
    %c0_330 = arith.constant 0 : index
    %273 = vector.load %arg7[%c8_329, %c0_330] : memref<216x512xbf16, #tpu.memory_space<vmem>>, vector<8x512xbf16>
    tpu.vector_store %arg7[%c8_329, %c0_330], %272 {strides = array<i32>} : memref<216x512xbf16, #tpu.memory_space<vmem>>, vector<8x512xbf16>,
    %c0_331 = arith.constant 0 : index
    %c0_332 = arith.constant 0 : index
    %c1538 = arith.constant 1538 : index
    %274 = vector.load %arg1[%c0_331, %c0_332, %c1538] : memref<1x8x4096xbf16, #tpu.memory_space<vmem>>, vector<1x8x512xbf16>
    %275 = vector.shape_cast %274 : vector<1x8x512xbf16> to vector<8x512xbf16>
    %c16_333 = arith.constant 16 : index
    %c0_334 = arith.constant 0 : index
    %276 = vector.load %arg7[%c16_333, %c0_334] : memref<216x512xbf16, #tpu.memory_space<vmem>>, vector<8x512xbf16>
    tpu.vector_store %arg7[%c16_333, %c0_334], %275 {strides = array<i32>} : memref<216x512xbf16, #tpu.memory_space<vmem>>, vector<8x512xbf16>,
    %c0_335 = arith.constant 0 : index
    %c0_336 = arith.constant 0 : index
    %c1554 = arith.constant 1554 : index
    %277 = vector.load %arg1[%c0_335, %c0_336, %c1554] : memref<1x8x4096xbf16, #tpu.memory_space<vmem>>, vector<1x8x512xbf16>
    %278 = vector.shape_cast %277 : vector<1x8x512xbf16> to vector<8x512xbf16>
    %c24_337 = arith.constant 24 : index
    %c0_338 = arith.constant 0 : index
    %279 = vector.load %arg7[%c24_337, %c0_338] : memref<216x512xbf16, #tpu.memory_space<vmem>>, vector<8x512xbf16>
    tpu.vector_store %arg7[%c24_337, %c0_338], %278 {strides = array<i32>} : memref<216x512xbf16, #tpu.memory_space<vmem>>, vector<8x512xbf16>,
    %c0_339 = arith.constant 0 : index
    %c0_340 = arith.constant 0 : index
    %c1555 = arith.constant 1555 : index
    %280 = vector.load %arg1[%c0_339, %c0_340, %c1555] : memref<1x8x4096xbf16, #tpu.memory_space<vmem>>, vector<1x8x512xbf16>
    %281 = vector.shape_cast %280 : vector<1x8x512xbf16> to vector<8x512xbf16>
    %c32_341 = arith.constant 32 : index
    %c0_342 = arith.constant 0 : index
    %282 = vector.load %arg7[%c32_341, %c0_342] : memref<216x512xbf16, #tpu.memory_space<vmem>>, vector<8x512xbf16>
    tpu.vector_store %arg7[%c32_341, %c0_342], %281 {strides = array<i32>} : memref<216x512xbf16, #tpu.memory_space<vmem>>, vector<8x512xbf16>,
    %c0_343 = arith.constant 0 : index
    %c0_344 = arith.constant 0 : index
    %c1556 = arith.constant 1556 : index
    %283 = vector.load %arg1[%c0_343, %c0_344, %c1556] : memref<1x8x4096xbf16, #tpu.memory_space<vmem>>, vector<1x8x512xbf16>
    %284 = vector.shape_cast %283 : vector<1x8x512xbf16> to vector<8x512xbf16>
    %c40_345 = arith.constant 40 : index
    %c0_346 = arith.constant 0 : index
    %285 = vector.load %arg7[%c40_345, %c0_346] : memref<216x512xbf16, #tpu.memory_space<vmem>>, vector<8x512xbf16>
    tpu.vector_store %arg7[%c40_345, %c0_346], %284 {strides = array<i32>} : memref<216x512xbf16, #tpu.memory_space<vmem>>, vector<8x512xbf16>,
    %c0_347 = arith.constant 0 : index
    %c0_348 = arith.constant 0 : index
    %c1572 = arith.constant 1572 : index
    %286 = vector.load %arg1[%c0_347, %c0_348, %c1572] : memref<1x8x4096xbf16, #tpu.memory_space<vmem>>, vector<1x8x512xbf16>
    %287 = vector.shape_cast %286 : vector<1x8x512xbf16> to vector<8x512xbf16>
    %c48_349 = arith.constant 48 : index
    %c0_350 = arith.constant 0 : index
    %288 = vector.load %arg7[%c48_349, %c0_350] : memref<216x512xbf16, #tpu.memory_space<vmem>>, vector<8x512xbf16>
    tpu.vector_store %arg7[%c48_349, %c0_350], %287 {strides = array<i32>} : memref<216x512xbf16, #tpu.memory_space<vmem>>, vector<8x512xbf16>,
    %c0_351 = arith.constant 0 : index
    %c0_352 = arith.constant 0 : index
    %c1573 = arith.constant 1573 : index
    %289 = vector.load %arg1[%c0_351, %c0_352, %c1573] : memref<1x8x4096xbf16, #tpu.memory_space<vmem>>, vector<1x8x512xbf16>
    %290 = vector.shape_cast %289 : vector<1x8x512xbf16> to vector<8x512xbf16>
    %c56_353 = arith.constant 56 : index
    %c0_354 = arith.constant 0 : index
    %291 = vector.load %arg7[%c56_353, %c0_354] : memref<216x512xbf16, #tpu.memory_space<vmem>>, vector<8x512xbf16>
    tpu.vector_store %arg7[%c56_353, %c0_354], %290 {strides = array<i32>} : memref<216x512xbf16, #tpu.memory_space<vmem>>, vector<8x512xbf16>,
    %c0_355 = arith.constant 0 : index
    %c0_356 = arith.constant 0 : index
    %c1574 = arith.constant 1574 : index
    %292 = vector.load %arg1[%c0_355, %c0_356, %c1574] : memref<1x8x4096xbf16, #tpu.memory_space<vmem>>, vector<1x8x512xbf16>
    %293 = vector.shape_cast %292 : vector<1x8x512xbf16> to vector<8x512xbf16>
    %c64_357 = arith.constant 64 : index
    %c0_358 = arith.constant 0 : index
    %294 = vector.load %arg7[%c64_357, %c0_358] : memref<216x512xbf16, #tpu.memory_space<vmem>>, vector<8x512xbf16>
    tpu.vector_store %arg7[%c64_357, %c0_358], %293 {strides = array<i32>} : memref<216x512xbf16, #tpu.memory_space<vmem>>, vector<8x512xbf16>,
    %c0_359 = arith.constant 0 : index
    %c0_360 = arith.constant 0 : index
    %c1860 = arith.constant 1860 : index
    %295 = vector.load %arg1[%c0_359, %c0_360, %c1860] : memref<1x8x4096xbf16, #tpu.memory_space<vmem>>, vector<1x8x512xbf16>
    %296 = vector.shape_cast %295 : vector<1x8x512xbf16> to vector<8x512xbf16>
    %c72_361 = arith.constant 72 : index
    %c0_362 = arith.constant 0 : index
    %297 = vector.load %arg7[%c72_361, %c0_362] : memref<216x512xbf16, #tpu.memory_space<vmem>>, vector<8x512xbf16>
    tpu.vector_store %arg7[%c72_361, %c0_362], %296 {strides = array<i32>} : memref<216x512xbf16, #tpu.memory_space<vmem>>, vector<8x512xbf16>,
    %c0_363 = arith.constant 0 : index
    %c0_364 = arith.constant 0 : index
    %c1861 = arith.constant 1861 : index
    %298 = vector.load %arg1[%c0_363, %c0_364, %c1861] : memref<1x8x4096xbf16, #tpu.memory_space<vmem>>, vector<1x8x512xbf16>
    %299 = vector.shape_cast %298 : vector<1x8x512xbf16> to vector<8x512xbf16>
    %c80_365 = arith.constant 80 : index
    %c0_366 = arith.constant 0 : index
    %300 = vector.load %arg7[%c80_365, %c0_366] : memref<216x512xbf16, #tpu.memory_space<vmem>>, vector<8x512xbf16>
    tpu.vector_store %arg7[%c80_365, %c0_366], %299 {strides = array<i32>} : memref<216x512xbf16, #tpu.memory_space<vmem>>, vector<8x512xbf16>,
    %c0_367 = arith.constant 0 : index
    %c0_368 = arith.constant 0 : index
    %c1862 = arith.constant 1862 : index
    %301 = vector.load %arg1[%c0_367, %c0_368, %c1862] : memref<1x8x4096xbf16, #tpu.memory_space<vmem>>, vector<1x8x512xbf16>
    %302 = vector.shape_cast %301 : vector<1x8x512xbf16> to vector<8x512xbf16>
    %c88_369 = arith.constant 88 : index
    %c0_370 = arith.constant 0 : index
    %303 = vector.load %arg7[%c88_369, %c0_370] : memref<216x512xbf16, #tpu.memory_space<vmem>>, vector<8x512xbf16>
    tpu.vector_store %arg7[%c88_369, %c0_370], %302 {strides = array<i32>} : memref<216x512xbf16, #tpu.memory_space<vmem>>, vector<8x512xbf16>,
    %c0_371 = arith.constant 0 : index
    %c0_372 = arith.constant 0 : index
    %c1878 = arith.constant 1878 : index
    %304 = vector.load %arg1[%c0_371, %c0_372, %c1878] : memref<1x8x4096xbf16, #tpu.memory_space<vmem>>, vector<1x8x512xbf16>
    %305 = vector.shape_cast %304 : vector<1x8x512xbf16> to vector<8x512xbf16>
    %c96_373 = arith.constant 96 : index
    %c0_374 = arith.constant 0 : index
    %306 = vector.load %arg7[%c96_373, %c0_374] : memref<216x512xbf16, #tpu.memory_space<vmem>>, vector<8x512xbf16>
    tpu.vector_store %arg7[%c96_373, %c0_374], %305 {strides = array<i32>} : memref<216x512xbf16, #tpu.memory_space<vmem>>, vector<8x512xbf16>,
    %c0_375 = arith.constant 0 : index
    %c0_376 = arith.constant 0 : index
    %c1879 = arith.constant 1879 : index
    %307 = vector.load %arg1[%c0_375, %c0_376, %c1879] : memref<1x8x4096xbf16, #tpu.memory_space<vmem>>, vector<1x8x512xbf16>
    %308 = vector.shape_cast %307 : vector<1x8x512xbf16> to vector<8x512xbf16>
    %c104_377 = arith.constant 104 : index
    %c0_378 = arith.constant 0 : index
    %309 = vector.load %arg7[%c104_377, %c0_378] : memref<216x512xbf16, #tpu.memory_space<vmem>>, vector<8x512xbf16>
    tpu.vector_store %arg7[%c104_377, %c0_378], %308 {strides = array<i32>} : memref<216x512xbf16, #tpu.memory_space<vmem>>, vector<8x512xbf16>,
    %c0_379 = arith.constant 0 : index
    %c0_380 = arith.constant 0 : index
    %c1880 = arith.constant 1880 : index
    %310 = vector.load %arg1[%c0_379, %c0_380, %c1880] : memref<1x8x4096xbf16, #tpu.memory_space<vmem>>, vector<1x8x512xbf16>
    %311 = vector.shape_cast %310 : vector<1x8x512xbf16> to vector<8x512xbf16>
    %c112_381 = arith.constant 112 : index
    %c0_382 = arith.constant 0 : index
    %312 = vector.load %arg7[%c112_381, %c0_382] : memref<216x512xbf16, #tpu.memory_space<vmem>>, vector<8x512xbf16>
    tpu.vector_store %arg7[%c112_381, %c0_382], %311 {strides = array<i32>} : memref<216x512xbf16, #tpu.memory_space<vmem>>, vector<8x512xbf16>,
    %c0_383 = arith.constant 0 : index
    %c0_384 = arith.constant 0 : index
    %c1896 = arith.constant 1896 : index
    %313 = vector.load %arg1[%c0_383, %c0_384, %c1896] : memref<1x8x4096xbf16, #tpu.memory_space<vmem>>, vector<1x8x512xbf16>
    %314 = vector.shape_cast %313 : vector<1x8x512xbf16> to vector<8x512xbf16>
    %c120_385 = arith.constant 120 : index
    %c0_386 = arith.constant 0 : index
    %315 = vector.load %arg7[%c120_385, %c0_386] : memref<216x512xbf16, #tpu.memory_space<vmem>>, vector<8x512xbf16>
    tpu.vector_store %arg7[%c120_385, %c0_386], %314 {strides = array<i32>} : memref<216x512xbf16, #tpu.memory_space<vmem>>, vector<8x512xbf16>,
    %c0_387 = arith.constant 0 : index
    %c0_388 = arith.constant 0 : index
    %c1897 = arith.constant 1897 : index
    %316 = vector.load %arg1[%c0_387, %c0_388, %c1897] : memref<1x8x4096xbf16, #tpu.memory_space<vmem>>, vector<1x8x512xbf16>
    %317 = vector.shape_cast %316 : vector<1x8x512xbf16> to vector<8x512xbf16>
    %c128_389 = arith.constant 128 : index
    %c0_390 = arith.constant 0 : index
    %318 = vector.load %arg7[%c128_389, %c0_390] : memref<216x512xbf16, #tpu.memory_space<vmem>>, vector<8x512xbf16>
    tpu.vector_store %arg7[%c128_389, %c0_390], %317 {strides = array<i32>} : memref<216x512xbf16, #tpu.memory_space<vmem>>, vector<8x512xbf16>,
    %c0_391 = arith.constant 0 : index
    %c0_392 = arith.constant 0 : index
    %c1898 = arith.constant 1898 : index
    %319 = vector.load %arg1[%c0_391, %c0_392, %c1898] : memref<1x8x4096xbf16, #tpu.memory_space<vmem>>, vector<1x8x512xbf16>
    %320 = vector.shape_cast %319 : vector<1x8x512xbf16> to vector<8x512xbf16>
    %c136_393 = arith.constant 136 : index
    %c0_394 = arith.constant 0 : index
    %321 = vector.load %arg7[%c136_393, %c0_394] : memref<216x512xbf16, #tpu.memory_space<vmem>>, vector<8x512xbf16>
    tpu.vector_store %arg7[%c136_393, %c0_394], %320 {strides = array<i32>} : memref<216x512xbf16, #tpu.memory_space<vmem>>, vector<8x512xbf16>,
    %c0_395 = arith.constant 0 : index
    %c0_396 = arith.constant 0 : index
    %c2184 = arith.constant 2184 : index
    %322 = vector.load %arg1[%c0_395, %c0_396, %c2184] : memref<1x8x4096xbf16, #tpu.memory_space<vmem>>, vector<1x8x512xbf16>
    %323 = vector.shape_cast %322 : vector<1x8x512xbf16> to vector<8x512xbf16>
    %c144_397 = arith.constant 144 : index
    %c0_398 = arith.constant 0 : index
    %324 = vector.load %arg7[%c144_397, %c0_398] : memref<216x512xbf16, #tpu.memory_space<vmem>>, vector<8x512xbf16>
    tpu.vector_store %arg7[%c144_397, %c0_398], %323 {strides = array<i32>} : memref<216x512xbf16, #tpu.memory_space<vmem>>, vector<8x512xbf16>,
    %c0_399 = arith.constant 0 : index
    %c0_400 = arith.constant 0 : index
    %c2185 = arith.constant 2185 : index
    %325 = vector.load %arg1[%c0_399, %c0_400, %c2185] : memref<1x8x4096xbf16, #tpu.memory_space<vmem>>, vector<1x8x512xbf16>
    %326 = vector.shape_cast %325 : vector<1x8x512xbf16> to vector<8x512xbf16>
    %c152_401 = arith.constant 152 : index
    %c0_402 = arith.constant 0 : index
    %327 = vector.load %arg7[%c152_401, %c0_402] : memref<216x512xbf16, #tpu.memory_space<vmem>>, vector<8x512xbf16>
    tpu.vector_store %arg7[%c152_401, %c0_402], %326 {strides = array<i32>} : memref<216x512xbf16, #tpu.memory_space<vmem>>, vector<8x512xbf16>,
    %c0_403 = arith.constant 0 : index
    %c0_404 = arith.constant 0 : index
    %c2186 = arith.constant 2186 : index
    %328 = vector.load %arg1[%c0_403, %c0_404, %c2186] : memref<1x8x4096xbf16, #tpu.memory_space<vmem>>, vector<1x8x512xbf16>
    %329 = vector.shape_cast %328 : vector<1x8x512xbf16> to vector<8x512xbf16>
    %c160_405 = arith.constant 160 : index
    %c0_406 = arith.constant 0 : index
    %330 = vector.load %arg7[%c160_405, %c0_406] : memref<216x512xbf16, #tpu.memory_space<vmem>>, vector<8x512xbf16>
    tpu.vector_store %arg7[%c160_405, %c0_406], %329 {strides = array<i32>} : memref<216x512xbf16, #tpu.memory_space<vmem>>, vector<8x512xbf16>,
    %c0_407 = arith.constant 0 : index
    %c0_408 = arith.constant 0 : index
    %c2202 = arith.constant 2202 : index
    %331 = vector.load %arg1[%c0_407, %c0_408, %c2202] : memref<1x8x4096xbf16, #tpu.memory_space<vmem>>, vector<1x8x512xbf16>
    %332 = vector.shape_cast %331 : vector<1x8x512xbf16> to vector<8x512xbf16>
    %c168_409 = arith.constant 168 : index
    %c0_410 = arith.constant 0 : index
    %333 = vector.load %arg7[%c168_409, %c0_410] : memref<216x512xbf16, #tpu.memory_space<vmem>>, vector<8x512xbf16>
    tpu.vector_store %arg7[%c168_409, %c0_410], %332 {strides = array<i32>} : memref<216x512xbf16, #tpu.memory_space<vmem>>, vector<8x512xbf16>,
    %c0_411 = arith.constant 0 : index
    %c0_412 = arith.constant 0 : index
    %c2203 = arith.constant 2203 : index
    %334 = vector.load %arg1[%c0_411, %c0_412, %c2203] : memref<1x8x4096xbf16, #tpu.memory_space<vmem>>, vector<1x8x512xbf16>
    %335 = vector.shape_cast %334 : vector<1x8x512xbf16> to vector<8x512xbf16>
    %c176_413 = arith.constant 176 : index
    %c0_414 = arith.constant 0 : index
    %336 = vector.load %arg7[%c176_413, %c0_414] : memref<216x512xbf16, #tpu.memory_space<vmem>>, vector<8x512xbf16>
    tpu.vector_store %arg7[%c176_413, %c0_414], %335 {strides = array<i32>} : memref<216x512xbf16, #tpu.memory_space<vmem>>, vector<8x512xbf16>,
    %c0_415 = arith.constant 0 : index
    %c0_416 = arith.constant 0 : index
    %c2204 = arith.constant 2204 : index
    %337 = vector.load %arg1[%c0_415, %c0_416, %c2204] : memref<1x8x4096xbf16, #tpu.memory_space<vmem>>, vector<1x8x512xbf16>
    %338 = vector.shape_cast %337 : vector<1x8x512xbf16> to vector<8x512xbf16>
    %c184_417 = arith.constant 184 : index
    %c0_418 = arith.constant 0 : index
    %339 = vector.load %arg7[%c184_417, %c0_418] : memref<216x512xbf16, #tpu.memory_space<vmem>>, vector<8x512xbf16>
    tpu.vector_store %arg7[%c184_417, %c0_418], %338 {strides = array<i32>} : memref<216x512xbf16, #tpu.memory_space<vmem>>, vector<8x512xbf16>,
    %c0_419 = arith.constant 0 : index
    %c0_420 = arith.constant 0 : index
    %c2220 = arith.constant 2220 : index
    %340 = vector.load %arg1[%c0_419, %c0_420, %c2220] : memref<1x8x4096xbf16, #tpu.memory_space<vmem>>, vector<1x8x512xbf16>
    %341 = vector.shape_cast %340 : vector<1x8x512xbf16> to vector<8x512xbf16>
    %c192_421 = arith.constant 192 : index
    %c0_422 = arith.constant 0 : index
    %342 = vector.load %arg7[%c192_421, %c0_422] : memref<216x512xbf16, #tpu.memory_space<vmem>>, vector<8x512xbf16>
    tpu.vector_store %arg7[%c192_421, %c0_422], %341 {strides = array<i32>} : memref<216x512xbf16, #tpu.memory_space<vmem>>, vector<8x512xbf16>,
    %c0_423 = arith.constant 0 : index
    %c0_424 = arith.constant 0 : index
    %c2221 = arith.constant 2221 : index
    %343 = vector.load %arg1[%c0_423, %c0_424, %c2221] : memref<1x8x4096xbf16, #tpu.memory_space<vmem>>, vector<1x8x512xbf16>
    %344 = vector.shape_cast %343 : vector<1x8x512xbf16> to vector<8x512xbf16>
    %c200_425 = arith.constant 200 : index
    %c0_426 = arith.constant 0 : index
    %345 = vector.load %arg7[%c200_425, %c0_426] : memref<216x512xbf16, #tpu.memory_space<vmem>>, vector<8x512xbf16>
    tpu.vector_store %arg7[%c200_425, %c0_426], %344 {strides = array<i32>} : memref<216x512xbf16, #tpu.memory_space<vmem>>, vector<8x512xbf16>,
    %c0_427 = arith.constant 0 : index
    %c0_428 = arith.constant 0 : index
    %c2222 = arith.constant 2222 : index
    %346 = vector.load %arg1[%c0_427, %c0_428, %c2222] : memref<1x8x4096xbf16, #tpu.memory_space<vmem>>, vector<1x8x512xbf16>
    %347 = vector.shape_cast %346 : vector<1x8x512xbf16> to vector<8x512xbf16>
    %c208_429 = arith.constant 208 : index
    %c0_430 = arith.constant 0 : index
    %348 = vector.load %arg7[%c208_429, %c0_430] : memref<216x512xbf16, #tpu.memory_space<vmem>>, vector<8x512xbf16>
    tpu.vector_store %arg7[%c208_429, %c0_430], %347 {strides = array<i32>} : memref<216x512xbf16, #tpu.memory_space<vmem>>, vector<8x512xbf16>,
    %c0_431 = arith.constant 0 : index
    %c0_432 = arith.constant 0 : index
    %349 = vector.load %arg7[%c0_431, %c0_432] : memref<216x512xbf16, #tpu.memory_space<vmem>>, vector<216x512xbf16>
    %cst_433 = arith.constant dense<0.000000e+00> : vector<32x512xf32>
    %350 = tpu.matmul %0, %349, %cst_433 {dimension_numbers = #tpu.dot_dimension_numbers<[1], [0], [0], [1], [0, 0, 1, 1], [], []>} : vector<32x216xbf16>, vector<216x512xbf16>, vector<32x512xf32> -> vector<32x512xf32>
    %c0_434 = arith.constant 0 : index
    %c1536_435 = arith.constant 1536 : index
    %351 = vector.load %arg5[%c0_434, %c1536_435] : memref<1x3328xf32, #tpu.memory_space<vmem>>, vector<1x512xf32>
    %352 = vector.broadcast %351 : vector<1x512xf32> to vector<32x512xf32>
    %353 = arith.mulf %350, %352 : vector<32x512xf32>
    %c0_436 = arith.constant 0 : index
    %c0_437 = arith.constant 0 : index
    %c1536_438 = arith.constant 1536 : index
    %354 = vector.load %arg6[%c0_436, %c0_437, %c1536_438] : memref<1x32x3328xf32, #tpu.memory_space<vmem>>, vector<1x32x512xf32>
    %355 = vector.shape_cast %354 : vector<1x32x512xf32> to vector<32x512xf32>
    %356 = vector.shape_cast %353 : vector<32x512xf32> to vector<1x32x512xf32>
    tpu.vector_store %arg6[%c0_436, %c0_437, %c1536_438], %356 {strides = array<i32>} : memref<1x32x3328xf32, #tpu.memory_space<vmem>>, vector<1x32x512xf32>,
    %c0_439 = arith.constant 0 : index
    %c0_440 = arith.constant 0 : index
    %c2048 = arith.constant 2048 : index
    %357 = vector.load %arg1[%c0_439, %c0_440, %c2048] : memref<1x8x4096xbf16, #tpu.memory_space<vmem>>, vector<1x8x512xbf16>
    %358 = vector.shape_cast %357 : vector<1x8x512xbf16> to vector<8x512xbf16>
    %c0_441 = arith.constant 0 : index
    %c0_442 = arith.constant 0 : index
    %359 = vector.load %arg7[%c0_441, %c0_442] : memref<216x512xbf16, #tpu.memory_space<vmem>>, vector<8x512xbf16>
    tpu.vector_store %arg7[%c0_441, %c0_442], %358 {strides = array<i32>} : memref<216x512xbf16, #tpu.memory_space<vmem>>, vector<8x512xbf16>,
    %c0_443 = arith.constant 0 : index
    %c0_444 = arith.constant 0 : index
    %c2049 = arith.constant 2049 : index
    %360 = vector.load %arg1[%c0_443, %c0_444, %c2049] : memref<1x8x4096xbf16, #tpu.memory_space<vmem>>, vector<1x8x512xbf16>
    %361 = vector.shape_cast %360 : vector<1x8x512xbf16> to vector<8x512xbf16>
    %c8_445 = arith.constant 8 : index
    %c0_446 = arith.constant 0 : index
    %362 = vector.load %arg7[%c8_445, %c0_446] : memref<216x512xbf16, #tpu.memory_space<vmem>>, vector<8x512xbf16>
    tpu.vector_store %arg7[%c8_445, %c0_446], %361 {strides = array<i32>} : memref<216x512xbf16, #tpu.memory_space<vmem>>, vector<8x512xbf16>,
    %c0_447 = arith.constant 0 : index
    %c0_448 = arith.constant 0 : index
    %c2050 = arith.constant 2050 : index
    %363 = vector.load %arg1[%c0_447, %c0_448, %c2050] : memref<1x8x4096xbf16, #tpu.memory_space<vmem>>, vector<1x8x512xbf16>
    %364 = vector.shape_cast %363 : vector<1x8x512xbf16> to vector<8x512xbf16>
    %c16_449 = arith.constant 16 : index
    %c0_450 = arith.constant 0 : index
    %365 = vector.load %arg7[%c16_449, %c0_450] : memref<216x512xbf16, #tpu.memory_space<vmem>>, vector<8x512xbf16>
    tpu.vector_store %arg7[%c16_449, %c0_450], %364 {strides = array<i32>} : memref<216x512xbf16, #tpu.memory_space<vmem>>, vector<8x512xbf16>,
    %c0_451 = arith.constant 0 : index
    %c0_452 = arith.constant 0 : index
    %c2066 = arith.constant 2066 : index
    %366 = vector.load %arg1[%c0_451, %c0_452, %c2066] : memref<1x8x4096xbf16, #tpu.memory_space<vmem>>, vector<1x8x512xbf16>
    %367 = vector.shape_cast %366 : vector<1x8x512xbf16> to vector<8x512xbf16>
    %c24_453 = arith.constant 24 : index
    %c0_454 = arith.constant 0 : index
    %368 = vector.load %arg7[%c24_453, %c0_454] : memref<216x512xbf16, #tpu.memory_space<vmem>>, vector<8x512xbf16>
    tpu.vector_store %arg7[%c24_453, %c0_454], %367 {strides = array<i32>} : memref<216x512xbf16, #tpu.memory_space<vmem>>, vector<8x512xbf16>,
    %c0_455 = arith.constant 0 : index
    %c0_456 = arith.constant 0 : index
    %c2067 = arith.constant 2067 : index
    %369 = vector.load %arg1[%c0_455, %c0_456, %c2067] : memref<1x8x4096xbf16, #tpu.memory_space<vmem>>, vector<1x8x512xbf16>
    %370 = vector.shape_cast %369 : vector<1x8x512xbf16> to vector<8x512xbf16>
    %c32_457 = arith.constant 32 : index
    %c0_458 = arith.constant 0 : index
    %371 = vector.load %arg7[%c32_457, %c0_458] : memref<216x512xbf16, #tpu.memory_space<vmem>>, vector<8x512xbf16>
    tpu.vector_store %arg7[%c32_457, %c0_458], %370 {strides = array<i32>} : memref<216x512xbf16, #tpu.memory_space<vmem>>, vector<8x512xbf16>,
    %c0_459 = arith.constant 0 : index
    %c0_460 = arith.constant 0 : index
    %c2068 = arith.constant 2068 : index
    %372 = vector.load %arg1[%c0_459, %c0_460, %c2068] : memref<1x8x4096xbf16, #tpu.memory_space<vmem>>, vector<1x8x512xbf16>
    %373 = vector.shape_cast %372 : vector<1x8x512xbf16> to vector<8x512xbf16>
    %c40_461 = arith.constant 40 : index
    %c0_462 = arith.constant 0 : index
    %374 = vector.load %arg7[%c40_461, %c0_462] : memref<216x512xbf16, #tpu.memory_space<vmem>>, vector<8x512xbf16>
    tpu.vector_store %arg7[%c40_461, %c0_462], %373 {strides = array<i32>} : memref<216x512xbf16, #tpu.memory_space<vmem>>, vector<8x512xbf16>,
    %c0_463 = arith.constant 0 : index
    %c0_464 = arith.constant 0 : index
    %c2084 = arith.constant 2084 : index
    %375 = vector.load %arg1[%c0_463, %c0_464, %c2084] : memref<1x8x4096xbf16, #tpu.memory_space<vmem>>, vector<1x8x512xbf16>
    %376 = vector.shape_cast %375 : vector<1x8x512xbf16> to vector<8x512xbf16>
    %c48_465 = arith.constant 48 : index
    %c0_466 = arith.constant 0 : index
    %377 = vector.load %arg7[%c48_465, %c0_466] : memref<216x512xbf16, #tpu.memory_space<vmem>>, vector<8x512xbf16>
    tpu.vector_store %arg7[%c48_465, %c0_466], %376 {strides = array<i32>} : memref<216x512xbf16, #tpu.memory_space<vmem>>, vector<8x512xbf16>,
    %c0_467 = arith.constant 0 : index
    %c0_468 = arith.constant 0 : index
    %c2085 = arith.constant 2085 : index
    %378 = vector.load %arg1[%c0_467, %c0_468, %c2085] : memref<1x8x4096xbf16, #tpu.memory_space<vmem>>, vector<1x8x512xbf16>
    %379 = vector.shape_cast %378 : vector<1x8x512xbf16> to vector<8x512xbf16>
    %c56_469 = arith.constant 56 : index
    %c0_470 = arith.constant 0 : index
    %380 = vector.load %arg7[%c56_469, %c0_470] : memref<216x512xbf16, #tpu.memory_space<vmem>>, vector<8x512xbf16>
    tpu.vector_store %arg7[%c56_469, %c0_470], %379 {strides = array<i32>} : memref<216x512xbf16, #tpu.memory_space<vmem>>, vector<8x512xbf16>,
    %c0_471 = arith.constant 0 : index
    %c0_472 = arith.constant 0 : index
    %c2086 = arith.constant 2086 : index
    %381 = vector.load %arg1[%c0_471, %c0_472, %c2086] : memref<1x8x4096xbf16, #tpu.memory_space<vmem>>, vector<1x8x512xbf16>
    %382 = vector.shape_cast %381 : vector<1x8x512xbf16> to vector<8x512xbf16>
    %c64_473 = arith.constant 64 : index
    %c0_474 = arith.constant 0 : index
    %383 = vector.load %arg7[%c64_473, %c0_474] : memref<216x512xbf16, #tpu.memory_space<vmem>>, vector<8x512xbf16>
    tpu.vector_store %arg7[%c64_473, %c0_474], %382 {strides = array<i32>} : memref<216x512xbf16, #tpu.memory_space<vmem>>, vector<8x512xbf16>,
    %c0_475 = arith.constant 0 : index
    %c0_476 = arith.constant 0 : index
    %c2372 = arith.constant 2372 : index
    %384 = vector.load %arg1[%c0_475, %c0_476, %c2372] : memref<1x8x4096xbf16, #tpu.memory_space<vmem>>, vector<1x8x512xbf16>
    %385 = vector.shape_cast %384 : vector<1x8x512xbf16> to vector<8x512xbf16>
    %c72_477 = arith.constant 72 : index
    %c0_478 = arith.constant 0 : index
    %386 = vector.load %arg7[%c72_477, %c0_478] : memref<216x512xbf16, #tpu.memory_space<vmem>>, vector<8x512xbf16>
    tpu.vector_store %arg7[%c72_477, %c0_478], %385 {strides = array<i32>} : memref<216x512xbf16, #tpu.memory_space<vmem>>, vector<8x512xbf16>,
    %c0_479 = arith.constant 0 : index
    %c0_480 = arith.constant 0 : index
    %c2373 = arith.constant 2373 : index
    %387 = vector.load %arg1[%c0_479, %c0_480, %c2373] : memref<1x8x4096xbf16, #tpu.memory_space<vmem>>, vector<1x8x512xbf16>
    %388 = vector.shape_cast %387 : vector<1x8x512xbf16> to vector<8x512xbf16>
    %c80_481 = arith.constant 80 : index
    %c0_482 = arith.constant 0 : index
    %389 = vector.load %arg7[%c80_481, %c0_482] : memref<216x512xbf16, #tpu.memory_space<vmem>>, vector<8x512xbf16>
    tpu.vector_store %arg7[%c80_481, %c0_482], %388 {strides = array<i32>} : memref<216x512xbf16, #tpu.memory_space<vmem>>, vector<8x512xbf16>,
    %c0_483 = arith.constant 0 : index
    %c0_484 = arith.constant 0 : index
    %c2374 = arith.constant 2374 : index
    %390 = vector.load %arg1[%c0_483, %c0_484, %c2374] : memref<1x8x4096xbf16, #tpu.memory_space<vmem>>, vector<1x8x512xbf16>
    %391 = vector.shape_cast %390 : vector<1x8x512xbf16> to vector<8x512xbf16>
    %c88_485 = arith.constant 88 : index
    %c0_486 = arith.constant 0 : index
    %392 = vector.load %arg7[%c88_485, %c0_486] : memref<216x512xbf16, #tpu.memory_space<vmem>>, vector<8x512xbf16>
    tpu.vector_store %arg7[%c88_485, %c0_486], %391 {strides = array<i32>} : memref<216x512xbf16, #tpu.memory_space<vmem>>, vector<8x512xbf16>,
    %c0_487 = arith.constant 0 : index
    %c0_488 = arith.constant 0 : index
    %c2390 = arith.constant 2390 : index
    %393 = vector.load %arg1[%c0_487, %c0_488, %c2390] : memref<1x8x4096xbf16, #tpu.memory_space<vmem>>, vector<1x8x512xbf16>
    %394 = vector.shape_cast %393 : vector<1x8x512xbf16> to vector<8x512xbf16>
    %c96_489 = arith.constant 96 : index
    %c0_490 = arith.constant 0 : index
    %395 = vector.load %arg7[%c96_489, %c0_490] : memref<216x512xbf16, #tpu.memory_space<vmem>>, vector<8x512xbf16>
    tpu.vector_store %arg7[%c96_489, %c0_490], %394 {strides = array<i32>} : memref<216x512xbf16, #tpu.memory_space<vmem>>, vector<8x512xbf16>,
    %c0_491 = arith.constant 0 : index
    %c0_492 = arith.constant 0 : index
    %c2391 = arith.constant 2391 : index
    %396 = vector.load %arg1[%c0_491, %c0_492, %c2391] : memref<1x8x4096xbf16, #tpu.memory_space<vmem>>, vector<1x8x512xbf16>
    %397 = vector.shape_cast %396 : vector<1x8x512xbf16> to vector<8x512xbf16>
    %c104_493 = arith.constant 104 : index
    %c0_494 = arith.constant 0 : index
    %398 = vector.load %arg7[%c104_493, %c0_494] : memref<216x512xbf16, #tpu.memory_space<vmem>>, vector<8x512xbf16>
    tpu.vector_store %arg7[%c104_493, %c0_494], %397 {strides = array<i32>} : memref<216x512xbf16, #tpu.memory_space<vmem>>, vector<8x512xbf16>,
    %c0_495 = arith.constant 0 : index
    %c0_496 = arith.constant 0 : index
    %c2392 = arith.constant 2392 : index
    %399 = vector.load %arg1[%c0_495, %c0_496, %c2392] : memref<1x8x4096xbf16, #tpu.memory_space<vmem>>, vector<1x8x512xbf16>
    %400 = vector.shape_cast %399 : vector<1x8x512xbf16> to vector<8x512xbf16>
    %c112_497 = arith.constant 112 : index
    %c0_498 = arith.constant 0 : index
    %401 = vector.load %arg7[%c112_497, %c0_498] : memref<216x512xbf16, #tpu.memory_space<vmem>>, vector<8x512xbf16>
    tpu.vector_store %arg7[%c112_497, %c0_498], %400 {strides = array<i32>} : memref<216x512xbf16, #tpu.memory_space<vmem>>, vector<8x512xbf16>,
    %c0_499 = arith.constant 0 : index
    %c0_500 = arith.constant 0 : index
    %c2408 = arith.constant 2408 : index
    %402 = vector.load %arg1[%c0_499, %c0_500, %c2408] : memref<1x8x4096xbf16, #tpu.memory_space<vmem>>, vector<1x8x512xbf16>
    %403 = vector.shape_cast %402 : vector<1x8x512xbf16> to vector<8x512xbf16>
    %c120_501 = arith.constant 120 : index
    %c0_502 = arith.constant 0 : index
    %404 = vector.load %arg7[%c120_501, %c0_502] : memref<216x512xbf16, #tpu.memory_space<vmem>>, vector<8x512xbf16>
    tpu.vector_store %arg7[%c120_501, %c0_502], %403 {strides = array<i32>} : memref<216x512xbf16, #tpu.memory_space<vmem>>, vector<8x512xbf16>,
    %c0_503 = arith.constant 0 : index
    %c0_504 = arith.constant 0 : index
    %c2409 = arith.constant 2409 : index
    %405 = vector.load %arg1[%c0_503, %c0_504, %c2409] : memref<1x8x4096xbf16, #tpu.memory_space<vmem>>, vector<1x8x512xbf16>
    %406 = vector.shape_cast %405 : vector<1x8x512xbf16> to vector<8x512xbf16>
    %c128_505 = arith.constant 128 : index
    %c0_506 = arith.constant 0 : index
    %407 = vector.load %arg7[%c128_505, %c0_506] : memref<216x512xbf16, #tpu.memory_space<vmem>>, vector<8x512xbf16>
    tpu.vector_store %arg7[%c128_505, %c0_506], %406 {strides = array<i32>} : memref<216x512xbf16, #tpu.memory_space<vmem>>, vector<8x512xbf16>,
    %c0_507 = arith.constant 0 : index
    %c0_508 = arith.constant 0 : index
    %c2410 = arith.constant 2410 : index
    %408 = vector.load %arg1[%c0_507, %c0_508, %c2410] : memref<1x8x4096xbf16, #tpu.memory_space<vmem>>, vector<1x8x512xbf16>
    %409 = vector.shape_cast %408 : vector<1x8x512xbf16> to vector<8x512xbf16>
    %c136_509 = arith.constant 136 : index
    %c0_510 = arith.constant 0 : index
    %410 = vector.load %arg7[%c136_509, %c0_510] : memref<216x512xbf16, #tpu.memory_space<vmem>>, vector<8x512xbf16>
    tpu.vector_store %arg7[%c136_509, %c0_510], %409 {strides = array<i32>} : memref<216x512xbf16, #tpu.memory_space<vmem>>, vector<8x512xbf16>,
    %c0_511 = arith.constant 0 : index
    %c0_512 = arith.constant 0 : index
    %c2696 = arith.constant 2696 : index
    %411 = vector.load %arg1[%c0_511, %c0_512, %c2696] : memref<1x8x4096xbf16, #tpu.memory_space<vmem>>, vector<1x8x512xbf16>
    %412 = vector.shape_cast %411 : vector<1x8x512xbf16> to vector<8x512xbf16>
    %c144_513 = arith.constant 144 : index
    %c0_514 = arith.constant 0 : index
    %413 = vector.load %arg7[%c144_513, %c0_514] : memref<216x512xbf16, #tpu.memory_space<vmem>>, vector<8x512xbf16>
    tpu.vector_store %arg7[%c144_513, %c0_514], %412 {strides = array<i32>} : memref<216x512xbf16, #tpu.memory_space<vmem>>, vector<8x512xbf16>,
    %c0_515 = arith.constant 0 : index
    %c0_516 = arith.constant 0 : index
    %c2697 = arith.constant 2697 : index
    %414 = vector.load %arg1[%c0_515, %c0_516, %c2697] : memref<1x8x4096xbf16, #tpu.memory_space<vmem>>, vector<1x8x512xbf16>
    %415 = vector.shape_cast %414 : vector<1x8x512xbf16> to vector<8x512xbf16>
    %c152_517 = arith.constant 152 : index
    %c0_518 = arith.constant 0 : index
    %416 = vector.load %arg7[%c152_517, %c0_518] : memref<216x512xbf16, #tpu.memory_space<vmem>>, vector<8x512xbf16>
    tpu.vector_store %arg7[%c152_517, %c0_518], %415 {strides = array<i32>} : memref<216x512xbf16, #tpu.memory_space<vmem>>, vector<8x512xbf16>,
    %c0_519 = arith.constant 0 : index
    %c0_520 = arith.constant 0 : index
    %c2698 = arith.constant 2698 : index
    %417 = vector.load %arg1[%c0_519, %c0_520, %c2698] : memref<1x8x4096xbf16, #tpu.memory_space<vmem>>, vector<1x8x512xbf16>
    %418 = vector.shape_cast %417 : vector<1x8x512xbf16> to vector<8x512xbf16>
    %c160_521 = arith.constant 160 : index
    %c0_522 = arith.constant 0 : index
    %419 = vector.load %arg7[%c160_521, %c0_522] : memref<216x512xbf16, #tpu.memory_space<vmem>>, vector<8x512xbf16>
    tpu.vector_store %arg7[%c160_521, %c0_522], %418 {strides = array<i32>} : memref<216x512xbf16, #tpu.memory_space<vmem>>, vector<8x512xbf16>,
    %c0_523 = arith.constant 0 : index
    %c0_524 = arith.constant 0 : index
    %c2714 = arith.constant 2714 : index
    %420 = vector.load %arg1[%c0_523, %c0_524, %c2714] : memref<1x8x4096xbf16, #tpu.memory_space<vmem>>, vector<1x8x512xbf16>
    %421 = vector.shape_cast %420 : vector<1x8x512xbf16> to vector<8x512xbf16>
    %c168_525 = arith.constant 168 : index
    %c0_526 = arith.constant 0 : index
    %422 = vector.load %arg7[%c168_525, %c0_526] : memref<216x512xbf16, #tpu.memory_space<vmem>>, vector<8x512xbf16>
    tpu.vector_store %arg7[%c168_525, %c0_526], %421 {strides = array<i32>} : memref<216x512xbf16, #tpu.memory_space<vmem>>, vector<8x512xbf16>,
    %c0_527 = arith.constant 0 : index
    %c0_528 = arith.constant 0 : index
    %c2715 = arith.constant 2715 : index
    %423 = vector.load %arg1[%c0_527, %c0_528, %c2715] : memref<1x8x4096xbf16, #tpu.memory_space<vmem>>, vector<1x8x512xbf16>
    %424 = vector.shape_cast %423 : vector<1x8x512xbf16> to vector<8x512xbf16>
    %c176_529 = arith.constant 176 : index
    %c0_530 = arith.constant 0 : index
    %425 = vector.load %arg7[%c176_529, %c0_530] : memref<216x512xbf16, #tpu.memory_space<vmem>>, vector<8x512xbf16>
    tpu.vector_store %arg7[%c176_529, %c0_530], %424 {strides = array<i32>} : memref<216x512xbf16, #tpu.memory_space<vmem>>, vector<8x512xbf16>,
    %c0_531 = arith.constant 0 : index
    %c0_532 = arith.constant 0 : index
    %c2716 = arith.constant 2716 : index
    %426 = vector.load %arg1[%c0_531, %c0_532, %c2716] : memref<1x8x4096xbf16, #tpu.memory_space<vmem>>, vector<1x8x512xbf16>
    %427 = vector.shape_cast %426 : vector<1x8x512xbf16> to vector<8x512xbf16>
    %c184_533 = arith.constant 184 : index
    %c0_534 = arith.constant 0 : index
    %428 = vector.load %arg7[%c184_533, %c0_534] : memref<216x512xbf16, #tpu.memory_space<vmem>>, vector<8x512xbf16>
    tpu.vector_store %arg7[%c184_533, %c0_534], %427 {strides = array<i32>} : memref<216x512xbf16, #tpu.memory_space<vmem>>, vector<8x512xbf16>,
    %c0_535 = arith.constant 0 : index
    %c0_536 = arith.constant 0 : index
    %c2732 = arith.constant 2732 : index
    %429 = vector.load %arg1[%c0_535, %c0_536, %c2732] : memref<1x8x4096xbf16, #tpu.memory_space<vmem>>, vector<1x8x512xbf16>
    %430 = vector.shape_cast %429 : vector<1x8x512xbf16> to vector<8x512xbf16>
    %c192_537 = arith.constant 192 : index
    %c0_538 = arith.constant 0 : index
    %431 = vector.load %arg7[%c192_537, %c0_538] : memref<216x512xbf16, #tpu.memory_space<vmem>>, vector<8x512xbf16>
    tpu.vector_store %arg7[%c192_537, %c0_538], %430 {strides = array<i32>} : memref<216x512xbf16, #tpu.memory_space<vmem>>, vector<8x512xbf16>,
    %c0_539 = arith.constant 0 : index
    %c0_540 = arith.constant 0 : index
    %c2733 = arith.constant 2733 : index
    %432 = vector.load %arg1[%c0_539, %c0_540, %c2733] : memref<1x8x4096xbf16, #tpu.memory_space<vmem>>, vector<1x8x512xbf16>
    %433 = vector.shape_cast %432 : vector<1x8x512xbf16> to vector<8x512xbf16>
    %c200_541 = arith.constant 200 : index
    %c0_542 = arith.constant 0 : index
    %434 = vector.load %arg7[%c200_541, %c0_542] : memref<216x512xbf16, #tpu.memory_space<vmem>>, vector<8x512xbf16>
    tpu.vector_store %arg7[%c200_541, %c0_542], %433 {strides = array<i32>} : memref<216x512xbf16, #tpu.memory_space<vmem>>, vector<8x512xbf16>,
    %c0_543 = arith.constant 0 : index
    %c0_544 = arith.constant 0 : index
    %c2734 = arith.constant 2734 : index
    %435 = vector.load %arg1[%c0_543, %c0_544, %c2734] : memref<1x8x4096xbf16, #tpu.memory_space<vmem>>, vector<1x8x512xbf16>
    %436 = vector.shape_cast %435 : vector<1x8x512xbf16> to vector<8x512xbf16>
    %c208_545 = arith.constant 208 : index
    %c0_546 = arith.constant 0 : index
    %437 = vector.load %arg7[%c208_545, %c0_546] : memref<216x512xbf16, #tpu.memory_space<vmem>>, vector<8x512xbf16>
    tpu.vector_store %arg7[%c208_545, %c0_546], %436 {strides = array<i32>} : memref<216x512xbf16, #tpu.memory_space<vmem>>, vector<8x512xbf16>,
    %c0_547 = arith.constant 0 : index
    %c0_548 = arith.constant 0 : index
    %438 = vector.load %arg7[%c0_547, %c0_548] : memref<216x512xbf16, #tpu.memory_space<vmem>>, vector<216x512xbf16>
    %cst_549 = arith.constant dense<0.000000e+00> : vector<32x512xf32>
    %439 = tpu.matmul %0, %438, %cst_549 {dimension_numbers = #tpu.dot_dimension_numbers<[1], [0], [0], [1], [0, 0, 1, 1], [], []>} : vector<32x216xbf16>, vector<216x512xbf16>, vector<32x512xf32> -> vector<32x512xf32>
    %c0_550 = arith.constant 0 : index
    %c2048_551 = arith.constant 2048 : index
    %440 = vector.load %arg5[%c0_550, %c2048_551] : memref<1x3328xf32, #tpu.memory_space<vmem>>, vector<1x512xf32>
    %441 = vector.broadcast %440 : vector<1x512xf32> to vector<32x512xf32>
    %442 = arith.mulf %439, %441 : vector<32x512xf32>
    %c0_552 = arith.constant 0 : index
    %c0_553 = arith.constant 0 : index
    %c2048_554 = arith.constant 2048 : index
    %443 = vector.load %arg6[%c0_552, %c0_553, %c2048_554] : memref<1x32x3328xf32, #tpu.memory_space<vmem>>, vector<1x32x512xf32>
    %444 = vector.shape_cast %443 : vector<1x32x512xf32> to vector<32x512xf32>
    %445 = vector.shape_cast %442 : vector<32x512xf32> to vector<1x32x512xf32>
    tpu.vector_store %arg6[%c0_552, %c0_553, %c2048_554], %445 {strides = array<i32>} : memref<1x32x3328xf32, #tpu.memory_space<vmem>>, vector<1x32x512xf32>,
    %c0_555 = arith.constant 0 : index
    %c0_556 = arith.constant 0 : index
    %c2560 = arith.constant 2560 : index
    %446 = vector.load %arg1[%c0_555, %c0_556, %c2560] : memref<1x8x4096xbf16, #tpu.memory_space<vmem>>, vector<1x8x512xbf16>
    %447 = vector.shape_cast %446 : vector<1x8x512xbf16> to vector<8x512xbf16>
    %c0_557 = arith.constant 0 : index
    %c0_558 = arith.constant 0 : index
    %448 = vector.load %arg7[%c0_557, %c0_558] : memref<216x512xbf16, #tpu.memory_space<vmem>>, vector<8x512xbf16>
    tpu.vector_store %arg7[%c0_557, %c0_558], %447 {strides = array<i32>} : memref<216x512xbf16, #tpu.memory_space<vmem>>, vector<8x512xbf16>,
    %c0_559 = arith.constant 0 : index
    %c0_560 = arith.constant 0 : index
    %c2561 = arith.constant 2561 : index
    %449 = vector.load %arg1[%c0_559, %c0_560, %c2561] : memref<1x8x4096xbf16, #tpu.memory_space<vmem>>, vector<1x8x512xbf16>
    %450 = vector.shape_cast %449 : vector<1x8x512xbf16> to vector<8x512xbf16>
    %c8_561 = arith.constant 8 : index
    %c0_562 = arith.constant 0 : index
    %451 = vector.load %arg7[%c8_561, %c0_562] : memref<216x512xbf16, #tpu.memory_space<vmem>>, vector<8x512xbf16>
    tpu.vector_store %arg7[%c8_561, %c0_562], %450 {strides = array<i32>} : memref<216x512xbf16, #tpu.memory_space<vmem>>, vector<8x512xbf16>,
    %c0_563 = arith.constant 0 : index
    %c0_564 = arith.constant 0 : index
    %c2562 = arith.constant 2562 : index
    %452 = vector.load %arg1[%c0_563, %c0_564, %c2562] : memref<1x8x4096xbf16, #tpu.memory_space<vmem>>, vector<1x8x512xbf16>
    %453 = vector.shape_cast %452 : vector<1x8x512xbf16> to vector<8x512xbf16>
    %c16_565 = arith.constant 16 : index
    %c0_566 = arith.constant 0 : index
    %454 = vector.load %arg7[%c16_565, %c0_566] : memref<216x512xbf16, #tpu.memory_space<vmem>>, vector<8x512xbf16>
    tpu.vector_store %arg7[%c16_565, %c0_566], %453 {strides = array<i32>} : memref<216x512xbf16, #tpu.memory_space<vmem>>, vector<8x512xbf16>,
    %c0_567 = arith.constant 0 : index
    %c0_568 = arith.constant 0 : index
    %c2578 = arith.constant 2578 : index
    %455 = vector.load %arg1[%c0_567, %c0_568, %c2578] : memref<1x8x4096xbf16, #tpu.memory_space<vmem>>, vector<1x8x512xbf16>
    %456 = vector.shape_cast %455 : vector<1x8x512xbf16> to vector<8x512xbf16>
    %c24_569 = arith.constant 24 : index
    %c0_570 = arith.constant 0 : index
    %457 = vector.load %arg7[%c24_569, %c0_570] : memref<216x512xbf16, #tpu.memory_space<vmem>>, vector<8x512xbf16>
    tpu.vector_store %arg7[%c24_569, %c0_570], %456 {strides = array<i32>} : memref<216x512xbf16, #tpu.memory_space<vmem>>, vector<8x512xbf16>,
    %c0_571 = arith.constant 0 : index
    %c0_572 = arith.constant 0 : index
    %c2579 = arith.constant 2579 : index
    %458 = vector.load %arg1[%c0_571, %c0_572, %c2579] : memref<1x8x4096xbf16, #tpu.memory_space<vmem>>, vector<1x8x512xbf16>
    %459 = vector.shape_cast %458 : vector<1x8x512xbf16> to vector<8x512xbf16>
    %c32_573 = arith.constant 32 : index
    %c0_574 = arith.constant 0 : index
    %460 = vector.load %arg7[%c32_573, %c0_574] : memref<216x512xbf16, #tpu.memory_space<vmem>>, vector<8x512xbf16>
    tpu.vector_store %arg7[%c32_573, %c0_574], %459 {strides = array<i32>} : memref<216x512xbf16, #tpu.memory_space<vmem>>, vector<8x512xbf16>,
    %c0_575 = arith.constant 0 : index
    %c0_576 = arith.constant 0 : index
    %c2580 = arith.constant 2580 : index
    %461 = vector.load %arg1[%c0_575, %c0_576, %c2580] : memref<1x8x4096xbf16, #tpu.memory_space<vmem>>, vector<1x8x512xbf16>
    %462 = vector.shape_cast %461 : vector<1x8x512xbf16> to vector<8x512xbf16>
    %c40_577 = arith.constant 40 : index
    %c0_578 = arith.constant 0 : index
    %463 = vector.load %arg7[%c40_577, %c0_578] : memref<216x512xbf16, #tpu.memory_space<vmem>>, vector<8x512xbf16>
    tpu.vector_store %arg7[%c40_577, %c0_578], %462 {strides = array<i32>} : memref<216x512xbf16, #tpu.memory_space<vmem>>, vector<8x512xbf16>,
    %c0_579 = arith.constant 0 : index
    %c0_580 = arith.constant 0 : index
    %c2596 = arith.constant 2596 : index
    %464 = vector.load %arg1[%c0_579, %c0_580, %c2596] : memref<1x8x4096xbf16, #tpu.memory_space<vmem>>, vector<1x8x512xbf16>
    %465 = vector.shape_cast %464 : vector<1x8x512xbf16> to vector<8x512xbf16>
    %c48_581 = arith.constant 48 : index
    %c0_582 = arith.constant 0 : index
    %466 = vector.load %arg7[%c48_581, %c0_582] : memref<216x512xbf16, #tpu.memory_space<vmem>>, vector<8x512xbf16>
    tpu.vector_store %arg7[%c48_581, %c0_582], %465 {strides = array<i32>} : memref<216x512xbf16, #tpu.memory_space<vmem>>, vector<8x512xbf16>,
    %c0_583 = arith.constant 0 : index
    %c0_584 = arith.constant 0 : index
    %c2597 = arith.constant 2597 : index
    %467 = vector.load %arg1[%c0_583, %c0_584, %c2597] : memref<1x8x4096xbf16, #tpu.memory_space<vmem>>, vector<1x8x512xbf16>
    %468 = vector.shape_cast %467 : vector<1x8x512xbf16> to vector<8x512xbf16>
    %c56_585 = arith.constant 56 : index
    %c0_586 = arith.constant 0 : index
    %469 = vector.load %arg7[%c56_585, %c0_586] : memref<216x512xbf16, #tpu.memory_space<vmem>>, vector<8x512xbf16>
    tpu.vector_store %arg7[%c56_585, %c0_586], %468 {strides = array<i32>} : memref<216x512xbf16, #tpu.memory_space<vmem>>, vector<8x512xbf16>,
    %c0_587 = arith.constant 0 : index
    %c0_588 = arith.constant 0 : index
    %c2598 = arith.constant 2598 : index
    %470 = vector.load %arg1[%c0_587, %c0_588, %c2598] : memref<1x8x4096xbf16, #tpu.memory_space<vmem>>, vector<1x8x512xbf16>
    %471 = vector.shape_cast %470 : vector<1x8x512xbf16> to vector<8x512xbf16>
    %c64_589 = arith.constant 64 : index
    %c0_590 = arith.constant 0 : index
    %472 = vector.load %arg7[%c64_589, %c0_590] : memref<216x512xbf16, #tpu.memory_space<vmem>>, vector<8x512xbf16>
    tpu.vector_store %arg7[%c64_589, %c0_590], %471 {strides = array<i32>} : memref<216x512xbf16, #tpu.memory_space<vmem>>, vector<8x512xbf16>,
    %c0_591 = arith.constant 0 : index
    %c0_592 = arith.constant 0 : index
    %c2884 = arith.constant 2884 : index
    %473 = vector.load %arg1[%c0_591, %c0_592, %c2884] : memref<1x8x4096xbf16, #tpu.memory_space<vmem>>, vector<1x8x512xbf16>
    %474 = vector.shape_cast %473 : vector<1x8x512xbf16> to vector<8x512xbf16>
    %c72_593 = arith.constant 72 : index
    %c0_594 = arith.constant 0 : index
    %475 = vector.load %arg7[%c72_593, %c0_594] : memref<216x512xbf16, #tpu.memory_space<vmem>>, vector<8x512xbf16>
    tpu.vector_store %arg7[%c72_593, %c0_594], %474 {strides = array<i32>} : memref<216x512xbf16, #tpu.memory_space<vmem>>, vector<8x512xbf16>,
    %c0_595 = arith.constant 0 : index
    %c0_596 = arith.constant 0 : index
    %c2885 = arith.constant 2885 : index
    %476 = vector.load %arg1[%c0_595, %c0_596, %c2885] : memref<1x8x4096xbf16, #tpu.memory_space<vmem>>, vector<1x8x512xbf16>
    %477 = vector.shape_cast %476 : vector<1x8x512xbf16> to vector<8x512xbf16>
    %c80_597 = arith.constant 80 : index
    %c0_598 = arith.constant 0 : index
    %478 = vector.load %arg7[%c80_597, %c0_598] : memref<216x512xbf16, #tpu.memory_space<vmem>>, vector<8x512xbf16>
    tpu.vector_store %arg7[%c80_597, %c0_598], %477 {strides = array<i32>} : memref<216x512xbf16, #tpu.memory_space<vmem>>, vector<8x512xbf16>,
    %c0_599 = arith.constant 0 : index
    %c0_600 = arith.constant 0 : index
    %c2886 = arith.constant 2886 : index
    %479 = vector.load %arg1[%c0_599, %c0_600, %c2886] : memref<1x8x4096xbf16, #tpu.memory_space<vmem>>, vector<1x8x512xbf16>
    %480 = vector.shape_cast %479 : vector<1x8x512xbf16> to vector<8x512xbf16>
    %c88_601 = arith.constant 88 : index
    %c0_602 = arith.constant 0 : index
    %481 = vector.load %arg7[%c88_601, %c0_602] : memref<216x512xbf16, #tpu.memory_space<vmem>>, vector<8x512xbf16>
    tpu.vector_store %arg7[%c88_601, %c0_602], %480 {strides = array<i32>} : memref<216x512xbf16, #tpu.memory_space<vmem>>, vector<8x512xbf16>,
    %c0_603 = arith.constant 0 : index
    %c0_604 = arith.constant 0 : index
    %c2902 = arith.constant 2902 : index
    %482 = vector.load %arg1[%c0_603, %c0_604, %c2902] : memref<1x8x4096xbf16, #tpu.memory_space<vmem>>, vector<1x8x512xbf16>
    %483 = vector.shape_cast %482 : vector<1x8x512xbf16> to vector<8x512xbf16>
    %c96_605 = arith.constant 96 : index
    %c0_606 = arith.constant 0 : index
    %484 = vector.load %arg7[%c96_605, %c0_606] : memref<216x512xbf16, #tpu.memory_space<vmem>>, vector<8x512xbf16>
    tpu.vector_store %arg7[%c96_605, %c0_606], %483 {strides = array<i32>} : memref<216x512xbf16, #tpu.memory_space<vmem>>, vector<8x512xbf16>,
    %c0_607 = arith.constant 0 : index
    %c0_608 = arith.constant 0 : index
    %c2903 = arith.constant 2903 : index
    %485 = vector.load %arg1[%c0_607, %c0_608, %c2903] : memref<1x8x4096xbf16, #tpu.memory_space<vmem>>, vector<1x8x512xbf16>
    %486 = vector.shape_cast %485 : vector<1x8x512xbf16> to vector<8x512xbf16>
    %c104_609 = arith.constant 104 : index
    %c0_610 = arith.constant 0 : index
    %487 = vector.load %arg7[%c104_609, %c0_610] : memref<216x512xbf16, #tpu.memory_space<vmem>>, vector<8x512xbf16>
    tpu.vector_store %arg7[%c104_609, %c0_610], %486 {strides = array<i32>} : memref<216x512xbf16, #tpu.memory_space<vmem>>, vector<8x512xbf16>,
    %c0_611 = arith.constant 0 : index
    %c0_612 = arith.constant 0 : index
    %c2904 = arith.constant 2904 : index
    %488 = vector.load %arg1[%c0_611, %c0_612, %c2904] : memref<1x8x4096xbf16, #tpu.memory_space<vmem>>, vector<1x8x512xbf16>
    %489 = vector.shape_cast %488 : vector<1x8x512xbf16> to vector<8x512xbf16>
    %c112_613 = arith.constant 112 : index
    %c0_614 = arith.constant 0 : index
    %490 = vector.load %arg7[%c112_613, %c0_614] : memref<216x512xbf16, #tpu.memory_space<vmem>>, vector<8x512xbf16>
    tpu.vector_store %arg7[%c112_613, %c0_614], %489 {strides = array<i32>} : memref<216x512xbf16, #tpu.memory_space<vmem>>, vector<8x512xbf16>,
    %c0_615 = arith.constant 0 : index
    %c0_616 = arith.constant 0 : index
    %c2920 = arith.constant 2920 : index
    %491 = vector.load %arg1[%c0_615, %c0_616, %c2920] : memref<1x8x4096xbf16, #tpu.memory_space<vmem>>, vector<1x8x512xbf16>
    %492 = vector.shape_cast %491 : vector<1x8x512xbf16> to vector<8x512xbf16>
    %c120_617 = arith.constant 120 : index
    %c0_618 = arith.constant 0 : index
    %493 = vector.load %arg7[%c120_617, %c0_618] : memref<216x512xbf16, #tpu.memory_space<vmem>>, vector<8x512xbf16>
    tpu.vector_store %arg7[%c120_617, %c0_618], %492 {strides = array<i32>} : memref<216x512xbf16, #tpu.memory_space<vmem>>, vector<8x512xbf16>,
    %c0_619 = arith.constant 0 : index
    %c0_620 = arith.constant 0 : index
    %c2921 = arith.constant 2921 : index
    %494 = vector.load %arg1[%c0_619, %c0_620, %c2921] : memref<1x8x4096xbf16, #tpu.memory_space<vmem>>, vector<1x8x512xbf16>
    %495 = vector.shape_cast %494 : vector<1x8x512xbf16> to vector<8x512xbf16>
    %c128_621 = arith.constant 128 : index
    %c0_622 = arith.constant 0 : index
    %496 = vector.load %arg7[%c128_621, %c0_622] : memref<216x512xbf16, #tpu.memory_space<vmem>>, vector<8x512xbf16>
    tpu.vector_store %arg7[%c128_621, %c0_622], %495 {strides = array<i32>} : memref<216x512xbf16, #tpu.memory_space<vmem>>, vector<8x512xbf16>,
    %c0_623 = arith.constant 0 : index
    %c0_624 = arith.constant 0 : index
    %c2922 = arith.constant 2922 : index
    %497 = vector.load %arg1[%c0_623, %c0_624, %c2922] : memref<1x8x4096xbf16, #tpu.memory_space<vmem>>, vector<1x8x512xbf16>
    %498 = vector.shape_cast %497 : vector<1x8x512xbf16> to vector<8x512xbf16>
    %c136_625 = arith.constant 136 : index
    %c0_626 = arith.constant 0 : index
    %499 = vector.load %arg7[%c136_625, %c0_626] : memref<216x512xbf16, #tpu.memory_space<vmem>>, vector<8x512xbf16>
    tpu.vector_store %arg7[%c136_625, %c0_626], %498 {strides = array<i32>} : memref<216x512xbf16, #tpu.memory_space<vmem>>, vector<8x512xbf16>,
    %c0_627 = arith.constant 0 : index
    %c0_628 = arith.constant 0 : index
    %c3208 = arith.constant 3208 : index
    %500 = vector.load %arg1[%c0_627, %c0_628, %c3208] : memref<1x8x4096xbf16, #tpu.memory_space<vmem>>, vector<1x8x512xbf16>
    %501 = vector.shape_cast %500 : vector<1x8x512xbf16> to vector<8x512xbf16>
    %c144_629 = arith.constant 144 : index
    %c0_630 = arith.constant 0 : index
    %502 = vector.load %arg7[%c144_629, %c0_630] : memref<216x512xbf16, #tpu.memory_space<vmem>>, vector<8x512xbf16>
    tpu.vector_store %arg7[%c144_629, %c0_630], %501 {strides = array<i32>} : memref<216x512xbf16, #tpu.memory_space<vmem>>, vector<8x512xbf16>,
    %c0_631 = arith.constant 0 : index
    %c0_632 = arith.constant 0 : index
    %c3209 = arith.constant 3209 : index
    %503 = vector.load %arg1[%c0_631, %c0_632, %c3209] : memref<1x8x4096xbf16, #tpu.memory_space<vmem>>, vector<1x8x512xbf16>
    %504 = vector.shape_cast %503 : vector<1x8x512xbf16> to vector<8x512xbf16>
    %c152_633 = arith.constant 152 : index
    %c0_634 = arith.constant 0 : index
    %505 = vector.load %arg7[%c152_633, %c0_634] : memref<216x512xbf16, #tpu.memory_space<vmem>>, vector<8x512xbf16>
    tpu.vector_store %arg7[%c152_633, %c0_634], %504 {strides = array<i32>} : memref<216x512xbf16, #tpu.memory_space<vmem>>, vector<8x512xbf16>,
    %c0_635 = arith.constant 0 : index
    %c0_636 = arith.constant 0 : index
    %c3210 = arith.constant 3210 : index
    %506 = vector.load %arg1[%c0_635, %c0_636, %c3210] : memref<1x8x4096xbf16, #tpu.memory_space<vmem>>, vector<1x8x512xbf16>
    %507 = vector.shape_cast %506 : vector<1x8x512xbf16> to vector<8x512xbf16>
    %c160_637 = arith.constant 160 : index
    %c0_638 = arith.constant 0 : index
    %508 = vector.load %arg7[%c160_637, %c0_638] : memref<216x512xbf16, #tpu.memory_space<vmem>>, vector<8x512xbf16>
    tpu.vector_store %arg7[%c160_637, %c0_638], %507 {strides = array<i32>} : memref<216x512xbf16, #tpu.memory_space<vmem>>, vector<8x512xbf16>,
    %c0_639 = arith.constant 0 : index
    %c0_640 = arith.constant 0 : index
    %c3226 = arith.constant 3226 : index
    %509 = vector.load %arg1[%c0_639, %c0_640, %c3226] : memref<1x8x4096xbf16, #tpu.memory_space<vmem>>, vector<1x8x512xbf16>
    %510 = vector.shape_cast %509 : vector<1x8x512xbf16> to vector<8x512xbf16>
    %c168_641 = arith.constant 168 : index
    %c0_642 = arith.constant 0 : index
    %511 = vector.load %arg7[%c168_641, %c0_642] : memref<216x512xbf16, #tpu.memory_space<vmem>>, vector<8x512xbf16>
    tpu.vector_store %arg7[%c168_641, %c0_642], %510 {strides = array<i32>} : memref<216x512xbf16, #tpu.memory_space<vmem>>, vector<8x512xbf16>,
    %c0_643 = arith.constant 0 : index
    %c0_644 = arith.constant 0 : index
    %c3227 = arith.constant 3227 : index
    %512 = vector.load %arg1[%c0_643, %c0_644, %c3227] : memref<1x8x4096xbf16, #tpu.memory_space<vmem>>, vector<1x8x512xbf16>
    %513 = vector.shape_cast %512 : vector<1x8x512xbf16> to vector<8x512xbf16>
    %c176_645 = arith.constant 176 : index
    %c0_646 = arith.constant 0 : index
    %514 = vector.load %arg7[%c176_645, %c0_646] : memref<216x512xbf16, #tpu.memory_space<vmem>>, vector<8x512xbf16>
    tpu.vector_store %arg7[%c176_645, %c0_646], %513 {strides = array<i32>} : memref<216x512xbf16, #tpu.memory_space<vmem>>, vector<8x512xbf16>,
    %c0_647 = arith.constant 0 : index
    %c0_648 = arith.constant 0 : index
    %c3228 = arith.constant 3228 : index
    %515 = vector.load %arg1[%c0_647, %c0_648, %c3228] : memref<1x8x4096xbf16, #tpu.memory_space<vmem>>, vector<1x8x512xbf16>
    %516 = vector.shape_cast %515 : vector<1x8x512xbf16> to vector<8x512xbf16>
    %c184_649 = arith.constant 184 : index
    %c0_650 = arith.constant 0 : index
    %517 = vector.load %arg7[%c184_649, %c0_650] : memref<216x512xbf16, #tpu.memory_space<vmem>>, vector<8x512xbf16>
    tpu.vector_store %arg7[%c184_649, %c0_650], %516 {strides = array<i32>} : memref<216x512xbf16, #tpu.memory_space<vmem>>, vector<8x512xbf16>,
    %c0_651 = arith.constant 0 : index
    %c0_652 = arith.constant 0 : index
    %c3244 = arith.constant 3244 : index
    %518 = vector.load %arg1[%c0_651, %c0_652, %c3244] : memref<1x8x4096xbf16, #tpu.memory_space<vmem>>, vector<1x8x512xbf16>
    %519 = vector.shape_cast %518 : vector<1x8x512xbf16> to vector<8x512xbf16>
    %c192_653 = arith.constant 192 : index
    %c0_654 = arith.constant 0 : index
    %520 = vector.load %arg7[%c192_653, %c0_654] : memref<216x512xbf16, #tpu.memory_space<vmem>>, vector<8x512xbf16>
    tpu.vector_store %arg7[%c192_653, %c0_654], %519 {strides = array<i32>} : memref<216x512xbf16, #tpu.memory_space<vmem>>, vector<8x512xbf16>,
    %c0_655 = arith.constant 0 : index
    %c0_656 = arith.constant 0 : index
    %c3245 = arith.constant 3245 : index
    %521 = vector.load %arg1[%c0_655, %c0_656, %c3245] : memref<1x8x4096xbf16, #tpu.memory_space<vmem>>, vector<1x8x512xbf16>
    %522 = vector.shape_cast %521 : vector<1x8x512xbf16> to vector<8x512xbf16>
    %c200_657 = arith.constant 200 : index
    %c0_658 = arith.constant 0 : index
    %523 = vector.load %arg7[%c200_657, %c0_658] : memref<216x512xbf16, #tpu.memory_space<vmem>>, vector<8x512xbf16>
    tpu.vector_store %arg7[%c200_657, %c0_658], %522 {strides = array<i32>} : memref<216x512xbf16, #tpu.memory_space<vmem>>, vector<8x512xbf16>,
    %c0_659 = arith.constant 0 : index
    %c0_660 = arith.constant 0 : index
    %c3246 = arith.constant 3246 : index
    %524 = vector.load %arg1[%c0_659, %c0_660, %c3246] : memref<1x8x4096xbf16, #tpu.memory_space<vmem>>, vector<1x8x512xbf16>
    %525 = vector.shape_cast %524 : vector<1x8x512xbf16> to vector<8x512xbf16>
    %c208_661 = arith.constant 208 : index
    %c0_662 = arith.constant 0 : index
    %526 = vector.load %arg7[%c208_661, %c0_662] : memref<216x512xbf16, #tpu.memory_space<vmem>>, vector<8x512xbf16>
    tpu.vector_store %arg7[%c208_661, %c0_662], %525 {strides = array<i32>} : memref<216x512xbf16, #tpu.memory_space<vmem>>, vector<8x512xbf16>,
    %c0_663 = arith.constant 0 : index
    %c0_664 = arith.constant 0 : index
    %527 = vector.load %arg7[%c0_663, %c0_664] : memref<216x512xbf16, #tpu.memory_space<vmem>>, vector<216x512xbf16>
    %cst_665 = arith.constant dense<0.000000e+00> : vector<32x512xf32>
    %528 = tpu.matmul %0, %527, %cst_665 {dimension_numbers = #tpu.dot_dimension_numbers<[1], [0], [0], [1], [0, 0, 1, 1], [], []>} : vector<32x216xbf16>, vector<216x512xbf16>, vector<32x512xf32> -> vector<32x512xf32>
    %c0_666 = arith.constant 0 : index
    %c2560_667 = arith.constant 2560 : index
    %529 = vector.load %arg5[%c0_666, %c2560_667] : memref<1x3328xf32, #tpu.memory_space<vmem>>, vector<1x512xf32>
    %530 = vector.broadcast %529 : vector<1x512xf32> to vector<32x512xf32>
    %531 = arith.mulf %528, %530 : vector<32x512xf32>
    %c0_668 = arith.constant 0 : index
    %c0_669 = arith.constant 0 : index
    %c2560_670 = arith.constant 2560 : index
    %532 = vector.load %arg6[%c0_668, %c0_669, %c2560_670] : memref<1x32x3328xf32, #tpu.memory_space<vmem>>, vector<1x32x512xf32>
    %533 = vector.shape_cast %532 : vector<1x32x512xf32> to vector<32x512xf32>
    %534 = vector.shape_cast %531 : vector<32x512xf32> to vector<1x32x512xf32>
    tpu.vector_store %arg6[%c0_668, %c0_669, %c2560_670], %534 {strides = array<i32>} : memref<1x32x3328xf32, #tpu.memory_space<vmem>>, vector<1x32x512xf32>,
    %c0_671 = arith.constant 0 : index
    %c0_672 = arith.constant 0 : index
    %c3072 = arith.constant 3072 : index
    %535 = vector.load %arg1[%c0_671, %c0_672, %c3072] : memref<1x8x4096xbf16, #tpu.memory_space<vmem>>, vector<1x8x256xbf16>
    %536 = vector.shape_cast %535 : vector<1x8x256xbf16> to vector<8x256xbf16>
    %c0_673 = arith.constant 0 : index
    %c0_674 = arith.constant 0 : index
    %537 = vector.load %arg7[%c0_673, %c0_674] : memref<216x512xbf16, #tpu.memory_space<vmem>>, vector<8x256xbf16>
    tpu.vector_store %arg7[%c0_673, %c0_674], %536 {strides = array<i32>} : memref<216x512xbf16, #tpu.memory_space<vmem>>, vector<8x256xbf16>,
    %c0_675 = arith.constant 0 : index
    %c0_676 = arith.constant 0 : index
    %c3073 = arith.constant 3073 : index
    %538 = vector.load %arg1[%c0_675, %c0_676, %c3073] : memref<1x8x4096xbf16, #tpu.memory_space<vmem>>, vector<1x8x256xbf16>
    %539 = vector.shape_cast %538 : vector<1x8x256xbf16> to vector<8x256xbf16>
    %c8_677 = arith.constant 8 : index
    %c0_678 = arith.constant 0 : index
    %540 = vector.load %arg7[%c8_677, %c0_678] : memref<216x512xbf16, #tpu.memory_space<vmem>>, vector<8x256xbf16>
    tpu.vector_store %arg7[%c8_677, %c0_678], %539 {strides = array<i32>} : memref<216x512xbf16, #tpu.memory_space<vmem>>, vector<8x256xbf16>,
    %c0_679 = arith.constant 0 : index
    %c0_680 = arith.constant 0 : index
    %c3074 = arith.constant 3074 : index
    %541 = vector.load %arg1[%c0_679, %c0_680, %c3074] : memref<1x8x4096xbf16, #tpu.memory_space<vmem>>, vector<1x8x256xbf16>
    %542 = vector.shape_cast %541 : vector<1x8x256xbf16> to vector<8x256xbf16>
    %c16_681 = arith.constant 16 : index
    %c0_682 = arith.constant 0 : index
    %543 = vector.load %arg7[%c16_681, %c0_682] : memref<216x512xbf16, #tpu.memory_space<vmem>>, vector<8x256xbf16>
    tpu.vector_store %arg7[%c16_681, %c0_682], %542 {strides = array<i32>} : memref<216x512xbf16, #tpu.memory_space<vmem>>, vector<8x256xbf16>,
    %c0_683 = arith.constant 0 : index
    %c0_684 = arith.constant 0 : index
    %c3090 = arith.constant 3090 : index
    %544 = vector.load %arg1[%c0_683, %c0_684, %c3090] : memref<1x8x4096xbf16, #tpu.memory_space<vmem>>, vector<1x8x256xbf16>
    %545 = vector.shape_cast %544 : vector<1x8x256xbf16> to vector<8x256xbf16>
    %c24_685 = arith.constant 24 : index
    %c0_686 = arith.constant 0 : index
    %546 = vector.load %arg7[%c24_685, %c0_686] : memref<216x512xbf16, #tpu.memory_space<vmem>>, vector<8x256xbf16>
    tpu.vector_store %arg7[%c24_685, %c0_686], %545 {strides = array<i32>} : memref<216x512xbf16, #tpu.memory_space<vmem>>, vector<8x256xbf16>,
    %c0_687 = arith.constant 0 : index
    %c0_688 = arith.constant 0 : index
    %c3091 = arith.constant 3091 : index
    %547 = vector.load %arg1[%c0_687, %c0_688, %c3091] : memref<1x8x4096xbf16, #tpu.memory_space<vmem>>, vector<1x8x256xbf16>
    %548 = vector.shape_cast %547 : vector<1x8x256xbf16> to vector<8x256xbf16>
    %c32_689 = arith.constant 32 : index
    %c0_690 = arith.constant 0 : index
    %549 = vector.load %arg7[%c32_689, %c0_690] : memref<216x512xbf16, #tpu.memory_space<vmem>>, vector<8x256xbf16>
    tpu.vector_store %arg7[%c32_689, %c0_690], %548 {strides = array<i32>} : memref<216x512xbf16, #tpu.memory_space<vmem>>, vector<8x256xbf16>,
    %c0_691 = arith.constant 0 : index
    %c0_692 = arith.constant 0 : index
    %c3092 = arith.constant 3092 : index
    %550 = vector.load %arg1[%c0_691, %c0_692, %c3092] : memref<1x8x4096xbf16, #tpu.memory_space<vmem>>, vector<1x8x256xbf16>
    %551 = vector.shape_cast %550 : vector<1x8x256xbf16> to vector<8x256xbf16>
    %c40_693 = arith.constant 40 : index
    %c0_694 = arith.constant 0 : index
    %552 = vector.load %arg7[%c40_693, %c0_694] : memref<216x512xbf16, #tpu.memory_space<vmem>>, vector<8x256xbf16>
    tpu.vector_store %arg7[%c40_693, %c0_694], %551 {strides = array<i32>} : memref<216x512xbf16, #tpu.memory_space<vmem>>, vector<8x256xbf16>,
    %c0_695 = arith.constant 0 : index
    %c0_696 = arith.constant 0 : index
    %c3108 = arith.constant 3108 : index
    %553 = vector.load %arg1[%c0_695, %c0_696, %c3108] : memref<1x8x4096xbf16, #tpu.memory_space<vmem>>, vector<1x8x256xbf16>
    %554 = vector.shape_cast %553 : vector<1x8x256xbf16> to vector<8x256xbf16>
    %c48_697 = arith.constant 48 : index
    %c0_698 = arith.constant 0 : index
    %555 = vector.load %arg7[%c48_697, %c0_698] : memref<216x512xbf16, #tpu.memory_space<vmem>>, vector<8x256xbf16>
    tpu.vector_store %arg7[%c48_697, %c0_698], %554 {strides = array<i32>} : memref<216x512xbf16, #tpu.memory_space<vmem>>, vector<8x256xbf16>,
    %c0_699 = arith.constant 0 : index
    %c0_700 = arith.constant 0 : index
    %c3109 = arith.constant 3109 : index
    %556 = vector.load %arg1[%c0_699, %c0_700, %c3109] : memref<1x8x4096xbf16, #tpu.memory_space<vmem>>, vector<1x8x256xbf16>
    %557 = vector.shape_cast %556 : vector<1x8x256xbf16> to vector<8x256xbf16>
    %c56_701 = arith.constant 56 : index
    %c0_702 = arith.constant 0 : index
    %558 = vector.load %arg7[%c56_701, %c0_702] : memref<216x512xbf16, #tpu.memory_space<vmem>>, vector<8x256xbf16>
    tpu.vector_store %arg7[%c56_701, %c0_702], %557 {strides = array<i32>} : memref<216x512xbf16, #tpu.memory_space<vmem>>, vector<8x256xbf16>,
    %c0_703 = arith.constant 0 : index
    %c0_704 = arith.constant 0 : index
    %c3110 = arith.constant 3110 : index
    %559 = vector.load %arg1[%c0_703, %c0_704, %c3110] : memref<1x8x4096xbf16, #tpu.memory_space<vmem>>, vector<1x8x256xbf16>
    %560 = vector.shape_cast %559 : vector<1x8x256xbf16> to vector<8x256xbf16>
    %c64_705 = arith.constant 64 : index
    %c0_706 = arith.constant 0 : index
    %561 = vector.load %arg7[%c64_705, %c0_706] : memref<216x512xbf16, #tpu.memory_space<vmem>>, vector<8x256xbf16>
    tpu.vector_store %arg7[%c64_705, %c0_706], %560 {strides = array<i32>} : memref<216x512xbf16, #tpu.memory_space<vmem>>, vector<8x256xbf16>,
    %c0_707 = arith.constant 0 : index
    %c0_708 = arith.constant 0 : index
    %c3396 = arith.constant 3396 : index
    %562 = vector.load %arg1[%c0_707, %c0_708, %c3396] : memref<1x8x4096xbf16, #tpu.memory_space<vmem>>, vector<1x8x256xbf16>
    %563 = vector.shape_cast %562 : vector<1x8x256xbf16> to vector<8x256xbf16>
    %c72_709 = arith.constant 72 : index
    %c0_710 = arith.constant 0 : index
    %564 = vector.load %arg7[%c72_709, %c0_710] : memref<216x512xbf16, #tpu.memory_space<vmem>>, vector<8x256xbf16>
    tpu.vector_store %arg7[%c72_709, %c0_710], %563 {strides = array<i32>} : memref<216x512xbf16, #tpu.memory_space<vmem>>, vector<8x256xbf16>,
    %c0_711 = arith.constant 0 : index
    %c0_712 = arith.constant 0 : index
    %c3397 = arith.constant 3397 : index
    %565 = vector.load %arg1[%c0_711, %c0_712, %c3397] : memref<1x8x4096xbf16, #tpu.memory_space<vmem>>, vector<1x8x256xbf16>
    %566 = vector.shape_cast %565 : vector<1x8x256xbf16> to vector<8x256xbf16>
    %c80_713 = arith.constant 80 : index
    %c0_714 = arith.constant 0 : index
    %567 = vector.load %arg7[%c80_713, %c0_714] : memref<216x512xbf16, #tpu.memory_space<vmem>>, vector<8x256xbf16>
    tpu.vector_store %arg7[%c80_713, %c0_714], %566 {strides = array<i32>} : memref<216x512xbf16, #tpu.memory_space<vmem>>, vector<8x256xbf16>,
    %c0_715 = arith.constant 0 : index
    %c0_716 = arith.constant 0 : index
    %c3398 = arith.constant 3398 : index
    %568 = vector.load %arg1[%c0_715, %c0_716, %c3398] : memref<1x8x4096xbf16, #tpu.memory_space<vmem>>, vector<1x8x256xbf16>
    %569 = vector.shape_cast %568 : vector<1x8x256xbf16> to vector<8x256xbf16>
    %c88_717 = arith.constant 88 : index
    %c0_718 = arith.constant 0 : index
    %570 = vector.load %arg7[%c88_717, %c0_718] : memref<216x512xbf16, #tpu.memory_space<vmem>>, vector<8x256xbf16>
    tpu.vector_store %arg7[%c88_717, %c0_718], %569 {strides = array<i32>} : memref<216x512xbf16, #tpu.memory_space<vmem>>, vector<8x256xbf16>,
    %c0_719 = arith.constant 0 : index
    %c0_720 = arith.constant 0 : index
    %c3414 = arith.constant 3414 : index
    %571 = vector.load %arg1[%c0_719, %c0_720, %c3414] : memref<1x8x4096xbf16, #tpu.memory_space<vmem>>, vector<1x8x256xbf16>
    %572 = vector.shape_cast %571 : vector<1x8x256xbf16> to vector<8x256xbf16>
    %c96_721 = arith.constant 96 : index
    %c0_722 = arith.constant 0 : index
    %573 = vector.load %arg7[%c96_721, %c0_722] : memref<216x512xbf16, #tpu.memory_space<vmem>>, vector<8x256xbf16>
    tpu.vector_store %arg7[%c96_721, %c0_722], %572 {strides = array<i32>} : memref<216x512xbf16, #tpu.memory_space<vmem>>, vector<8x256xbf16>,
    %c0_723 = arith.constant 0 : index
    %c0_724 = arith.constant 0 : index
    %c3415 = arith.constant 3415 : index
    %574 = vector.load %arg1[%c0_723, %c0_724, %c3415] : memref<1x8x4096xbf16, #tpu.memory_space<vmem>>, vector<1x8x256xbf16>
    %575 = vector.shape_cast %574 : vector<1x8x256xbf16> to vector<8x256xbf16>
    %c104_725 = arith.constant 104 : index
    %c0_726 = arith.constant 0 : index
    %576 = vector.load %arg7[%c104_725, %c0_726] : memref<216x512xbf16, #tpu.memory_space<vmem>>, vector<8x256xbf16>
    tpu.vector_store %arg7[%c104_725, %c0_726], %575 {strides = array<i32>} : memref<216x512xbf16, #tpu.memory_space<vmem>>, vector<8x256xbf16>,
    %c0_727 = arith.constant 0 : index
    %c0_728 = arith.constant 0 : index
    %c3416 = arith.constant 3416 : index
    %577 = vector.load %arg1[%c0_727, %c0_728, %c3416] : memref<1x8x4096xbf16, #tpu.memory_space<vmem>>, vector<1x8x256xbf16>
    %578 = vector.shape_cast %577 : vector<1x8x256xbf16> to vector<8x256xbf16>
    %c112_729 = arith.constant 112 : index
    %c0_730 = arith.constant 0 : index
    %579 = vector.load %arg7[%c112_729, %c0_730] : memref<216x512xbf16, #tpu.memory_space<vmem>>, vector<8x256xbf16>
    tpu.vector_store %arg7[%c112_729, %c0_730], %578 {strides = array<i32>} : memref<216x512xbf16, #tpu.memory_space<vmem>>, vector<8x256xbf16>,
    %c0_731 = arith.constant 0 : index
    %c0_732 = arith.constant 0 : index
    %c3432 = arith.constant 3432 : index
    %580 = vector.load %arg1[%c0_731, %c0_732, %c3432] : memref<1x8x4096xbf16, #tpu.memory_space<vmem>>, vector<1x8x256xbf16>
    %581 = vector.shape_cast %580 : vector<1x8x256xbf16> to vector<8x256xbf16>
    %c120_733 = arith.constant 120 : index
    %c0_734 = arith.constant 0 : index
    %582 = vector.load %arg7[%c120_733, %c0_734] : memref<216x512xbf16, #tpu.memory_space<vmem>>, vector<8x256xbf16>
    tpu.vector_store %arg7[%c120_733, %c0_734], %581 {strides = array<i32>} : memref<216x512xbf16, #tpu.memory_space<vmem>>, vector<8x256xbf16>,
    %c0_735 = arith.constant 0 : index
    %c0_736 = arith.constant 0 : index
    %c3433 = arith.constant 3433 : index
    %583 = vector.load %arg1[%c0_735, %c0_736, %c3433] : memref<1x8x4096xbf16, #tpu.memory_space<vmem>>, vector<1x8x256xbf16>
    %584 = vector.shape_cast %583 : vector<1x8x256xbf16> to vector<8x256xbf16>
    %c128_737 = arith.constant 128 : index
    %c0_738 = arith.constant 0 : index
    %585 = vector.load %arg7[%c128_737, %c0_738] : memref<216x512xbf16, #tpu.memory_space<vmem>>, vector<8x256xbf16>
    tpu.vector_store %arg7[%c128_737, %c0_738], %584 {strides = array<i32>} : memref<216x512xbf16, #tpu.memory_space<vmem>>, vector<8x256xbf16>,
    %c0_739 = arith.constant 0 : index
    %c0_740 = arith.constant 0 : index
    %c3434 = arith.constant 3434 : index
    %586 = vector.load %arg1[%c0_739, %c0_740, %c3434] : memref<1x8x4096xbf16, #tpu.memory_space<vmem>>, vector<1x8x256xbf16>
    %587 = vector.shape_cast %586 : vector<1x8x256xbf16> to vector<8x256xbf16>
    %c136_741 = arith.constant 136 : index
    %c0_742 = arith.constant 0 : index
    %588 = vector.load %arg7[%c136_741, %c0_742] : memref<216x512xbf16, #tpu.memory_space<vmem>>, vector<8x256xbf16>
    tpu.vector_store %arg7[%c136_741, %c0_742], %587 {strides = array<i32>} : memref<216x512xbf16, #tpu.memory_space<vmem>>, vector<8x256xbf16>,
    %c0_743 = arith.constant 0 : index
    %c0_744 = arith.constant 0 : index
    %c3720 = arith.constant 3720 : index
    %589 = vector.load %arg1[%c0_743, %c0_744, %c3720] : memref<1x8x4096xbf16, #tpu.memory_space<vmem>>, vector<1x8x256xbf16>
    %590 = vector.shape_cast %589 : vector<1x8x256xbf16> to vector<8x256xbf16>
    %c144_745 = arith.constant 144 : index
    %c0_746 = arith.constant 0 : index
    %591 = vector.load %arg7[%c144_745, %c0_746] : memref<216x512xbf16, #tpu.memory_space<vmem>>, vector<8x256xbf16>
    tpu.vector_store %arg7[%c144_745, %c0_746], %590 {strides = array<i32>} : memref<216x512xbf16, #tpu.memory_space<vmem>>, vector<8x256xbf16>,
    %c0_747 = arith.constant 0 : index
    %c0_748 = arith.constant 0 : index
    %c3721 = arith.constant 3721 : index
    %592 = vector.load %arg1[%c0_747, %c0_748, %c3721] : memref<1x8x4096xbf16, #tpu.memory_space<vmem>>, vector<1x8x256xbf16>
    %593 = vector.shape_cast %592 : vector<1x8x256xbf16> to vector<8x256xbf16>
    %c152_749 = arith.constant 152 : index
    %c0_750 = arith.constant 0 : index
    %594 = vector.load %arg7[%c152_749, %c0_750] : memref<216x512xbf16, #tpu.memory_space<vmem>>, vector<8x256xbf16>
    tpu.vector_store %arg7[%c152_749, %c0_750], %593 {strides = array<i32>} : memref<216x512xbf16, #tpu.memory_space<vmem>>, vector<8x256xbf16>,
    %c0_751 = arith.constant 0 : index
    %c0_752 = arith.constant 0 : index
    %c3722 = arith.constant 3722 : index
    %595 = vector.load %arg1[%c0_751, %c0_752, %c3722] : memref<1x8x4096xbf16, #tpu.memory_space<vmem>>, vector<1x8x256xbf16>
    %596 = vector.shape_cast %595 : vector<1x8x256xbf16> to vector<8x256xbf16>
    %c160_753 = arith.constant 160 : index
    %c0_754 = arith.constant 0 : index
    %597 = vector.load %arg7[%c160_753, %c0_754] : memref<216x512xbf16, #tpu.memory_space<vmem>>, vector<8x256xbf16>
    tpu.vector_store %arg7[%c160_753, %c0_754], %596 {strides = array<i32>} : memref<216x512xbf16, #tpu.memory_space<vmem>>, vector<8x256xbf16>,
    %c0_755 = arith.constant 0 : index
    %c0_756 = arith.constant 0 : index
    %c3738 = arith.constant 3738 : index
    %598 = vector.load %arg1[%c0_755, %c0_756, %c3738] : memref<1x8x4096xbf16, #tpu.memory_space<vmem>>, vector<1x8x256xbf16>
    %599 = vector.shape_cast %598 : vector<1x8x256xbf16> to vector<8x256xbf16>
    %c168_757 = arith.constant 168 : index
    %c0_758 = arith.constant 0 : index
    %600 = vector.load %arg7[%c168_757, %c0_758] : memref<216x512xbf16, #tpu.memory_space<vmem>>, vector<8x256xbf16>
    tpu.vector_store %arg7[%c168_757, %c0_758], %599 {strides = array<i32>} : memref<216x512xbf16, #tpu.memory_space<vmem>>, vector<8x256xbf16>,
    %c0_759 = arith.constant 0 : index
    %c0_760 = arith.constant 0 : index
    %c3739 = arith.constant 3739 : index
    %601 = vector.load %arg1[%c0_759, %c0_760, %c3739] : memref<1x8x4096xbf16, #tpu.memory_space<vmem>>, vector<1x8x256xbf16>
    %602 = vector.shape_cast %601 : vector<1x8x256xbf16> to vector<8x256xbf16>
    %c176_761 = arith.constant 176 : index
    %c0_762 = arith.constant 0 : index
    %603 = vector.load %arg7[%c176_761, %c0_762] : memref<216x512xbf16, #tpu.memory_space<vmem>>, vector<8x256xbf16>
    tpu.vector_store %arg7[%c176_761, %c0_762], %602 {strides = array<i32>} : memref<216x512xbf16, #tpu.memory_space<vmem>>, vector<8x256xbf16>,
    %c0_763 = arith.constant 0 : index
    %c0_764 = arith.constant 0 : index
    %c3740 = arith.constant 3740 : index
    %604 = vector.load %arg1[%c0_763, %c0_764, %c3740] : memref<1x8x4096xbf16, #tpu.memory_space<vmem>>, vector<1x8x256xbf16>
    %605 = vector.shape_cast %604 : vector<1x8x256xbf16> to vector<8x256xbf16>
    %c184_765 = arith.constant 184 : index
    %c0_766 = arith.constant 0 : index
    %606 = vector.load %arg7[%c184_765, %c0_766] : memref<216x512xbf16, #tpu.memory_space<vmem>>, vector<8x256xbf16>
    tpu.vector_store %arg7[%c184_765, %c0_766], %605 {strides = array<i32>} : memref<216x512xbf16, #tpu.memory_space<vmem>>, vector<8x256xbf16>,
    %c0_767 = arith.constant 0 : index
    %c0_768 = arith.constant 0 : index
    %c3756 = arith.constant 3756 : index
    %607 = vector.load %arg1[%c0_767, %c0_768, %c3756] : memref<1x8x4096xbf16, #tpu.memory_space<vmem>>, vector<1x8x256xbf16>
    %608 = vector.shape_cast %607 : vector<1x8x256xbf16> to vector<8x256xbf16>
    %c192_769 = arith.constant 192 : index
    %c0_770 = arith.constant 0 : index
    %609 = vector.load %arg7[%c192_769, %c0_770] : memref<216x512xbf16, #tpu.memory_space<vmem>>, vector<8x256xbf16>
    tpu.vector_store %arg7[%c192_769, %c0_770], %608 {strides = array<i32>} : memref<216x512xbf16, #tpu.memory_space<vmem>>, vector<8x256xbf16>,
    %c0_771 = arith.constant 0 : index
    %c0_772 = arith.constant 0 : index
    %c3757 = arith.constant 3757 : index
    %610 = vector.load %arg1[%c0_771, %c0_772, %c3757] : memref<1x8x4096xbf16, #tpu.memory_space<vmem>>, vector<1x8x256xbf16>
    %611 = vector.shape_cast %610 : vector<1x8x256xbf16> to vector<8x256xbf16>
    %c200_773 = arith.constant 200 : index
    %c0_774 = arith.constant 0 : index
    %612 = vector.load %arg7[%c200_773, %c0_774] : memref<216x512xbf16, #tpu.memory_space<vmem>>, vector<8x256xbf16>
    tpu.vector_store %arg7[%c200_773, %c0_774], %611 {strides = array<i32>} : memref<216x512xbf16, #tpu.memory_space<vmem>>, vector<8x256xbf16>,
    %c0_775 = arith.constant 0 : index
    %c0_776 = arith.constant 0 : index
    %c3758 = arith.constant 3758 : index
    %613 = vector.load %arg1[%c0_775, %c0_776, %c3758] : memref<1x8x4096xbf16, #tpu.memory_space<vmem>>, vector<1x8x256xbf16>
    %614 = vector.shape_cast %613 : vector<1x8x256xbf16> to vector<8x256xbf16>
    %c208_777 = arith.constant 208 : index
    %c0_778 = arith.constant 0 : index
    %615 = vector.load %arg7[%c208_777, %c0_778] : memref<216x512xbf16, #tpu.memory_space<vmem>>, vector<8x256xbf16>
    tpu.vector_store %arg7[%c208_777, %c0_778], %614 {strides = array<i32>} : memref<216x512xbf16, #tpu.memory_space<vmem>>, vector<8x256xbf16>,
    %c0_779 = arith.constant 0 : index
    %c0_780 = arith.constant 0 : index
    %616 = vector.load %arg7[%c0_779, %c0_780] : memref<216x512xbf16, #tpu.memory_space<vmem>>, vector<216x256xbf16>
    %cst_781 = arith.constant dense<0.000000e+00> : vector<32x256xf32>
    %617 = tpu.matmul %0, %616, %cst_781 {dimension_numbers = #tpu.dot_dimension_numbers<[1], [0], [0], [1], [0, 0, 1, 1], [], []>} : vector<32x216xbf16>, vector<216x256xbf16>, vector<32x256xf32> -> vector<32x256xf32>
    %c0_782 = arith.constant 0 : index
    %c3072_783 = arith.constant 3072 : index
    %618 = vector.load %arg5[%c0_782, %c3072_783] : memref<1x3328xf32, #tpu.memory_space<vmem>>, vector<1x256xf32>
    %619 = vector.broadcast %618 : vector<1x256xf32> to vector<32x256xf32>
    %620 = arith.mulf %617, %619 : vector<32x256xf32>
    %c0_784 = arith.constant 0 : index
    %c0_785 = arith.constant 0 : index
    %c3072_786 = arith.constant 3072 : index
    %621 = vector.load %arg6[%c0_784, %c0_785, %c3072_786] : memref<1x32x3328xf32, #tpu.memory_space<vmem>>, vector<1x32x256xf32>
    %622 = vector.shape_cast %621 : vector<1x32x256xf32> to vector<32x256xf32>
    %623 = vector.shape_cast %620 : vector<32x256xf32> to vector<1x32x256xf32>
    tpu.vector_store %arg6[%c0_784, %c0_785, %c3072_786], %623 {strides = array<i32>} : memref<1x32x3328xf32, #tpu.memory_space<vmem>>, vector<1x32x256xf32>,
    %c0_787 = arith.constant 0 : index
    %c0_788 = arith.constant 0 : index
    %c0_789 = arith.constant 0 : index
    %624 = vector.load %arg6[%c0_787, %c0_788, %c0_789] : memref<1x32x3328xf32, #tpu.memory_space<vmem>>, vector<1x32x3328xf32>
    %625 = vector.shape_cast %624 : vector<1x32x3328xf32> to vector<32x3328xf32>
    %cst_790 = arith.constant dense<0.000000e+00> : vector<32xf32>
    %626 = vector.multi_reduction <add>, %625, %cst_790 [1] : vector<32x3328xf32> to vector<32xf32>
    %627 = vector.shape_cast %626 : vector<32xf32> to vector<32x1xf32>
    %cst_791 = arith.constant 4.8828125E-4 : f32
    %628 = vector.broadcast %cst_791 : f32 to vector<32x1xf32>
    %629 = arith.mulf %627, %628 : vector<32x1xf32>
    %630 = vector.broadcast %629 : vector<32x1xf32> to vector<32x3328xf32>
    %631 = arith.subf %625, %630 : vector<32x3328xf32>
    %632 = arith.mulf %631, %631 : vector<32x3328xf32>
    %cst_792 = arith.constant dense<0.000000e+00> : vector<32xf32>
    %633 = vector.multi_reduction <add>, %632, %cst_792 [1] : vector<32x3328xf32> to vector<32xf32>
    %634 = vector.shape_cast %633 : vector<32xf32> to vector<32x1xf32>
    %cst_793 = arith.constant 1.280000e+03 : f32
    %635 = vector.broadcast %cst_793 : f32 to vector<32x1xf32>
    %636 = arith.mulf %635, %629 : vector<32x1xf32>
    %637 = arith.mulf %636, %629 : vector<32x1xf32>
    %638 = arith.subf %634, %637 : vector<32x1xf32>
    %cst_794 = arith.constant 4.8828125E-4 : f32
    %639 = vector.broadcast %cst_794 : f32 to vector<32x1xf32>
    %640 = arith.mulf %638, %639 : vector<32x1xf32>
    %cst_795 = arith.constant 0.000000e+00 : f32
    %641 = vector.broadcast %cst_795 : f32 to vector<32x1xf32>
    %642 = arith.maximumf %640, %641 : vector<32x1xf32>
    %cst_796 = arith.constant 9.99999974E-6 : f32
    %643 = vector.broadcast %cst_796 : f32 to vector<32x1xf32>
    %644 = arith.addf %642, %643 : vector<32x1xf32>
    %645 = math.rsqrt %644 : vector<32x1xf32>
    %c0_797 = arith.constant 0 : index
    %c0_798 = arith.constant 0 : index
    %646 = vector.load %arg3[%c0_797, %c0_798] : memref<32x1xf32, #tpu.memory_space<vmem>>, vector<32x1xf32>
    %647 = arith.mulf %645, %646 : vector<32x1xf32>
    %648 = vector.broadcast %629 : vector<32x1xf32> to vector<32x3328xf32>
    %649 = arith.subf %625, %648 : vector<32x3328xf32>
    %650 = vector.broadcast %647 : vector<32x1xf32> to vector<32x3328xf32>
    %651 = arith.mulf %649, %650 : vector<32x3328xf32>
    %c0_799 = arith.constant 0 : index
    %c0_800 = arith.constant 0 : index
    %652 = vector.load %arg4[%c0_799, %c0_800] : memref<32x1xf32, #tpu.memory_space<vmem>>, vector<32x1xf32>
    %653 = vector.broadcast %652 : vector<32x1xf32> to vector<32x3328xf32>
    %654 = arith.addf %651, %653 : vector<32x3328xf32>
    %cst_801 = arith.constant 0.000000e+00 : f32
    %655 = vector.broadcast %cst_801 : f32 to vector<32x3328xf32>
    %656 = arith.maximumf %654, %655 : vector<32x3328xf32>
    %c0_802 = arith.constant 0 : index
    %c0_803 = arith.constant 0 : index
    %c0_804 = arith.constant 0 : index
    %657 = vector.load %arg6[%c0_802, %c0_803, %c0_804] : memref<1x32x3328xf32, #tpu.memory_space<vmem>>, vector<1x32x3328xf32>
    %658 = vector.shape_cast %657 : vector<1x32x3328xf32> to vector<32x3328xf32>
    %659 = vector.shape_cast %656 : vector<32x3328xf32> to vector<1x32x3328xf32>
    tpu.vector_store %arg6[%c0_802, %c0_803, %c0_804], %659 {strides = array<i32>} : memref<1x32x3328xf32, #tpu.memory_space<vmem>>, vector<1x32x3328xf32>,
    return
  }
  func.func @transform_0(%arg0: i32) -> (i32, i32, i32) {
    %c0_i32 = arith.constant 0 : i32
    %c0_i32_0 = arith.constant 0 : i32
    %c0_i32_1 = arith.constant 0 : i32
    return %arg0, %c0_i32, %c0_i32_0 : i32, i32, i32
  }
  func.func @transform_1(%arg0: i32) -> (i32, i32) {
    %c0_i32 = arith.constant 0 : i32
    %c0_i32_0 = arith.constant 0 : i32
    %c0_i32_1 = arith.constant 0 : i32
    return %c0_i32, %c0_i32_0 : i32, i32
  }
  func.func @transform_2(%arg0: i32) -> (i32, i32) {
    %c0_i32 = arith.constant 0 : i32
    %c0_i32_0 = arith.constant 0 : i32
    %c0_i32_1 = arith.constant 0 : i32
    return %c0_i32, %c0_i32_0 : i32, i32
  }
  func.func @transform_3(%arg0: i32) -> (i32, i32) {
    %c0_i32 = arith.constant 0 : i32
    %c0_i32_0 = arith.constant 0 : i32
    %c0_i32_1 = arith.constant 0 : i32
    return %c0_i32, %c0_i32_0 : i32, i32
  }
  func.func @transform_4(%arg0: i32) -> (i32, i32) {
    %c0_i32 = arith.constant 0 : i32
    %c0_i32_0 = arith.constant 0 : i32
    %c0_i32_1 = arith.constant 0 : i32
    return %c0_i32, %c0_i32_0 : i32, i32
  }
  func.func @transform_5(%arg0: i32) -> (i32, i32, i32) {
    %c0_i32 = arith.constant 0 : i32
    %c0_i32_0 = arith.constant 0 : i32
    %c0_i32_1 = arith.constant 0 : i32
    return %arg0, %c0_i32, %c0_i32_0 : i32, i32, i32
  }
}

</mosaic_0001>

<llo_original>
// kernel: tpu_custom_call.1
$region0: #{tpu_custom_call.1}
  #allocation0 [shape = 'u32[]', space=smem, size = 0x4, offset = 0x4, fixed_abs, tag = 'smem constant byte address 0x4 - core index']
  #allocation1 [shape = 'u32[144,128]{1,0:T(1,128)}', space=vmem, size = 0x12000, scoped, tag = 'internal scratch']
  #allocation2 [shape = 'bf16[216,512]{1,0:T(8,128)(2,1)}', space=vmem, size = 0x36000, scoped, tag = 'scratch operand']
  %s0 = inlined_call_operand.hbm [shape: bf16[2,8,4096], index: 0, kind: input, shape index: {}]
  %s1 = inlined_call_operand.vmem [shape: bf16[32,216], index: 1, kind: input, shape index: {}]
  %s2 = inlined_call_operand.vmem [shape: f32[32,1], index: 2, kind: input, shape index: {}]
  %s3 = inlined_call_operand.vmem [shape: f32[32,1], index: 3, kind: input, shape index: {}]
  %s4 = inlined_call_operand.vmem [shape: f32[1,3328], index: 4, kind: input, shape index: {}]
  %s5 = inlined_call_operand.hbm [shape: f32[2,32,3328], index: 5, kind: output, shape index: {}]
  %s6 = sld [smem:[#allocation0]]
  $region57: #{tpu_custom_call.1} parent=0
    _
  %s8 = ssub.s32 1, %s6
  %s9 = scalar_select 0, %s8, %s6
  $region1: #{tpu_custom_call.1} parent=0
    #allocation3 [shape = 'u8[131072]{0}', space=vmem, size = 0x20000, scoped, tag = 'input window, operand 0']
    #allocation4 [shape = 's32[2]{0}', space=sflag, size = 0x8, scoped, tag = 'scoped memory for tpu_custom_call.1']
    #allocation5 [shape = 's32[2]{0}', space=sflag, size = 0x8, scoped, tag = 'scoped memory for tpu_custom_call.1']
    #allocation6 [shape = 'u8[851968]{0}', space=vmem, size = 0xd0000, scoped, tag = 'output window, operand 0']
    %10 = vsyncpa [#allocation4], 0
    %s11 = scalar_lea.sflag [#allocation4], 1
    %12 = vsyncpa %s11, 0
    %13 = vsyncpa [#allocation5], 0
    %s14 = scalar_lea.sflag [#allocation5], 1
    %15 = vsyncpa %s14, 0
    loop: start=0, step=1, limit=4
    $region2: #{tpu_custom_call.1} parent=1 // loop_pre_header
      _
    $region3: #{tpu_custom_call.1} parent=1 // loop_header
      %s17 = sphi 0, %s21
      %p18 = scmp.ge.s32.totalorder %s17, 4
      %s27 = sphi 0, %s29
      %s30 = sphi 0, %s27
      %s31 = sphi 0, %s30
      %s47 = sphi 0, %s31
      %s51 = sphi 0, %s51
      %s53 = sphi 0, %s51
      %s54 = sphi 0, %s53
      %s68 = sphi 0, %s54
      %s72 = sphi 0, %s72
      %s74 = sphi 0, %s72
      %s75 = sphi 0, %s74
      %s89 = sphi 0, %s75
      %s93 = sphi 0, %s93
      %s95 = sphi 0, %s93
      %s96 = sphi 0, %s95
      %s110 = sphi 0, %s96
      %s114 = sphi 0, %s114
      %s116 = sphi 0, %s114
      %s117 = sphi 0, %s116
      %s131 = sphi 0, %s117
      %s137 = sphi 0, %s139
      %s140 = sphi 0, %s137
      %s141 = sphi 0, %s140
      %s157 = sphi 0, %s141
    $region4: #{tpu_custom_call.1} parent=1 // loop_header_branch
      %20 = sbr.rel (%p18) target = $region8
    $region5: #{tpu_custom_call.1} parent=1 // loop_body
      %s22 = ssub.s32 %s17, 1
      %s23 = ssub.s32 %s17, 2
      %s24 = sadd.s32 %s17, 1
      %s25 = ssub.s32 %s17, %s24
      %p26 = scmp.eq.s32.totalorder %s25, 0
      %s28 = sadd.s32 %s27, 1
      %s29 = scalar_select %p26, %s27, %s28
      %p32 = pneg %p26
      %p33 = scmp.eq.s32.totalorder %s17, 1
      %p34 = por %p32, %p33
      %p35 = scmp.ne.s32.totalorder %s27, %s30
      %p36 = scmp.eq.s32.totalorder %s17, 0
      %p37 = por %p35, %p36
      %p38 = scmp.ne.s32.totalorder %s27, %s30
      %p39 = scmp.eq.s32.totalorder %s22, 1
      %p40 = por %p38, %p39
      %p41 = scmp.ne.s32.totalorder %s30, %s31
      %p42 = scmp.eq.s32.totalorder %s22, 0
      %p43 = por %p41, %p42
      %p44 = scmp.ne.s32.totalorder %s30, %s31
      %p45 = scmp.eq.s32.totalorder %s23, 1
      %p46 = por %p44, %p45
      %p48 = scmp.ne.s32.totalorder %s31, %s47
      %p49 = scmp.eq.s32.totalorder %s23, 0
      %p50 = por %p48, %p49
      %s52 = sadd.s32 %s51, 1
      %p55 = scmp.eq.s32.totalorder %s17, 1
      %p56 = scmp.ne.s32.totalorder %s51, %s53
      %p57 = scmp.eq.s32.totalorder %s17, 0
      %p58 = por %p56, %p57
      %p59 = scmp.ne.s32.totalorder %s51, %s53
      %p60 = scmp.eq.s32.totalorder %s22, 1
      %p61 = por %p59, %p60
      %p62 = scmp.ne.s32.totalorder %s53, %s54
      %p63 = scmp.eq.s32.totalorder %s22, 0
      %p64 = por %p62, %p63
      %p65 = scmp.ne.s32.totalorder %s53, %s54
      %p66 = scmp.eq.s32.totalorder %s23, 1
      %p67 = por %p65, %p66
      %p69 = scmp.ne.s32.totalorder %s54, %s68
      %p70 = scmp.eq.s32.totalorder %s23, 0
      %p71 = por %p69, %p70
      %s73 = sadd.s32 %s72, 1
      %p76 = scmp.eq.s32.totalorder %s17, 1
      %p77 = scmp.ne.s32.totalorder %s72, %s74
      %p78 = scmp.eq.s32.totalorder %s17, 0
      %p79 = por %p77, %p78
      %p80 = scmp.ne.s32.totalorder %s72, %s74
      %p81 = scmp.eq.s32.totalorder %s22, 1
      %p82 = por %p80, %p81
      %p83 = scmp.ne.s32.totalorder %s74, %s75
      %p84 = scmp.eq.s32.totalorder %s22, 0
      %p85 = por %p83, %p84
      %p86 = scmp.ne.s32.totalorder %s74, %s75
      %p87 = scmp.eq.s32.totalorder %s23, 1
      %p88 = por %p86, %p87
      %p90 = scmp.ne.s32.totalorder %s75, %s89
      %p91 = scmp.eq.s32.totalorder %s23, 0
      %p92 = por %p90, %p91
      %s94 = sadd.s32 %s93, 1
      %p97 = scmp.eq.s32.totalorder %s17, 1
      %p98 = scmp.ne.s32.totalorder %s93, %s95
      %p99 = scmp.eq.s32.totalorder %s17, 0
      %p100 = por %p98, %p99
      %p101 = scmp.ne.s32.totalorder %s93, %s95
      %p102 = scmp.eq.s32.totalorder %s22, 1
      %p103 = por %p101, %p102
      %p104 = scmp.ne.s32.totalorder %s95, %s96
      %p105 = scmp.eq.s32.totalorder %s22, 0
      %p106 = por %p104, %p105
      %p107 = scmp.ne.s32.totalorder %s95, %s96
      %p108 = scmp.eq.s32.totalorder %s23, 1
      %p109 = por %p107, %p108
      %p111 = scmp.ne.s32.totalorder %s96, %s110
      %p112 = scmp.eq.s32.totalorder %s23, 0
      %p113 = por %p111, %p112
      %s115 = sadd.s32 %s114, 1
      %p118 = scmp.eq.s32.totalorder %s17, 1
      %p119 = scmp.ne.s32.totalorder %s114, %s116
      %p120 = scmp.eq.s32.totalorder %s17, 0
      %p121 = por %p119, %p120
      %p122 = scmp.ne.s32.totalorder %s114, %s116
      %p123 = scmp.eq.s32.totalorder %s22, 1
      %p124 = por %p122, %p123
      %p125 = scmp.ne.s32.totalorder %s116, %s117
      %p126 = scmp.eq.s32.totalorder %s22, 0
      %p127 = por %p125, %p126
      %p128 = scmp.ne.s32.totalorder %s116, %s117
      %p129 = scmp.eq.s32.totalorder %s23, 1
      %p130 = por %p128, %p129
      %p132 = scmp.ne.s32.totalorder %s117, %s131
      %p133 = scmp.eq.s32.totalorder %s23, 0
      %p134 = por %p132, %p133
      %s135 = ssub.s32 %s17, %s24
      %p136 = scmp.eq.s32.totalorder %s135, 0
      %s138 = sadd.s32 %s137, 1
      %s139 = scalar_select %p136, %s137, %s138
      %p142 = pneg %p136
      %p143 = scmp.eq.s32.totalorder %s17, 1
      %p144 = por %p142, %p143
      %p145 = scmp.ne.s32.totalorder %s137, %s140
      %p146 = scmp.eq.s32.totalorder %s17, 0
      %p147 = por %p145, %p146
      %p148 = scmp.ne.s32.totalorder %s137, %s140
      %p149 = scmp.eq.s32.totalorder %s22, 1
      %p150 = por %p148, %p149
      %p151 = scmp.ne.s32.totalorder %s140, %s141
      %p152 = scmp.eq.s32.totalorder %s22, 0
      %p153 = por %p151, %p152
      %p154 = scmp.ne.s32.totalorder %s140, %s141
      %p155 = scmp.eq.s32.totalorder %s23, 1
      %p156 = por %p154, %p155
      %p158 = scmp.ne.s32.totalorder %s141, %s157
      %p159 = scmp.eq.s32.totalorder %s23, 0
      %p160 = por %p158, %p159
      %p161 = scmp.le.s32.totalorder 1, %s17
      %p162 = scmp.lt.s32.totalorder %s17, 3
      %p163 = pnand %p161, %p162
      %p164 = pneg %p163
      // Predicated region
      $region9: #{tpu_custom_call.1} parent=5 // pred_check
        _
      $region10: #{tpu_custom_call.1} parent=5 // pred_check_branch
        %166 = sbr.rel (%p163) target = $region12
      $region11: #{tpu_custom_call.1} parent=5 // pred_region
        %s167 = ssub.s32 %s17, 1
        // Predicated region
        $region13: #{tpu_custom_call.1} parent=11 // pred_check
          %p168 = pneg %p64
        $region14: #{tpu_custom_call.1} parent=11 // pred_check_branch
          %170 = sbr.rel (%p168) target = $region16
        $region15: #{tpu_custom_call.1} parent=11 // pred_region
          _
        $region16: #{tpu_custom_call.1} parent=11 // pred_fallthru
          _
        // Predicated region
        $region17: #{tpu_custom_call.1} parent=11 // pred_check
          %p171 = pneg %p85
        $region18: #{tpu_custom_call.1} parent=11 // pred_check_branch
          %173 = sbr.rel (%p171) target = $region20
        $region19: #{tpu_custom_call.1} parent=11 // pred_region
          _
        $region20: #{tpu_custom_call.1} parent=11 // pred_fallthru
          _
        // Predicated region
        $region21: #{tpu_custom_call.1} parent=11 // pred_check
          %p174 = pneg %p106
        $region22: #{tpu_custom_call.1} parent=11 // pred_check_branch
          %176 = sbr.rel (%p174) target = $region24
        $region23: #{tpu_custom_call.1} parent=11 // pred_region
          _
        $region24: #{tpu_custom_call.1} parent=11 // pred_fallthru
          _
        // Predicated region
        $region25: #{tpu_custom_call.1} parent=11 // pred_check
          %p177 = pneg %p127
        $region26: #{tpu_custom_call.1} parent=11 // pred_check_branch
          %179 = sbr.rel (%p177) target = $region28
        $region27: #{tpu_custom_call.1} parent=11 // pred_region
          _
        $region28: #{tpu_custom_call.1} parent=11 // pred_fallthru
          _
      $region12: #{tpu_custom_call.1} parent=5 // pred_fallthru
        _
      %p180 = scmp.lt.s32.totalorder %s17, 2
      // Predicated region
      $region29: #{tpu_custom_call.1} parent=5 // pred_check
        %p181 = pneg %p180
      $region30: #{tpu_custom_call.1} parent=5 // pred_check_branch
        %183 = sbr.rel (%p181) target = $region32
      $region31: #{tpu_custom_call.1} parent=5 // pred_region
        // Predicated region
        $region33: #{tpu_custom_call.1} parent=31 // pred_check
          %p184 = pneg %p37
        $region34: #{tpu_custom_call.1} parent=31 // pred_check_branch
          %186 = sbr.rel (%p184) target = $region36
        $region35: #{tpu_custom_call.1} parent=31 // pred_region
          %s187 = sand.u32 %s27, 1
          %s188 = scalar_lea.sflag [#allocation4], %s187
          %s189 = sand.u32 %s27, 1
          %s190 = smul.addr %s189, 128
          %s191 = scalar_lea.vmem [#allocation3], %s190
          %s193 = ssub.s32 2048, 2048
          %194 = vsyncadd %s188, %s193
          %s195 = smul.addr %s17, 32
          %s196 = smul.addr %s195, 64
          %s197 = scalar_lea.hbm %s0, %s196
          %s199 = sshll.u32 %s191, 4
          %s200 = int_to_ptr.vmem [resolvable:$true] %s199
          %202 = dma.hbm_to_vmem [thread:$0]  %s197, 2048, %s200, %s188
        $region36: #{tpu_custom_call.1} parent=31 // pred_fallthru
          _
      $region32: #{tpu_custom_call.1} parent=5 // pred_fallthru
        _
      %p203 = scmp.le.s32.totalorder 1, %s17
      %p204 = scmp.lt.s32.totalorder %s17, 3
      %p205 = pnand %p203, %p204
      %p206 = pneg %p205
      // Predicated region
      $region37: #{tpu_custom_call.1} parent=5 // pred_check
        _
      $region38: #{tpu_custom_call.1} parent=5 // pred_check_branch
        %208 = sbr.rel (%p205) target = $region40
      $region39: #{tpu_custom_call.1} parent=5 // pred_region
        %s209 = ssub.s32 %s17, 1
        %s210 = sand.u32 %s30, 1
        %s211 = scalar_lea.sflag [#allocation4], %s210
        %s212 = sand.u32 %s30, 1
        %s213 = smul.addr %s212, 128
        %s214 = scalar_lea.vmem [#allocation3], %s213
        // Predicated region
        $region41: #{tpu_custom_call.1} parent=39 // pred_check
          %p215 = pneg %p43
        $region42: #{tpu_custom_call.1} parent=39 // pred_check_branch
          %217 = sbr.rel (%p215) target = $region44
        $region43: #{tpu_custom_call.1} parent=39 // pred_region
          %218 = dma.done %s211, 2048
        $region44: #{tpu_custom_call.1} parent=39 // pred_fallthru
          _
        %s219 = sand.u32 %s30, 1
        %s220 = scalar_lea.sflag [#allocation4], %s219
        %s221 = sand.u32 %s30, 1
        %s222 = smul.addr %s221, 128
        %s223 = scalar_lea.vmem [#allocation3], %s222
        %p224 = pneg %p43
        %p225 = pneg %p40
        %p226 = pneg %p64
        %p227 = pneg %p61
        %p228 = pneg %p85
        %p229 = pneg %p82
        %p230 = pneg %p106
        %p231 = pneg %p103
        %p232 = pneg %p127
        %p233 = pneg %p124
        %p234 = pneg %p153
        %p235 = pneg %p150
        %s236 = sand.u32 %s140, 1
        %s237 = scalar_lea.sflag [#allocation5], %s236
        %s238 = sand.u32 %s140, 1
        %s239 = smul.addr %s238, 832
        %s240 = scalar_lea.vmem [#allocation6], %s239
        %v242 = vld [vmem:[%s1] sm:$0xff]
        %v243 = vld [vmem:[%s1 + $0x8] sm:$0xff]
        %v244 = vld [vmem:[%s1 + $0x10] sm:$0xff]
        %v245 = vld [vmem:[%s1 + $0x18] sm:$0xff]
        %v246 = vld [vmem:[%s214] sm:$0xff]
        %v247 = vld [vmem:[%s214 + $0x8] sm:$0xff]
        %248 = vst [vmem:[#allocation2] sm:$0xff] %v246
        %249 = vst [vmem:[#allocation2 + $0x8] sm:$0xff] %v247
        %v250 = vld [vmem:[%s214] sm:$0xff]
        %v251 = vld [vmem:[%s214 + $0x8] sm:$0xff]
        %v252 = vld [vmem:[%s214 + $0x10] sm:$0xf]
        %256 = vrot.lane.b32.xlu0 %v250, 127
        %v257 = vpop.permute.xlu0 %256
        %258 = vrot.lane.b32.xlu0 %v251, 127
        %v259 = vpop.permute.xlu0 %258
        %260 = vrot.lane.b32.xlu0 %v252, 127
        %v261 = vpop.permute.xlu0 %260
        %v262 = vrot.slane %v257, 4
        %v263 = vrot.slane %v259, 4
        %v264 = vrot.slane %v261, 4
        %vm265 = vcmask 1043456
        %v266 = vsel %vm265, %v262, %v263
        %vm267 = vcmask 1039360
        %v268 = vsel %vm267, %v257, %v266
        %v269 = vsel %vm265, %v263, %v264
        %v270 = vsel %vm267, %v259, %v269
        %273 = vst [vmem:[#allocation2 + $0x10] sm:$0xff] %v268
        %274 = vst [vmem:[#allocation2 + $0x18] sm:$0xff] %v270
        %v275 = vld [vmem:[%s214] sm:$0xff]
        %v276 = vld [vmem:[%s214 + $0x8] sm:$0xff]
        %v277 = vld [vmem:[%s214 + $0x10] sm:$0xf]
        %281 = vrot.lane.b32.xlu0 %v275, 126
        %v282 = vpop.permute.xlu0 %281
        %283 = vrot.lane.b32.xlu0 %v276, 126
        %v284 = vpop.permute.xlu0 %283
        %285 = vrot.lane.b32.xlu0 %v277, 126
        %v286 = vpop.permute.xlu0 %285
        %v287 = vrot.slane %v282, 4
        %v288 = vrot.slane %v284, 4
        %v289 = vrot.slane %v286, 4
        %v290 = vsel %vm265, %v287, %v288
        %vm291 = vcmask 1031168
        %v292 = vsel %vm291, %v282, %v290
        %v293 = vsel %vm265, %v288, %v289
        %v294 = vsel %vm291, %v284, %v293
        %297 = vst [vmem:[#allocation2 + $0x20] sm:$0xff] %v292
        %298 = vst [vmem:[#allocation2 + $0x28] sm:$0xff] %v294
        %v299 = vld [vmem:[%s214] sm:$0xff]
        %v300 = vld [vmem:[%s214 + $0x8] sm:$0xff]
        %v301 = vld [vmem:[%s214 + $0x10] sm:$0xf]
        %305 = vrot.lane.b32.xlu0 %v299, 110
        %v306 = vpop.permute.xlu0 %305
        %307 = vrot.lane.b32.xlu0 %v300, 110
        %v308 = vpop.permute.xlu0 %307
        %309 = vrot.lane.b32.xlu0 %v301, 110
        %v310 = vpop.permute.xlu0 %309
        %v311 = vrot.slane %v306, 4
        %v312 = vrot.slane %v308, 4
        %v313 = vrot.slane %v310, 4
        %v314 = vsel %vm265, %v311, %v312
        %vm315 = vcmask 900096
        %v316 = vsel %vm315, %v306, %v314
        %v317 = vsel %vm265, %v312, %v313
        %v318 = vsel %vm315, %v308, %v317
        %321 = vst [vmem:[#allocation2 + $0x30] sm:$0xff] %v316
        %322 = vst [vmem:[#allocation2 + $0x38] sm:$0xff] %v318
        %v323 = vld [vmem:[%s214] sm:$0xff]
        %v324 = vld [vmem:[%s214 + $0x8] sm:$0xff]
        %v325 = vld [vmem:[%s214 + $0x10] sm:$0xf]
        %329 = vrot.lane.b32.xlu0 %v323, 109
        %v330 = vpop.permute.xlu0 %329
        %331 = vrot.lane.b32.xlu0 %v324, 109
        %v332 = vpop.permute.xlu0 %331
        %333 = vrot.lane.b32.xlu0 %v325, 109
        %v334 = vpop.permute.xlu0 %333
        %v335 = vrot.slane %v330, 4
        %v336 = vrot.slane %v332, 4
        %v337 = vrot.slane %v334, 4
        %v338 = vsel %vm265, %v335, %v336
        %vm339 = vcmask 891904
        %v340 = vsel %vm339, %v330, %v338
        %v341 = vsel %vm265, %v336, %v337
        %v342 = vsel %vm339, %v332, %v341
        %345 = vst [vmem:[#allocation2 + $0x40] sm:$0xff] %v340
        %346 = vst [vmem:[#allocation2 + $0x48] sm:$0xff] %v342
        %v347 = vld [vmem:[%s214] sm:$0xff]
        %v348 = vld [vmem:[%s214 + $0x8] sm:$0xff]
        %v349 = vld [vmem:[%s214 + $0x10] sm:$0xf]
        %353 = vrot.lane.b32.xlu0 %v347, 108
        %v354 = vpop.permute.xlu0 %353
        %355 = vrot.lane.b32.xlu0 %v348, 108
        %v356 = vpop.permute.xlu0 %355
        %357 = vrot.lane.b32.xlu0 %v349, 108
        %v358 = vpop.permute.xlu0 %357
        %v359 = vrot.slane %v354, 4
        %v360 = vrot.slane %v356, 4
        %v361 = vrot.slane %v358, 4
        %v362 = vsel %vm265, %v359, %v360
        %vm363 = vcmask 883712
        %v364 = vsel %vm363, %v354, %v362
        %v365 = vsel %vm265, %v360, %v361
        %v366 = vsel %vm363, %v356, %v365
        %369 = vst [vmem:[#allocation2 + $0x50] sm:$0xff] %v364
        %370 = vst [vmem:[#allocation2 + $0x58] sm:$0xff] %v366
        %v371 = vld [vmem:[%s214] sm:$0xff]
        %v372 = vld [vmem:[%s214 + $0x8] sm:$0xff]
        %v373 = vld [vmem:[%s214 + $0x10] sm:$0xf]
        %377 = vrot.lane.b32.xlu0 %v371, 92
        %v378 = vpop.permute.xlu0 %377
        %379 = vrot.lane.b32.xlu0 %v372, 92
        %v380 = vpop.permute.xlu0 %379
        %381 = vrot.lane.b32.xlu0 %v373, 92
        %v382 = vpop.permute.xlu0 %381
        %v383 = vrot.slane %v378, 4
        %v384 = vrot.slane %v380, 4
        %v385 = vrot.slane %v382, 4
        %v386 = vsel %vm265, %v383, %v384
        %vm387 = vcmask 752640
        %v388 = vsel %vm387, %v378, %v386
        %v389 = vsel %vm265, %v384, %v385
        %v390 = vsel %vm387, %v380, %v389
        %393 = vst [vmem:[#allocation2 + $0x60] sm:$0xff] %v388
        %394 = vst [vmem:[#allocation2 + $0x68] sm:$0xff] %v390
        %v395 = vld [vmem:[%s214] sm:$0xff]
        %v396 = vld [vmem:[%s214 + $0x8] sm:$0xff]
        %v397 = vld [vmem:[%s214 + $0x10] sm:$0xf]
        %401 = vrot.lane.b32.xlu0 %v395, 91
        %v402 = vpop.permute.xlu0 %401
        %403 = vrot.lane.b32.xlu0 %v396, 91
        %v404 = vpop.permute.xlu0 %403
        %405 = vrot.lane.b32.xlu0 %v397, 91
        %v406 = vpop.permute.xlu0 %405
        %v407 = vrot.slane %v402, 4
        %v408 = vrot.slane %v404, 4
        %v409 = vrot.slane %v406, 4
        %v410 = vsel %vm265, %v407, %v408
        %vm411 = vcmask 744448
        %v412 = vsel %vm411, %v402, %v410
        %v413 = vsel %vm265, %v408, %v409
        %v414 = vsel %vm411, %v404, %v413
        %417 = vst [vmem:[#allocation2 + $0x70] sm:$0xff] %v412
        %418 = vst [vmem:[#allocation2 + $0x78] sm:$0xff] %v414
        %v419 = vld [vmem:[%s214] sm:$0xff]
        %v420 = vld [vmem:[%s214 + $0x8] sm:$0xff]
        %v421 = vld [vmem:[%s214 + $0x10] sm:$0xf]
        %425 = vrot.lane.b32.xlu0 %v419, 90
        %v426 = vpop.permute.xlu0 %425
        %427 = vrot.lane.b32.xlu0 %v420, 90
        %v428 = vpop.permute.xlu0 %427
        %429 = vrot.lane.b32.xlu0 %v421, 90
        %v430 = vpop.permute.xlu0 %429
        %v431 = vrot.slane %v426, 4
        %v432 = vrot.slane %v428, 4
        %v433 = vrot.slane %v430, 4
        %v434 = vsel %vm265, %v431, %v432
        %vm435 = vcmask 736256
        %v436 = vsel %vm435, %v426, %v434
        %v437 = vsel %vm265, %v432, %v433
        %v438 = vsel %vm435, %v428, %v437
        %441 = vst [vmem:[#allocation2 + $0x80] sm:$0xff] %v436
        %442 = vst [vmem:[#allocation2 + $0x88] sm:$0xff] %v438
        %v443 = vld [vmem:[%s214 + $0x8] sm:$0xff]
        %v444 = vld [vmem:[%s214 + $0x10] sm:$0xff]
        %v445 = vld [vmem:[%s214 + $0x18] sm:$0xf]
        %449 = vrot.lane.b32.xlu0 %v443, 60
        %v450 = vpop.permute.xlu0 %449
        %451 = vrot.lane.b32.xlu0 %v444, 60
        %v452 = vpop.permute.xlu0 %451
        %453 = vrot.lane.b32.xlu0 %v445, 60
        %v454 = vpop.permute.xlu0 %453
        %v455 = vrot.slane %v450, 4
        %v456 = vrot.slane %v452, 4
        %v457 = vrot.slane %v454, 4
        %v458 = vsel %vm265, %v455, %v456
        %vm459 = vcmask 490496
        %v460 = vsel %vm459, %v450, %v458
        %v461 = vsel %vm265, %v456, %v457
        %v462 = vsel %vm459, %v452, %v461
        %465 = vst [vmem:[#allocation2 + $0x90] sm:$0xff] %v460
        %466 = vst [vmem:[#allocation2 + $0x98] sm:$0xff] %v462
        %v467 = vld [vmem:[%s214 + $0x8] sm:$0xff]
        %v468 = vld [vmem:[%s214 + $0x10] sm:$0xff]
        %v469 = vld [vmem:[%s214 + $0x18] sm:$0xf]
        %473 = vrot.lane.b32.xlu0 %v467, 59
        %v474 = vpop.permute.xlu0 %473
        %475 = vrot.lane.b32.xlu0 %v468, 59
        %v476 = vpop.permute.xlu0 %475
        %477 = vrot.lane.b32.xlu0 %v469, 59
        %v478 = vpop.permute.xlu0 %477
        %v479 = vrot.slane %v474, 4
        %v480 = vrot.slane %v476, 4
        %v481 = vrot.slane %v478, 4
        %v482 = vsel %vm265, %v479, %v480
        %vm483 = vcmask 482304
        %v484 = vsel %vm483, %v474, %v482
        %v485 = vsel %vm265, %v480, %v481
        %v486 = vsel %vm483, %v476, %v485
        %489 = vst [vmem:[#allocation2 + $0xa0] sm:$0xff] %v484
        %490 = vst [vmem:[#allocation2 + $0xa8] sm:$0xff] %v486
        %v491 = vld [vmem:[%s214 + $0x8] sm:$0xff]
        %v492 = vld [vmem:[%s214 + $0x10] sm:$0xff]
        %v493 = vld [vmem:[%s214 + $0x18] sm:$0xf]
        %497 = vrot.lane.b32.xlu0 %v491, 58
        %v498 = vpop.permute.xlu0 %497
        %499 = vrot.lane.b32.xlu0 %v492, 58
        %v500 = vpop.permute.xlu0 %499
        %501 = vrot.lane.b32.xlu0 %v493, 58
        %v502 = vpop.permute.xlu0 %501
        %v503 = vrot.slane %v498, 4
        %v504 = vrot.slane %v500, 4
        %v505 = vrot.slane %v502, 4
        %v506 = vsel %vm265, %v503, %v504
        %vm507 = vcmask 474112
        %v508 = vsel %vm507, %v498, %v506
        %v509 = vsel %vm265, %v504, %v505
        %v510 = vsel %vm507, %v500, %v509
        %513 = vst [vmem:[#allocation2 + $0xb0] sm:$0xff] %v508
        %514 = vst [vmem:[#allocation2 + $0xb8] sm:$0xff] %v510
        %v515 = vld [vmem:[%s214 + $0x8] sm:$0xff]
        %v516 = vld [vmem:[%s214 + $0x10] sm:$0xff]
        %v517 = vld [vmem:[%s214 + $0x18] sm:$0xf]
        %521 = vrot.lane.b32.xlu0 %v515, 42
        %v522 = vpop.permute.xlu0 %521
        %523 = vrot.lane.b32.xlu0 %v516, 42
        %v524 = vpop.permute.xlu0 %523
        %525 = vrot.lane.b32.xlu0 %v517, 42
        %v526 = vpop.permute.xlu0 %525
        %v527 = vrot.slane %v522, 4
        %v528 = vrot.slane %v524, 4
        %v529 = vrot.slane %v526, 4
        %v530 = vsel %vm265, %v527, %v528
        %vm531 = vcmask 343040
        %v532 = vsel %vm531, %v522, %v530
        %v533 = vsel %vm265, %v528, %v529
        %v534 = vsel %vm531, %v524, %v533
        %537 = vst [vmem:[#allocation2 + $0xc0] sm:$0xff] %v532
        %538 = vst [vmem:[#allocation2 + $0xc8] sm:$0xff] %v534
        %v539 = vld [vmem:[%s214 + $0x8] sm:$0xff]
        %v540 = vld [vmem:[%s214 + $0x10] sm:$0xff]
        %v541 = vld [vmem:[%s214 + $0x18] sm:$0xf]
        %545 = vrot.lane.b32.xlu0 %v539, 41
        %v546 = vpop.permute.xlu0 %545
        %547 = vrot.lane.b32.xlu0 %v540, 41
        %v548 = vpop.permute.xlu0 %547
        %549 = vrot.lane.b32.xlu0 %v541, 41
        %v550 = vpop.permute.xlu0 %549
        %v551 = vrot.slane %v546, 4
        %v552 = vrot.slane %v548, 4
        %v553 = vrot.slane %v550, 4
        %v554 = vsel %vm265, %v551, %v552
        %vm555 = vcmask 334848
        %v556 = vsel %vm555, %v546, %v554
        %v557 = vsel %vm265, %v552, %v553
        %v558 = vsel %vm555, %v548, %v557
        %561 = vst [vmem:[#allocation2 + $0xd0] sm:$0xff] %v556
        %562 = vst [vmem:[#allocation2 + $0xd8] sm:$0xff] %v558
        %v563 = vld [vmem:[%s214 + $0x8] sm:$0xff]
        %v564 = vld [vmem:[%s214 + $0x10] sm:$0xff]
        %v565 = vld [vmem:[%s214 + $0x18] sm:$0xf]
        %569 = vrot.lane.b32.xlu0 %v563, 40
        %v570 = vpop.permute.xlu0 %569
        %571 = vrot.lane.b32.xlu0 %v564, 40
        %v572 = vpop.permute.xlu0 %571
        %573 = vrot.lane.b32.xlu0 %v565, 40
        %v574 = vpop.permute.xlu0 %573
        %v575 = vrot.slane %v570, 4
        %v576 = vrot.slane %v572, 4
        %v577 = vrot.slane %v574, 4
        %v578 = vsel %vm265, %v575, %v576
        %vm579 = vcmask 326656
        %v580 = vsel %vm579, %v570, %v578
        %v581 = vsel %vm265, %v576, %v577
        %v582 = vsel %vm579, %v572, %v581
        %585 = vst [vmem:[#allocation2 + $0xe0] sm:$0xff] %v580
        %586 = vst [vmem:[#allocation2 + $0xe8] sm:$0xff] %v582
        %v587 = vld [vmem:[%s214 + $0x8] sm:$0xff]
        %v588 = vld [vmem:[%s214 + $0x10] sm:$0xff]
        %v589 = vld [vmem:[%s214 + $0x18] sm:$0xf]
        %593 = vrot.lane.b32.xlu0 %v587, 24
        %v594 = vpop.permute.xlu0 %593
        %595 = vrot.lane.b32.xlu0 %v588, 24
        %v596 = vpop.permute.xlu0 %595
        %597 = vrot.lane.b32.xlu0 %v589, 24
        %v598 = vpop.permute.xlu0 %597
        %v599 = vrot.slane %v594, 4
        %v600 = vrot.slane %v596, 4
        %v601 = vrot.slane %v598, 4
        %v602 = vsel %vm265, %v599, %v600
        %vm603 = vcmask 195584
        %v604 = vsel %vm603, %v594, %v602
        %v605 = vsel %vm265, %v600, %v601
        %v606 = vsel %vm603, %v596, %v605
        %609 = vst [vmem:[#allocation2 + $0xf0] sm:$0xff] %v604
        %610 = vst [vmem:[#allocation2 + $0xf8] sm:$0xff] %v606
        %v611 = vld [vmem:[%s214 + $0x8] sm:$0xff]
        %v612 = vld [vmem:[%s214 + $0x10] sm:$0xff]
        %v613 = vld [vmem:[%s214 + $0x18] sm:$0xf]
        %617 = vrot.lane.b32.xlu0 %v611, 23
        %v618 = vpop.permute.xlu0 %617
        %619 = vrot.lane.b32.xlu0 %v612, 23
        %v620 = vpop.permute.xlu0 %619
        %621 = vrot.lane.b32.xlu0 %v613, 23
        %v622 = vpop.permute.xlu0 %621
        %v623 = vrot.slane %v618, 4
        %v624 = vrot.slane %v620, 4
        %v625 = vrot.slane %v622, 4
        %v626 = vsel %vm265, %v623, %v624
        %vm627 = vcmask 187392
        %v628 = vsel %vm627, %v618, %v626
        %v629 = vsel %vm265, %v624, %v625
        %v630 = vsel %vm627, %v620, %v629
        %633 = vst [vmem:[#allocation2 + $0x100] sm:$0xff] %v628
        %634 = vst [vmem:[#allocation2 + $0x108] sm:$0xff] %v630
        %v635 = vld [vmem:[%s214 + $0x8] sm:$0xff]
        %v636 = vld [vmem:[%s214 + $0x10] sm:$0xff]
        %v637 = vld [vmem:[%s214 + $0x18] sm:$0xf]
        %641 = vrot.lane.b32.xlu0 %v635, 22
        %v642 = vpop.permute.xlu0 %641
        %643 = vrot.lane.b32.xlu0 %v636, 22
        %v644 = vpop.permute.xlu0 %643
        %645 = vrot.lane.b32.xlu0 %v637, 22
        %v646 = vpop.permute.xlu0 %645
        %v647 = vrot.slane %v642, 4
        %v648 = vrot.slane %v644, 4
        %v649 = vrot.slane %v646, 4
        %v650 = vsel %vm265, %v647, %v648
        %vm651 = vcmask 179200
        %v652 = vsel %vm651, %v642, %v650
        %v653 = vsel %vm265, %v648, %v649
        %v654 = vsel %vm651, %v644, %v653
        %657 = vst [vmem:[#allocation2 + $0x110] sm:$0xff] %v652
        %658 = vst [vmem:[#allocation2 + $0x118] sm:$0xff] %v654
        %v659 = vld [vmem:[%s214 + $0x14] sm:$0xff]
        %v660 = vld [vmem:[%s214 + $0x1c] sm:$0xff]
        %v661 = vld [vmem:[%s214 + $0x24] sm:$0xf]
        %665 = vrot.lane.b32.xlu0 %v659, 120
        %v666 = vpop.permute.xlu0 %665
        %667 = vrot.lane.b32.xlu0 %v660, 120
        %v668 = vpop.permute.xlu0 %667
        %669 = vrot.lane.b32.xlu0 %v661, 120
        %v670 = vpop.permute.xlu0 %669
        %v671 = vrot.slane %v666, 4
        %v672 = vrot.slane %v668, 4
        %v673 = vrot.slane %v670, 4
        %v674 = vsel %vm265, %v671, %v672
        %vm675 = vcmask 982016
        %v676 = vsel %vm675, %v666, %v674
        %v677 = vsel %vm265, %v672, %v673
        %v678 = vsel %vm675, %v668, %v677
        %681 = vst [vmem:[#allocation2 + $0x120] sm:$0xff] %v676
        %682 = vst [vmem:[#allocation2 + $0x128] sm:$0xff] %v678
        %v683 = vld [vmem:[%s214 + $0x14] sm:$0xff]
        %v684 = vld [vmem:[%s214 + $0x1c] sm:$0xff]
        %v685 = vld [vmem:[%s214 + $0x24] sm:$0xf]
        %689 = vrot.lane.b32.xlu0 %v683, 119
        %v690 = vpop.permute.xlu0 %689
        %691 = vrot.lane.b32.xlu0 %v684, 119
        %v692 = vpop.permute.xlu0 %691
        %693 = vrot.lane.b32.xlu0 %v685, 119
        %v694 = vpop.permute.xlu0 %693
        %v695 = vrot.slane %v690, 4
        %v696 = vrot.slane %v692, 4
        %v697 = vrot.slane %v694, 4
        %v698 = vsel %vm265, %v695, %v696
        %vm699 = vcmask 973824
        %v700 = vsel %vm699, %v690, %v698
        %v701 = vsel %vm265, %v696, %v697
        %v702 = vsel %vm699, %v692, %v701
        %705 = vst [vmem:[#allocation2 + $0x130] sm:$0xff] %v700
        %706 = vst [vmem:[#allocation2 + $0x138] sm:$0xff] %v702
        %v707 = vld [vmem:[%s214 + $0x14] sm:$0xff]
        %v708 = vld [vmem:[%s214 + $0x1c] sm:$0xff]
        %v709 = vld [vmem:[%s214 + $0x24] sm:$0xf]
        %713 = vrot.lane.b32.xlu0 %v707, 118
        %v714 = vpop.permute.xlu0 %713
        %715 = vrot.lane.b32.xlu0 %v708, 118
        %v716 = vpop.permute.xlu0 %715
        %717 = vrot.lane.b32.xlu0 %v709, 118
        %v718 = vpop.permute.xlu0 %717
        %v719 = vrot.slane %v714, 4
        %v720 = vrot.slane %v716, 4
        %v721 = vrot.slane %v718, 4
        %v722 = vsel %vm265, %v719, %v720
        %vm723 = vcmask 965632
        %v724 = vsel %vm723, %v714, %v722
        %v725 = vsel %vm265, %v720, %v721
        %v726 = vsel %vm723, %v716, %v725
        %729 = vst [vmem:[#allocation2 + $0x140] sm:$0xff] %v724
        %730 = vst [vmem:[#allocation2 + $0x148] sm:$0xff] %v726
        %v731 = vld [vmem:[%s214 + $0x14] sm:$0xff]
        %v732 = vld [vmem:[%s214 + $0x1c] sm:$0xff]
        %v733 = vld [vmem:[%s214 + $0x24] sm:$0xf]
        %737 = vrot.lane.b32.xlu0 %v731, 102
        %v738 = vpop.permute.xlu0 %737
        %739 = vrot.lane.b32.xlu0 %v732, 102
        %v740 = vpop.permute.xlu0 %739
        %741 = vrot.lane.b32.xlu0 %v733, 102
        %v742 = vpop.permute.xlu0 %741
        %v743 = vrot.slane %v738, 4
        %v744 = vrot.slane %v740, 4
        %v745 = vrot.slane %v742, 4
        %v746 = vsel %vm265, %v743, %v744
        %vm747 = vcmask 834560
        %v748 = vsel %vm747, %v738, %v746
        %v749 = vsel %vm265, %v744, %v745
        %v750 = vsel %vm747, %v740, %v749
        %753 = vst [vmem:[#allocation2 + $0x150] sm:$0xff] %v748
        %754 = vst [vmem:[#allocation2 + $0x158] sm:$0xff] %v750
        %v755 = vld [vmem:[%s214 + $0x14] sm:$0xff]
        %v756 = vld [vmem:[%s214 + $0x1c] sm:$0xff]
        %v757 = vld [vmem:[%s214 + $0x24] sm:$0xf]
        %761 = vrot.lane.b32.xlu0 %v755, 101
        %v762 = vpop.permute.xlu0 %761
        %763 = vrot.lane.b32.xlu0 %v756, 101
        %v764 = vpop.permute.xlu0 %763
        %765 = vrot.lane.b32.xlu0 %v757, 101
        %v766 = vpop.permute.xlu0 %765
        %v767 = vrot.slane %v762, 4
        %v768 = vrot.slane %v764, 4
        %v769 = vrot.slane %v766, 4
        %v770 = vsel %vm265, %v767, %v768
        %vm771 = vcmask 826368
        %v772 = vsel %vm771, %v762, %v770
        %v773 = vsel %vm265, %v768, %v769
        %v774 = vsel %vm771, %v764, %v773
        %777 = vst [vmem:[#allocation2 + $0x160] sm:$0xff] %v772
        %778 = vst [vmem:[#allocation2 + $0x168] sm:$0xff] %v774
        %v779 = vld [vmem:[%s214 + $0x14] sm:$0xff]
        %v780 = vld [vmem:[%s214 + $0x1c] sm:$0xff]
        %v781 = vld [vmem:[%s214 + $0x24] sm:$0xf]
        %785 = vrot.lane.b32.xlu0 %v779, 100
        %v786 = vpop.permute.xlu0 %785
        %787 = vrot.lane.b32.xlu0 %v780, 100
        %v788 = vpop.permute.xlu0 %787
        %789 = vrot.lane.b32.xlu0 %v781, 100
        %v790 = vpop.permute.xlu0 %789
        %v791 = vrot.slane %v786, 4
        %v792 = vrot.slane %v788, 4
        %v793 = vrot.slane %v790, 4
        %v794 = vsel %vm265, %v791, %v792
        %vm795 = vcmask 818176
        %v796 = vsel %vm795, %v786, %v794
        %v797 = vsel %vm265, %v792, %v793
        %v798 = vsel %vm795, %v788, %v797
        %801 = vst [vmem:[#allocation2 + $0x170] sm:$0xff] %v796
        %802 = vst [vmem:[#allocation2 + $0x178] sm:$0xff] %v798
        %v803 = vld [vmem:[%s214 + $0x14] sm:$0xff]
        %v804 = vld [vmem:[%s214 + $0x1c] sm:$0xff]
        %v805 = vld [vmem:[%s214 + $0x24] sm:$0xf]
        %809 = vrot.lane.b32.xlu0 %v803, 84
        %v810 = vpop.permute.xlu0 %809
        %811 = vrot.lane.b32.xlu0 %v804, 84
        %v812 = vpop.permute.xlu0 %811
        %813 = vrot.lane.b32.xlu0 %v805, 84
        %v814 = vpop.permute.xlu0 %813
        %v815 = vrot.slane %v810, 4
        %v816 = vrot.slane %v812, 4
        %v817 = vrot.slane %v814, 4
        %v818 = vsel %vm265, %v815, %v816
        %vm819 = vcmask 687104
        %v820 = vsel %vm819, %v810, %v818
        %v821 = vsel %vm265, %v816, %v817
        %v822 = vsel %vm819, %v812, %v821
        %825 = vst [vmem:[#allocation2 + $0x180] sm:$0xff] %v820
        %826 = vst [vmem:[#allocation2 + $0x188] sm:$0xff] %v822
        %v827 = vld [vmem:[%s214 + $0x14] sm:$0xff]
        %v828 = vld [vmem:[%s214 + $0x1c] sm:$0xff]
        %v829 = vld [vmem:[%s214 + $0x24] sm:$0xf]
        %833 = vrot.lane.b32.xlu0 %v827, 83
        %v834 = vpop.permute.xlu0 %833
        %835 = vrot.lane.b32.xlu0 %v828, 83
        %v836 = vpop.permute.xlu0 %835
        %837 = vrot.lane.b32.xlu0 %v829, 83
        %v838 = vpop.permute.xlu0 %837
        %v839 = vrot.slane %v834, 4
        %v840 = vrot.slane %v836, 4
        %v841 = vrot.slane %v838, 4
        %v842 = vsel %vm265, %v839, %v840
        %vm843 = vcmask 678912
        %v844 = vsel %vm843, %v834, %v842
        %v845 = vsel %vm265, %v840, %v841
        %v846 = vsel %vm843, %v836, %v845
        %849 = vst [vmem:[#allocation2 + $0x190] sm:$0xff] %v844
        %850 = vst [vmem:[#allocation2 + $0x198] sm:$0xff] %v846
        %v851 = vld [vmem:[%s214 + $0x14] sm:$0xff]
        %v852 = vld [vmem:[%s214 + $0x1c] sm:$0xff]
        %v853 = vld [vmem:[%s214 + $0x24] sm:$0xf]
        %857 = vrot.lane.b32.xlu0 %v851, 82
        %v858 = vpop.permute.xlu0 %857
        %859 = vrot.lane.b32.xlu0 %v852, 82
        %v860 = vpop.permute.xlu0 %859
        %861 = vrot.lane.b32.xlu0 %v853, 82
        %v862 = vpop.permute.xlu0 %861
        %v863 = vrot.slane %v858, 4
        %v864 = vrot.slane %v860, 4
        %v865 = vrot.slane %v862, 4
        %v866 = vsel %vm265, %v863, %v864
        %vm867 = vcmask 670720
        %v868 = vsel %vm867, %v858, %v866
        %v869 = vsel %vm265, %v864, %v865
        %v870 = vsel %vm867, %v860, %v869
        %873 = vst [vmem:[#allocation2 + $0x1a0] sm:$0xff] %v868
        %874 = vst [vmem:[#allocation2 + $0x1a8] sm:$0xff] %v870
        %v875 = vld [vmem:[#allocation2] sm:$0xff]
        %v876 = vld [vmem:[#allocation2 + $0x8] sm:$0xff]
        %v877 = vld [vmem:[#allocation2 + $0x10] sm:$0xff]
        %v878 = vld [vmem:[#allocation2 + $0x18] sm:$0xff]
        %v879 = vld [vmem:[#allocation2 + $0x20] sm:$0xff]
        %v880 = vld [vmem:[#allocation2 + $0x28] sm:$0xff]
        %v881 = vld [vmem:[#allocation2 + $0x30] sm:$0xff]
        %v882 = vld [vmem:[#allocation2 + $0x38] sm:$0xff]
        %v883 = vld [vmem:[#allocation2 + $0x40] sm:$0xff]
        %v884 = vld [vmem:[#allocation2 + $0x48] sm:$0xff]
        %v885 = vld [vmem:[#allocation2 + $0x50] sm:$0xff]
        %v886 = vld [vmem:[#allocation2 + $0x58] sm:$0xff]
        %v887 = vld [vmem:[#allocation2 + $0x60] sm:$0xff]
        %v888 = vld [vmem:[#allocation2 + $0x68] sm:$0xff]
        %v889 = vld [vmem:[#allocation2 + $0x70] sm:$0xff]
        %v890 = vld [vmem:[#allocation2 + $0x78] sm:$0xff]
        %v891 = vld [vmem:[#allocation2 + $0x80] sm:$0xff]
        %v892 = vld [vmem:[#allocation2 + $0x88] sm:$0xff]
        %v893 = vld [vmem:[#allocation2 + $0x90] sm:$0xff]
        %v894 = vld [vmem:[#allocation2 + $0x98] sm:$0xff]
        %v895 = vld [vmem:[#allocation2 + $0xa0] sm:$0xff]
        %v896 = vld [vmem:[#allocation2 + $0xa8] sm:$0xff]
        %v897 = vld [vmem:[#allocation2 + $0xb0] sm:$0xff]
        %v898 = vld [vmem:[#allocation2 + $0xb8] sm:$0xff]
        %v899 = vld [vmem:[#allocation2 + $0xc0] sm:$0xff]
        %v900 = vld [vmem:[#allocation2 + $0xc8] sm:$0xff]
        %v901 = vld [vmem:[#allocation2 + $0xd0] sm:$0xff]
        %v902 = vld [vmem:[#allocation2 + $0xd8] sm:$0xff]
        %v903 = vld [vmem:[#allocation2 + $0xe0] sm:$0xff]
        %v904 = vld [vmem:[#allocation2 + $0xe8] sm:$0xff]
        %v905 = vld [vmem:[#allocation2 + $0xf0] sm:$0xff]
        %v906 = vld [vmem:[#allocation2 + $0xf8] sm:$0xff]
        %v907 = vld [vmem:[#allocation2 + $0x100] sm:$0xff]
        %v908 = vld [vmem:[#allocation2 + $0x108] sm:$0xff]
        %v909 = vld [vmem:[#allocation2 + $0x110] sm:$0xff]
        %v910 = vld [vmem:[#allocation2 + $0x118] sm:$0xff]
        %v911 = vld [vmem:[#allocation2 + $0x120] sm:$0xff]
        %v912 = vld [vmem:[#allocation2 + $0x128] sm:$0xff]
        %v913 = vld [vmem:[#allocation2 + $0x130] sm:$0xff]
        %v914 = vld [vmem:[#allocation2 + $0x138] sm:$0xff]
        %v915 = vld [vmem:[#allocation2 + $0x140] sm:$0xff]
        %v916 = vld [vmem:[#allocation2 + $0x148] sm:$0xff]
        %v917 = vld [vmem:[#allocation2 + $0x150] sm:$0xff]
        %v918 = vld [vmem:[#allocation2 + $0x158] sm:$0xff]
        %v919 = vld [vmem:[#allocation2 + $0x160] sm:$0xff]
        %v920 = vld [vmem:[#allocation2 + $0x168] sm:$0xff]
        %v921 = vld [vmem:[#allocation2 + $0x170] sm:$0xff]
        %v922 = vld [vmem:[#allocation2 + $0x178] sm:$0xff]
        %v923 = vld [vmem:[#allocation2 + $0x180] sm:$0xff]
        %v924 = vld [vmem:[#allocation2 + $0x188] sm:$0xff]
        %v925 = vld [vmem:[#allocation2 + $0x190] sm:$0xff]
        %v926 = vld [vmem:[#allocation2 + $0x198] sm:$0xff]
        %v927 = vld [vmem:[#allocation2 + $0x1a0] sm:$0xff]
        %v928 = vld [vmem:[#allocation2 + $0x1a8] sm:$0xff]
        %v933 = vunpack.c.l.b16 %v242
        %v934 = vunpack.c.h.b16 %v242
        %v935 = vunpack.c.l.b16 %v243
        %v936 = vunpack.c.h.b16 %v243
        %v937 = vunpack.c.l.b16 %v244
        %v938 = vunpack.c.h.b16 %v244
        %v939 = vunpack.c.l.b16 %v245
        %v940 = vunpack.c.h.b16 %v245
        %v941 = vpack.c.b16 %v935, %v933
        %v942 = vpack.c.b16 %v936, %v934
        %v943 = vpack.c.b16 %v939, %v937
        %v944 = vpack.c.b16 %v940, %v938
        %v1001 = vunpack.c.l.b16 %v875
        %v1002 = vunpack.c.h.b16 %v875
        %v1003 = vunpack.c.l.b16 %v876
        %v1004 = vunpack.c.h.b16 %v876
        %v1005 = vunpack.c.l.b16 %v877
        %v1006 = vunpack.c.h.b16 %v877
        %v1007 = vunpack.c.l.b16 %v878
        %v1008 = vunpack.c.h.b16 %v878
        %v1009 = vunpack.c.l.b16 %v879
        %v1010 = vunpack.c.h.b16 %v879
        %v1011 = vunpack.c.l.b16 %v880
        %v1012 = vunpack.c.h.b16 %v880
        %v1013 = vunpack.c.l.b16 %v881
        %v1014 = vunpack.c.h.b16 %v881
        %v1015 = vunpack.c.l.b16 %v882
        %v1016 = vunpack.c.h.b16 %v882
        %v1017 = vunpack.c.l.b16 %v883
        %v1018 = vunpack.c.h.b16 %v883
        %v1019 = vunpack.c.l.b16 %v884
        %v1020 = vunpack.c.h.b16 %v884
        %v1021 = vunpack.c.l.b16 %v885
        %v1022 = vunpack.c.h.b16 %v885
        %v1023 = vunpack.c.l.b16 %v886
        %v1024 = vunpack.c.h.b16 %v886
        %v1025 = vunpack.c.l.b16 %v887
        %v1026 = vunpack.c.h.b16 %v887
        %v1027 = vunpack.c.l.b16 %v888
        %v1028 = vunpack.c.h.b16 %v888
        %v1029 = vunpack.c.l.b16 %v889
        %v1030 = vunpack.c.h.b16 %v889
        %v1031 = vunpack.c.l.b16 %v890
        %v1032 = vunpack.c.h.b16 %v890
        %v1033 = vunpack.c.l.b16 %v891
        %v1034 = vunpack.c.h.b16 %v891
        %v1035 = vunpack.c.l.b16 %v892
        %v1036 = vunpack.c.h.b16 %v892
        %v1037 = vunpack.c.l.b16 %v893
        %v1038 = vunpack.c.h.b16 %v893
        %v1039 = vunpack.c.l.b16 %v894
        %v1040 = vunpack.c.h.b16 %v894
        %v1041 = vunpack.c.l.b16 %v895
        %v1042 = vunpack.c.h.b16 %v895
        %v1043 = vunpack.c.l.b16 %v896
        %v1044 = vunpack.c.h.b16 %v896
        %v1045 = vunpack.c.l.b16 %v897
        %v1046 = vunpack.c.h.b16 %v897
        %v1047 = vunpack.c.l.b16 %v898
        %v1048 = vunpack.c.h.b16 %v898
        %v1049 = vunpack.c.l.b16 %v899
        %v1050 = vunpack.c.h.b16 %v899
        %v1051 = vunpack.c.l.b16 %v900
        %v1052 = vunpack.c.h.b16 %v900
        %v1053 = vunpack.c.l.b16 %v901
        %v1054 = vunpack.c.h.b16 %v901
        %v1055 = vunpack.c.l.b16 %v902
        %v1056 = vunpack.c.h.b16 %v902
        %v1057 = vunpack.c.l.b16 %v903
        %v1058 = vunpack.c.h.b16 %v903
        %v1059 = vunpack.c.l.b16 %v904
        %v1060 = vunpack.c.h.b16 %v904
        %v1061 = vunpack.c.l.b16 %v905
        %v1062 = vunpack.c.h.b16 %v905
        %v1063 = vunpack.c.l.b16 %v906
        %v1064 = vunpack.c.h.b16 %v906
        %v1065 = vunpack.c.l.b16 %v907
        %v1066 = vunpack.c.h.b16 %v907
        %v1067 = vunpack.c.l.b16 %v908
        %v1068 = vunpack.c.h.b16 %v908
        %v1069 = vunpack.c.l.b16 %v909
        %v1070 = vunpack.c.h.b16 %v909
        %v1071 = vunpack.c.l.b16 %v910
        %v1072 = vunpack.c.h.b16 %v910
        %v1073 = vunpack.c.l.b16 %v911
        %v1074 = vunpack.c.h.b16 %v911
        %v1075 = vunpack.c.l.b16 %v912
        %v1076 = vunpack.c.h.b16 %v912
        %v1077 = vunpack.c.l.b16 %v913
        %v1078 = vunpack.c.h.b16 %v913
        %v1079 = vunpack.c.l.b16 %v914
        %v1080 = vunpack.c.h.b16 %v914
        %v1081 = vunpack.c.l.b16 %v915
        %v1082 = vunpack.c.h.b16 %v915
        %v1083 = vunpack.c.l.b16 %v916
        %v1084 = vunpack.c.h.b16 %v916
        %v1085 = vunpack.c.l.b16 %v917
        %v1086 = vunpack.c.h.b16 %v917
        %v1087 = vunpack.c.l.b16 %v918
        %v1088 = vunpack.c.h.b16 %v918
        %v1089 = vunpack.c.l.b16 %v919
        %v1090 = vunpack.c.h.b16 %v919
        %v1091 = vunpack.c.l.b16 %v920
        %v1092 = vunpack.c.h.b16 %v920
        %v1093 = vunpack.c.l.b16 %v921
        %v1094 = vunpack.c.h.b16 %v921
        %v1095 = vunpack.c.l.b16 %v922
        %v1096 = vunpack.c.h.b16 %v922
        %v1097 = vunpack.c.l.b16 %v923
        %v1098 = vunpack.c.h.b16 %v923
        %v1099 = vunpack.c.l.b16 %v924
        %v1100 = vunpack.c.h.b16 %v924
        %v1101 = vunpack.c.l.b16 %v925
        %v1102 = vunpack.c.h.b16 %v925
        %v1103 = vunpack.c.l.b16 %v926
        %v1104 = vunpack.c.h.b16 %v926
        %v1105 = vunpack.c.l.b16 %v927
        %v1106 = vunpack.c.h.b16 %v927
        %v1107 = vunpack.c.l.b16 %v928
        %v1108 = vunpack.c.h.b16 %v928
        %v1109 = vpack.c.b16 %v1005, %v1001
        %v1110 = vpack.c.b16 %v1006, %v1002
        %v1111 = vpack.c.b16 %v1007, %v1003
        %v1112 = vpack.c.b16 %v1008, %v1004
        %v1113 = vpack.c.b16 %v1013, %v1009
        %v1114 = vpack.c.b16 %v1014, %v1010
        %v1115 = vpack.c.b16 %v1015, %v1011
        %v1116 = vpack.c.b16 %v1016, %v1012
        %v1117 = vpack.c.b16 %v1021, %v1017
        %v1118 = vpack.c.b16 %v1022, %v1018
        %v1119 = vpack.c.b16 %v1023, %v1019
        %v1120 = vpack.c.b16 %v1024, %v1020
        %v1121 = vpack.c.b16 %v1029, %v1025
        %v1122 = vpack.c.b16 %v1030, %v1026
        %v1123 = vpack.c.b16 %v1031, %v1027
        %v1124 = vpack.c.b16 %v1032, %v1028
        %v1125 = vpack.c.b16 %v1037, %v1033
        %v1126 = vpack.c.b16 %v1038, %v1034
        %v1127 = vpack.c.b16 %v1039, %v1035
        %v1128 = vpack.c.b16 %v1040, %v1036
        %v1129 = vpack.c.b16 %v1045, %v1041
        %v1130 = vpack.c.b16 %v1046, %v1042
        %v1131 = vpack.c.b16 %v1047, %v1043
        %v1132 = vpack.c.b16 %v1048, %v1044
        %v1133 = vpack.c.b16 %v1053, %v1049
        %v1134 = vpack.c.b16 %v1054, %v1050
        %v1135 = vpack.c.b16 %v1055, %v1051
        %v1136 = vpack.c.b16 %v1056, %v1052
        %v1137 = vpack.c.b16 %v1061, %v1057
        %v1138 = vpack.c.b16 %v1062, %v1058
        %v1139 = vpack.c.b16 %v1063, %v1059
        %v1140 = vpack.c.b16 %v1064, %v1060
        %v1141 = vpack.c.b16 %v1069, %v1065
        %v1142 = vpack.c.b16 %v1070, %v1066
        %v1143 = vpack.c.b16 %v1071, %v1067
        %v1144 = vpack.c.b16 %v1072, %v1068
        %v1145 = vpack.c.b16 %v1077, %v1073
        %v1146 = vpack.c.b16 %v1078, %v1074
        %v1147 = vpack.c.b16 %v1079, %v1075
        %v1148 = vpack.c.b16 %v1080, %v1076
        %v1149 = vpack.c.b16 %v1085, %v1081
        %v1150 = vpack.c.b16 %v1086, %v1082
        %v1151 = vpack.c.b16 %v1087, %v1083
        %v1152 = vpack.c.b16 %v1088, %v1084
        %v1153 = vpack.c.b16 %v1093, %v1089
        %v1154 = vpack.c.b16 %v1094, %v1090
        %v1155 = vpack.c.b16 %v1095, %v1091
        %v1156 = vpack.c.b16 %v1096, %v1092
        %v1157 = vpack.c.b16 %v1101, %v1097
        %v1158 = vpack.c.b16 %v1102, %v1098
        %v1159 = vpack.c.b16 %v1103, %v1099
        %v1160 = vpack.c.b16 %v1104, %v1100
        %v1161 = vpack.c.b16 %v1105, %v1105
        %v1162 = vpack.c.b16 %v1106, %v1106
        %v1163 = vpack.c.b16 %v1107, %v1107
        %v1164 = vpack.c.b16 %v1108, %v1108
        %vm1217 = vcmask 719872
        %v1219 = vsel %vm1217, %v942, 0
        %v1222 = vsel %vm1217, %v944, 0
        %vm1224 = vcmask 1043456
        %v1226 = vsel %vm1224, %v1161, 0
        %v1229 = vsel %vm1224, %v1162, 0
        %v1232 = vsel %vm1224, %v1163, 0
        %v1235 = vsel %vm1224, %v1164, 0
        %1237 = vmatprep.subr.bf16.mxu0 %v1110
        %1238 = vmatpush1.bf16.msra.mxu0 %v1109
        %1239 = vmatprep.subr.bf16.mxu0 %v1114
        %1240 = vmatpush1.bf16.msra.mxu0 %v1113
        %1241 = vmatprep.subr.bf16.mxu0 %v1118
        %1242 = vmatpush1.bf16.msra.mxu0 %v1117
        %1243 = vmatprep.subr.bf16.mxu0 %v1122
        %1244 = vmatpush1.bf16.msra.mxu0 %v1121
        %1245 = vmatprep.subr.bf16.mxu0 %v1126
        %1246 = vmatpush1.bf16.msra.mxu0 %v1125
        %1247 = vmatprep.subr.bf16.mxu0 %v1130
        %1248 = vmatpush1.bf16.msra.mxu0 %v1129
        %1249 = vmatprep.subr.bf16.mxu0 %v1134
        %1250 = vmatpush1.bf16.msra.mxu0 %v1133
        %1251 = vmatprep.subr.bf16.mxu0 %v1138
        %1252 = vmatpush1.bf16.msra.mxu0 %v1137
        %1253 = vmatprep.subr.bf16.mxu0 %v1142
        %1254 = vmatpush1.bf16.msra.mxu0 %v1141
        %1255 = vmatprep.subr.bf16.mxu0 %v1146
        %1256 = vmatpush1.bf16.msra.mxu0 %v1145
        %1257 = vmatprep.subr.bf16.mxu0 %v1150
        %1258 = vmatpush1.bf16.msra.mxu0 %v1149
        %1259 = vmatprep.subr.bf16.mxu0 %v1154
        %1260 = vmatpush1.bf16.msra.mxu0 %v1153
        %1261 = vmatprep.subr.bf16.mxu0 %v1158
        %1262 = vmatpush1.bf16.msra.mxu0 %v1157
        %1263 = vmatprep.subr.bf16.mxu0 %v1229
        %1264 = vmatpush1.bf16.msra.mxu0 %v1226
        %1265 = vmatprep.subr.bf16.mxu0 0
        %1266 = vmatpush1.bf16.msra.mxu0 0
        %1267 = vmatprep.subr.bf16.mxu0 0
        %1268 = vmatpush1.bf16.msra.mxu0 0
        %1269 = vmatprep.mubr.bf16.mxu0 %v1219
        %1270 = vmatmul.mubr.bf16.gmra.mrb[0].mxu0 %v941
        %v1271 = vpop.f32.mrb[0].mxu0
        %v1272 = vadd.f32 0.0, %v1271
        %v1273 = vpop.f32.mrb[0].mxu0
        %v1274 = vadd.f32 0.0, %v1273
        %v1275 = vpop.f32.mrb[0].mxu0
        %v1276 = vadd.f32 0.0, %v1275
        %v1277 = vpop.f32.mrb[0].mxu0
        %v1278 = vadd.f32 0.0, %v1277
        %1279 = vmatprep.mubr.bf16.mxu0 %v1222
        %1280 = vmatmul.mubr.bf16.gmra.mrb[0].mxu0 %v943
        %v1281 = vpop.f32.mrb[0].mxu0
        %v1282 = vadd.f32 0.0, %v1281
        %v1283 = vpop.f32.mrb[0].mxu0
        %v1284 = vadd.f32 0.0, %v1283
        %v1285 = vpop.f32.mrb[0].mxu0
        %v1286 = vadd.f32 0.0, %v1285
        %v1287 = vpop.f32.mrb[0].mxu0
        %v1288 = vadd.f32 0.0, %v1287
        %1289 = vdwg.mxu0
        %1290 = vmatprep.subr.bf16.mxu0 %v1112
        %1291 = vmatpush1.bf16.msra.mxu0 %v1111
        %1292 = vmatprep.subr.bf16.mxu0 %v1116
        %1293 = vmatpush1.bf16.msra.mxu0 %v1115
        %1294 = vmatprep.subr.bf16.mxu0 %v1120
        %1295 = vmatpush1.bf16.msra.mxu0 %v1119
        %1296 = vmatprep.subr.bf16.mxu0 %v1124
        %1297 = vmatpush1.bf16.msra.mxu0 %v1123
        %1298 = vmatprep.subr.bf16.mxu0 %v1128
        %1299 = vmatpush1.bf16.msra.mxu0 %v1127
        %1300 = vmatprep.subr.bf16.mxu0 %v1132
        %1301 = vmatpush1.bf16.msra.mxu0 %v1131
        %1302 = vmatprep.subr.bf16.mxu0 %v1136
        %1303 = vmatpush1.bf16.msra.mxu0 %v1135
        %1304 = vmatprep.subr.bf16.mxu0 %v1140
        %1305 = vmatpush1.bf16.msra.mxu0 %v1139
        %1306 = vmatprep.subr.bf16.mxu0 %v1144
        %1307 = vmatpush1.bf16.msra.mxu0 %v1143
        %1308 = vmatprep.subr.bf16.mxu0 %v1148
        %1309 = vmatpush1.bf16.msra.mxu0 %v1147
        %1310 = vmatprep.subr.bf16.mxu0 %v1152
        %1311 = vmatpush1.bf16.msra.mxu0 %v1151
        %1312 = vmatprep.subr.bf16.mxu0 %v1156
        %1313 = vmatpush1.bf16.msra.mxu0 %v1155
        %1314 = vmatprep.subr.bf16.mxu0 %v1160
        %1315 = vmatpush1.bf16.msra.mxu0 %v1159
        %1316 = vmatprep.subr.bf16.mxu0 %v1235
        %1317 = vmatpush1.bf16.msra.mxu0 %v1232
        %1318 = vmatprep.subr.bf16.mxu0 0
        %1319 = vmatpush1.bf16.msra.mxu0 0
        %1320 = vmatprep.subr.bf16.mxu0 0
        %1321 = vmatpush1.bf16.msra.mxu0 0
        %1322 = vmatprep.mubr.bf16.mxu0 %v1219
        %1323 = vmatmul.mubr.bf16.gmra.mrb[0].mxu0 %v941
        %v1324 = vpop.f32.mrb[0].mxu0
        %v1325 = vadd.f32 0.0, %v1324
        %v1326 = vpop.f32.mrb[0].mxu0
        %v1327 = vadd.f32 0.0, %v1326
        %v1328 = vpop.f32.mrb[0].mxu0
        %v1329 = vadd.f32 0.0, %v1328
        %v1330 = vpop.f32.mrb[0].mxu0
        %v1331 = vadd.f32 0.0, %v1330
        %1332 = vmatprep.mubr.bf16.mxu0 %v1222
        %1333 = vmatmul.mubr.bf16.gmra.mrb[0].mxu0 %v943
        %v1334 = vpop.f32.mrb[0].mxu0
        %v1335 = vadd.f32 0.0, %v1334
        %v1336 = vpop.f32.mrb[0].mxu0
        %v1337 = vadd.f32 0.0, %v1336
        %v1338 = vpop.f32.mrb[0].mxu0
        %v1339 = vadd.f32 0.0, %v1338
        %v1340 = vpop.f32.mrb[0].mxu0
        %v1341 = vadd.f32 0.0, %v1340
        %1342 = vdwg.mxu0
        %v1343 = vld [vmem:[%s4] sm:$0xf]
        %v1345 = vlaneseq
        %v1346 = vshrl.u32 %v1345, 7
        %v1347 = vsub.s32 0, %v1346
        %v1348 = vrot.slane %v1343, %v1347
        %v1349 = vlaneseq
        %v1350 = vshrl.u32 %v1349, 7
        %v1351 = vsub.s32 1, %v1350
        %v1352 = vrot.slane %v1343, %v1351
        %v1353 = vlaneseq
        %v1354 = vshrl.u32 %v1353, 7
        %v1355 = vsub.s32 2, %v1354
        %v1356 = vrot.slane %v1343, %v1355
        %v1357 = vlaneseq
        %v1358 = vshrl.u32 %v1357, 7
        %v1359 = vsub.s32 3, %v1358
        %v1360 = vrot.slane %v1343, %v1359
        %v1365 = vmul.f32 %v1272, %v1348
        %v1366 = vmul.f32 %v1274, %v1352
        %v1367 = vmul.f32 %v1325, %v1356
        %v1368 = vmul.f32 %v1327, %v1360
        %v1369 = vmul.f32 %v1276, %v1348
        %v1370 = vmul.f32 %v1278, %v1352
        %v1371 = vmul.f32 %v1329, %v1356
        %v1372 = vmul.f32 %v1331, %v1360
        %v1373 = vmul.f32 %v1282, %v1348
        %v1374 = vmul.f32 %v1284, %v1352
        %v1375 = vmul.f32 %v1335, %v1356
        %v1376 = vmul.f32 %v1337, %v1360
        %v1377 = vmul.f32 %v1286, %v1348
        %v1378 = vmul.f32 %v1288, %v1352
        %v1379 = vmul.f32 %v1339, %v1356
        %v1380 = vmul.f32 %v1341, %v1360
        %1381 = vst [vmem:[%s240] sm:$0xff] %v1365
        %1382 = vst [vmem:[%s240 + $0x8] sm:$0xff] %v1366
        %1383 = vst [vmem:[%s240 + $0x10] sm:$0xff] %v1367
        %1384 = vst [vmem:[%s240 + $0x18] sm:$0xff] %v1368
        %1385 = vst [vmem:[%s240 + $0xd0] sm:$0xff] %v1369
        %1386 = vst [vmem:[%s240 + $0xd8] sm:$0xff] %v1370
        %1387 = vst [vmem:[%s240 + $0xe0] sm:$0xff] %v1371
        %1388 = vst [vmem:[%s240 + $0xe8] sm:$0xff] %v1372
        %1389 = vst [vmem:[%s240 + $0x1a0] sm:$0xff] %v1373
        %1390 = vst [vmem:[%s240 + $0x1a8] sm:$0xff] %v1374
        %1391 = vst [vmem:[%s240 + $0x1b0] sm:$0xff] %v1375
        %1392 = vst [vmem:[%s240 + $0x1b8] sm:$0xff] %v1376
        %1393 = vst [vmem:[%s240 + $0x270] sm:$0xff] %v1377
        %1394 = vst [vmem:[%s240 + $0x278] sm:$0xff] %v1378
        %1395 = vst [vmem:[%s240 + $0x280] sm:$0xff] %v1379
        %1396 = vst [vmem:[%s240 + $0x288] sm:$0xff] %v1380
        %v1397 = vld [vmem:[%s214 + $0x10] sm:$0xff]
        %v1398 = vld [vmem:[%s214 + $0x18] sm:$0xff]
        %1399 = vst [vmem:[#allocation2] sm:$0xff] %v1397
        %1400 = vst [vmem:[#allocation2 + $0x8] sm:$0xff] %v1398
        %v1401 = vld [vmem:[%s214 + $0x10] sm:$0xff]
        %v1402 = vld [vmem:[%s214 + $0x18] sm:$0xff]
        %v1403 = vld [vmem:[%s214 + $0x20] sm:$0xf]
        %1407 = vrot.lane.b32.xlu0 %v1401, 127
        %v1408 = vpop.permute.xlu0 %1407
        %1409 = vrot.lane.b32.xlu0 %v1402, 127
        %v1410 = vpop.permute.xlu0 %1409
        %1411 = vrot.lane.b32.xlu0 %v1403, 127
        %v1412 = vpop.permute.xlu0 %1411
        %v1413 = vrot.slane %v1408, 4
        %v1414 = vrot.slane %v1410, 4
        %v1415 = vrot.slane %v1412, 4
        %v1416 = vsel %vm265, %v1413, %v1414
        %v1417 = vsel %vm267, %v1408, %v1416
        %v1418 = vsel %vm265, %v1414, %v1415
        %v1419 = vsel %vm267, %v1410, %v1418
        %1422 = vst [vmem:[#allocation2 + $0x10] sm:$0xff] %v1417
        %1423 = vst [vmem:[#allocation2 + $0x18] sm:$0xff] %v1419
        %v1424 = vld [vmem:[%s214 + $0x10] sm:$0xff]
        %v1425 = vld [vmem:[%s214 + $0x18] sm:$0xff]
        %v1426 = vld [vmem:[%s214 + $0x20] sm:$0xf]
        %1430 = vrot.lane.b32.xlu0 %v1424, 126
        %v1431 = vpop.permute.xlu0 %1430
        %1432 = vrot.lane.b32.xlu0 %v1425, 126
        %v1433 = vpop.permute.xlu0 %1432
        %1434 = vrot.lane.b32.xlu0 %v1426, 126
        %v1435 = vpop.permute.xlu0 %1434
        %v1436 = vrot.slane %v1431, 4
        %v1437 = vrot.slane %v1433, 4
        %v1438 = vrot.slane %v1435, 4
        %v1439 = vsel %vm265, %v1436, %v1437
        %v1440 = vsel %vm291, %v1431, %v1439
        %v1441 = vsel %vm265, %v1437, %v1438
        %v1442 = vsel %vm291, %v1433, %v1441
        %1445 = vst [vmem:[#allocation2 + $0x20] sm:$0xff] %v1440
        %1446 = vst [vmem:[#allocation2 + $0x28] sm:$0xff] %v1442
        %v1447 = vld [vmem:[%s214 + $0x10] sm:$0xff]
        %v1448 = vld [vmem:[%s214 + $0x18] sm:$0xff]
        %v1449 = vld [vmem:[%s214 + $0x20] sm:$0xf]
        %1453 = vrot.lane.b32.xlu0 %v1447, 110
        %v1454 = vpop.permute.xlu0 %1453
        %1455 = vrot.lane.b32.xlu0 %v1448, 110
        %v1456 = vpop.permute.xlu0 %1455
        %1457 = vrot.lane.b32.xlu0 %v1449, 110
        %v1458 = vpop.permute.xlu0 %1457
        %v1459 = vrot.slane %v1454, 4
        %v1460 = vrot.slane %v1456, 4
        %v1461 = vrot.slane %v1458, 4
        %v1462 = vsel %vm265, %v1459, %v1460
        %v1463 = vsel %vm315, %v1454, %v1462
        %v1464 = vsel %vm265, %v1460, %v1461
        %v1465 = vsel %vm315, %v1456, %v1464
        %1468 = vst [vmem:[#allocation2 + $0x30] sm:$0xff] %v1463
        %1469 = vst [vmem:[#allocation2 + $0x38] sm:$0xff] %v1465
        %v1470 = vld [vmem:[%s214 + $0x10] sm:$0xff]
        %v1471 = vld [vmem:[%s214 + $0x18] sm:$0xff]
        %v1472 = vld [vmem:[%s214 + $0x20] sm:$0xf]
        %1476 = vrot.lane.b32.xlu0 %v1470, 109
        %v1477 = vpop.permute.xlu0 %1476
        %1478 = vrot.lane.b32.xlu0 %v1471, 109
        %v1479 = vpop.permute.xlu0 %1478
        %1480 = vrot.lane.b32.xlu0 %v1472, 109
        %v1481 = vpop.permute.xlu0 %1480
        %v1482 = vrot.slane %v1477, 4
        %v1483 = vrot.slane %v1479, 4
        %v1484 = vrot.slane %v1481, 4
        %v1485 = vsel %vm265, %v1482, %v1483
        %v1486 = vsel %vm339, %v1477, %v1485
        %v1487 = vsel %vm265, %v1483, %v1484
        %v1488 = vsel %vm339, %v1479, %v1487
        %1491 = vst [vmem:[#allocation2 + $0x40] sm:$0xff] %v1486
        %1492 = vst [vmem:[#allocation2 + $0x48] sm:$0xff] %v1488
        %v1493 = vld [vmem:[%s214 + $0x10] sm:$0xff]
        %v1494 = vld [vmem:[%s214 + $0x18] sm:$0xff]
        %v1495 = vld [vmem:[%s214 + $0x20] sm:$0xf]
        %1499 = vrot.lane.b32.xlu0 %v1493, 108
        %v1500 = vpop.permute.xlu0 %1499
        %1501 = vrot.lane.b32.xlu0 %v1494, 108
        %v1502 = vpop.permute.xlu0 %1501
        %1503 = vrot.lane.b32.xlu0 %v1495, 108
        %v1504 = vpop.permute.xlu0 %1503
        %v1505 = vrot.slane %v1500, 4
        %v1506 = vrot.slane %v1502, 4
        %v1507 = vrot.slane %v1504, 4
        %v1508 = vsel %vm265, %v1505, %v1506
        %v1509 = vsel %vm363, %v1500, %v1508
        %v1510 = vsel %vm265, %v1506, %v1507
        %v1511 = vsel %vm363, %v1502, %v1510
        %1514 = vst [vmem:[#allocation2 + $0x50] sm:$0xff] %v1509
        %1515 = vst [vmem:[#allocation2 + $0x58] sm:$0xff] %v1511
        %v1516 = vld [vmem:[%s214 + $0x10] sm:$0xff]
        %v1517 = vld [vmem:[%s214 + $0x18] sm:$0xff]
        %v1518 = vld [vmem:[%s214 + $0x20] sm:$0xf]
        %1522 = vrot.lane.b32.xlu0 %v1516, 92
        %v1523 = vpop.permute.xlu0 %1522
        %1524 = vrot.lane.b32.xlu0 %v1517, 92
        %v1525 = vpop.permute.xlu0 %1524
        %1526 = vrot.lane.b32.xlu0 %v1518, 92
        %v1527 = vpop.permute.xlu0 %1526
        %v1528 = vrot.slane %v1523, 4
        %v1529 = vrot.slane %v1525, 4
        %v1530 = vrot.slane %v1527, 4
        %v1531 = vsel %vm265, %v1528, %v1529
        %v1532 = vsel %vm387, %v1523, %v1531
        %v1533 = vsel %vm265, %v1529, %v1530
        %v1534 = vsel %vm387, %v1525, %v1533
        %1537 = vst [vmem:[#allocation2 + $0x60] sm:$0xff] %v1532
        %1538 = vst [vmem:[#allocation2 + $0x68] sm:$0xff] %v1534
        %v1539 = vld [vmem:[%s214 + $0x10] sm:$0xff]
        %v1540 = vld [vmem:[%s214 + $0x18] sm:$0xff]
        %v1541 = vld [vmem:[%s214 + $0x20] sm:$0xf]
        %1545 = vrot.lane.b32.xlu0 %v1539, 91
        %v1546 = vpop.permute.xlu0 %1545
        %1547 = vrot.lane.b32.xlu0 %v1540, 91
        %v1548 = vpop.permute.xlu0 %1547
        %1549 = vrot.lane.b32.xlu0 %v1541, 91
        %v1550 = vpop.permute.xlu0 %1549
        %v1551 = vrot.slane %v1546, 4
        %v1552 = vrot.slane %v1548, 4
        %v1553 = vrot.slane %v1550, 4
        %v1554 = vsel %vm265, %v1551, %v1552
        %v1555 = vsel %vm411, %v1546, %v1554
        %v1556 = vsel %vm265, %v1552, %v1553
        %v1557 = vsel %vm411, %v1548, %v1556
        %1560 = vst [vmem:[#allocation2 + $0x70] sm:$0xff] %v1555
        %1561 = vst [vmem:[#allocation2 + $0x78] sm:$0xff] %v1557
        %v1562 = vld [vmem:[%s214 + $0x10] sm:$0xff]
        %v1563 = vld [vmem:[%s214 + $0x18] sm:$0xff]
        %v1564 = vld [vmem:[%s214 + $0x20] sm:$0xf]
        %1568 = vrot.lane.b32.xlu0 %v1562, 90
        %v1569 = vpop.permute.xlu0 %1568
        %1570 = vrot.lane.b32.xlu0 %v1563, 90
        %v1571 = vpop.permute.xlu0 %1570
        %1572 = vrot.lane.b32.xlu0 %v1564, 90
        %v1573 = vpop.permute.xlu0 %1572
        %v1574 = vrot.slane %v1569, 4
        %v1575 = vrot.slane %v1571, 4
        %v1576 = vrot.slane %v1573, 4
        %v1577 = vsel %vm265, %v1574, %v1575
        %v1578 = vsel %vm435, %v1569, %v1577
        %v1579 = vsel %vm265, %v1575, %v1576
        %v1580 = vsel %vm435, %v1571, %v1579
        %1583 = vst [vmem:[#allocation2 + $0x80] sm:$0xff] %v1578
        %1584 = vst [vmem:[#allocation2 + $0x88] sm:$0xff] %v1580
        %v1585 = vld [vmem:[%s214 + $0x18] sm:$0xff]
        %v1586 = vld [vmem:[%s214 + $0x20] sm:$0xff]
        %v1587 = vld [vmem:[%s214 + $0x28] sm:$0xf]
        %1591 = vrot.lane.b32.xlu0 %v1585, 60
        %v1592 = vpop.permute.xlu0 %1591
        %1593 = vrot.lane.b32.xlu0 %v1586, 60
        %v1594 = vpop.permute.xlu0 %1593
        %1595 = vrot.lane.b32.xlu0 %v1587, 60
        %v1596 = vpop.permute.xlu0 %1595
        %v1597 = vrot.slane %v1592, 4
        %v1598 = vrot.slane %v1594, 4
        %v1599 = vrot.slane %v1596, 4
        %v1600 = vsel %vm265, %v1597, %v1598
        %v1601 = vsel %vm459, %v1592, %v1600
        %v1602 = vsel %vm265, %v1598, %v1599
        %v1603 = vsel %vm459, %v1594, %v1602
        %1606 = vst [vmem:[#allocation2 + $0x90] sm:$0xff] %v1601
        %1607 = vst [vmem:[#allocation2 + $0x98] sm:$0xff] %v1603
        %v1608 = vld [vmem:[%s214 + $0x18] sm:$0xff]
        %v1609 = vld [vmem:[%s214 + $0x20] sm:$0xff]
        %v1610 = vld [vmem:[%s214 + $0x28] sm:$0xf]
        %1614 = vrot.lane.b32.xlu0 %v1608, 59
        %v1615 = vpop.permute.xlu0 %1614
        %1616 = vrot.lane.b32.xlu0 %v1609, 59
        %v1617 = vpop.permute.xlu0 %1616
        %1618 = vrot.lane.b32.xlu0 %v1610, 59
        %v1619 = vpop.permute.xlu0 %1618
        %v1620 = vrot.slane %v1615, 4
        %v1621 = vrot.slane %v1617, 4
        %v1622 = vrot.slane %v1619, 4
        %v1623 = vsel %vm265, %v1620, %v1621
        %v1624 = vsel %vm483, %v1615, %v1623
        %v1625 = vsel %vm265, %v1621, %v1622
        %v1626 = vsel %vm483, %v1617, %v1625
        %1629 = vst [vmem:[#allocation2 + $0xa0] sm:$0xff] %v1624
        %1630 = vst [vmem:[#allocation2 + $0xa8] sm:$0xff] %v1626
        %v1631 = vld [vmem:[%s214 + $0x18] sm:$0xff]
        %v1632 = vld [vmem:[%s214 + $0x20] sm:$0xff]
        %v1633 = vld [vmem:[%s214 + $0x28] sm:$0xf]
        %1637 = vrot.lane.b32.xlu0 %v1631, 58
        %v1638 = vpop.permute.xlu0 %1637
        %1639 = vrot.lane.b32.xlu0 %v1632, 58
        %v1640 = vpop.permute.xlu0 %1639
        %1641 = vrot.lane.b32.xlu0 %v1633, 58
        %v1642 = vpop.permute.xlu0 %1641
        %v1643 = vrot.slane %v1638, 4
        %v1644 = vrot.slane %v1640, 4
        %v1645 = vrot.slane %v1642, 4
        %v1646 = vsel %vm265, %v1643, %v1644
        %v1647 = vsel %vm507, %v1638, %v1646
        %v1648 = vsel %vm265, %v1644, %v1645
        %v1649 = vsel %vm507, %v1640, %v1648
        %1652 = vst [vmem:[#allocation2 + $0xb0] sm:$0xff] %v1647
        %1653 = vst [vmem:[#allocation2 + $0xb8] sm:$0xff] %v1649
        %v1654 = vld [vmem:[%s214 + $0x18] sm:$0xff]
        %v1655 = vld [vmem:[%s214 + $0x20] sm:$0xff]
        %v1656 = vld [vmem:[%s214 + $0x28] sm:$0xf]
        %1660 = vrot.lane.b32.xlu0 %v1654, 42
        %v1661 = vpop.permute.xlu0 %1660
        %1662 = vrot.lane.b32.xlu0 %v1655, 42
        %v1663 = vpop.permute.xlu0 %1662
        %1664 = vrot.lane.b32.xlu0 %v1656, 42
        %v1665 = vpop.permute.xlu0 %1664
        %v1666 = vrot.slane %v1661, 4
        %v1667 = vrot.slane %v1663, 4
        %v1668 = vrot.slane %v1665, 4
        %v1669 = vsel %vm265, %v1666, %v1667
        %v1670 = vsel %vm531, %v1661, %v1669
        %v1671 = vsel %vm265, %v1667, %v1668
        %v1672 = vsel %vm531, %v1663, %v1671
        %1675 = vst [vmem:[#allocation2 + $0xc0] sm:$0xff] %v1670
        %1676 = vst [vmem:[#allocation2 + $0xc8] sm:$0xff] %v1672
        %v1677 = vld [vmem:[%s214 + $0x18] sm:$0xff]
        %v1678 = vld [vmem:[%s214 + $0x20] sm:$0xff]
        %v1679 = vld [vmem:[%s214 + $0x28] sm:$0xf]
        %1683 = vrot.lane.b32.xlu0 %v1677, 41
        %v1684 = vpop.permute.xlu0 %1683
        %1685 = vrot.lane.b32.xlu0 %v1678, 41
        %v1686 = vpop.permute.xlu0 %1685
        %1687 = vrot.lane.b32.xlu0 %v1679, 41
        %v1688 = vpop.permute.xlu0 %1687
        %v1689 = vrot.slane %v1684, 4
        %v1690 = vrot.slane %v1686, 4
        %v1691 = vrot.slane %v1688, 4
        %v1692 = vsel %vm265, %v1689, %v1690
        %v1693 = vsel %vm555, %v1684, %v1692
        %v1694 = vsel %vm265, %v1690, %v1691
        %v1695 = vsel %vm555, %v1686, %v1694
        %1698 = vst [vmem:[#allocation2 + $0xd0] sm:$0xff] %v1693
        %1699 = vst [vmem:[#allocation2 + $0xd8] sm:$0xff] %v1695
        %v1700 = vld [vmem:[%s214 + $0x18] sm:$0xff]
        %v1701 = vld [vmem:[%s214 + $0x20] sm:$0xff]
        %v1702 = vld [vmem:[%s214 + $0x28] sm:$0xf]
        %1706 = vrot.lane.b32.xlu0 %v1700, 40
        %v1707 = vpop.permute.xlu0 %1706
        %1708 = vrot.lane.b32.xlu0 %v1701, 40
        %v1709 = vpop.permute.xlu0 %1708
        %1710 = vrot.lane.b32.xlu0 %v1702, 40
        %v1711 = vpop.permute.xlu0 %1710
        %v1712 = vrot.slane %v1707, 4
        %v1713 = vrot.slane %v1709, 4
        %v1714 = vrot.slane %v1711, 4
        %v1715 = vsel %vm265, %v1712, %v1713
        %v1716 = vsel %vm579, %v1707, %v1715
        %v1717 = vsel %vm265, %v1713, %v1714
        %v1718 = vsel %vm579, %v1709, %v1717
        %1721 = vst [vmem:[#allocation2 + $0xe0] sm:$0xff] %v1716
        %1722 = vst [vmem:[#allocation2 + $0xe8] sm:$0xff] %v1718
        %v1723 = vld [vmem:[%s214 + $0x18] sm:$0xff]
        %v1724 = vld [vmem:[%s214 + $0x20] sm:$0xff]
        %v1725 = vld [vmem:[%s214 + $0x28] sm:$0xf]
        %1729 = vrot.lane.b32.xlu0 %v1723, 24
        %v1730 = vpop.permute.xlu0 %1729
        %1731 = vrot.lane.b32.xlu0 %v1724, 24
        %v1732 = vpop.permute.xlu0 %1731
        %1733 = vrot.lane.b32.xlu0 %v1725, 24
        %v1734 = vpop.permute.xlu0 %1733
        %v1735 = vrot.slane %v1730, 4
        %v1736 = vrot.slane %v1732, 4
        %v1737 = vrot.slane %v1734, 4
        %v1738 = vsel %vm265, %v1735, %v1736
        %v1739 = vsel %vm603, %v1730, %v1738
        %v1740 = vsel %vm265, %v1736, %v1737
        %v1741 = vsel %vm603, %v1732, %v1740
        %1744 = vst [vmem:[#allocation2 + $0xf0] sm:$0xff] %v1739
        %1745 = vst [vmem:[#allocation2 + $0xf8] sm:$0xff] %v1741
        %v1746 = vld [vmem:[%s214 + $0x18] sm:$0xff]
        %v1747 = vld [vmem:[%s214 + $0x20] sm:$0xff]
        %v1748 = vld [vmem:[%s214 + $0x28] sm:$0xf]
        %1752 = vrot.lane.b32.xlu0 %v1746, 23
        %v1753 = vpop.permute.xlu0 %1752
        %1754 = vrot.lane.b32.xlu0 %v1747, 23
        %v1755 = vpop.permute.xlu0 %1754
        %1756 = vrot.lane.b32.xlu0 %v1748, 23
        %v1757 = vpop.permute.xlu0 %1756
        %v1758 = vrot.slane %v1753, 4
        %v1759 = vrot.slane %v1755, 4
        %v1760 = vrot.slane %v1757, 4
        %v1761 = vsel %vm265, %v1758, %v1759
        %v1762 = vsel %vm627, %v1753, %v1761
        %v1763 = vsel %vm265, %v1759, %v1760
        %v1764 = vsel %vm627, %v1755, %v1763
        %1767 = vst [vmem:[#allocation2 + $0x100] sm:$0xff] %v1762
        %1768 = vst [vmem:[#allocation2 + $0x108] sm:$0xff] %v1764
        %v1769 = vld [vmem:[%s214 + $0x18] sm:$0xff]
        %v1770 = vld [vmem:[%s214 + $0x20] sm:$0xff]
        %v1771 = vld [vmem:[%s214 + $0x28] sm:$0xf]
        %1775 = vrot.lane.b32.xlu0 %v1769, 22
        %v1776 = vpop.permute.xlu0 %1775
        %1777 = vrot.lane.b32.xlu0 %v1770, 22
        %v1778 = vpop.permute.xlu0 %1777
        %1779 = vrot.lane.b32.xlu0 %v1771, 22
        %v1780 = vpop.permute.xlu0 %1779
        %v1781 = vrot.slane %v1776, 4
        %v1782 = vrot.slane %v1778, 4
        %v1783 = vrot.slane %v1780, 4
        %v1784 = vsel %vm265, %v1781, %v1782
        %v1785 = vsel %vm651, %v1776, %v1784
        %v1786 = vsel %vm265, %v1782, %v1783
        %v1787 = vsel %vm651, %v1778, %v1786
        %1790 = vst [vmem:[#allocation2 + $0x110] sm:$0xff] %v1785
        %1791 = vst [vmem:[#allocation2 + $0x118] sm:$0xff] %v1787
        %v1792 = vld [vmem:[%s214 + $0x24] sm:$0xff]
        %v1793 = vld [vmem:[%s214 + $0x2c] sm:$0xff]
        %v1794 = vld [vmem:[%s214 + $0x34] sm:$0xf]
        %1798 = vrot.lane.b32.xlu0 %v1792, 120
        %v1799 = vpop.permute.xlu0 %1798
        %1800 = vrot.lane.b32.xlu0 %v1793, 120
        %v1801 = vpop.permute.xlu0 %1800
        %1802 = vrot.lane.b32.xlu0 %v1794, 120
        %v1803 = vpop.permute.xlu0 %1802
        %v1804 = vrot.slane %v1799, 4
        %v1805 = vrot.slane %v1801, 4
        %v1806 = vrot.slane %v1803, 4
        %v1807 = vsel %vm265, %v1804, %v1805
        %v1808 = vsel %vm675, %v1799, %v1807
        %v1809 = vsel %vm265, %v1805, %v1806
        %v1810 = vsel %vm675, %v1801, %v1809
        %1813 = vst [vmem:[#allocation2 + $0x120] sm:$0xff] %v1808
        %1814 = vst [vmem:[#allocation2 + $0x128] sm:$0xff] %v1810
        %v1815 = vld [vmem:[%s214 + $0x24] sm:$0xff]
        %v1816 = vld [vmem:[%s214 + $0x2c] sm:$0xff]
        %v1817 = vld [vmem:[%s214 + $0x34] sm:$0xf]
        %1821 = vrot.lane.b32.xlu0 %v1815, 119
        %v1822 = vpop.permute.xlu0 %1821
        %1823 = vrot.lane.b32.xlu0 %v1816, 119
        %v1824 = vpop.permute.xlu0 %1823
        %1825 = vrot.lane.b32.xlu0 %v1817, 119
        %v1826 = vpop.permute.xlu0 %1825
        %v1827 = vrot.slane %v1822, 4
        %v1828 = vrot.slane %v1824, 4
        %v1829 = vrot.slane %v1826, 4
        %v1830 = vsel %vm265, %v1827, %v1828
        %v1831 = vsel %vm699, %v1822, %v1830
        %v1832 = vsel %vm265, %v1828, %v1829
        %v1833 = vsel %vm699, %v1824, %v1832
        %1836 = vst [vmem:[#allocation2 + $0x130] sm:$0xff] %v1831
        %1837 = vst [vmem:[#allocation2 + $0x138] sm:$0xff] %v1833
        %v1838 = vld [vmem:[%s214 + $0x24] sm:$0xff]
        %v1839 = vld [vmem:[%s214 + $0x2c] sm:$0xff]
        %v1840 = vld [vmem:[%s214 + $0x34] sm:$0xf]
        %1844 = vrot.lane.b32.xlu0 %v1838, 118
        %v1845 = vpop.permute.xlu0 %1844
        %1846 = vrot.lane.b32.xlu0 %v1839, 118
        %v1847 = vpop.permute.xlu0 %1846
        %1848 = vrot.lane.b32.xlu0 %v1840, 118
        %v1849 = vpop.permute.xlu0 %1848
        %v1850 = vrot.slane %v1845, 4
        %v1851 = vrot.slane %v1847, 4
        %v1852 = vrot.slane %v1849, 4
        %v1853 = vsel %vm265, %v1850, %v1851
        %v1854 = vsel %vm723, %v1845, %v1853
        %v1855 = vsel %vm265, %v1851, %v1852
        %v1856 = vsel %vm723, %v1847, %v1855
        %1859 = vst [vmem:[#allocation2 + $0x140] sm:$0xff] %v1854
        %1860 = vst [vmem:[#allocation2 + $0x148] sm:$0xff] %v1856
        %v1861 = vld [vmem:[%s214 + $0x24] sm:$0xff]
        %v1862 = vld [vmem:[%s214 + $0x2c] sm:$0xff]
        %v1863 = vld [vmem:[%s214 + $0x34] sm:$0xf]
        %1867 = vrot.lane.b32.xlu0 %v1861, 102
        %v1868 = vpop.permute.xlu0 %1867
        %1869 = vrot.lane.b32.xlu0 %v1862, 102
        %v1870 = vpop.permute.xlu0 %1869
        %1871 = vrot.lane.b32.xlu0 %v1863, 102
        %v1872 = vpop.permute.xlu0 %1871
        %v1873 = vrot.slane %v1868, 4
        %v1874 = vrot.slane %v1870, 4
        %v1875 = vrot.slane %v1872, 4
        %v1876 = vsel %vm265, %v1873, %v1874
        %v1877 = vsel %vm747, %v1868, %v1876
        %v1878 = vsel %vm265, %v1874, %v1875
        %v1879 = vsel %vm747, %v1870, %v1878
        %1882 = vst [vmem:[#allocation2 + $0x150] sm:$0xff] %v1877
        %1883 = vst [vmem:[#allocation2 + $0x158] sm:$0xff] %v1879
        %v1884 = vld [vmem:[%s214 + $0x24] sm:$0xff]
        %v1885 = vld [vmem:[%s214 + $0x2c] sm:$0xff]
        %v1886 = vld [vmem:[%s214 + $0x34] sm:$0xf]
        %1890 = vrot.lane.b32.xlu0 %v1884, 101
        %v1891 = vpop.permute.xlu0 %1890
        %1892 = vrot.lane.b32.xlu0 %v1885, 101
        %v1893 = vpop.permute.xlu0 %1892
        %1894 = vrot.lane.b32.xlu0 %v1886, 101
        %v1895 = vpop.permute.xlu0 %1894
        %v1896 = vrot.slane %v1891, 4
        %v1897 = vrot.slane %v1893, 4
        %v1898 = vrot.slane %v1895, 4
        %v1899 = vsel %vm265, %v1896, %v1897
        %v1900 = vsel %vm771, %v1891, %v1899
        %v1901 = vsel %vm265, %v1897, %v1898
        %v1902 = vsel %vm771, %v1893, %v1901
        %1905 = vst [vmem:[#allocation2 + $0x160] sm:$0xff] %v1900
        %1906 = vst [vmem:[#allocation2 + $0x168] sm:$0xff] %v1902
        %v1907 = vld [vmem:[%s214 + $0x24] sm:$0xff]
        %v1908 = vld [vmem:[%s214 + $0x2c] sm:$0xff]
        %v1909 = vld [vmem:[%s214 + $0x34] sm:$0xf]
        %1913 = vrot.lane.b32.xlu0 %v1907, 100
        %v1914 = vpop.permute.xlu0 %1913
        %1915 = vrot.lane.b32.xlu0 %v1908, 100
        %v1916 = vpop.permute.xlu0 %1915
        %1917 = vrot.lane.b32.xlu0 %v1909, 100
        %v1918 = vpop.permute.xlu0 %1917
        %v1919 = vrot.slane %v1914, 4
        %v1920 = vrot.slane %v1916, 4
        %v1921 = vrot.slane %v1918, 4
        %v1922 = vsel %vm265, %v1919, %v1920
        %v1923 = vsel %vm795, %v1914, %v1922
        %v1924 = vsel %vm265, %v1920, %v1921
        %v1925 = vsel %vm795, %v1916, %v1924
        %1928 = vst [vmem:[#allocation2 + $0x170] sm:$0xff] %v1923
        %1929 = vst [vmem:[#allocation2 + $0x178] sm:$0xff] %v1925
        %v1930 = vld [vmem:[%s214 + $0x24] sm:$0xff]
        %v1931 = vld [vmem:[%s214 + $0x2c] sm:$0xff]
        %v1932 = vld [vmem:[%s214 + $0x34] sm:$0xf]
        %1936 = vrot.lane.b32.xlu0 %v1930, 84
        %v1937 = vpop.permute.xlu0 %1936
        %1938 = vrot.lane.b32.xlu0 %v1931, 84
        %v1939 = vpop.permute.xlu0 %1938
        %1940 = vrot.lane.b32.xlu0 %v1932, 84
        %v1941 = vpop.permute.xlu0 %1940
        %v1942 = vrot.slane %v1937, 4
        %v1943 = vrot.slane %v1939, 4
        %v1944 = vrot.slane %v1941, 4
        %v1945 = vsel %vm265, %v1942, %v1943
        %v1946 = vsel %vm819, %v1937, %v1945
        %v1947 = vsel %vm265, %v1943, %v1944
        %v1948 = vsel %vm819, %v1939, %v1947
        %1951 = vst [vmem:[#allocation2 + $0x180] sm:$0xff] %v1946
        %1952 = vst [vmem:[#allocation2 + $0x188] sm:$0xff] %v1948
        %v1953 = vld [vmem:[%s214 + $0x24] sm:$0xff]
        %v1954 = vld [vmem:[%s214 + $0x2c] sm:$0xff]
        %v1955 = vld [vmem:[%s214 + $0x34] sm:$0xf]
        %1959 = vrot.lane.b32.xlu0 %v1953, 83
        %v1960 = vpop.permute.xlu0 %1959
        %1961 = vrot.lane.b32.xlu0 %v1954, 83
        %v1962 = vpop.permute.xlu0 %1961
        %1963 = vrot.lane.b32.xlu0 %v1955, 83
        %v1964 = vpop.permute.xlu0 %1963
        %v1965 = vrot.slane %v1960, 4
        %v1966 = vrot.slane %v1962, 4
        %v1967 = vrot.slane %v1964, 4
        %v1968 = vsel %vm265, %v1965, %v1966
        %v1969 = vsel %vm843, %v1960, %v1968
        %v1970 = vsel %vm265, %v1966, %v1967
        %v1971 = vsel %vm843, %v1962, %v1970
        %1974 = vst [vmem:[#allocation2 + $0x190] sm:$0xff] %v1969
        %1975 = vst [vmem:[#allocation2 + $0x198] sm:$0xff] %v1971
        %v1976 = vld [vmem:[%s214 + $0x24] sm:$0xff]
        %v1977 = vld [vmem:[%s214 + $0x2c] sm:$0xff]
        %v1978 = vld [vmem:[%s214 + $0x34] sm:$0xf]
        %1982 = vrot.lane.b32.xlu0 %v1976, 82
        %v1983 = vpop.permute.xlu0 %1982
        %1984 = vrot.lane.b32.xlu0 %v1977, 82
        %v1985 = vpop.permute.xlu0 %1984
        %1986 = vrot.lane.b32.xlu0 %v1978, 82
        %v1987 = vpop.permute.xlu0 %1986
        %v1988 = vrot.slane %v1983, 4
        %v1989 = vrot.slane %v1985, 4
        %v1990 = vrot.slane %v1987, 4
        %v1991 = vsel %vm265, %v1988, %v1989
        %v1992 = vsel %vm867, %v1983, %v1991
        %v1993 = vsel %vm265, %v1989, %v1990
        %v1994 = vsel %vm867, %v1985, %v1993
        %1997 = vst [vmem:[#allocation2 + $0x1a0] sm:$0xff] %v1992
        %1998 = vst [vmem:[#allocation2 + $0x1a8] sm:$0xff] %v1994
        %v1999 = vld [vmem:[#allocation2] sm:$0xff]
        %v2000 = vld [vmem:[#allocation2 + $0x8] sm:$0xff]
        %v2001 = vld [vmem:[#allocation2 + $0x10] sm:$0xff]
        %v2002 = vld [vmem:[#allocation2 + $0x18] sm:$0xff]
        %v2003 = vld [vmem:[#allocation2 + $0x20] sm:$0xff]
        %v2004 = vld [vmem:[#allocation2 + $0x28] sm:$0xff]
        %v2005 = vld [vmem:[#allocation2 + $0x30] sm:$0xff]
        %v2006 = vld [vmem:[#allocation2 + $0x38] sm:$0xff]
        %v2007 = vld [vmem:[#allocation2 + $0x40] sm:$0xff]
        %v2008 = vld [vmem:[#allocation2 + $0x48] sm:$0xff]
        %v2009 = vld [vmem:[#allocation2 + $0x50] sm:$0xff]
        %v2010 = vld [vmem:[#allocation2 + $0x58] sm:$0xff]
        %v2011 = vld [vmem:[#allocation2 + $0x60] sm:$0xff]
        %v2012 = vld [vmem:[#allocation2 + $0x68] sm:$0xff]
        %v2013 = vld [vmem:[#allocation2 + $0x70] sm:$0xff]
        %v2014 = vld [vmem:[#allocation2 + $0x78] sm:$0xff]
        %v2015 = vld [vmem:[#allocation2 + $0x80] sm:$0xff]
        %v2016 = vld [vmem:[#allocation2 + $0x88] sm:$0xff]
        %v2017 = vld [vmem:[#allocation2 + $0x90] sm:$0xff]
        %v2018 = vld [vmem:[#allocation2 + $0x98] sm:$0xff]
        %v2019 = vld [vmem:[#allocation2 + $0xa0] sm:$0xff]
        %v2020 = vld [vmem:[#allocation2 + $0xa8] sm:$0xff]
        %v2021 = vld [vmem:[#allocation2 + $0xb0] sm:$0xff]
        %v2022 = vld [vmem:[#allocation2 + $0xb8] sm:$0xff]
        %v2023 = vld [vmem:[#allocation2 + $0xc0] sm:$0xff]
        %v2024 = vld [vmem:[#allocation2 + $0xc8] sm:$0xff]
        %v2025 = vld [vmem:[#allocation2 + $0xd0] sm:$0xff]
        %v2026 = vld [vmem:[#allocation2 + $0xd8] sm:$0xff]
        %v2027 = vld [vmem:[#allocation2 + $0xe0] sm:$0xff]
        %v2028 = vld [vmem:[#allocation2 + $0xe8] sm:$0xff]
        %v2029 = vld [vmem:[#allocation2 + $0xf0] sm:$0xff]
        %v2030 = vld [vmem:[#allocation2 + $0xf8] sm:$0xff]
        %v2031 = vld [vmem:[#allocation2 + $0x100] sm:$0xff]
        %v2032 = vld [vmem:[#allocation2 + $0x108] sm:$0xff]
        %v2033 = vld [vmem:[#allocation2 + $0x110] sm:$0xff]
        %v2034 = vld [vmem:[#allocation2 + $0x118] sm:$0xff]
        %v2035 = vld [vmem:[#allocation2 + $0x120] sm:$0xff]
        %v2036 = vld [vmem:[#allocation2 + $0x128] sm:$0xff]
        %v2037 = vld [vmem:[#allocation2 + $0x130] sm:$0xff]
        %v2038 = vld [vmem:[#allocation2 + $0x138] sm:$0xff]
        %v2039 = vld [vmem:[#allocation2 + $0x140] sm:$0xff]
        %v2040 = vld [vmem:[#allocation2 + $0x148] sm:$0xff]
        %v2041 = vld [vmem:[#allocation2 + $0x150] sm:$0xff]
        %v2042 = vld [vmem:[#allocation2 + $0x158] sm:$0xff]
        %v2043 = vld [vmem:[#allocation2 + $0x160] sm:$0xff]
        %v2044 = vld [vmem:[#allocation2 + $0x168] sm:$0xff]
        %v2045 = vld [vmem:[#allocation2 + $0x170] sm:$0xff]
        %v2046 = vld [vmem:[#allocation2 + $0x178] sm:$0xff]
        %v2047 = vld [vmem:[#allocation2 + $0x180] sm:$0xff]
        %v2048 = vld [vmem:[#allocation2 + $0x188] sm:$0xff]
        %v2049 = vld [vmem:[#allocation2 + $0x190] sm:$0xff]
        %v2050 = vld [vmem:[#allocation2 + $0x198] sm:$0xff]
        %v2051 = vld [vmem:[#allocation2 + $0x1a0] sm:$0xff]
        %v2052 = vld [vmem:[#allocation2 + $0x1a8] sm:$0xff]
        %v2107 = vunpack.c.l.b16 %v1999
        %v2108 = vunpack.c.h.b16 %v1999
        %v2109 = vunpack.c.l.b16 %v2000
        %v2110 = vunpack.c.h.b16 %v2000
        %v2111 = vunpack.c.l.b16 %v2001
        %v2112 = vunpack.c.h.b16 %v2001
        %v2113 = vunpack.c.l.b16 %v2002
        %v2114 = vunpack.c.h.b16 %v2002
        %v2115 = vunpack.c.l.b16 %v2003
        %v2116 = vunpack.c.h.b16 %v2003
        %v2117 = vunpack.c.l.b16 %v2004
        %v2118 = vunpack.c.h.b16 %v2004
        %v2119 = vunpack.c.l.b16 %v2005
        %v2120 = vunpack.c.h.b16 %v2005
        %v2121 = vunpack.c.l.b16 %v2006
        %v2122 = vunpack.c.h.b16 %v2006
        %v2123 = vunpack.c.l.b16 %v2007
        %v2124 = vunpack.c.h.b16 %v2007
        %v2125 = vunpack.c.l.b16 %v2008
        %v2126 = vunpack.c.h.b16 %v2008
        %v2127 = vunpack.c.l.b16 %v2009
        %v2128 = vunpack.c.h.b16 %v2009
        %v2129 = vunpack.c.l.b16 %v2010
        %v2130 = vunpack.c.h.b16 %v2010
        %v2131 = vunpack.c.l.b16 %v2011
        %v2132 = vunpack.c.h.b16 %v2011
        %v2133 = vunpack.c.l.b16 %v2012
        %v2134 = vunpack.c.h.b16 %v2012
        %v2135 = vunpack.c.l.b16 %v2013
        %v2136 = vunpack.c.h.b16 %v2013
        %v2137 = vunpack.c.l.b16 %v2014
        %v2138 = vunpack.c.h.b16 %v2014
        %v2139 = vunpack.c.l.b16 %v2015
        %v2140 = vunpack.c.h.b16 %v2015
        %v2141 = vunpack.c.l.b16 %v2016
        %v2142 = vunpack.c.h.b16 %v2016
        %v2143 = vunpack.c.l.b16 %v2017
        %v2144 = vunpack.c.h.b16 %v2017
        %v2145 = vunpack.c.l.b16 %v2018
        %v2146 = vunpack.c.h.b16 %v2018
        %v2147 = vunpack.c.l.b16 %v2019
        %v2148 = vunpack.c.h.b16 %v2019
        %v2149 = vunpack.c.l.b16 %v2020
        %v2150 = vunpack.c.h.b16 %v2020
        %v2151 = vunpack.c.l.b16 %v2021
        %v2152 = vunpack.c.h.b16 %v2021
        %v2153 = vunpack.c.l.b16 %v2022
        %v2154 = vunpack.c.h.b16 %v2022
        %v2155 = vunpack.c.l.b16 %v2023
        %v2156 = vunpack.c.h.b16 %v2023
        %v2157 = vunpack.c.l.b16 %v2024
        %v2158 = vunpack.c.h.b16 %v2024
        %v2159 = vunpack.c.l.b16 %v2025
        %v2160 = vunpack.c.h.b16 %v2025
        %v2161 = vunpack.c.l.b16 %v2026
        %v2162 = vunpack.c.h.b16 %v2026
        %v2163 = vunpack.c.l.b16 %v2027
        %v2164 = vunpack.c.h.b16 %v2027
        %v2165 = vunpack.c.l.b16 %v2028
        %v2166 = vunpack.c.h.b16 %v2028
        %v2167 = vunpack.c.l.b16 %v2029
        %v2168 = vunpack.c.h.b16 %v2029
        %v2169 = vunpack.c.l.b16 %v2030
        %v2170 = vunpack.c.h.b16 %v2030
        %v2171 = vunpack.c.l.b16 %v2031
        %v2172 = vunpack.c.h.b16 %v2031
        %v2173 = vunpack.c.l.b16 %v2032
        %v2174 = vunpack.c.h.b16 %v2032
        %v2175 = vunpack.c.l.b16 %v2033
        %v2176 = vunpack.c.h.b16 %v2033
        %v2177 = vunpack.c.l.b16 %v2034
        %v2178 = vunpack.c.h.b16 %v2034
        %v2179 = vunpack.c.l.b16 %v2035
        %v2180 = vunpack.c.h.b16 %v2035
        %v2181 = vunpack.c.l.b16 %v2036
        %v2182 = vunpack.c.h.b16 %v2036
        %v2183 = vunpack.c.l.b16 %v2037
        %v2184 = vunpack.c.h.b16 %v2037
        %v2185 = vunpack.c.l.b16 %v2038
        %v2186 = vunpack.c.h.b16 %v2038
        %v2187 = vunpack.c.l.b16 %v2039
        %v2188 = vunpack.c.h.b16 %v2039
        %v2189 = vunpack.c.l.b16 %v2040
        %v2190 = vunpack.c.h.b16 %v2040
        %v2191 = vunpack.c.l.b16 %v2041
        %v2192 = vunpack.c.h.b16 %v2041
        %v2193 = vunpack.c.l.b16 %v2042
        %v2194 = vunpack.c.h.b16 %v2042
        %v2195 = vunpack.c.l.b16 %v2043
        %v2196 = vunpack.c.h.b16 %v2043
        %v2197 = vunpack.c.l.b16 %v2044
        %v2198 = vunpack.c.h.b16 %v2044
        %v2199 = vunpack.c.l.b16 %v2045
        %v2200 = vunpack.c.h.b16 %v2045
        %v2201 = vunpack.c.l.b16 %v2046
        %v2202 = vunpack.c.h.b16 %v2046
        %v2203 = vunpack.c.l.b16 %v2047
        %v2204 = vunpack.c.h.b16 %v2047
        %v2205 = vunpack.c.l.b16 %v2048
        %v2206 = vunpack.c.h.b16 %v2048
        %v2207 = vunpack.c.l.b16 %v2049
        %v2208 = vunpack.c.h.b16 %v2049
        %v2209 = vunpack.c.l.b16 %v2050
        %v2210 = vunpack.c.h.b16 %v2050
        %v2211 = vunpack.c.l.b16 %v2051
        %v2212 = vunpack.c.h.b16 %v2051
        %v2213 = vunpack.c.l.b16 %v2052
        %v2214 = vunpack.c.h.b16 %v2052
        %v2215 = vpack.c.b16 %v2111, %v2107
        %v2216 = vpack.c.b16 %v2112, %v2108
        %v2217 = vpack.c.b16 %v2113, %v2109
        %v2218 = vpack.c.b16 %v2114, %v2110
        %v2219 = vpack.c.b16 %v2119, %v2115
        %v2220 = vpack.c.b16 %v2120, %v2116
        %v2221 = vpack.c.b16 %v2121, %v2117
        %v2222 = vpack.c.b16 %v2122, %v2118
        %v2223 = vpack.c.b16 %v2127, %v2123
        %v2224 = vpack.c.b16 %v2128, %v2124
        %v2225 = vpack.c.b16 %v2129, %v2125
        %v2226 = vpack.c.b16 %v2130, %v2126
        %v2227 = vpack.c.b16 %v2135, %v2131
        %v2228 = vpack.c.b16 %v2136, %v2132
        %v2229 = vpack.c.b16 %v2137, %v2133
        %v2230 = vpack.c.b16 %v2138, %v2134
        %v2231 = vpack.c.b16 %v2143, %v2139
        %v2232 = vpack.c.b16 %v2144, %v2140
        %v2233 = vpack.c.b16 %v2145, %v2141
        %v2234 = vpack.c.b16 %v2146, %v2142
        %v2235 = vpack.c.b16 %v2151, %v2147
        %v2236 = vpack.c.b16 %v2152, %v2148
        %v2237 = vpack.c.b16 %v2153, %v2149
        %v2238 = vpack.c.b16 %v2154, %v2150
        %v2239 = vpack.c.b16 %v2159, %v2155
        %v2240 = vpack.c.b16 %v2160, %v2156
        %v2241 = vpack.c.b16 %v2161, %v2157
        %v2242 = vpack.c.b16 %v2162, %v2158
        %v2243 = vpack.c.b16 %v2167, %v2163
        %v2244 = vpack.c.b16 %v2168, %v2164
        %v2245 = vpack.c.b16 %v2169, %v2165
        %v2246 = vpack.c.b16 %v2170, %v2166
        %v2247 = vpack.c.b16 %v2175, %v2171
        %v2248 = vpack.c.b16 %v2176, %v2172
        %v2249 = vpack.c.b16 %v2177, %v2173
        %v2250 = vpack.c.b16 %v2178, %v2174
        %v2251 = vpack.c.b16 %v2183, %v2179
        %v2252 = vpack.c.b16 %v2184, %v2180
        %v2253 = vpack.c.b16 %v2185, %v2181
        %v2254 = vpack.c.b16 %v2186, %v2182
        %v2255 = vpack.c.b16 %v2191, %v2187
        %v2256 = vpack.c.b16 %v2192, %v2188
        %v2257 = vpack.c.b16 %v2193, %v2189
        %v2258 = vpack.c.b16 %v2194, %v2190
        %v2259 = vpack.c.b16 %v2199, %v2195
        %v2260 = vpack.c.b16 %v2200, %v2196
        %v2261 = vpack.c.b16 %v2201, %v2197
        %v2262 = vpack.c.b16 %v2202, %v2198
        %v2263 = vpack.c.b16 %v2207, %v2203
        %v2264 = vpack.c.b16 %v2208, %v2204
        %v2265 = vpack.c.b16 %v2209, %v2205
        %v2266 = vpack.c.b16 %v2210, %v2206
        %v2267 = vpack.c.b16 %v2211, %v2211
        %v2268 = vpack.c.b16 %v2212, %v2212
        %v2269 = vpack.c.b16 %v2213, %v2213
        %v2270 = vpack.c.b16 %v2214, %v2214
        %v2324 = vsel %vm1224, %v2267, 0
        %v2327 = vsel %vm1224, %v2268, 0
        %v2330 = vsel %vm1224, %v2269, 0
        %v2333 = vsel %vm1224, %v2270, 0
        %2335 = vmatprep.subr.bf16.mxu0 %v2216
        %2336 = vmatpush1.bf16.msra.mxu0 %v2215
        %2337 = vmatprep.subr.bf16.mxu0 %v2220
        %2338 = vmatpush1.bf16.msra.mxu0 %v2219
        %2339 = vmatprep.subr.bf16.mxu0 %v2224
        %2340 = vmatpush1.bf16.msra.mxu0 %v2223
        %2341 = vmatprep.subr.bf16.mxu0 %v2228
        %2342 = vmatpush1.bf16.msra.mxu0 %v2227
        %2343 = vmatprep.subr.bf16.mxu0 %v2232
        %2344 = vmatpush1.bf16.msra.mxu0 %v2231
        %2345 = vmatprep.subr.bf16.mxu0 %v2236
        %2346 = vmatpush1.bf16.msra.mxu0 %v2235
        %2347 = vmatprep.subr.bf16.mxu0 %v2240
        %2348 = vmatpush1.bf16.msra.mxu0 %v2239
        %2349 = vmatprep.subr.bf16.mxu0 %v2244
        %2350 = vmatpush1.bf16.msra.mxu0 %v2243
        %2351 = vmatprep.subr.bf16.mxu0 %v2248
        %2352 = vmatpush1.bf16.msra.mxu0 %v2247
        %2353 = vmatprep.subr.bf16.mxu0 %v2252
        %2354 = vmatpush1.bf16.msra.mxu0 %v2251
        %2355 = vmatprep.subr.bf16.mxu0 %v2256
        %2356 = vmatpush1.bf16.msra.mxu0 %v2255
        %2357 = vmatprep.subr.bf16.mxu0 %v2260
        %2358 = vmatpush1.bf16.msra.mxu0 %v2259
        %2359 = vmatprep.subr.bf16.mxu0 %v2264
        %2360 = vmatpush1.bf16.msra.mxu0 %v2263
        %2361 = vmatprep.subr.bf16.mxu0 %v2327
        %2362 = vmatpush1.bf16.msra.mxu0 %v2324
        %2363 = vmatprep.subr.bf16.mxu0 0
        %2364 = vmatpush1.bf16.msra.mxu0 0
        %2365 = vmatprep.subr.bf16.mxu0 0
        %2366 = vmatpush1.bf16.msra.mxu0 0
        %2367 = vmatprep.mubr.bf16.mxu0 %v1219
        %2368 = vmatmul.mubr.bf16.gmra.mrb[0].mxu0 %v941
        %v2369 = vpop.f32.mrb[0].mxu0
        %v2370 = vadd.f32 0.0, %v2369
        %v2371 = vpop.f32.mrb[0].mxu0
        %v2372 = vadd.f32 0.0, %v2371
        %v2373 = vpop.f32.mrb[0].mxu0
        %v2374 = vadd.f32 0.0, %v2373
        %v2375 = vpop.f32.mrb[0].mxu0
        %v2376 = vadd.f32 0.0, %v2375
        %2377 = vmatprep.mubr.bf16.mxu0 %v1222
        %2378 = vmatmul.mubr.bf16.gmra.mrb[0].mxu0 %v943
        %v2379 = vpop.f32.mrb[0].mxu0
        %v2380 = vadd.f32 0.0, %v2379
        %v2381 = vpop.f32.mrb[0].mxu0
        %v2382 = vadd.f32 0.0, %v2381
        %v2383 = vpop.f32.mrb[0].mxu0
        %v2384 = vadd.f32 0.0, %v2383
        %v2385 = vpop.f32.mrb[0].mxu0
        %v2386 = vadd.f32 0.0, %v2385
        %2387 = vdwg.mxu0
        %2388 = vmatprep.subr.bf16.mxu0 %v2218
        %2389 = vmatpush1.bf16.msra.mxu0 %v2217
        %2390 = vmatprep.subr.bf16.mxu0 %v2222
        %2391 = vmatpush1.bf16.msra.mxu0 %v2221
        %2392 = vmatprep.subr.bf16.mxu0 %v2226
        %2393 = vmatpush1.bf16.msra.mxu0 %v2225
        %2394 = vmatprep.subr.bf16.mxu0 %v2230
        %2395 = vmatpush1.bf16.msra.mxu0 %v2229
        %2396 = vmatprep.subr.bf16.mxu0 %v2234
        %2397 = vmatpush1.bf16.msra.mxu0 %v2233
        %2398 = vmatprep.subr.bf16.mxu0 %v2238
        %2399 = vmatpush1.bf16.msra.mxu0 %v2237
        %2400 = vmatprep.subr.bf16.mxu0 %v2242
        %2401 = vmatpush1.bf16.msra.mxu0 %v2241
        %2402 = vmatprep.subr.bf16.mxu0 %v2246
        %2403 = vmatpush1.bf16.msra.mxu0 %v2245
        %2404 = vmatprep.subr.bf16.mxu0 %v2250
        %2405 = vmatpush1.bf16.msra.mxu0 %v2249
        %2406 = vmatprep.subr.bf16.mxu0 %v2254
        %2407 = vmatpush1.bf16.msra.mxu0 %v2253
        %2408 = vmatprep.subr.bf16.mxu0 %v2258
        %2409 = vmatpush1.bf16.msra.mxu0 %v2257
        %2410 = vmatprep.subr.bf16.mxu0 %v2262
        %2411 = vmatpush1.bf16.msra.mxu0 %v2261
        %2412 = vmatprep.subr.bf16.mxu0 %v2266
        %2413 = vmatpush1.bf16.msra.mxu0 %v2265
        %2414 = vmatprep.subr.bf16.mxu0 %v2333
        %2415 = vmatpush1.bf16.msra.mxu0 %v2330
        %2416 = vmatprep.subr.bf16.mxu0 0
        %2417 = vmatpush1.bf16.msra.mxu0 0
        %2418 = vmatprep.subr.bf16.mxu0 0
        %2419 = vmatpush1.bf16.msra.mxu0 0
        %2420 = vmatprep.mubr.bf16.mxu0 %v1219
        %2421 = vmatmul.mubr.bf16.gmra.mrb[0].mxu0 %v941
        %v2422 = vpop.f32.mrb[0].mxu0
        %v2423 = vadd.f32 0.0, %v2422
        %v2424 = vpop.f32.mrb[0].mxu0
        %v2425 = vadd.f32 0.0, %v2424
        %v2426 = vpop.f32.mrb[0].mxu0
        %v2427 = vadd.f32 0.0, %v2426
        %v2428 = vpop.f32.mrb[0].mxu0
        %v2429 = vadd.f32 0.0, %v2428
        %2430 = vmatprep.mubr.bf16.mxu0 %v1222
        %2431 = vmatmul.mubr.bf16.gmra.mrb[0].mxu0 %v943
        %v2432 = vpop.f32.mrb[0].mxu0
        %v2433 = vadd.f32 0.0, %v2432
        %v2434 = vpop.f32.mrb[0].mxu0
        %v2435 = vadd.f32 0.0, %v2434
        %v2436 = vpop.f32.mrb[0].mxu0
        %v2437 = vadd.f32 0.0, %v2436
        %v2438 = vpop.f32.mrb[0].mxu0
        %v2439 = vadd.f32 0.0, %v2438
        %2440 = vdwg.mxu0
        %v2441 = vld [vmem:[%s4 + $0x4] sm:$0xf]
        %v2443 = vlaneseq
        %v2444 = vshrl.u32 %v2443, 7
        %v2445 = vsub.s32 0, %v2444
        %v2446 = vrot.slane %v2441, %v2445
        %v2447 = vlaneseq
        %v2448 = vshrl.u32 %v2447, 7
        %v2449 = vsub.s32 1, %v2448
        %v2450 = vrot.slane %v2441, %v2449
        %v2451 = vlaneseq
        %v2452 = vshrl.u32 %v2451, 7
        %v2453 = vsub.s32 2, %v2452
        %v2454 = vrot.slane %v2441, %v2453
        %v2455 = vlaneseq
        %v2456 = vshrl.u32 %v2455, 7
        %v2457 = vsub.s32 3, %v2456
        %v2458 = vrot.slane %v2441, %v2457
        %v2463 = vmul.f32 %v2370, %v2446
        %v2464 = vmul.f32 %v2372, %v2450
        %v2465 = vmul.f32 %v2423, %v2454
        %v2466 = vmul.f32 %v2425, %v2458
        %v2467 = vmul.f32 %v2374, %v2446
        %v2468 = vmul.f32 %v2376, %v2450
        %v2469 = vmul.f32 %v2427, %v2454
        %v2470 = vmul.f32 %v2429, %v2458
        %v2471 = vmul.f32 %v2380, %v2446
        %v2472 = vmul.f32 %v2382, %v2450
        %v2473 = vmul.f32 %v2433, %v2454
        %v2474 = vmul.f32 %v2435, %v2458
        %v2475 = vmul.f32 %v2384, %v2446
        %v2476 = vmul.f32 %v2386, %v2450
        %v2477 = vmul.f32 %v2437, %v2454
        %v2478 = vmul.f32 %v2439, %v2458
        %2479 = vst [vmem:[%s240 + $0x20] sm:$0xff] %v2463
        %2480 = vst [vmem:[%s240 + $0x28] sm:$0xff] %v2464
        %2481 = vst [vmem:[%s240 + $0x30] sm:$0xff] %v2465
        %2482 = vst [vmem:[%s240 + $0x38] sm:$0xff] %v2466
        %2483 = vst [vmem:[%s240 + $0xf0] sm:$0xff] %v2467
        %2484 = vst [vmem:[%s240 + $0xf8] sm:$0xff] %v2468
        %2485 = vst [vmem:[%s240 + $0x100] sm:$0xff] %v2469
        %2486 = vst [vmem:[%s240 + $0x108] sm:$0xff] %v2470
        %2487 = vst [vmem:[%s240 + $0x1c0] sm:$0xff] %v2471
        %2488 = vst [vmem:[%s240 + $0x1c8] sm:$0xff] %v2472
        %2489 = vst [vmem:[%s240 + $0x1d0] sm:$0xff] %v2473
        %2490 = vst [vmem:[%s240 + $0x1d8] sm:$0xff] %v2474
        %2491 = vst [vmem:[%s240 + $0x290] sm:$0xff] %v2475
        %2492 = vst [vmem:[%s240 + $0x298] sm:$0xff] %v2476
        %2493 = vst [vmem:[%s240 + $0x2a0] sm:$0xff] %v2477
        %2494 = vst [vmem:[%s240 + $0x2a8] sm:$0xff] %v2478
        %v2495 = vld [vmem:[%s214 + $0x20] sm:$0xff]
        %v2496 = vld [vmem:[%s214 + $0x28] sm:$0xff]
        %2497 = vst [vmem:[#allocation2] sm:$0xff] %v2495
        %2498 = vst [vmem:[#allocation2 + $0x8] sm:$0xff] %v2496
        %v2499 = vld [vmem:[%s214 + $0x20] sm:$0xff]
        %v2500 = vld [vmem:[%s214 + $0x28] sm:$0xff]
        %v2501 = vld [vmem:[%s214 + $0x30] sm:$0xf]
        %2505 = vrot.lane.b32.xlu0 %v2499, 127
        %v2506 = vpop.permute.xlu0 %2505
        %2507 = vrot.lane.b32.xlu0 %v2500, 127
        %v2508 = vpop.permute.xlu0 %2507
        %2509 = vrot.lane.b32.xlu0 %v2501, 127
        %v2510 = vpop.permute.xlu0 %2509
        %v2511 = vrot.slane %v2506, 4
        %v2512 = vrot.slane %v2508, 4
        %v2513 = vrot.slane %v2510, 4
        %v2514 = vsel %vm265, %v2511, %v2512
        %v2515 = vsel %vm267, %v2506, %v2514
        %v2516 = vsel %vm265, %v2512, %v2513
        %v2517 = vsel %vm267, %v2508, %v2516
        %2520 = vst [vmem:[#allocation2 + $0x10] sm:$0xff] %v2515
        %2521 = vst [vmem:[#allocation2 + $0x18] sm:$0xff] %v2517
        %v2522 = vld [vmem:[%s214 + $0x20] sm:$0xff]
        %v2523 = vld [vmem:[%s214 + $0x28] sm:$0xff]
        %v2524 = vld [vmem:[%s214 + $0x30] sm:$0xf]
        %2528 = vrot.lane.b32.xlu0 %v2522, 126
        %v2529 = vpop.permute.xlu0 %2528
        %2530 = vrot.lane.b32.xlu0 %v2523, 126
        %v2531 = vpop.permute.xlu0 %2530
        %2532 = vrot.lane.b32.xlu0 %v2524, 126
        %v2533 = vpop.permute.xlu0 %2532
        %v2534 = vrot.slane %v2529, 4
        %v2535 = vrot.slane %v2531, 4
        %v2536 = vrot.slane %v2533, 4
        %v2537 = vsel %vm265, %v2534, %v2535
        %v2538 = vsel %vm291, %v2529, %v2537
        %v2539 = vsel %vm265, %v2535, %v2536
        %v2540 = vsel %vm291, %v2531, %v2539
        %2543 = vst [vmem:[#allocation2 + $0x20] sm:$0xff] %v2538
        %2544 = vst [vmem:[#allocation2 + $0x28] sm:$0xff] %v2540
        %v2545 = vld [vmem:[%s214 + $0x20] sm:$0xff]
        %v2546 = vld [vmem:[%s214 + $0x28] sm:$0xff]
        %v2547 = vld [vmem:[%s214 + $0x30] sm:$0xf]
        %2551 = vrot.lane.b32.xlu0 %v2545, 110
        %v2552 = vpop.permute.xlu0 %2551
        %2553 = vrot.lane.b32.xlu0 %v2546, 110
        %v2554 = vpop.permute.xlu0 %2553
        %2555 = vrot.lane.b32.xlu0 %v2547, 110
        %v2556 = vpop.permute.xlu0 %2555
        %v2557 = vrot.slane %v2552, 4
        %v2558 = vrot.slane %v2554, 4
        %v2559 = vrot.slane %v2556, 4
        %v2560 = vsel %vm265, %v2557, %v2558
        %v2561 = vsel %vm315, %v2552, %v2560
        %v2562 = vsel %vm265, %v2558, %v2559
        %v2563 = vsel %vm315, %v2554, %v2562
        %2566 = vst [vmem:[#allocation2 + $0x30] sm:$0xff] %v2561
        %2567 = vst [vmem:[#allocation2 + $0x38] sm:$0xff] %v2563
        %v2568 = vld [vmem:[%s214 + $0x20] sm:$0xff]
        %v2569 = vld [vmem:[%s214 + $0x28] sm:$0xff]
        %v2570 = vld [vmem:[%s214 + $0x30] sm:$0xf]
        %2574 = vrot.lane.b32.xlu0 %v2568, 109
        %v2575 = vpop.permute.xlu0 %2574
        %2576 = vrot.lane.b32.xlu0 %v2569, 109
        %v2577 = vpop.permute.xlu0 %2576
        %2578 = vrot.lane.b32.xlu0 %v2570, 109
        %v2579 = vpop.permute.xlu0 %2578
        %v2580 = vrot.slane %v2575, 4
        %v2581 = vrot.slane %v2577, 4
        %v2582 = vrot.slane %v2579, 4
        %v2583 = vsel %vm265, %v2580, %v2581
        %v2584 = vsel %vm339, %v2575, %v2583
        %v2585 = vsel %vm265, %v2581, %v2582
        %v2586 = vsel %vm339, %v2577, %v2585
        %2589 = vst [vmem:[#allocation2 + $0x40] sm:$0xff] %v2584
        %2590 = vst [vmem:[#allocation2 + $0x48] sm:$0xff] %v2586
        %v2591 = vld [vmem:[%s214 + $0x20] sm:$0xff]
        %v2592 = vld [vmem:[%s214 + $0x28] sm:$0xff]
        %v2593 = vld [vmem:[%s214 + $0x30] sm:$0xf]
        %2597 = vrot.lane.b32.xlu0 %v2591, 108
        %v2598 = vpop.permute.xlu0 %2597
        %2599 = vrot.lane.b32.xlu0 %v2592, 108
        %v2600 = vpop.permute.xlu0 %2599
        %2601 = vrot.lane.b32.xlu0 %v2593, 108
        %v2602 = vpop.permute.xlu0 %2601
        %v2603 = vrot.slane %v2598, 4
        %v2604 = vrot.slane %v2600, 4
        %v2605 = vrot.slane %v2602, 4
        %v2606 = vsel %vm265, %v2603, %v2604
        %v2607 = vsel %vm363, %v2598, %v2606
        %v2608 = vsel %vm265, %v2604, %v2605
        %v2609 = vsel %vm363, %v2600, %v2608
        %2612 = vst [vmem:[#allocation2 + $0x50] sm:$0xff] %v2607
        %2613 = vst [vmem:[#allocation2 + $0x58] sm:$0xff] %v2609
        %v2614 = vld [vmem:[%s214 + $0x20] sm:$0xff]
        %v2615 = vld [vmem:[%s214 + $0x28] sm:$0xff]
        %v2616 = vld [vmem:[%s214 + $0x30] sm:$0xf]
        %2620 = vrot.lane.b32.xlu0 %v2614, 92
        %v2621 = vpop.permute.xlu0 %2620
        %2622 = vrot.lane.b32.xlu0 %v2615, 92
        %v2623 = vpop.permute.xlu0 %2622
        %2624 = vrot.lane.b32.xlu0 %v2616, 92
        %v2625 = vpop.permute.xlu0 %2624
        %v2626 = vrot.slane %v2621, 4
        %v2627 = vrot.slane %v2623, 4
        %v2628 = vrot.slane %v2625, 4
        %v2629 = vsel %vm265, %v2626, %v2627
        %v2630 = vsel %vm387, %v2621, %v2629
        %v2631 = vsel %vm265, %v2627, %v2628
        %v2632 = vsel %vm387, %v2623, %v2631
        %2635 = vst [vmem:[#allocation2 + $0x60] sm:$0xff] %v2630
        %2636 = vst [vmem:[#allocation2 + $0x68] sm:$0xff] %v2632
        %v2637 = vld [vmem:[%s214 + $0x20] sm:$0xff]
        %v2638 = vld [vmem:[%s214 + $0x28] sm:$0xff]
        %v2639 = vld [vmem:[%s214 + $0x30] sm:$0xf]
        %2643 = vrot.lane.b32.xlu0 %v2637, 91
        %v2644 = vpop.permute.xlu0 %2643
        %2645 = vrot.lane.b32.xlu0 %v2638, 91
        %v2646 = vpop.permute.xlu0 %2645
        %2647 = vrot.lane.b32.xlu0 %v2639, 91
        %v2648 = vpop.permute.xlu0 %2647
        %v2649 = vrot.slane %v2644, 4
        %v2650 = vrot.slane %v2646, 4
        %v2651 = vrot.slane %v2648, 4
        %v2652 = vsel %vm265, %v2649, %v2650
        %v2653 = vsel %vm411, %v2644, %v2652
        %v2654 = vsel %vm265, %v2650, %v2651
        %v2655 = vsel %vm411, %v2646, %v2654
        %2658 = vst [vmem:[#allocation2 + $0x70] sm:$0xff] %v2653
        %2659 = vst [vmem:[#allocation2 + $0x78] sm:$0xff] %v2655
        %v2660 = vld [vmem:[%s214 + $0x20] sm:$0xff]
        %v2661 = vld [vmem:[%s214 + $0x28] sm:$0xff]
        %v2662 = vld [vmem:[%s214 + $0x30] sm:$0xf]
        %2666 = vrot.lane.b32.xlu0 %v2660, 90
        %v2667 = vpop.permute.xlu0 %2666
        %2668 = vrot.lane.b32.xlu0 %v2661, 90
        %v2669 = vpop.permute.xlu0 %2668
        %2670 = vrot.lane.b32.xlu0 %v2662, 90
        %v2671 = vpop.permute.xlu0 %2670
        %v2672 = vrot.slane %v2667, 4
        %v2673 = vrot.slane %v2669, 4
        %v2674 = vrot.slane %v2671, 4
        %v2675 = vsel %vm265, %v2672, %v2673
        %v2676 = vsel %vm435, %v2667, %v2675
        %v2677 = vsel %vm265, %v2673, %v2674
        %v2678 = vsel %vm435, %v2669, %v2677
        %2681 = vst [vmem:[#allocation2 + $0x80] sm:$0xff] %v2676
        %2682 = vst [vmem:[#allocation2 + $0x88] sm:$0xff] %v2678
        %v2683 = vld [vmem:[%s214 + $0x28] sm:$0xff]
        %v2684 = vld [vmem:[%s214 + $0x30] sm:$0xff]
        %v2685 = vld [vmem:[%s214 + $0x38] sm:$0xf]
        %2689 = vrot.lane.b32.xlu0 %v2683, 60
        %v2690 = vpop.permute.xlu0 %2689
        %2691 = vrot.lane.b32.xlu0 %v2684, 60
        %v2692 = vpop.permute.xlu0 %2691
        %2693 = vrot.lane.b32.xlu0 %v2685, 60
        %v2694 = vpop.permute.xlu0 %2693
        %v2695 = vrot.slane %v2690, 4
        %v2696 = vrot.slane %v2692, 4
        %v2697 = vrot.slane %v2694, 4
        %v2698 = vsel %vm265, %v2695, %v2696
        %v2699 = vsel %vm459, %v2690, %v2698
        %v2700 = vsel %vm265, %v2696, %v2697
        %v2701 = vsel %vm459, %v2692, %v2700
        %2704 = vst [vmem:[#allocation2 + $0x90] sm:$0xff] %v2699
        %2705 = vst [vmem:[#allocation2 + $0x98] sm:$0xff] %v2701
        %v2706 = vld [vmem:[%s214 + $0x28] sm:$0xff]
        %v2707 = vld [vmem:[%s214 + $0x30] sm:$0xff]
        %v2708 = vld [vmem:[%s214 + $0x38] sm:$0xf]
        %2712 = vrot.lane.b32.xlu0 %v2706, 59
        %v2713 = vpop.permute.xlu0 %2712
        %2714 = vrot.lane.b32.xlu0 %v2707, 59
        %v2715 = vpop.permute.xlu0 %2714
        %2716 = vrot.lane.b32.xlu0 %v2708, 59
        %v2717 = vpop.permute.xlu0 %2716
        %v2718 = vrot.slane %v2713, 4
        %v2719 = vrot.slane %v2715, 4
        %v2720 = vrot.slane %v2717, 4
        %v2721 = vsel %vm265, %v2718, %v2719
        %v2722 = vsel %vm483, %v2713, %v2721
        %v2723 = vsel %vm265, %v2719, %v2720
        %v2724 = vsel %vm483, %v2715, %v2723
        %2727 = vst [vmem:[#allocation2 + $0xa0] sm:$0xff] %v2722
        %2728 = vst [vmem:[#allocation2 + $0xa8] sm:$0xff] %v2724
        %v2729 = vld [vmem:[%s214 + $0x28] sm:$0xff]
        %v2730 = vld [vmem:[%s214 + $0x30] sm:$0xff]
        %v2731 = vld [vmem:[%s214 + $0x38] sm:$0xf]
        %2735 = vrot.lane.b32.xlu0 %v2729, 58
        %v2736 = vpop.permute.xlu0 %2735
        %2737 = vrot.lane.b32.xlu0 %v2730, 58
        %v2738 = vpop.permute.xlu0 %2737
        %2739 = vrot.lane.b32.xlu0 %v2731, 58
        %v2740 = vpop.permute.xlu0 %2739
        %v2741 = vrot.slane %v2736, 4
        %v2742 = vrot.slane %v2738, 4
        %v2743 = vrot.slane %v2740, 4
        %v2744 = vsel %vm265, %v2741, %v2742
        %v2745 = vsel %vm507, %v2736, %v2744
        %v2746 = vsel %vm265, %v2742, %v2743
        %v2747 = vsel %vm507, %v2738, %v2746
        %2750 = vst [vmem:[#allocation2 + $0xb0] sm:$0xff] %v2745
        %2751 = vst [vmem:[#allocation2 + $0xb8] sm:$0xff] %v2747
        %v2752 = vld [vmem:[%s214 + $0x28] sm:$0xff]
        %v2753 = vld [vmem:[%s214 + $0x30] sm:$0xff]
        %v2754 = vld [vmem:[%s214 + $0x38] sm:$0xf]
        %2758 = vrot.lane.b32.xlu0 %v2752, 42
        %v2759 = vpop.permute.xlu0 %2758
        %2760 = vrot.lane.b32.xlu0 %v2753, 42
        %v2761 = vpop.permute.xlu0 %2760
        %2762 = vrot.lane.b32.xlu0 %v2754, 42
        %v2763 = vpop.permute.xlu0 %2762
        %v2764 = vrot.slane %v2759, 4
        %v2765 = vrot.slane %v2761, 4
        %v2766 = vrot.slane %v2763, 4
        %v2767 = vsel %vm265, %v2764, %v2765
        %v2768 = vsel %vm531, %v2759, %v2767
        %v2769 = vsel %vm265, %v2765, %v2766
        %v2770 = vsel %vm531, %v2761, %v2769
        %2773 = vst [vmem:[#allocation2 + $0xc0] sm:$0xff] %v2768
        %2774 = vst [vmem:[#allocation2 + $0xc8] sm:$0xff] %v2770
        %v2775 = vld [vmem:[%s214 + $0x28] sm:$0xff]
        %v2776 = vld [vmem:[%s214 + $0x30] sm:$0xff]
        %v2777 = vld [vmem:[%s214 + $0x38] sm:$0xf]
        %2781 = vrot.lane.b32.xlu0 %v2775, 41
        %v2782 = vpop.permute.xlu0 %2781
        %2783 = vrot.lane.b32.xlu0 %v2776, 41
        %v2784 = vpop.permute.xlu0 %2783
        %2785 = vrot.lane.b32.xlu0 %v2777, 41
        %v2786 = vpop.permute.xlu0 %2785
        %v2787 = vrot.slane %v2782, 4
        %v2788 = vrot.slane %v2784, 4
        %v2789 = vrot.slane %v2786, 4
        %v2790 = vsel %vm265, %v2787, %v2788
        %v2791 = vsel %vm555, %v2782, %v2790
        %v2792 = vsel %vm265, %v2788, %v2789
        %v2793 = vsel %vm555, %v2784, %v2792
        %2796 = vst [vmem:[#allocation2 + $0xd0] sm:$0xff] %v2791
        %2797 = vst [vmem:[#allocation2 + $0xd8] sm:$0xff] %v2793
        %v2798 = vld [vmem:[%s214 + $0x28] sm:$0xff]
        %v2799 = vld [vmem:[%s214 + $0x30] sm:$0xff]
        %v2800 = vld [vmem:[%s214 + $0x38] sm:$0xf]
        %2804 = vrot.lane.b32.xlu0 %v2798, 40
        %v2805 = vpop.permute.xlu0 %2804
        %2806 = vrot.lane.b32.xlu0 %v2799, 40
        %v2807 = vpop.permute.xlu0 %2806
        %2808 = vrot.lane.b32.xlu0 %v2800, 40
        %v2809 = vpop.permute.xlu0 %2808
        %v2810 = vrot.slane %v2805, 4
        %v2811 = vrot.slane %v2807, 4
        %v2812 = vrot.slane %v2809, 4
        %v2813 = vsel %vm265, %v2810, %v2811
        %v2814 = vsel %vm579, %v2805, %v2813
        %v2815 = vsel %vm265, %v2811, %v2812
        %v2816 = vsel %vm579, %v2807, %v2815
        %2819 = vst [vmem:[#allocation2 + $0xe0] sm:$0xff] %v2814
        %2820 = vst [vmem:[#allocation2 + $0xe8] sm:$0xff] %v2816
        %v2821 = vld [vmem:[%s214 + $0x28] sm:$0xff]
        %v2822 = vld [vmem:[%s214 + $0x30] sm:$0xff]
        %v2823 = vld [vmem:[%s214 + $0x38] sm:$0xf]
        %2827 = vrot.lane.b32.xlu0 %v2821, 24
        %v2828 = vpop.permute.xlu0 %2827
        %2829 = vrot.lane.b32.xlu0 %v2822, 24
        %v2830 = vpop.permute.xlu0 %2829
        %2831 = vrot.lane.b32.xlu0 %v2823, 24
        %v2832 = vpop.permute.xlu0 %2831
        %v2833 = vrot.slane %v2828, 4
        %v2834 = vrot.slane %v2830, 4
        %v2835 = vrot.slane %v2832, 4
        %v2836 = vsel %vm265, %v2833, %v2834
        %v2837 = vsel %vm603, %v2828, %v2836
        %v2838 = vsel %vm265, %v2834, %v2835
        %v2839 = vsel %vm603, %v2830, %v2838
        %2842 = vst [vmem:[#allocation2 + $0xf0] sm:$0xff] %v2837
        %2843 = vst [vmem:[#allocation2 + $0xf8] sm:$0xff] %v2839
        %v2844 = vld [vmem:[%s214 + $0x28] sm:$0xff]
        %v2845 = vld [vmem:[%s214 + $0x30] sm:$0xff]
        %v2846 = vld [vmem:[%s214 + $0x38] sm:$0xf]
        %2850 = vrot.lane.b32.xlu0 %v2844, 23
        %v2851 = vpop.permute.xlu0 %2850
        %2852 = vrot.lane.b32.xlu0 %v2845, 23
        %v2853 = vpop.permute.xlu0 %2852
        %2854 = vrot.lane.b32.xlu0 %v2846, 23
        %v2855 = vpop.permute.xlu0 %2854
        %v2856 = vrot.slane %v2851, 4
        %v2857 = vrot.slane %v2853, 4
        %v2858 = vrot.slane %v2855, 4
        %v2859 = vsel %vm265, %v2856, %v2857
        %v2860 = vsel %vm627, %v2851, %v2859
        %v2861 = vsel %vm265, %v2857, %v2858
        %v2862 = vsel %vm627, %v2853, %v2861
        %2865 = vst [vmem:[#allocation2 + $0x100] sm:$0xff] %v2860
        %2866 = vst [vmem:[#allocation2 + $0x108] sm:$0xff] %v2862
        %v2867 = vld [vmem:[%s214 + $0x28] sm:$0xff]
        %v2868 = vld [vmem:[%s214 + $0x30] sm:$0xff]
        %v2869 = vld [vmem:[%s214 + $0x38] sm:$0xf]
        %2873 = vrot.lane.b32.xlu0 %v2867, 22
        %v2874 = vpop.permute.xlu0 %2873
        %2875 = vrot.lane.b32.xlu0 %v2868, 22
        %v2876 = vpop.permute.xlu0 %2875
        %2877 = vrot.lane.b32.xlu0 %v2869, 22
        %v2878 = vpop.permute.xlu0 %2877
        %v2879 = vrot.slane %v2874, 4
        %v2880 = vrot.slane %v2876, 4
        %v2881 = vrot.slane %v2878, 4
        %v2882 = vsel %vm265, %v2879, %v2880
        %v2883 = vsel %vm651, %v2874, %v2882
        %v2884 = vsel %vm265, %v2880, %v2881
        %v2885 = vsel %vm651, %v2876, %v2884
        %2888 = vst [vmem:[#allocation2 + $0x110] sm:$0xff] %v2883
        %2889 = vst [vmem:[#allocation2 + $0x118] sm:$0xff] %v2885
        %v2890 = vld [vmem:[%s214 + $0x34] sm:$0xff]
        %v2891 = vld [vmem:[%s214 + $0x3c] sm:$0xff]
        %v2892 = vld [vmem:[%s214 + $0x44] sm:$0xf]
        %2896 = vrot.lane.b32.xlu0 %v2890, 120
        %v2897 = vpop.permute.xlu0 %2896
        %2898 = vrot.lane.b32.xlu0 %v2891, 120
        %v2899 = vpop.permute.xlu0 %2898
        %2900 = vrot.lane.b32.xlu0 %v2892, 120
        %v2901 = vpop.permute.xlu0 %2900
        %v2902 = vrot.slane %v2897, 4
        %v2903 = vrot.slane %v2899, 4
        %v2904 = vrot.slane %v2901, 4
        %v2905 = vsel %vm265, %v2902, %v2903
        %v2906 = vsel %vm675, %v2897, %v2905
        %v2907 = vsel %vm265, %v2903, %v2904
        %v2908 = vsel %vm675, %v2899, %v2907
        %2911 = vst [vmem:[#allocation2 + $0x120] sm:$0xff] %v2906
        %2912 = vst [vmem:[#allocation2 + $0x128] sm:$0xff] %v2908
        %v2913 = vld [vmem:[%s214 + $0x34] sm:$0xff]
        %v2914 = vld [vmem:[%s214 + $0x3c] sm:$0xff]
        %v2915 = vld [vmem:[%s214 + $0x44] sm:$0xf]
        %2919 = vrot.lane.b32.xlu0 %v2913, 119
        %v2920 = vpop.permute.xlu0 %2919
        %2921 = vrot.lane.b32.xlu0 %v2914, 119
        %v2922 = vpop.permute.xlu0 %2921
        %2923 = vrot.lane.b32.xlu0 %v2915, 119
        %v2924 = vpop.permute.xlu0 %2923
        %v2925 = vrot.slane %v2920, 4
        %v2926 = vrot.slane %v2922, 4
        %v2927 = vrot.slane %v2924, 4
        %v2928 = vsel %vm265, %v2925, %v2926
        %v2929 = vsel %vm699, %v2920, %v2928
        %v2930 = vsel %vm265, %v2926, %v2927
        %v2931 = vsel %vm699, %v2922, %v2930
        %2934 = vst [vmem:[#allocation2 + $0x130] sm:$0xff] %v2929
        %2935 = vst [vmem:[#allocation2 + $0x138] sm:$0xff] %v2931
        %v2936 = vld [vmem:[%s214 + $0x34] sm:$0xff]
        %v2937 = vld [vmem:[%s214 + $0x3c] sm:$0xff]
        %v2938 = vld [vmem:[%s214 + $0x44] sm:$0xf]
        %2942 = vrot.lane.b32.xlu0 %v2936, 118
        %v2943 = vpop.permute.xlu0 %2942
        %2944 = vrot.lane.b32.xlu0 %v2937, 118
        %v2945 = vpop.permute.xlu0 %2944
        %2946 = vrot.lane.b32.xlu0 %v2938, 118
        %v2947 = vpop.permute.xlu0 %2946
        %v2948 = vrot.slane %v2943, 4
        %v2949 = vrot.slane %v2945, 4
        %v2950 = vrot.slane %v2947, 4
        %v2951 = vsel %vm265, %v2948, %v2949
        %v2952 = vsel %vm723, %v2943, %v2951
        %v2953 = vsel %vm265, %v2949, %v2950
        %v2954 = vsel %vm723, %v2945, %v2953
        %2957 = vst [vmem:[#allocation2 + $0x140] sm:$0xff] %v2952
        %2958 = vst [vmem:[#allocation2 + $0x148] sm:$0xff] %v2954
        %v2959 = vld [vmem:[%s214 + $0x34] sm:$0xff]
        %v2960 = vld [vmem:[%s214 + $0x3c] sm:$0xff]
        %v2961 = vld [vmem:[%s214 + $0x44] sm:$0xf]
        %2965 = vrot.lane.b32.xlu0 %v2959, 102
        %v2966 = vpop.permute.xlu0 %2965
        %2967 = vrot.lane.b32.xlu0 %v2960, 102
        %v2968 = vpop.permute.xlu0 %2967
        %2969 = vrot.lane.b32.xlu0 %v2961, 102
        %v2970 = vpop.permute.xlu0 %2969
        %v2971 = vrot.slane %v2966, 4
        %v2972 = vrot.slane %v2968, 4
        %v2973 = vrot.slane %v2970, 4
        %v2974 = vsel %vm265, %v2971, %v2972
        %v2975 = vsel %vm747, %v2966, %v2974
        %v2976 = vsel %vm265, %v2972, %v2973
        %v2977 = vsel %vm747, %v2968, %v2976
        %2980 = vst [vmem:[#allocation2 + $0x150] sm:$0xff] %v2975
        %2981 = vst [vmem:[#allocation2 + $0x158] sm:$0xff] %v2977
        %v2982 = vld [vmem:[%s214 + $0x34] sm:$0xff]
        %v2983 = vld [vmem:[%s214 + $0x3c] sm:$0xff]
        %v2984 = vld [vmem:[%s214 + $0x44] sm:$0xf]
        %2988 = vrot.lane.b32.xlu0 %v2982, 101
        %v2989 = vpop.permute.xlu0 %2988
        %2990 = vrot.lane.b32.xlu0 %v2983, 101
        %v2991 = vpop.permute.xlu0 %2990
        %2992 = vrot.lane.b32.xlu0 %v2984, 101
        %v2993 = vpop.permute.xlu0 %2992
        %v2994 = vrot.slane %v2989, 4
        %v2995 = vrot.slane %v2991, 4
        %v2996 = vrot.slane %v2993, 4
        %v2997 = vsel %vm265, %v2994, %v2995
        %v2998 = vsel %vm771, %v2989, %v2997
        %v2999 = vsel %vm265, %v2995, %v2996
        %v3000 = vsel %vm771, %v2991, %v2999
        %3003 = vst [vmem:[#allocation2 + $0x160] sm:$0xff] %v2998
        %3004 = vst [vmem:[#allocation2 + $0x168] sm:$0xff] %v3000
        %v3005 = vld [vmem:[%s214 + $0x34] sm:$0xff]
        %v3006 = vld [vmem:[%s214 + $0x3c] sm:$0xff]
        %v3007 = vld [vmem:[%s214 + $0x44] sm:$0xf]
        %3011 = vrot.lane.b32.xlu0 %v3005, 100
        %v3012 = vpop.permute.xlu0 %3011
        %3013 = vrot.lane.b32.xlu0 %v3006, 100
        %v3014 = vpop.permute.xlu0 %3013
        %3015 = vrot.lane.b32.xlu0 %v3007, 100
        %v3016 = vpop.permute.xlu0 %3015
        %v3017 = vrot.slane %v3012, 4
        %v3018 = vrot.slane %v3014, 4
        %v3019 = vrot.slane %v3016, 4
        %v3020 = vsel %vm265, %v3017, %v3018
        %v3021 = vsel %vm795, %v3012, %v3020
        %v3022 = vsel %vm265, %v3018, %v3019
        %v3023 = vsel %vm795, %v3014, %v3022
        %3026 = vst [vmem:[#allocation2 + $0x170] sm:$0xff] %v3021
        %3027 = vst [vmem:[#allocation2 + $0x178] sm:$0xff] %v3023
        %v3028 = vld [vmem:[%s214 + $0x34] sm:$0xff]
        %v3029 = vld [vmem:[%s214 + $0x3c] sm:$0xff]
        %v3030 = vld [vmem:[%s214 + $0x44] sm:$0xf]
        %3034 = vrot.lane.b32.xlu0 %v3028, 84
        %v3035 = vpop.permute.xlu0 %3034
        %3036 = vrot.lane.b32.xlu0 %v3029, 84
        %v3037 = vpop.permute.xlu0 %3036
        %3038 = vrot.lane.b32.xlu0 %v3030, 84
        %v3039 = vpop.permute.xlu0 %3038
        %v3040 = vrot.slane %v3035, 4
        %v3041 = vrot.slane %v3037, 4
        %v3042 = vrot.slane %v3039, 4
        %v3043 = vsel %vm265, %v3040, %v3041
        %v3044 = vsel %vm819, %v3035, %v3043
        %v3045 = vsel %vm265, %v3041, %v3042
        %v3046 = vsel %vm819, %v3037, %v3045
        %3049 = vst [vmem:[#allocation2 + $0x180] sm:$0xff] %v3044
        %3050 = vst [vmem:[#allocation2 + $0x188] sm:$0xff] %v3046
        %v3051 = vld [vmem:[%s214 + $0x34] sm:$0xff]
        %v3052 = vld [vmem:[%s214 + $0x3c] sm:$0xff]
        %v3053 = vld [vmem:[%s214 + $0x44] sm:$0xf]
        %3057 = vrot.lane.b32.xlu0 %v3051, 83
        %v3058 = vpop.permute.xlu0 %3057
        %3059 = vrot.lane.b32.xlu0 %v3052, 83
        %v3060 = vpop.permute.xlu0 %3059
        %3061 = vrot.lane.b32.xlu0 %v3053, 83
        %v3062 = vpop.permute.xlu0 %3061
        %v3063 = vrot.slane %v3058, 4
        %v3064 = vrot.slane %v3060, 4
        %v3065 = vrot.slane %v3062, 4
        %v3066 = vsel %vm265, %v3063, %v3064
        %v3067 = vsel %vm843, %v3058, %v3066
        %v3068 = vsel %vm265, %v3064, %v3065
        %v3069 = vsel %vm843, %v3060, %v3068
        %3072 = vst [vmem:[#allocation2 + $0x190] sm:$0xff] %v3067
        %3073 = vst [vmem:[#allocation2 + $0x198] sm:$0xff] %v3069
        %v3074 = vld [vmem:[%s214 + $0x34] sm:$0xff]
        %v3075 = vld [vmem:[%s214 + $0x3c] sm:$0xff]
        %v3076 = vld [vmem:[%s214 + $0x44] sm:$0xf]
        %3080 = vrot.lane.b32.xlu0 %v3074, 82
        %v3081 = vpop.permute.xlu0 %3080
        %3082 = vrot.lane.b32.xlu0 %v3075, 82
        %v3083 = vpop.permute.xlu0 %3082
        %3084 = vrot.lane.b32.xlu0 %v3076, 82
        %v3085 = vpop.permute.xlu0 %3084
        %v3086 = vrot.slane %v3081, 4
        %v3087 = vrot.slane %v3083, 4
        %v3088 = vrot.slane %v3085, 4
        %v3089 = vsel %vm265, %v3086, %v3087
        %v3090 = vsel %vm867, %v3081, %v3089
        %v3091 = vsel %vm265, %v3087, %v3088
        %v3092 = vsel %vm867, %v3083, %v3091
        %3095 = vst [vmem:[#allocation2 + $0x1a0] sm:$0xff] %v3090
        %3096 = vst [vmem:[#allocation2 + $0x1a8] sm:$0xff] %v3092
        %v3097 = vld [vmem:[#allocation2] sm:$0xff]
        %v3098 = vld [vmem:[#allocation2 + $0x8] sm:$0xff]
        %v3099 = vld [vmem:[#allocation2 + $0x10] sm:$0xff]
        %v3100 = vld [vmem:[#allocation2 + $0x18] sm:$0xff]
        %v3101 = vld [vmem:[#allocation2 + $0x20] sm:$0xff]
        %v3102 = vld [vmem:[#allocation2 + $0x28] sm:$0xff]
        %v3103 = vld [vmem:[#allocation2 + $0x30] sm:$0xff]
        %v3104 = vld [vmem:[#allocation2 + $0x38] sm:$0xff]
        %v3105 = vld [vmem:[#allocation2 + $0x40] sm:$0xff]
        %v3106 = vld [vmem:[#allocation2 + $0x48] sm:$0xff]
        %v3107 = vld [vmem:[#allocation2 + $0x50] sm:$0xff]
        %v3108 = vld [vmem:[#allocation2 + $0x58] sm:$0xff]
        %v3109 = vld [vmem:[#allocation2 + $0x60] sm:$0xff]
        %v3110 = vld [vmem:[#allocation2 + $0x68] sm:$0xff]
        %v3111 = vld [vmem:[#allocation2 + $0x70] sm:$0xff]
        %v3112 = vld [vmem:[#allocation2 + $0x78] sm:$0xff]
        %v3113 = vld [vmem:[#allocation2 + $0x80] sm:$0xff]
        %v3114 = vld [vmem:[#allocation2 + $0x88] sm:$0xff]
        %v3115 = vld [vmem:[#allocation2 + $0x90] sm:$0xff]
        %v3116 = vld [vmem:[#allocation2 + $0x98] sm:$0xff]
        %v3117 = vld [vmem:[#allocation2 + $0xa0] sm:$0xff]
        %v3118 = vld [vmem:[#allocation2 + $0xa8] sm:$0xff]
        %v3119 = vld [vmem:[#allocation2 + $0xb0] sm:$0xff]
        %v3120 = vld [vmem:[#allocation2 + $0xb8] sm:$0xff]
        %v3121 = vld [vmem:[#allocation2 + $0xc0] sm:$0xff]
        %v3122 = vld [vmem:[#allocation2 + $0xc8] sm:$0xff]
        %v3123 = vld [vmem:[#allocation2 + $0xd0] sm:$0xff]
        %v3124 = vld [vmem:[#allocation2 + $0xd8] sm:$0xff]
        %v3125 = vld [vmem:[#allocation2 + $0xe0] sm:$0xff]
        %v3126 = vld [vmem:[#allocation2 + $0xe8] sm:$0xff]
        %v3127 = vld [vmem:[#allocation2 + $0xf0] sm:$0xff]
        %v3128 = vld [vmem:[#allocation2 + $0xf8] sm:$0xff]
        %v3129 = vld [vmem:[#allocation2 + $0x100] sm:$0xff]
        %v3130 = vld [vmem:[#allocation2 + $0x108] sm:$0xff]
        %v3131 = vld [vmem:[#allocation2 + $0x110] sm:$0xff]
        %v3132 = vld [vmem:[#allocation2 + $0x118] sm:$0xff]
        %v3133 = vld [vmem:[#allocation2 + $0x120] sm:$0xff]
        %v3134 = vld [vmem:[#allocation2 + $0x128] sm:$0xff]
        %v3135 = vld [vmem:[#allocation2 + $0x130] sm:$0xff]
        %v3136 = vld [vmem:[#allocation2 + $0x138] sm:$0xff]
        %v3137 = vld [vmem:[#allocation2 + $0x140] sm:$0xff]
        %v3138 = vld [vmem:[#allocation2 + $0x148] sm:$0xff]
        %v3139 = vld [vmem:[#allocation2 + $0x150] sm:$0xff]
        %v3140 = vld [vmem:[#allocation2 + $0x158] sm:$0xff]
        %v3141 = vld [vmem:[#allocation2 + $0x160] sm:$0xff]
        %v3142 = vld [vmem:[#allocation2 + $0x168] sm:$0xff]
        %v3143 = vld [vmem:[#allocation2 + $0x170] sm:$0xff]
        %v3144 = vld [vmem:[#allocation2 + $0x178] sm:$0xff]
        %v3145 = vld [vmem:[#allocation2 + $0x180] sm:$0xff]
        %v3146 = vld [vmem:[#allocation2 + $0x188] sm:$0xff]
        %v3147 = vld [vmem:[#allocation2 + $0x190] sm:$0xff]
        %v3148 = vld [vmem:[#allocation2 + $0x198] sm:$0xff]
        %v3149 = vld [vmem:[#allocation2 + $0x1a0] sm:$0xff]
        %v3150 = vld [vmem:[#allocation2 + $0x1a8] sm:$0xff]
        %v3205 = vunpack.c.l.b16 %v3097
        %v3206 = vunpack.c.h.b16 %v3097
        %v3207 = vunpack.c.l.b16 %v3098
        %v3208 = vunpack.c.h.b16 %v3098
        %v3209 = vunpack.c.l.b16 %v3099
        %v3210 = vunpack.c.h.b16 %v3099
        %v3211 = vunpack.c.l.b16 %v3100
        %v3212 = vunpack.c.h.b16 %v3100
        %v3213 = vunpack.c.l.b16 %v3101
        %v3214 = vunpack.c.h.b16 %v3101
        %v3215 = vunpack.c.l.b16 %v3102
        %v3216 = vunpack.c.h.b16 %v3102
        %v3217 = vunpack.c.l.b16 %v3103
        %v3218 = vunpack.c.h.b16 %v3103
        %v3219 = vunpack.c.l.b16 %v3104
        %v3220 = vunpack.c.h.b16 %v3104
        %v3221 = vunpack.c.l.b16 %v3105
        %v3222 = vunpack.c.h.b16 %v3105
        %v3223 = vunpack.c.l.b16 %v3106
        %v3224 = vunpack.c.h.b16 %v3106
        %v3225 = vunpack.c.l.b16 %v3107
        %v3226 = vunpack.c.h.b16 %v3107
        %v3227 = vunpack.c.l.b16 %v3108
        %v3228 = vunpack.c.h.b16 %v3108
        %v3229 = vunpack.c.l.b16 %v3109
        %v3230 = vunpack.c.h.b16 %v3109
        %v3231 = vunpack.c.l.b16 %v3110
        %v3232 = vunpack.c.h.b16 %v3110
        %v3233 = vunpack.c.l.b16 %v3111
        %v3234 = vunpack.c.h.b16 %v3111
        %v3235 = vunpack.c.l.b16 %v3112
        %v3236 = vunpack.c.h.b16 %v3112
        %v3237 = vunpack.c.l.b16 %v3113
        %v3238 = vunpack.c.h.b16 %v3113
        %v3239 = vunpack.c.l.b16 %v3114
        %v3240 = vunpack.c.h.b16 %v3114
        %v3241 = vunpack.c.l.b16 %v3115
        %v3242 = vunpack.c.h.b16 %v3115
        %v3243 = vunpack.c.l.b16 %v3116
        %v3244 = vunpack.c.h.b16 %v3116
        %v3245 = vunpack.c.l.b16 %v3117
        %v3246 = vunpack.c.h.b16 %v3117
        %v3247 = vunpack.c.l.b16 %v3118
        %v3248 = vunpack.c.h.b16 %v3118
        %v3249 = vunpack.c.l.b16 %v3119
        %v3250 = vunpack.c.h.b16 %v3119
        %v3251 = vunpack.c.l.b16 %v3120
        %v3252 = vunpack.c.h.b16 %v3120
        %v3253 = vunpack.c.l.b16 %v3121
        %v3254 = vunpack.c.h.b16 %v3121
        %v3255 = vunpack.c.l.b16 %v3122
        %v3256 = vunpack.c.h.b16 %v3122
        %v3257 = vunpack.c.l.b16 %v3123
        %v3258 = vunpack.c.h.b16 %v3123
        %v3259 = vunpack.c.l.b16 %v3124
        %v3260 = vunpack.c.h.b16 %v3124
        %v3261 = vunpack.c.l.b16 %v3125
        %v3262 = vunpack.c.h.b16 %v3125
        %v3263 = vunpack.c.l.b16 %v3126
        %v3264 = vunpack.c.h.b16 %v3126
        %v3265 = vunpack.c.l.b16 %v3127
        %v3266 = vunpack.c.h.b16 %v3127
        %v3267 = vunpack.c.l.b16 %v3128
        %v3268 = vunpack.c.h.b16 %v3128
        %v3269 = vunpack.c.l.b16 %v3129
        %v3270 = vunpack.c.h.b16 %v3129
        %v3271 = vunpack.c.l.b16 %v3130
        %v3272 = vunpack.c.h.b16 %v3130
        %v3273 = vunpack.c.l.b16 %v3131
        %v3274 = vunpack.c.h.b16 %v3131
        %v3275 = vunpack.c.l.b16 %v3132
        %v3276 = vunpack.c.h.b16 %v3132
        %v3277 = vunpack.c.l.b16 %v3133
        %v3278 = vunpack.c.h.b16 %v3133
        %v3279 = vunpack.c.l.b16 %v3134
        %v3280 = vunpack.c.h.b16 %v3134
        %v3281 = vunpack.c.l.b16 %v3135
        %v3282 = vunpack.c.h.b16 %v3135
        %v3283 = vunpack.c.l.b16 %v3136
        %v3284 = vunpack.c.h.b16 %v3136
        %v3285 = vunpack.c.l.b16 %v3137
        %v3286 = vunpack.c.h.b16 %v3137
        %v3287 = vunpack.c.l.b16 %v3138
        %v3288 = vunpack.c.h.b16 %v3138
        %v3289 = vunpack.c.l.b16 %v3139
        %v3290 = vunpack.c.h.b16 %v3139
        %v3291 = vunpack.c.l.b16 %v3140
        %v3292 = vunpack.c.h.b16 %v3140
        %v3293 = vunpack.c.l.b16 %v3141
        %v3294 = vunpack.c.h.b16 %v3141
        %v3295 = vunpack.c.l.b16 %v3142
        %v3296 = vunpack.c.h.b16 %v3142
        %v3297 = vunpack.c.l.b16 %v3143
        %v3298 = vunpack.c.h.b16 %v3143
        %v3299 = vunpack.c.l.b16 %v3144
        %v3300 = vunpack.c.h.b16 %v3144
        %v3301 = vunpack.c.l.b16 %v3145
        %v3302 = vunpack.c.h.b16 %v3145
        %v3303 = vunpack.c.l.b16 %v3146
        %v3304 = vunpack.c.h.b16 %v3146
        %v3305 = vunpack.c.l.b16 %v3147
        %v3306 = vunpack.c.h.b16 %v3147
        %v3307 = vunpack.c.l.b16 %v3148
        %v3308 = vunpack.c.h.b16 %v3148
        %v3309 = vunpack.c.l.b16 %v3149
        %v3310 = vunpack.c.h.b16 %v3149
        %v3311 = vunpack.c.l.b16 %v3150
        %v3312 = vunpack.c.h.b16 %v3150
        %v3313 = vpack.c.b16 %v3209, %v3205
        %v3314 = vpack.c.b16 %v3210, %v3206
        %v3315 = vpack.c.b16 %v3211, %v3207
        %v3316 = vpack.c.b16 %v3212, %v3208
        %v3317 = vpack.c.b16 %v3217, %v3213
        %v3318 = vpack.c.b16 %v3218, %v3214
        %v3319 = vpack.c.b16 %v3219, %v3215
        %v3320 = vpack.c.b16 %v3220, %v3216
        %v3321 = vpack.c.b16 %v3225, %v3221
        %v3322 = vpack.c.b16 %v3226, %v3222
        %v3323 = vpack.c.b16 %v3227, %v3223
        %v3324 = vpack.c.b16 %v3228, %v3224
        %v3325 = vpack.c.b16 %v3233, %v3229
        %v3326 = vpack.c.b16 %v3234, %v3230
        %v3327 = vpack.c.b16 %v3235, %v3231
        %v3328 = vpack.c.b16 %v3236, %v3232
        %v3329 = vpack.c.b16 %v3241, %v3237
        %v3330 = vpack.c.b16 %v3242, %v3238
        %v3331 = vpack.c.b16 %v3243, %v3239
        %v3332 = vpack.c.b16 %v3244, %v3240
        %v3333 = vpack.c.b16 %v3249, %v3245
        %v3334 = vpack.c.b16 %v3250, %v3246
        %v3335 = vpack.c.b16 %v3251, %v3247
        %v3336 = vpack.c.b16 %v3252, %v3248
        %v3337 = vpack.c.b16 %v3257, %v3253
        %v3338 = vpack.c.b16 %v3258, %v3254
        %v3339 = vpack.c.b16 %v3259, %v3255
        %v3340 = vpack.c.b16 %v3260, %v3256
        %v3341 = vpack.c.b16 %v3265, %v3261
        %v3342 = vpack.c.b16 %v3266, %v3262
        %v3343 = vpack.c.b16 %v3267, %v3263
        %v3344 = vpack.c.b16 %v3268, %v3264
        %v3345 = vpack.c.b16 %v3273, %v3269
        %v3346 = vpack.c.b16 %v3274, %v3270
        %v3347 = vpack.c.b16 %v3275, %v3271
        %v3348 = vpack.c.b16 %v3276, %v3272
        %v3349 = vpack.c.b16 %v3281, %v3277
        %v3350 = vpack.c.b16 %v3282, %v3278
        %v3351 = vpack.c.b16 %v3283, %v3279
        %v3352 = vpack.c.b16 %v3284, %v3280
        %v3353 = vpack.c.b16 %v3289, %v3285
        %v3354 = vpack.c.b16 %v3290, %v3286
        %v3355 = vpack.c.b16 %v3291, %v3287
        %v3356 = vpack.c.b16 %v3292, %v3288
        %v3357 = vpack.c.b16 %v3297, %v3293
        %v3358 = vpack.c.b16 %v3298, %v3294
        %v3359 = vpack.c.b16 %v3299, %v3295
        %v3360 = vpack.c.b16 %v3300, %v3296
        %v3361 = vpack.c.b16 %v3305, %v3301
        %v3362 = vpack.c.b16 %v3306, %v3302
        %v3363 = vpack.c.b16 %v3307, %v3303
        %v3364 = vpack.c.b16 %v3308, %v3304
        %v3365 = vpack.c.b16 %v3309, %v3309
        %v3366 = vpack.c.b16 %v3310, %v3310
        %v3367 = vpack.c.b16 %v3311, %v3311
        %v3368 = vpack.c.b16 %v3312, %v3312
        %v3422 = vsel %vm1224, %v3365, 0
        %v3425 = vsel %vm1224, %v3366, 0
        %v3428 = vsel %vm1224, %v3367, 0
        %v3431 = vsel %vm1224, %v3368, 0
        %3433 = vmatprep.subr.bf16.mxu0 %v3314
        %3434 = vmatpush1.bf16.msra.mxu0 %v3313
        %3435 = vmatprep.subr.bf16.mxu0 %v3318
        %3436 = vmatpush1.bf16.msra.mxu0 %v3317
        %3437 = vmatprep.subr.bf16.mxu0 %v3322
        %3438 = vmatpush1.bf16.msra.mxu0 %v3321
        %3439 = vmatprep.subr.bf16.mxu0 %v3326
        %3440 = vmatpush1.bf16.msra.mxu0 %v3325
        %3441 = vmatprep.subr.bf16.mxu0 %v3330
        %3442 = vmatpush1.bf16.msra.mxu0 %v3329
        %3443 = vmatprep.subr.bf16.mxu0 %v3334
        %3444 = vmatpush1.bf16.msra.mxu0 %v3333
        %3445 = vmatprep.subr.bf16.mxu0 %v3338
        %3446 = vmatpush1.bf16.msra.mxu0 %v3337
        %3447 = vmatprep.subr.bf16.mxu0 %v3342
        %3448 = vmatpush1.bf16.msra.mxu0 %v3341
        %3449 = vmatprep.subr.bf16.mxu0 %v3346
        %3450 = vmatpush1.bf16.msra.mxu0 %v3345
        %3451 = vmatprep.subr.bf16.mxu0 %v3350
        %3452 = vmatpush1.bf16.msra.mxu0 %v3349
        %3453 = vmatprep.subr.bf16.mxu0 %v3354
        %3454 = vmatpush1.bf16.msra.mxu0 %v3353
        %3455 = vmatprep.subr.bf16.mxu0 %v3358
        %3456 = vmatpush1.bf16.msra.mxu0 %v3357
        %3457 = vmatprep.subr.bf16.mxu0 %v3362
        %3458 = vmatpush1.bf16.msra.mxu0 %v3361
        %3459 = vmatprep.subr.bf16.mxu0 %v3425
        %3460 = vmatpush1.bf16.msra.mxu0 %v3422
        %3461 = vmatprep.subr.bf16.mxu0 0
        %3462 = vmatpush1.bf16.msra.mxu0 0
        %3463 = vmatprep.subr.bf16.mxu0 0
        %3464 = vmatpush1.bf16.msra.mxu0 0
        %3465 = vmatprep.mubr.bf16.mxu0 %v1219
        %3466 = vmatmul.mubr.bf16.gmra.mrb[0].mxu0 %v941
        %v3467 = vpop.f32.mrb[0].mxu0
        %v3468 = vadd.f32 0.0, %v3467
        %v3469 = vpop.f32.mrb[0].mxu0
        %v3470 = vadd.f32 0.0, %v3469
        %v3471 = vpop.f32.mrb[0].mxu0
        %v3472 = vadd.f32 0.0, %v3471
        %v3473 = vpop.f32.mrb[0].mxu0
        %v3474 = vadd.f32 0.0, %v3473
        %3475 = vmatprep.mubr.bf16.mxu0 %v1222
        %3476 = vmatmul.mubr.bf16.gmra.mrb[0].mxu0 %v943
        %v3477 = vpop.f32.mrb[0].mxu0
        %v3478 = vadd.f32 0.0, %v3477
        %v3479 = vpop.f32.mrb[0].mxu0
        %v3480 = vadd.f32 0.0, %v3479
        %v3481 = vpop.f32.mrb[0].mxu0
        %v3482 = vadd.f32 0.0, %v3481
        %v3483 = vpop.f32.mrb[0].mxu0
        %v3484 = vadd.f32 0.0, %v3483
        %3485 = vdwg.mxu0
        %3486 = vmatprep.subr.bf16.mxu0 %v3316
        %3487 = vmatpush1.bf16.msra.mxu0 %v3315
        %3488 = vmatprep.subr.bf16.mxu0 %v3320
        %3489 = vmatpush1.bf16.msra.mxu0 %v3319
        %3490 = vmatprep.subr.bf16.mxu0 %v3324
        %3491 = vmatpush1.bf16.msra.mxu0 %v3323
        %3492 = vmatprep.subr.bf16.mxu0 %v3328
        %3493 = vmatpush1.bf16.msra.mxu0 %v3327
        %3494 = vmatprep.subr.bf16.mxu0 %v3332
        %3495 = vmatpush1.bf16.msra.mxu0 %v3331
        %3496 = vmatprep.subr.bf16.mxu0 %v3336
        %3497 = vmatpush1.bf16.msra.mxu0 %v3335
        %3498 = vmatprep.subr.bf16.mxu0 %v3340
        %3499 = vmatpush1.bf16.msra.mxu0 %v3339
        %3500 = vmatprep.subr.bf16.mxu0 %v3344
        %3501 = vmatpush1.bf16.msra.mxu0 %v3343
        %3502 = vmatprep.subr.bf16.mxu0 %v3348
        %3503 = vmatpush1.bf16.msra.mxu0 %v3347
        %3504 = vmatprep.subr.bf16.mxu0 %v3352
        %3505 = vmatpush1.bf16.msra.mxu0 %v3351
        %3506 = vmatprep.subr.bf16.mxu0 %v3356
        %3507 = vmatpush1.bf16.msra.mxu0 %v3355
        %3508 = vmatprep.subr.bf16.mxu0 %v3360
        %3509 = vmatpush1.bf16.msra.mxu0 %v3359
        %3510 = vmatprep.subr.bf16.mxu0 %v3364
        %3511 = vmatpush1.bf16.msra.mxu0 %v3363
        %3512 = vmatprep.subr.bf16.mxu0 %v3431
        %3513 = vmatpush1.bf16.msra.mxu0 %v3428
        %3514 = vmatprep.subr.bf16.mxu0 0
        %3515 = vmatpush1.bf16.msra.mxu0 0
        %3516 = vmatprep.subr.bf16.mxu0 0
        %3517 = vmatpush1.bf16.msra.mxu0 0
        %3518 = vmatprep.mubr.bf16.mxu0 %v1219
        %3519 = vmatmul.mubr.bf16.gmra.mrb[0].mxu0 %v941
        %v3520 = vpop.f32.mrb[0].mxu0
        %v3521 = vadd.f32 0.0, %v3520
        %v3522 = vpop.f32.mrb[0].mxu0
        %v3523 = vadd.f32 0.0, %v3522
        %v3524 = vpop.f32.mrb[0].mxu0
        %v3525 = vadd.f32 0.0, %v3524
        %v3526 = vpop.f32.mrb[0].mxu0
        %v3527 = vadd.f32 0.0, %v3526
        %3528 = vmatprep.mubr.bf16.mxu0 %v1222
        %3529 = vmatmul.mubr.bf16.gmra.mrb[0].mxu0 %v943
        %v3530 = vpop.f32.mrb[0].mxu0
        %v3531 = vadd.f32 0.0, %v3530
        %v3532 = vpop.f32.mrb[0].mxu0
        %v3533 = vadd.f32 0.0, %v3532
        %v3534 = vpop.f32.mrb[0].mxu0
        %v3535 = vadd.f32 0.0, %v3534
        %v3536 = vpop.f32.mrb[0].mxu0
        %v3537 = vadd.f32 0.0, %v3536
        %3538 = vdwg.mxu0
        %v3539 = vld [vmem:[%s4 + $0x8] sm:$0xf]
        %v3541 = vlaneseq
        %v3542 = vshrl.u32 %v3541, 7
        %v3543 = vsub.s32 0, %v3542
        %v3544 = vrot.slane %v3539, %v3543
        %v3545 = vlaneseq
        %v3546 = vshrl.u32 %v3545, 7
        %v3547 = vsub.s32 1, %v3546
        %v3548 = vrot.slane %v3539, %v3547
        %v3549 = vlaneseq
        %v3550 = vshrl.u32 %v3549, 7
        %v3551 = vsub.s32 2, %v3550
        %v3552 = vrot.slane %v3539, %v3551
        %v3553 = vlaneseq
        %v3554 = vshrl.u32 %v3553, 7
        %v3555 = vsub.s32 3, %v3554
        %v3556 = vrot.slane %v3539, %v3555
        %v3561 = vmul.f32 %v3468, %v3544
        %v3562 = vmul.f32 %v3470, %v3548
        %v3563 = vmul.f32 %v3521, %v3552
        %v3564 = vmul.f32 %v3523, %v3556
        %v3565 = vmul.f32 %v3472, %v3544
        %v3566 = vmul.f32 %v3474, %v3548
        %v3567 = vmul.f32 %v3525, %v3552
        %v3568 = vmul.f32 %v3527, %v3556
        %v3569 = vmul.f32 %v3478, %v3544
        %v3570 = vmul.f32 %v3480, %v3548
        %v3571 = vmul.f32 %v3531, %v3552
        %v3572 = vmul.f32 %v3533, %v3556
        %v3573 = vmul.f32 %v3482, %v3544
        %v3574 = vmul.f32 %v3484, %v3548
        %v3575 = vmul.f32 %v3535, %v3552
        %v3576 = vmul.f32 %v3537, %v3556
        %3577 = vst [vmem:[%s240 + $0x40] sm:$0xff] %v3561
        %3578 = vst [vmem:[%s240 + $0x48] sm:$0xff] %v3562
        %3579 = vst [vmem:[%s240 + $0x50] sm:$0xff] %v3563
        %3580 = vst [vmem:[%s240 + $0x58] sm:$0xff] %v3564
        %3581 = vst [vmem:[%s240 + $0x110] sm:$0xff] %v3565
        %3582 = vst [vmem:[%s240 + $0x118] sm:$0xff] %v3566
        %3583 = vst [vmem:[%s240 + $0x120] sm:$0xff] %v3567
        %3584 = vst [vmem:[%s240 + $0x128] sm:$0xff] %v3568
        %3585 = vst [vmem:[%s240 + $0x1e0] sm:$0xff] %v3569
        %3586 = vst [vmem:[%s240 + $0x1e8] sm:$0xff] %v3570
        %3587 = vst [vmem:[%s240 + $0x1f0] sm:$0xff] %v3571
        %3588 = vst [vmem:[%s240 + $0x1f8] sm:$0xff] %v3572
        %3589 = vst [vmem:[%s240 + $0x2b0] sm:$0xff] %v3573
        %3590 = vst [vmem:[%s240 + $0x2b8] sm:$0xff] %v3574
        %3591 = vst [vmem:[%s240 + $0x2c0] sm:$0xff] %v3575
        %3592 = vst [vmem:[%s240 + $0x2c8] sm:$0xff] %v3576
        %v3593 = vld [vmem:[%s214 + $0x30] sm:$0xff]
        %v3594 = vld [vmem:[%s214 + $0x38] sm:$0xff]
        %3595 = vst [vmem:[#allocation2] sm:$0xff] %v3593
        %3596 = vst [vmem:[#allocation2 + $0x8] sm:$0xff] %v3594
        %v3597 = vld [vmem:[%s214 + $0x30] sm:$0xff]
        %v3598 = vld [vmem:[%s214 + $0x38] sm:$0xff]
        %v3599 = vld [vmem:[%s214 + $0x40] sm:$0xf]
        %3603 = vrot.lane.b32.xlu0 %v3597, 127
        %v3604 = vpop.permute.xlu0 %3603
        %3605 = vrot.lane.b32.xlu0 %v3598, 127
        %v3606 = vpop.permute.xlu0 %3605
        %3607 = vrot.lane.b32.xlu0 %v3599, 127
        %v3608 = vpop.permute.xlu0 %3607
        %v3609 = vrot.slane %v3604, 4
        %v3610 = vrot.slane %v3606, 4
        %v3611 = vrot.slane %v3608, 4
        %v3612 = vsel %vm265, %v3609, %v3610
        %v3613 = vsel %vm267, %v3604, %v3612
        %v3614 = vsel %vm265, %v3610, %v3611
        %v3615 = vsel %vm267, %v3606, %v3614
        %3618 = vst [vmem:[#allocation2 + $0x10] sm:$0xff] %v3613
        %3619 = vst [vmem:[#allocation2 + $0x18] sm:$0xff] %v3615
        %v3620 = vld [vmem:[%s214 + $0x30] sm:$0xff]
        %v3621 = vld [vmem:[%s214 + $0x38] sm:$0xff]
        %v3622 = vld [vmem:[%s214 + $0x40] sm:$0xf]
        %3626 = vrot.lane.b32.xlu0 %v3620, 126
        %v3627 = vpop.permute.xlu0 %3626
        %3628 = vrot.lane.b32.xlu0 %v3621, 126
        %v3629 = vpop.permute.xlu0 %3628
        %3630 = vrot.lane.b32.xlu0 %v3622, 126
        %v3631 = vpop.permute.xlu0 %3630
        %v3632 = vrot.slane %v3627, 4
        %v3633 = vrot.slane %v3629, 4
        %v3634 = vrot.slane %v3631, 4
        %v3635 = vsel %vm265, %v3632, %v3633
        %v3636 = vsel %vm291, %v3627, %v3635
        %v3637 = vsel %vm265, %v3633, %v3634
        %v3638 = vsel %vm291, %v3629, %v3637
        %3641 = vst [vmem:[#allocation2 + $0x20] sm:$0xff] %v3636
        %3642 = vst [vmem:[#allocation2 + $0x28] sm:$0xff] %v3638
        %v3643 = vld [vmem:[%s214 + $0x30] sm:$0xff]
        %v3644 = vld [vmem:[%s214 + $0x38] sm:$0xff]
        %v3645 = vld [vmem:[%s214 + $0x40] sm:$0xf]
        %3649 = vrot.lane.b32.xlu0 %v3643, 110
        %v3650 = vpop.permute.xlu0 %3649
        %3651 = vrot.lane.b32.xlu0 %v3644, 110
        %v3652 = vpop.permute.xlu0 %3651
        %3653 = vrot.lane.b32.xlu0 %v3645, 110
        %v3654 = vpop.permute.xlu0 %3653
        %v3655 = vrot.slane %v3650, 4
        %v3656 = vrot.slane %v3652, 4
        %v3657 = vrot.slane %v3654, 4
        %v3658 = vsel %vm265, %v3655, %v3656
        %v3659 = vsel %vm315, %v3650, %v3658
        %v3660 = vsel %vm265, %v3656, %v3657
        %v3661 = vsel %vm315, %v3652, %v3660
        %3664 = vst [vmem:[#allocation2 + $0x30] sm:$0xff] %v3659
        %3665 = vst [vmem:[#allocation2 + $0x38] sm:$0xff] %v3661
        %v3666 = vld [vmem:[%s214 + $0x30] sm:$0xff]
        %v3667 = vld [vmem:[%s214 + $0x38] sm:$0xff]
        %v3668 = vld [vmem:[%s214 + $0x40] sm:$0xf]
        %3672 = vrot.lane.b32.xlu0 %v3666, 109
        %v3673 = vpop.permute.xlu0 %3672
        %3674 = vrot.lane.b32.xlu0 %v3667, 109
        %v3675 = vpop.permute.xlu0 %3674
        %3676 = vrot.lane.b32.xlu0 %v3668, 109
        %v3677 = vpop.permute.xlu0 %3676
        %v3678 = vrot.slane %v3673, 4
        %v3679 = vrot.slane %v3675, 4
        %v3680 = vrot.slane %v3677, 4
        %v3681 = vsel %vm265, %v3678, %v3679
        %v3682 = vsel %vm339, %v3673, %v3681
        %v3683 = vsel %vm265, %v3679, %v3680
        %v3684 = vsel %vm339, %v3675, %v3683
        %3687 = vst [vmem:[#allocation2 + $0x40] sm:$0xff] %v3682
        %3688 = vst [vmem:[#allocation2 + $0x48] sm:$0xff] %v3684
        %v3689 = vld [vmem:[%s214 + $0x30] sm:$0xff]
        %v3690 = vld [vmem:[%s214 + $0x38] sm:$0xff]
        %v3691 = vld [vmem:[%s214 + $0x40] sm:$0xf]
        %3695 = vrot.lane.b32.xlu0 %v3689, 108
        %v3696 = vpop.permute.xlu0 %3695
        %3697 = vrot.lane.b32.xlu0 %v3690, 108
        %v3698 = vpop.permute.xlu0 %3697
        %3699 = vrot.lane.b32.xlu0 %v3691, 108
        %v3700 = vpop.permute.xlu0 %3699
        %v3701 = vrot.slane %v3696, 4
        %v3702 = vrot.slane %v3698, 4
        %v3703 = vrot.slane %v3700, 4
        %v3704 = vsel %vm265, %v3701, %v3702
        %v3705 = vsel %vm363, %v3696, %v3704
        %v3706 = vsel %vm265, %v3702, %v3703
        %v3707 = vsel %vm363, %v3698, %v3706
        %3710 = vst [vmem:[#allocation2 + $0x50] sm:$0xff] %v3705
        %3711 = vst [vmem:[#allocation2 + $0x58] sm:$0xff] %v3707
        %v3712 = vld [vmem:[%s214 + $0x30] sm:$0xff]
        %v3713 = vld [vmem:[%s214 + $0x38] sm:$0xff]
        %v3714 = vld [vmem:[%s214 + $0x40] sm:$0xf]
        %3718 = vrot.lane.b32.xlu0 %v3712, 92
        %v3719 = vpop.permute.xlu0 %3718
        %3720 = vrot.lane.b32.xlu0 %v3713, 92
        %v3721 = vpop.permute.xlu0 %3720
        %3722 = vrot.lane.b32.xlu0 %v3714, 92
        %v3723 = vpop.permute.xlu0 %3722
        %v3724 = vrot.slane %v3719, 4
        %v3725 = vrot.slane %v3721, 4
        %v3726 = vrot.slane %v3723, 4
        %v3727 = vsel %vm265, %v3724, %v3725
        %v3728 = vsel %vm387, %v3719, %v3727
        %v3729 = vsel %vm265, %v3725, %v3726
        %v3730 = vsel %vm387, %v3721, %v3729
        %3733 = vst [vmem:[#allocation2 + $0x60] sm:$0xff] %v3728
        %3734 = vst [vmem:[#allocation2 + $0x68] sm:$0xff] %v3730
        %v3735 = vld [vmem:[%s214 + $0x30] sm:$0xff]
        %v3736 = vld [vmem:[%s214 + $0x38] sm:$0xff]
        %v3737 = vld [vmem:[%s214 + $0x40] sm:$0xf]
        %3741 = vrot.lane.b32.xlu0 %v3735, 91
        %v3742 = vpop.permute.xlu0 %3741
        %3743 = vrot.lane.b32.xlu0 %v3736, 91
        %v3744 = vpop.permute.xlu0 %3743
        %3745 = vrot.lane.b32.xlu0 %v3737, 91
        %v3746 = vpop.permute.xlu0 %3745
        %v3747 = vrot.slane %v3742, 4
        %v3748 = vrot.slane %v3744, 4
        %v3749 = vrot.slane %v3746, 4
        %v3750 = vsel %vm265, %v3747, %v3748
        %v3751 = vsel %vm411, %v3742, %v3750
        %v3752 = vsel %vm265, %v3748, %v3749
        %v3753 = vsel %vm411, %v3744, %v3752
        %3756 = vst [vmem:[#allocation2 + $0x70] sm:$0xff] %v3751
        %3757 = vst [vmem:[#allocation2 + $0x78] sm:$0xff] %v3753
        %v3758 = vld [vmem:[%s214 + $0x30] sm:$0xff]
        %v3759 = vld [vmem:[%s214 + $0x38] sm:$0xff]
        %v3760 = vld [vmem:[%s214 + $0x40] sm:$0xf]
        %3764 = vrot.lane.b32.xlu0 %v3758, 90
        %v3765 = vpop.permute.xlu0 %3764
        %3766 = vrot.lane.b32.xlu0 %v3759, 90
        %v3767 = vpop.permute.xlu0 %3766
        %3768 = vrot.lane.b32.xlu0 %v3760, 90
        %v3769 = vpop.permute.xlu0 %3768
        %v3770 = vrot.slane %v3765, 4
        %v3771 = vrot.slane %v3767, 4
        %v3772 = vrot.slane %v3769, 4
        %v3773 = vsel %vm265, %v3770, %v3771
        %v3774 = vsel %vm435, %v3765, %v3773
        %v3775 = vsel %vm265, %v3771, %v3772
        %v3776 = vsel %vm435, %v3767, %v3775
        %3779 = vst [vmem:[#allocation2 + $0x80] sm:$0xff] %v3774
        %3780 = vst [vmem:[#allocation2 + $0x88] sm:$0xff] %v3776
        %v3781 = vld [vmem:[%s214 + $0x38] sm:$0xff]
        %v3782 = vld [vmem:[%s214 + $0x40] sm:$0xff]
        %v3783 = vld [vmem:[%s214 + $0x48] sm:$0xf]
        %3787 = vrot.lane.b32.xlu0 %v3781, 60
        %v3788 = vpop.permute.xlu0 %3787
        %3789 = vrot.lane.b32.xlu0 %v3782, 60
        %v3790 = vpop.permute.xlu0 %3789
        %3791 = vrot.lane.b32.xlu0 %v3783, 60
        %v3792 = vpop.permute.xlu0 %3791
        %v3793 = vrot.slane %v3788, 4
        %v3794 = vrot.slane %v3790, 4
        %v3795 = vrot.slane %v3792, 4
        %v3796 = vsel %vm265, %v3793, %v3794
        %v3797 = vsel %vm459, %v3788, %v3796
        %v3798 = vsel %vm265, %v3794, %v3795
        %v3799 = vsel %vm459, %v3790, %v3798
        %3802 = vst [vmem:[#allocation2 + $0x90] sm:$0xff] %v3797
        %3803 = vst [vmem:[#allocation2 + $0x98] sm:$0xff] %v3799
        %v3804 = vld [vmem:[%s214 + $0x38] sm:$0xff]
        %v3805 = vld [vmem:[%s214 + $0x40] sm:$0xff]
        %v3806 = vld [vmem:[%s214 + $0x48] sm:$0xf]
        %3810 = vrot.lane.b32.xlu0 %v3804, 59
        %v3811 = vpop.permute.xlu0 %3810
        %3812 = vrot.lane.b32.xlu0 %v3805, 59
        %v3813 = vpop.permute.xlu0 %3812
        %3814 = vrot.lane.b32.xlu0 %v3806, 59
        %v3815 = vpop.permute.xlu0 %3814
        %v3816 = vrot.slane %v3811, 4
        %v3817 = vrot.slane %v3813, 4
        %v3818 = vrot.slane %v3815, 4
        %v3819 = vsel %vm265, %v3816, %v3817
        %v3820 = vsel %vm483, %v3811, %v3819
        %v3821 = vsel %vm265, %v3817, %v3818
        %v3822 = vsel %vm483, %v3813, %v3821
        %3825 = vst [vmem:[#allocation2 + $0xa0] sm:$0xff] %v3820
        %3826 = vst [vmem:[#allocation2 + $0xa8] sm:$0xff] %v3822
        %v3827 = vld [vmem:[%s214 + $0x38] sm:$0xff]
        %v3828 = vld [vmem:[%s214 + $0x40] sm:$0xff]
        %v3829 = vld [vmem:[%s214 + $0x48] sm:$0xf]
        %3833 = vrot.lane.b32.xlu0 %v3827, 58
        %v3834 = vpop.permute.xlu0 %3833
        %3835 = vrot.lane.b32.xlu0 %v3828, 58
        %v3836 = vpop.permute.xlu0 %3835
        %3837 = vrot.lane.b32.xlu0 %v3829, 58
        %v3838 = vpop.permute.xlu0 %3837
        %v3839 = vrot.slane %v3834, 4
        %v3840 = vrot.slane %v3836, 4
        %v3841 = vrot.slane %v3838, 4
        %v3842 = vsel %vm265, %v3839, %v3840
        %v3843 = vsel %vm507, %v3834, %v3842
        %v3844 = vsel %vm265, %v3840, %v3841
        %v3845 = vsel %vm507, %v3836, %v3844
        %3848 = vst [vmem:[#allocation2 + $0xb0] sm:$0xff] %v3843
        %3849 = vst [vmem:[#allocation2 + $0xb8] sm:$0xff] %v3845
        %v3850 = vld [vmem:[%s214 + $0x38] sm:$0xff]
        %v3851 = vld [vmem:[%s214 + $0x40] sm:$0xff]
        %v3852 = vld [vmem:[%s214 + $0x48] sm:$0xf]
        %3856 = vrot.lane.b32.xlu0 %v3850, 42
        %v3857 = vpop.permute.xlu0 %3856
        %3858 = vrot.lane.b32.xlu0 %v3851, 42
        %v3859 = vpop.permute.xlu0 %3858
        %3860 = vrot.lane.b32.xlu0 %v3852, 42
        %v3861 = vpop.permute.xlu0 %3860
        %v3862 = vrot.slane %v3857, 4
        %v3863 = vrot.slane %v3859, 4
        %v3864 = vrot.slane %v3861, 4
        %v3865 = vsel %vm265, %v3862, %v3863
        %v3866 = vsel %vm531, %v3857, %v3865
        %v3867 = vsel %vm265, %v3863, %v3864
        %v3868 = vsel %vm531, %v3859, %v3867
        %3871 = vst [vmem:[#allocation2 + $0xc0] sm:$0xff] %v3866
        %3872 = vst [vmem:[#allocation2 + $0xc8] sm:$0xff] %v3868
        %v3873 = vld [vmem:[%s214 + $0x38] sm:$0xff]
        %v3874 = vld [vmem:[%s214 + $0x40] sm:$0xff]
        %v3875 = vld [vmem:[%s214 + $0x48] sm:$0xf]
        %3879 = vrot.lane.b32.xlu0 %v3873, 41
        %v3880 = vpop.permute.xlu0 %3879
        %3881 = vrot.lane.b32.xlu0 %v3874, 41
        %v3882 = vpop.permute.xlu0 %3881
        %3883 = vrot.lane.b32.xlu0 %v3875, 41
        %v3884 = vpop.permute.xlu0 %3883
        %v3885 = vrot.slane %v3880, 4
        %v3886 = vrot.slane %v3882, 4
        %v3887 = vrot.slane %v3884, 4
        %v3888 = vsel %vm265, %v3885, %v3886
        %v3889 = vsel %vm555, %v3880, %v3888
        %v3890 = vsel %vm265, %v3886, %v3887
        %v3891 = vsel %vm555, %v3882, %v3890
        %3894 = vst [vmem:[#allocation2 + $0xd0] sm:$0xff] %v3889
        %3895 = vst [vmem:[#allocation2 + $0xd8] sm:$0xff] %v3891
        %v3896 = vld [vmem:[%s214 + $0x38] sm:$0xff]
        %v3897 = vld [vmem:[%s214 + $0x40] sm:$0xff]
        %v3898 = vld [vmem:[%s214 + $0x48] sm:$0xf]
        %3902 = vrot.lane.b32.xlu0 %v3896, 40
        %v3903 = vpop.permute.xlu0 %3902
        %3904 = vrot.lane.b32.xlu0 %v3897, 40
        %v3905 = vpop.permute.xlu0 %3904
        %3906 = vrot.lane.b32.xlu0 %v3898, 40
        %v3907 = vpop.permute.xlu0 %3906
        %v3908 = vrot.slane %v3903, 4
        %v3909 = vrot.slane %v3905, 4
        %v3910 = vrot.slane %v3907, 4
        %v3911 = vsel %vm265, %v3908, %v3909
        %v3912 = vsel %vm579, %v3903, %v3911
        %v3913 = vsel %vm265, %v3909, %v3910
        %v3914 = vsel %vm579, %v3905, %v3913
        %3917 = vst [vmem:[#allocation2 + $0xe0] sm:$0xff] %v3912
        %3918 = vst [vmem:[#allocation2 + $0xe8] sm:$0xff] %v3914
        %v3919 = vld [vmem:[%s214 + $0x38] sm:$0xff]
        %v3920 = vld [vmem:[%s214 + $0x40] sm:$0xff]
        %v3921 = vld [vmem:[%s214 + $0x48] sm:$0xf]
        %3925 = vrot.lane.b32.xlu0 %v3919, 24
        %v3926 = vpop.permute.xlu0 %3925
        %3927 = vrot.lane.b32.xlu0 %v3920, 24
        %v3928 = vpop.permute.xlu0 %3927
        %3929 = vrot.lane.b32.xlu0 %v3921, 24
        %v3930 = vpop.permute.xlu0 %3929
        %v3931 = vrot.slane %v3926, 4
        %v3932 = vrot.slane %v3928, 4
        %v3933 = vrot.slane %v3930, 4
        %v3934 = vsel %vm265, %v3931, %v3932
        %v3935 = vsel %vm603, %v3926, %v3934
        %v3936 = vsel %vm265, %v3932, %v3933
        %v3937 = vsel %vm603, %v3928, %v3936
        %3940 = vst [vmem:[#allocation2 + $0xf0] sm:$0xff] %v3935
        %3941 = vst [vmem:[#allocation2 + $0xf8] sm:$0xff] %v3937
        %v3942 = vld [vmem:[%s214 + $0x38] sm:$0xff]
        %v3943 = vld [vmem:[%s214 + $0x40] sm:$0xff]
        %v3944 = vld [vmem:[%s214 + $0x48] sm:$0xf]
        %3948 = vrot.lane.b32.xlu0 %v3942, 23
        %v3949 = vpop.permute.xlu0 %3948
        %3950 = vrot.lane.b32.xlu0 %v3943, 23
        %v3951 = vpop.permute.xlu0 %3950
        %3952 = vrot.lane.b32.xlu0 %v3944, 23
        %v3953 = vpop.permute.xlu0 %3952
        %v3954 = vrot.slane %v3949, 4
        %v3955 = vrot.slane %v3951, 4
        %v3956 = vrot.slane %v3953, 4
        %v3957 = vsel %vm265, %v3954, %v3955
        %v3958 = vsel %vm627, %v3949, %v3957
        %v3959 = vsel %vm265, %v3955, %v3956
        %v3960 = vsel %vm627, %v3951, %v3959
        %3963 = vst [vmem:[#allocation2 + $0x100] sm:$0xff] %v3958
        %3964 = vst [vmem:[#allocation2 + $0x108] sm:$0xff] %v3960
        %v3965 = vld [vmem:[%s214 + $0x38] sm:$0xff]
        %v3966 = vld [vmem:[%s214 + $0x40] sm:$0xff]
        %v3967 = vld [vmem:[%s214 + $0x48] sm:$0xf]
        %3971 = vrot.lane.b32.xlu0 %v3965, 22
        %v3972 = vpop.permute.xlu0 %3971
        %3973 = vrot.lane.b32.xlu0 %v3966, 22
        %v3974 = vpop.permute.xlu0 %3973
        %3975 = vrot.lane.b32.xlu0 %v3967, 22
        %v3976 = vpop.permute.xlu0 %3975
        %v3977 = vrot.slane %v3972, 4
        %v3978 = vrot.slane %v3974, 4
        %v3979 = vrot.slane %v3976, 4
        %v3980 = vsel %vm265, %v3977, %v3978
        %v3981 = vsel %vm651, %v3972, %v3980
        %v3982 = vsel %vm265, %v3978, %v3979
        %v3983 = vsel %vm651, %v3974, %v3982
        %3986 = vst [vmem:[#allocation2 + $0x110] sm:$0xff] %v3981
        %3987 = vst [vmem:[#allocation2 + $0x118] sm:$0xff] %v3983
        %v3988 = vld [vmem:[%s214 + $0x44] sm:$0xff]
        %v3989 = vld [vmem:[%s214 + $0x4c] sm:$0xff]
        %v3990 = vld [vmem:[%s214 + $0x54] sm:$0xf]
        %3994 = vrot.lane.b32.xlu0 %v3988, 120
        %v3995 = vpop.permute.xlu0 %3994
        %3996 = vrot.lane.b32.xlu0 %v3989, 120
        %v3997 = vpop.permute.xlu0 %3996
        %3998 = vrot.lane.b32.xlu0 %v3990, 120
        %v3999 = vpop.permute.xlu0 %3998
        %v4000 = vrot.slane %v3995, 4
        %v4001 = vrot.slane %v3997, 4
        %v4002 = vrot.slane %v3999, 4
        %v4003 = vsel %vm265, %v4000, %v4001
        %v4004 = vsel %vm675, %v3995, %v4003
        %v4005 = vsel %vm265, %v4001, %v4002
        %v4006 = vsel %vm675, %v3997, %v4005
        %4009 = vst [vmem:[#allocation2 + $0x120] sm:$0xff] %v4004
        %4010 = vst [vmem:[#allocation2 + $0x128] sm:$0xff] %v4006
        %v4011 = vld [vmem:[%s214 + $0x44] sm:$0xff]
        %v4012 = vld [vmem:[%s214 + $0x4c] sm:$0xff]
        %v4013 = vld [vmem:[%s214 + $0x54] sm:$0xf]
        %4017 = vrot.lane.b32.xlu0 %v4011, 119
        %v4018 = vpop.permute.xlu0 %4017
        %4019 = vrot.lane.b32.xlu0 %v4012, 119
        %v4020 = vpop.permute.xlu0 %4019
        %4021 = vrot.lane.b32.xlu0 %v4013, 119
        %v4022 = vpop.permute.xlu0 %4021
        %v4023 = vrot.slane %v4018, 4
        %v4024 = vrot.slane %v4020, 4
        %v4025 = vrot.slane %v4022, 4
        %v4026 = vsel %vm265, %v4023, %v4024
        %v4027 = vsel %vm699, %v4018, %v4026
        %v4028 = vsel %vm265, %v4024, %v4025
        %v4029 = vsel %vm699, %v4020, %v4028
        %4032 = vst [vmem:[#allocation2 + $0x130] sm:$0xff] %v4027
        %4033 = vst [vmem:[#allocation2 + $0x138] sm:$0xff] %v4029
        %v4034 = vld [vmem:[%s214 + $0x44] sm:$0xff]
        %v4035 = vld [vmem:[%s214 + $0x4c] sm:$0xff]
        %v4036 = vld [vmem:[%s214 + $0x54] sm:$0xf]
        %4040 = vrot.lane.b32.xlu0 %v4034, 118
        %v4041 = vpop.permute.xlu0 %4040
        %4042 = vrot.lane.b32.xlu0 %v4035, 118
        %v4043 = vpop.permute.xlu0 %4042
        %4044 = vrot.lane.b32.xlu0 %v4036, 118
        %v4045 = vpop.permute.xlu0 %4044
        %v4046 = vrot.slane %v4041, 4
        %v4047 = vrot.slane %v4043, 4
        %v4048 = vrot.slane %v4045, 4
        %v4049 = vsel %vm265, %v4046, %v4047
        %v4050 = vsel %vm723, %v4041, %v4049
        %v4051 = vsel %vm265, %v4047, %v4048
        %v4052 = vsel %vm723, %v4043, %v4051
        %4055 = vst [vmem:[#allocation2 + $0x140] sm:$0xff] %v4050
        %4056 = vst [vmem:[#allocation2 + $0x148] sm:$0xff] %v4052
        %v4057 = vld [vmem:[%s214 + $0x44] sm:$0xff]
        %v4058 = vld [vmem:[%s214 + $0x4c] sm:$0xff]
        %v4059 = vld [vmem:[%s214 + $0x54] sm:$0xf]
        %4063 = vrot.lane.b32.xlu0 %v4057, 102
        %v4064 = vpop.permute.xlu0 %4063
        %4065 = vrot.lane.b32.xlu0 %v4058, 102
        %v4066 = vpop.permute.xlu0 %4065
        %4067 = vrot.lane.b32.xlu0 %v4059, 102
        %v4068 = vpop.permute.xlu0 %4067
        %v4069 = vrot.slane %v4064, 4
        %v4070 = vrot.slane %v4066, 4
        %v4071 = vrot.slane %v4068, 4
        %v4072 = vsel %vm265, %v4069, %v4070
        %v4073 = vsel %vm747, %v4064, %v4072
        %v4074 = vsel %vm265, %v4070, %v4071
        %v4075 = vsel %vm747, %v4066, %v4074
        %4078 = vst [vmem:[#allocation2 + $0x150] sm:$0xff] %v4073
        %4079 = vst [vmem:[#allocation2 + $0x158] sm:$0xff] %v4075
        %v4080 = vld [vmem:[%s214 + $0x44] sm:$0xff]
        %v4081 = vld [vmem:[%s214 + $0x4c] sm:$0xff]
        %v4082 = vld [vmem:[%s214 + $0x54] sm:$0xf]
        %4086 = vrot.lane.b32.xlu0 %v4080, 101
        %v4087 = vpop.permute.xlu0 %4086
        %4088 = vrot.lane.b32.xlu0 %v4081, 101
        %v4089 = vpop.permute.xlu0 %4088
        %4090 = vrot.lane.b32.xlu0 %v4082, 101
        %v4091 = vpop.permute.xlu0 %4090
        %v4092 = vrot.slane %v4087, 4
        %v4093 = vrot.slane %v4089, 4
        %v4094 = vrot.slane %v4091, 4
        %v4095 = vsel %vm265, %v4092, %v4093
        %v4096 = vsel %vm771, %v4087, %v4095
        %v4097 = vsel %vm265, %v4093, %v4094
        %v4098 = vsel %vm771, %v4089, %v4097
        %4101 = vst [vmem:[#allocation2 + $0x160] sm:$0xff] %v4096
        %4102 = vst [vmem:[#allocation2 + $0x168] sm:$0xff] %v4098
        %v4103 = vld [vmem:[%s214 + $0x44] sm:$0xff]
        %v4104 = vld [vmem:[%s214 + $0x4c] sm:$0xff]
        %v4105 = vld [vmem:[%s214 + $0x54] sm:$0xf]
        %4109 = vrot.lane.b32.xlu0 %v4103, 100
        %v4110 = vpop.permute.xlu0 %4109
        %4111 = vrot.lane.b32.xlu0 %v4104, 100
        %v4112 = vpop.permute.xlu0 %4111
        %4113 = vrot.lane.b32.xlu0 %v4105, 100
        %v4114 = vpop.permute.xlu0 %4113
        %v4115 = vrot.slane %v4110, 4
        %v4116 = vrot.slane %v4112, 4
        %v4117 = vrot.slane %v4114, 4
        %v4118 = vsel %vm265, %v4115, %v4116
        %v4119 = vsel %vm795, %v4110, %v4118
        %v4120 = vsel %vm265, %v4116, %v4117
        %v4121 = vsel %vm795, %v4112, %v4120
        %4124 = vst [vmem:[#allocation2 + $0x170] sm:$0xff] %v4119
        %4125 = vst [vmem:[#allocation2 + $0x178] sm:$0xff] %v4121
        %v4126 = vld [vmem:[%s214 + $0x44] sm:$0xff]
        %v4127 = vld [vmem:[%s214 + $0x4c] sm:$0xff]
        %v4128 = vld [vmem:[%s214 + $0x54] sm:$0xf]
        %4132 = vrot.lane.b32.xlu0 %v4126, 84
        %v4133 = vpop.permute.xlu0 %4132
        %4134 = vrot.lane.b32.xlu0 %v4127, 84
        %v4135 = vpop.permute.xlu0 %4134
        %4136 = vrot.lane.b32.xlu0 %v4128, 84
        %v4137 = vpop.permute.xlu0 %4136
        %v4138 = vrot.slane %v4133, 4
        %v4139 = vrot.slane %v4135, 4
        %v4140 = vrot.slane %v4137, 4
        %v4141 = vsel %vm265, %v4138, %v4139
        %v4142 = vsel %vm819, %v4133, %v4141
        %v4143 = vsel %vm265, %v4139, %v4140
        %v4144 = vsel %vm819, %v4135, %v4143
        %4147 = vst [vmem:[#allocation2 + $0x180] sm:$0xff] %v4142
        %4148 = vst [vmem:[#allocation2 + $0x188] sm:$0xff] %v4144
        %v4149 = vld [vmem:[%s214 + $0x44] sm:$0xff]
        %v4150 = vld [vmem:[%s214 + $0x4c] sm:$0xff]
        %v4151 = vld [vmem:[%s214 + $0x54] sm:$0xf]
        %4155 = vrot.lane.b32.xlu0 %v4149, 83
        %v4156 = vpop.permute.xlu0 %4155
        %4157 = vrot.lane.b32.xlu0 %v4150, 83
        %v4158 = vpop.permute.xlu0 %4157
        %4159 = vrot.lane.b32.xlu0 %v4151, 83
        %v4160 = vpop.permute.xlu0 %4159
        %v4161 = vrot.slane %v4156, 4
        %v4162 = vrot.slane %v4158, 4
        %v4163 = vrot.slane %v4160, 4
        %v4164 = vsel %vm265, %v4161, %v4162
        %v4165 = vsel %vm843, %v4156, %v4164
        %v4166 = vsel %vm265, %v4162, %v4163
        %v4167 = vsel %vm843, %v4158, %v4166
        %4170 = vst [vmem:[#allocation2 + $0x190] sm:$0xff] %v4165
        %4171 = vst [vmem:[#allocation2 + $0x198] sm:$0xff] %v4167
        %v4172 = vld [vmem:[%s214 + $0x44] sm:$0xff]
        %v4173 = vld [vmem:[%s214 + $0x4c] sm:$0xff]
        %v4174 = vld [vmem:[%s214 + $0x54] sm:$0xf]
        %4178 = vrot.lane.b32.xlu0 %v4172, 82
        %v4179 = vpop.permute.xlu0 %4178
        %4180 = vrot.lane.b32.xlu0 %v4173, 82
        %v4181 = vpop.permute.xlu0 %4180
        %4182 = vrot.lane.b32.xlu0 %v4174, 82
        %v4183 = vpop.permute.xlu0 %4182
        %v4184 = vrot.slane %v4179, 4
        %v4185 = vrot.slane %v4181, 4
        %v4186 = vrot.slane %v4183, 4
        %v4187 = vsel %vm265, %v4184, %v4185
        %v4188 = vsel %vm867, %v4179, %v4187
        %v4189 = vsel %vm265, %v4185, %v4186
        %v4190 = vsel %vm867, %v4181, %v4189
        %4193 = vst [vmem:[#allocation2 + $0x1a0] sm:$0xff] %v4188
        %4194 = vst [vmem:[#allocation2 + $0x1a8] sm:$0xff] %v4190
        %v4195 = vld [vmem:[#allocation2] sm:$0xff]
        %v4196 = vld [vmem:[#allocation2 + $0x8] sm:$0xff]
        %v4197 = vld [vmem:[#allocation2 + $0x10] sm:$0xff]
        %v4198 = vld [vmem:[#allocation2 + $0x18] sm:$0xff]
        %v4199 = vld [vmem:[#allocation2 + $0x20] sm:$0xff]
        %v4200 = vld [vmem:[#allocation2 + $0x28] sm:$0xff]
        %v4201 = vld [vmem:[#allocation2 + $0x30] sm:$0xff]
        %v4202 = vld [vmem:[#allocation2 + $0x38] sm:$0xff]
        %v4203 = vld [vmem:[#allocation2 + $0x40] sm:$0xff]
        %v4204 = vld [vmem:[#allocation2 + $0x48] sm:$0xff]
        %v4205 = vld [vmem:[#allocation2 + $0x50] sm:$0xff]
        %v4206 = vld [vmem:[#allocation2 + $0x58] sm:$0xff]
        %v4207 = vld [vmem:[#allocation2 + $0x60] sm:$0xff]
        %v4208 = vld [vmem:[#allocation2 + $0x68] sm:$0xff]
        %v4209 = vld [vmem:[#allocation2 + $0x70] sm:$0xff]
        %v4210 = vld [vmem:[#allocation2 + $0x78] sm:$0xff]
        %v4211 = vld [vmem:[#allocation2 + $0x80] sm:$0xff]
        %v4212 = vld [vmem:[#allocation2 + $0x88] sm:$0xff]
        %v4213 = vld [vmem:[#allocation2 + $0x90] sm:$0xff]
        %v4214 = vld [vmem:[#allocation2 + $0x98] sm:$0xff]
        %v4215 = vld [vmem:[#allocation2 + $0xa0] sm:$0xff]
        %v4216 = vld [vmem:[#allocation2 + $0xa8] sm:$0xff]
        %v4217 = vld [vmem:[#allocation2 + $0xb0] sm:$0xff]
        %v4218 = vld [vmem:[#allocation2 + $0xb8] sm:$0xff]
        %v4219 = vld [vmem:[#allocation2 + $0xc0] sm:$0xff]
        %v4220 = vld [vmem:[#allocation2 + $0xc8] sm:$0xff]
        %v4221 = vld [vmem:[#allocation2 + $0xd0] sm:$0xff]
        %v4222 = vld [vmem:[#allocation2 + $0xd8] sm:$0xff]
        %v4223 = vld [vmem:[#allocation2 + $0xe0] sm:$0xff]
        %v4224 = vld [vmem:[#allocation2 + $0xe8] sm:$0xff]
        %v4225 = vld [vmem:[#allocation2 + $0xf0] sm:$0xff]
        %v4226 = vld [vmem:[#allocation2 + $0xf8] sm:$0xff]
        %v4227 = vld [vmem:[#allocation2 + $0x100] sm:$0xff]
        %v4228 = vld [vmem:[#allocation2 + $0x108] sm:$0xff]
        %v4229 = vld [vmem:[#allocation2 + $0x110] sm:$0xff]
        %v4230 = vld [vmem:[#allocation2 + $0x118] sm:$0xff]
        %v4231 = vld [vmem:[#allocation2 + $0x120] sm:$0xff]
        %v4232 = vld [vmem:[#allocation2 + $0x128] sm:$0xff]
        %v4233 = vld [vmem:[#allocation2 + $0x130] sm:$0xff]
        %v4234 = vld [vmem:[#allocation2 + $0x138] sm:$0xff]
        %v4235 = vld [vmem:[#allocation2 + $0x140] sm:$0xff]
        %v4236 = vld [vmem:[#allocation2 + $0x148] sm:$0xff]
        %v4237 = vld [vmem:[#allocation2 + $0x150] sm:$0xff]
        %v4238 = vld [vmem:[#allocation2 + $0x158] sm:$0xff]
        %v4239 = vld [vmem:[#allocation2 + $0x160] sm:$0xff]
        %v4240 = vld [vmem:[#allocation2 + $0x168] sm:$0xff]
        %v4241 = vld [vmem:[#allocation2 + $0x170] sm:$0xff]
        %v4242 = vld [vmem:[#allocation2 + $0x178] sm:$0xff]
        %v4243 = vld [vmem:[#allocation2 + $0x180] sm:$0xff]
        %v4244 = vld [vmem:[#allocation2 + $0x188] sm:$0xff]
        %v4245 = vld [vmem:[#allocation2 + $0x190] sm:$0xff]
        %v4246 = vld [vmem:[#allocation2 + $0x198] sm:$0xff]
        %v4247 = vld [vmem:[#allocation2 + $0x1a0] sm:$0xff]
        %v4248 = vld [vmem:[#allocation2 + $0x1a8] sm:$0xff]
        %v4303 = vunpack.c.l.b16 %v4195
        %v4304 = vunpack.c.h.b16 %v4195
        %v4305 = vunpack.c.l.b16 %v4196
        %v4306 = vunpack.c.h.b16 %v4196
        %v4307 = vunpack.c.l.b16 %v4197
        %v4308 = vunpack.c.h.b16 %v4197
        %v4309 = vunpack.c.l.b16 %v4198
        %v4310 = vunpack.c.h.b16 %v4198
        %v4311 = vunpack.c.l.b16 %v4199
        %v4312 = vunpack.c.h.b16 %v4199
        %v4313 = vunpack.c.l.b16 %v4200
        %v4314 = vunpack.c.h.b16 %v4200
        %v4315 = vunpack.c.l.b16 %v4201
        %v4316 = vunpack.c.h.b16 %v4201
        %v4317 = vunpack.c.l.b16 %v4202
        %v4318 = vunpack.c.h.b16 %v4202
        %v4319 = vunpack.c.l.b16 %v4203
        %v4320 = vunpack.c.h.b16 %v4203
        %v4321 = vunpack.c.l.b16 %v4204
        %v4322 = vunpack.c.h.b16 %v4204
        %v4323 = vunpack.c.l.b16 %v4205
        %v4324 = vunpack.c.h.b16 %v4205
        %v4325 = vunpack.c.l.b16 %v4206
        %v4326 = vunpack.c.h.b16 %v4206
        %v4327 = vunpack.c.l.b16 %v4207
        %v4328 = vunpack.c.h.b16 %v4207
        %v4329 = vunpack.c.l.b16 %v4208
        %v4330 = vunpack.c.h.b16 %v4208
        %v4331 = vunpack.c.l.b16 %v4209
        %v4332 = vunpack.c.h.b16 %v4209
        %v4333 = vunpack.c.l.b16 %v4210
        %v4334 = vunpack.c.h.b16 %v4210
        %v4335 = vunpack.c.l.b16 %v4211
        %v4336 = vunpack.c.h.b16 %v4211
        %v4337 = vunpack.c.l.b16 %v4212
        %v4338 = vunpack.c.h.b16 %v4212
        %v4339 = vunpack.c.l.b16 %v4213
        %v4340 = vunpack.c.h.b16 %v4213
        %v4341 = vunpack.c.l.b16 %v4214
        %v4342 = vunpack.c.h.b16 %v4214
        %v4343 = vunpack.c.l.b16 %v4215
        %v4344 = vunpack.c.h.b16 %v4215
        %v4345 = vunpack.c.l.b16 %v4216
        %v4346 = vunpack.c.h.b16 %v4216
        %v4347 = vunpack.c.l.b16 %v4217
        %v4348 = vunpack.c.h.b16 %v4217
        %v4349 = vunpack.c.l.b16 %v4218
        %v4350 = vunpack.c.h.b16 %v4218
        %v4351 = vunpack.c.l.b16 %v4219
        %v4352 = vunpack.c.h.b16 %v4219
        %v4353 = vunpack.c.l.b16 %v4220
        %v4354 = vunpack.c.h.b16 %v4220
        %v4355 = vunpack.c.l.b16 %v4221
        %v4356 = vunpack.c.h.b16 %v4221
        %v4357 = vunpack.c.l.b16 %v4222
        %v4358 = vunpack.c.h.b16 %v4222
        %v4359 = vunpack.c.l.b16 %v4223
        %v4360 = vunpack.c.h.b16 %v4223
        %v4361 = vunpack.c.l.b16 %v4224
        %v4362 = vunpack.c.h.b16 %v4224
        %v4363 = vunpack.c.l.b16 %v4225
        %v4364 = vunpack.c.h.b16 %v4225
        %v4365 = vunpack.c.l.b16 %v4226
        %v4366 = vunpack.c.h.b16 %v4226
        %v4367 = vunpack.c.l.b16 %v4227
        %v4368 = vunpack.c.h.b16 %v4227
        %v4369 = vunpack.c.l.b16 %v4228
        %v4370 = vunpack.c.h.b16 %v4228
        %v4371 = vunpack.c.l.b16 %v4229
        %v4372 = vunpack.c.h.b16 %v4229
        %v4373 = vunpack.c.l.b16 %v4230
        %v4374 = vunpack.c.h.b16 %v4230
        %v4375 = vunpack.c.l.b16 %v4231
        %v4376 = vunpack.c.h.b16 %v4231
        %v4377 = vunpack.c.l.b16 %v4232
        %v4378 = vunpack.c.h.b16 %v4232
        %v4379 = vunpack.c.l.b16 %v4233
        %v4380 = vunpack.c.h.b16 %v4233
        %v4381 = vunpack.c.l.b16 %v4234
        %v4382 = vunpack.c.h.b16 %v4234
        %v4383 = vunpack.c.l.b16 %v4235
        %v4384 = vunpack.c.h.b16 %v4235
        %v4385 = vunpack.c.l.b16 %v4236
        %v4386 = vunpack.c.h.b16 %v4236
        %v4387 = vunpack.c.l.b16 %v4237
        %v4388 = vunpack.c.h.b16 %v4237
        %v4389 = vunpack.c.l.b16 %v4238
        %v4390 = vunpack.c.h.b16 %v4238
        %v4391 = vunpack.c.l.b16 %v4239
        %v4392 = vunpack.c.h.b16 %v4239
        %v4393 = vunpack.c.l.b16 %v4240
        %v4394 = vunpack.c.h.b16 %v4240
        %v4395 = vunpack.c.l.b16 %v4241
        %v4396 = vunpack.c.h.b16 %v4241
        %v4397 = vunpack.c.l.b16 %v4242
        %v4398 = vunpack.c.h.b16 %v4242
        %v4399 = vunpack.c.l.b16 %v4243
        %v4400 = vunpack.c.h.b16 %v4243
        %v4401 = vunpack.c.l.b16 %v4244
        %v4402 = vunpack.c.h.b16 %v4244
        %v4403 = vunpack.c.l.b16 %v4245
        %v4404 = vunpack.c.h.b16 %v4245
        %v4405 = vunpack.c.l.b16 %v4246
        %v4406 = vunpack.c.h.b16 %v4246
        %v4407 = vunpack.c.l.b16 %v4247
        %v4408 = vunpack.c.h.b16 %v4247
        %v4409 = vunpack.c.l.b16 %v4248
        %v4410 = vunpack.c.h.b16 %v4248
        %v4411 = vpack.c.b16 %v4307, %v4303
        %v4412 = vpack.c.b16 %v4308, %v4304
        %v4413 = vpack.c.b16 %v4309, %v4305
        %v4414 = vpack.c.b16 %v4310, %v4306
        %v4415 = vpack.c.b16 %v4315, %v4311
        %v4416 = vpack.c.b16 %v4316, %v4312
        %v4417 = vpack.c.b16 %v4317, %v4313
        %v4418 = vpack.c.b16 %v4318, %v4314
        %v4419 = vpack.c.b16 %v4323, %v4319
        %v4420 = vpack.c.b16 %v4324, %v4320
        %v4421 = vpack.c.b16 %v4325, %v4321
        %v4422 = vpack.c.b16 %v4326, %v4322
        %v4423 = vpack.c.b16 %v4331, %v4327
        %v4424 = vpack.c.b16 %v4332, %v4328
        %v4425 = vpack.c.b16 %v4333, %v4329
        %v4426 = vpack.c.b16 %v4334, %v4330
        %v4427 = vpack.c.b16 %v4339, %v4335
        %v4428 = vpack.c.b16 %v4340, %v4336
        %v4429 = vpack.c.b16 %v4341, %v4337
        %v4430 = vpack.c.b16 %v4342, %v4338
        %v4431 = vpack.c.b16 %v4347, %v4343
        %v4432 = vpack.c.b16 %v4348, %v4344
        %v4433 = vpack.c.b16 %v4349, %v4345
        %v4434 = vpack.c.b16 %v4350, %v4346
        %v4435 = vpack.c.b16 %v4355, %v4351
        %v4436 = vpack.c.b16 %v4356, %v4352
        %v4437 = vpack.c.b16 %v4357, %v4353
        %v4438 = vpack.c.b16 %v4358, %v4354
        %v4439 = vpack.c.b16 %v4363, %v4359
        %v4440 = vpack.c.b16 %v4364, %v4360
        %v4441 = vpack.c.b16 %v4365, %v4361
        %v4442 = vpack.c.b16 %v4366, %v4362
        %v4443 = vpack.c.b16 %v4371, %v4367
        %v4444 = vpack.c.b16 %v4372, %v4368
        %v4445 = vpack.c.b16 %v4373, %v4369
        %v4446 = vpack.c.b16 %v4374, %v4370
        %v4447 = vpack.c.b16 %v4379, %v4375
        %v4448 = vpack.c.b16 %v4380, %v4376
        %v4449 = vpack.c.b16 %v4381, %v4377
        %v4450 = vpack.c.b16 %v4382, %v4378
        %v4451 = vpack.c.b16 %v4387, %v4383
        %v4452 = vpack.c.b16 %v4388, %v4384
        %v4453 = vpack.c.b16 %v4389, %v4385
        %v4454 = vpack.c.b16 %v4390, %v4386
        %v4455 = vpack.c.b16 %v4395, %v4391
        %v4456 = vpack.c.b16 %v4396, %v4392
        %v4457 = vpack.c.b16 %v4397, %v4393
        %v4458 = vpack.c.b16 %v4398, %v4394
        %v4459 = vpack.c.b16 %v4403, %v4399
        %v4460 = vpack.c.b16 %v4404, %v4400
        %v4461 = vpack.c.b16 %v4405, %v4401
        %v4462 = vpack.c.b16 %v4406, %v4402
        %v4463 = vpack.c.b16 %v4407, %v4407
        %v4464 = vpack.c.b16 %v4408, %v4408
        %v4465 = vpack.c.b16 %v4409, %v4409
        %v4466 = vpack.c.b16 %v4410, %v4410
        %v4520 = vsel %vm1224, %v4463, 0
        %v4523 = vsel %vm1224, %v4464, 0
        %v4526 = vsel %vm1224, %v4465, 0
        %v4529 = vsel %vm1224, %v4466, 0
        %4531 = vmatprep.subr.bf16.mxu0 %v4412
        %4532 = vmatpush1.bf16.msra.mxu0 %v4411
        %4533 = vmatprep.subr.bf16.mxu0 %v4416
        %4534 = vmatpush1.bf16.msra.mxu0 %v4415
        %4535 = vmatprep.subr.bf16.mxu0 %v4420
        %4536 = vmatpush1.bf16.msra.mxu0 %v4419
        %4537 = vmatprep.subr.bf16.mxu0 %v4424
        %4538 = vmatpush1.bf16.msra.mxu0 %v4423
        %4539 = vmatprep.subr.bf16.mxu0 %v4428
        %4540 = vmatpush1.bf16.msra.mxu0 %v4427
        %4541 = vmatprep.subr.bf16.mxu0 %v4432
        %4542 = vmatpush1.bf16.msra.mxu0 %v4431
        %4543 = vmatprep.subr.bf16.mxu0 %v4436
        %4544 = vmatpush1.bf16.msra.mxu0 %v4435
        %4545 = vmatprep.subr.bf16.mxu0 %v4440
        %4546 = vmatpush1.bf16.msra.mxu0 %v4439
        %4547 = vmatprep.subr.bf16.mxu0 %v4444
        %4548 = vmatpush1.bf16.msra.mxu0 %v4443
        %4549 = vmatprep.subr.bf16.mxu0 %v4448
        %4550 = vmatpush1.bf16.msra.mxu0 %v4447
        %4551 = vmatprep.subr.bf16.mxu0 %v4452
        %4552 = vmatpush1.bf16.msra.mxu0 %v4451
        %4553 = vmatprep.subr.bf16.mxu0 %v4456
        %4554 = vmatpush1.bf16.msra.mxu0 %v4455
        %4555 = vmatprep.subr.bf16.mxu0 %v4460
        %4556 = vmatpush1.bf16.msra.mxu0 %v4459
        %4557 = vmatprep.subr.bf16.mxu0 %v4523
        %4558 = vmatpush1.bf16.msra.mxu0 %v4520
        %4559 = vmatprep.subr.bf16.mxu0 0
        %4560 = vmatpush1.bf16.msra.mxu0 0
        %4561 = vmatprep.subr.bf16.mxu0 0
        %4562 = vmatpush1.bf16.msra.mxu0 0
        %4563 = vmatprep.mubr.bf16.mxu0 %v1219
        %4564 = vmatmul.mubr.bf16.gmra.mrb[0].mxu0 %v941
        %v4565 = vpop.f32.mrb[0].mxu0
        %v4566 = vadd.f32 0.0, %v4565
        %v4567 = vpop.f32.mrb[0].mxu0
        %v4568 = vadd.f32 0.0, %v4567
        %v4569 = vpop.f32.mrb[0].mxu0
        %v4570 = vadd.f32 0.0, %v4569
        %v4571 = vpop.f32.mrb[0].mxu0
        %v4572 = vadd.f32 0.0, %v4571
        %4573 = vmatprep.mubr.bf16.mxu0 %v1222
        %4574 = vmatmul.mubr.bf16.gmra.mrb[0].mxu0 %v943
        %v4575 = vpop.f32.mrb[0].mxu0
        %v4576 = vadd.f32 0.0, %v4575
        %v4577 = vpop.f32.mrb[0].mxu0
        %v4578 = vadd.f32 0.0, %v4577
        %v4579 = vpop.f32.mrb[0].mxu0
        %v4580 = vadd.f32 0.0, %v4579
        %v4581 = vpop.f32.mrb[0].mxu0
        %v4582 = vadd.f32 0.0, %v4581
        %4583 = vdwg.mxu0
        %4584 = vmatprep.subr.bf16.mxu0 %v4414
        %4585 = vmatpush1.bf16.msra.mxu0 %v4413
        %4586 = vmatprep.subr.bf16.mxu0 %v4418
        %4587 = vmatpush1.bf16.msra.mxu0 %v4417
        %4588 = vmatprep.subr.bf16.mxu0 %v4422
        %4589 = vmatpush1.bf16.msra.mxu0 %v4421
        %4590 = vmatprep.subr.bf16.mxu0 %v4426
        %4591 = vmatpush1.bf16.msra.mxu0 %v4425
        %4592 = vmatprep.subr.bf16.mxu0 %v4430
        %4593 = vmatpush1.bf16.msra.mxu0 %v4429
        %4594 = vmatprep.subr.bf16.mxu0 %v4434
        %4595 = vmatpush1.bf16.msra.mxu0 %v4433
        %4596 = vmatprep.subr.bf16.mxu0 %v4438
        %4597 = vmatpush1.bf16.msra.mxu0 %v4437
        %4598 = vmatprep.subr.bf16.mxu0 %v4442
        %4599 = vmatpush1.bf16.msra.mxu0 %v4441
        %4600 = vmatprep.subr.bf16.mxu0 %v4446
        %4601 = vmatpush1.bf16.msra.mxu0 %v4445
        %4602 = vmatprep.subr.bf16.mxu0 %v4450
        %4603 = vmatpush1.bf16.msra.mxu0 %v4449
        %4604 = vmatprep.subr.bf16.mxu0 %v4454
        %4605 = vmatpush1.bf16.msra.mxu0 %v4453
        %4606 = vmatprep.subr.bf16.mxu0 %v4458
        %4607 = vmatpush1.bf16.msra.mxu0 %v4457
        %4608 = vmatprep.subr.bf16.mxu0 %v4462
        %4609 = vmatpush1.bf16.msra.mxu0 %v4461
        %4610 = vmatprep.subr.bf16.mxu0 %v4529
        %4611 = vmatpush1.bf16.msra.mxu0 %v4526
        %4612 = vmatprep.subr.bf16.mxu0 0
        %4613 = vmatpush1.bf16.msra.mxu0 0
        %4614 = vmatprep.subr.bf16.mxu0 0
        %4615 = vmatpush1.bf16.msra.mxu0 0
        %4616 = vmatprep.mubr.bf16.mxu0 %v1219
        %4617 = vmatmul.mubr.bf16.gmra.mrb[0].mxu0 %v941
        %v4618 = vpop.f32.mrb[0].mxu0
        %v4619 = vadd.f32 0.0, %v4618
        %v4620 = vpop.f32.mrb[0].mxu0
        %v4621 = vadd.f32 0.0, %v4620
        %v4622 = vpop.f32.mrb[0].mxu0
        %v4623 = vadd.f32 0.0, %v4622
        %v4624 = vpop.f32.mrb[0].mxu0
        %v4625 = vadd.f32 0.0, %v4624
        %4626 = vmatprep.mubr.bf16.mxu0 %v1222
        %4627 = vmatmul.mubr.bf16.gmra.mrb[0].mxu0 %v943
        %v4628 = vpop.f32.mrb[0].mxu0
        %v4629 = vadd.f32 0.0, %v4628
        %v4630 = vpop.f32.mrb[0].mxu0
        %v4631 = vadd.f32 0.0, %v4630
        %v4632 = vpop.f32.mrb[0].mxu0
        %v4633 = vadd.f32 0.0, %v4632
        %v4634 = vpop.f32.mrb[0].mxu0
        %v4635 = vadd.f32 0.0, %v4634
        %4636 = vdwg.mxu0
        %v4637 = vld [vmem:[%s4 + $0xc] sm:$0xf]
        %v4639 = vlaneseq
        %v4640 = vshrl.u32 %v4639, 7
        %v4641 = vsub.s32 0, %v4640
        %v4642 = vrot.slane %v4637, %v4641
        %v4643 = vlaneseq
        %v4644 = vshrl.u32 %v4643, 7
        %v4645 = vsub.s32 1, %v4644
        %v4646 = vrot.slane %v4637, %v4645
        %v4647 = vlaneseq
        %v4648 = vshrl.u32 %v4647, 7
        %v4649 = vsub.s32 2, %v4648
        %v4650 = vrot.slane %v4637, %v4649
        %v4651 = vlaneseq
        %v4652 = vshrl.u32 %v4651, 7
        %v4653 = vsub.s32 3, %v4652
        %v4654 = vrot.slane %v4637, %v4653
        %v4659 = vmul.f32 %v4566, %v4642
        %v4660 = vmul.f32 %v4568, %v4646
        %v4661 = vmul.f32 %v4619, %v4650
        %v4662 = vmul.f32 %v4621, %v4654
        %v4663 = vmul.f32 %v4570, %v4642
        %v4664 = vmul.f32 %v4572, %v4646
        %v4665 = vmul.f32 %v4623, %v4650
        %v4666 = vmul.f32 %v4625, %v4654
        %v4667 = vmul.f32 %v4576, %v4642
        %v4668 = vmul.f32 %v4578, %v4646
        %v4669 = vmul.f32 %v4629, %v4650
        %v4670 = vmul.f32 %v4631, %v4654
        %v4671 = vmul.f32 %v4580, %v4642
        %v4672 = vmul.f32 %v4582, %v4646
        %v4673 = vmul.f32 %v4633, %v4650
        %v4674 = vmul.f32 %v4635, %v4654
        %4675 = vst [vmem:[%s240 + $0x60] sm:$0xff] %v4659
        %4676 = vst [vmem:[%s240 + $0x68] sm:$0xff] %v4660
        %4677 = vst [vmem:[%s240 + $0x70] sm:$0xff] %v4661
        %4678 = vst [vmem:[%s240 + $0x78] sm:$0xff] %v4662
        %4679 = vst [vmem:[%s240 + $0x130] sm:$0xff] %v4663
        %4680 = vst [vmem:[%s240 + $0x138] sm:$0xff] %v4664
        %4681 = vst [vmem:[%s240 + $0x140] sm:$0xff] %v4665
        %4682 = vst [vmem:[%s240 + $0x148] sm:$0xff] %v4666
        %4683 = vst [vmem:[%s240 + $0x200] sm:$0xff] %v4667
        %4684 = vst [vmem:[%s240 + $0x208] sm:$0xff] %v4668
        %4685 = vst [vmem:[%s240 + $0x210] sm:$0xff] %v4669
        %4686 = vst [vmem:[%s240 + $0x218] sm:$0xff] %v4670
        %4687 = vst [vmem:[%s240 + $0x2d0] sm:$0xff] %v4671
        %4688 = vst [vmem:[%s240 + $0x2d8] sm:$0xff] %v4672
        %4689 = vst [vmem:[%s240 + $0x2e0] sm:$0xff] %v4673
        %4690 = vst [vmem:[%s240 + $0x2e8] sm:$0xff] %v4674
        %v4691 = vld [vmem:[%s214 + $0x40] sm:$0xff]
        %v4692 = vld [vmem:[%s214 + $0x48] sm:$0xff]
        %4693 = vst [vmem:[#allocation2] sm:$0xff] %v4691
        %4694 = vst [vmem:[#allocation2 + $0x8] sm:$0xff] %v4692
        %v4695 = vld [vmem:[%s214 + $0x40] sm:$0xff]
        %v4696 = vld [vmem:[%s214 + $0x48] sm:$0xff]
        %v4697 = vld [vmem:[%s214 + $0x50] sm:$0xf]
        %4701 = vrot.lane.b32.xlu0 %v4695, 127
        %v4702 = vpop.permute.xlu0 %4701
        %4703 = vrot.lane.b32.xlu0 %v4696, 127
        %v4704 = vpop.permute.xlu0 %4703
        %4705 = vrot.lane.b32.xlu0 %v4697, 127
        %v4706 = vpop.permute.xlu0 %4705
        %v4707 = vrot.slane %v4702, 4
        %v4708 = vrot.slane %v4704, 4
        %v4709 = vrot.slane %v4706, 4
        %v4710 = vsel %vm265, %v4707, %v4708
        %v4711 = vsel %vm267, %v4702, %v4710
        %v4712 = vsel %vm265, %v4708, %v4709
        %v4713 = vsel %vm267, %v4704, %v4712
        %4716 = vst [vmem:[#allocation2 + $0x10] sm:$0xff] %v4711
        %4717 = vst [vmem:[#allocation2 + $0x18] sm:$0xff] %v4713
        %v4718 = vld [vmem:[%s214 + $0x40] sm:$0xff]
        %v4719 = vld [vmem:[%s214 + $0x48] sm:$0xff]
        %v4720 = vld [vmem:[%s214 + $0x50] sm:$0xf]
        %4724 = vrot.lane.b32.xlu0 %v4718, 126
        %v4725 = vpop.permute.xlu0 %4724
        %4726 = vrot.lane.b32.xlu0 %v4719, 126
        %v4727 = vpop.permute.xlu0 %4726
        %4728 = vrot.lane.b32.xlu0 %v4720, 126
        %v4729 = vpop.permute.xlu0 %4728
        %v4730 = vrot.slane %v4725, 4
        %v4731 = vrot.slane %v4727, 4
        %v4732 = vrot.slane %v4729, 4
        %v4733 = vsel %vm265, %v4730, %v4731
        %v4734 = vsel %vm291, %v4725, %v4733
        %v4735 = vsel %vm265, %v4731, %v4732
        %v4736 = vsel %vm291, %v4727, %v4735
        %4739 = vst [vmem:[#allocation2 + $0x20] sm:$0xff] %v4734
        %4740 = vst [vmem:[#allocation2 + $0x28] sm:$0xff] %v4736
        %v4741 = vld [vmem:[%s214 + $0x40] sm:$0xff]
        %v4742 = vld [vmem:[%s214 + $0x48] sm:$0xff]
        %v4743 = vld [vmem:[%s214 + $0x50] sm:$0xf]
        %4747 = vrot.lane.b32.xlu0 %v4741, 110
        %v4748 = vpop.permute.xlu0 %4747
        %4749 = vrot.lane.b32.xlu0 %v4742, 110
        %v4750 = vpop.permute.xlu0 %4749
        %4751 = vrot.lane.b32.xlu0 %v4743, 110
        %v4752 = vpop.permute.xlu0 %4751
        %v4753 = vrot.slane %v4748, 4
        %v4754 = vrot.slane %v4750, 4
        %v4755 = vrot.slane %v4752, 4
        %v4756 = vsel %vm265, %v4753, %v4754
        %v4757 = vsel %vm315, %v4748, %v4756
        %v4758 = vsel %vm265, %v4754, %v4755
        %v4759 = vsel %vm315, %v4750, %v4758
        %4762 = vst [vmem:[#allocation2 + $0x30] sm:$0xff] %v4757
        %4763 = vst [vmem:[#allocation2 + $0x38] sm:$0xff] %v4759
        %v4764 = vld [vmem:[%s214 + $0x40] sm:$0xff]
        %v4765 = vld [vmem:[%s214 + $0x48] sm:$0xff]
        %v4766 = vld [vmem:[%s214 + $0x50] sm:$0xf]
        %4770 = vrot.lane.b32.xlu0 %v4764, 109
        %v4771 = vpop.permute.xlu0 %4770
        %4772 = vrot.lane.b32.xlu0 %v4765, 109
        %v4773 = vpop.permute.xlu0 %4772
        %4774 = vrot.lane.b32.xlu0 %v4766, 109
        %v4775 = vpop.permute.xlu0 %4774
        %v4776 = vrot.slane %v4771, 4
        %v4777 = vrot.slane %v4773, 4
        %v4778 = vrot.slane %v4775, 4
        %v4779 = vsel %vm265, %v4776, %v4777
        %v4780 = vsel %vm339, %v4771, %v4779
        %v4781 = vsel %vm265, %v4777, %v4778
        %v4782 = vsel %vm339, %v4773, %v4781
        %4785 = vst [vmem:[#allocation2 + $0x40] sm:$0xff] %v4780
        %4786 = vst [vmem:[#allocation2 + $0x48] sm:$0xff] %v4782
        %v4787 = vld [vmem:[%s214 + $0x40] sm:$0xff]
        %v4788 = vld [vmem:[%s214 + $0x48] sm:$0xff]
        %v4789 = vld [vmem:[%s214 + $0x50] sm:$0xf]
        %4793 = vrot.lane.b32.xlu0 %v4787, 108
        %v4794 = vpop.permute.xlu0 %4793
        %4795 = vrot.lane.b32.xlu0 %v4788, 108
        %v4796 = vpop.permute.xlu0 %4795
        %4797 = vrot.lane.b32.xlu0 %v4789, 108
        %v4798 = vpop.permute.xlu0 %4797
        %v4799 = vrot.slane %v4794, 4
        %v4800 = vrot.slane %v4796, 4
        %v4801 = vrot.slane %v4798, 4
        %v4802 = vsel %vm265, %v4799, %v4800
        %v4803 = vsel %vm363, %v4794, %v4802
        %v4804 = vsel %vm265, %v4800, %v4801
        %v4805 = vsel %vm363, %v4796, %v4804
        %4808 = vst [vmem:[#allocation2 + $0x50] sm:$0xff] %v4803
        %4809 = vst [vmem:[#allocation2 + $0x58] sm:$0xff] %v4805
        %v4810 = vld [vmem:[%s214 + $0x40] sm:$0xff]
        %v4811 = vld [vmem:[%s214 + $0x48] sm:$0xff]
        %v4812 = vld [vmem:[%s214 + $0x50] sm:$0xf]
        %4816 = vrot.lane.b32.xlu0 %v4810, 92
        %v4817 = vpop.permute.xlu0 %4816
        %4818 = vrot.lane.b32.xlu0 %v4811, 92
        %v4819 = vpop.permute.xlu0 %4818
        %4820 = vrot.lane.b32.xlu0 %v4812, 92
        %v4821 = vpop.permute.xlu0 %4820
        %v4822 = vrot.slane %v4817, 4
        %v4823 = vrot.slane %v4819, 4
        %v4824 = vrot.slane %v4821, 4
        %v4825 = vsel %vm265, %v4822, %v4823
        %v4826 = vsel %vm387, %v4817, %v4825
        %v4827 = vsel %vm265, %v4823, %v4824
        %v4828 = vsel %vm387, %v4819, %v4827
        %4831 = vst [vmem:[#allocation2 + $0x60] sm:$0xff] %v4826
        %4832 = vst [vmem:[#allocation2 + $0x68] sm:$0xff] %v4828
        %v4833 = vld [vmem:[%s214 + $0x40] sm:$0xff]
        %v4834 = vld [vmem:[%s214 + $0x48] sm:$0xff]
        %v4835 = vld [vmem:[%s214 + $0x50] sm:$0xf]
        %4839 = vrot.lane.b32.xlu0 %v4833, 91
        %v4840 = vpop.permute.xlu0 %4839
        %4841 = vrot.lane.b32.xlu0 %v4834, 91
        %v4842 = vpop.permute.xlu0 %4841
        %4843 = vrot.lane.b32.xlu0 %v4835, 91
        %v4844 = vpop.permute.xlu0 %4843
        %v4845 = vrot.slane %v4840, 4
        %v4846 = vrot.slane %v4842, 4
        %v4847 = vrot.slane %v4844, 4
        %v4848 = vsel %vm265, %v4845, %v4846
        %v4849 = vsel %vm411, %v4840, %v4848
        %v4850 = vsel %vm265, %v4846, %v4847
        %v4851 = vsel %vm411, %v4842, %v4850
        %4854 = vst [vmem:[#allocation2 + $0x70] sm:$0xff] %v4849
        %4855 = vst [vmem:[#allocation2 + $0x78] sm:$0xff] %v4851
        %v4856 = vld [vmem:[%s214 + $0x40] sm:$0xff]
        %v4857 = vld [vmem:[%s214 + $0x48] sm:$0xff]
        %v4858 = vld [vmem:[%s214 + $0x50] sm:$0xf]
        %4862 = vrot.lane.b32.xlu0 %v4856, 90
        %v4863 = vpop.permute.xlu0 %4862
        %4864 = vrot.lane.b32.xlu0 %v4857, 90
        %v4865 = vpop.permute.xlu0 %4864
        %4866 = vrot.lane.b32.xlu0 %v4858, 90
        %v4867 = vpop.permute.xlu0 %4866
        %v4868 = vrot.slane %v4863, 4
        %v4869 = vrot.slane %v4865, 4
        %v4870 = vrot.slane %v4867, 4
        %v4871 = vsel %vm265, %v4868, %v4869
        %v4872 = vsel %vm435, %v4863, %v4871
        %v4873 = vsel %vm265, %v4869, %v4870
        %v4874 = vsel %vm435, %v4865, %v4873
        %4877 = vst [vmem:[#allocation2 + $0x80] sm:$0xff] %v4872
        %4878 = vst [vmem:[#allocation2 + $0x88] sm:$0xff] %v4874
        %v4879 = vld [vmem:[%s214 + $0x48] sm:$0xff]
        %v4880 = vld [vmem:[%s214 + $0x50] sm:$0xff]
        %v4881 = vld [vmem:[%s214 + $0x58] sm:$0xf]
        %4885 = vrot.lane.b32.xlu0 %v4879, 60
        %v4886 = vpop.permute.xlu0 %4885
        %4887 = vrot.lane.b32.xlu0 %v4880, 60
        %v4888 = vpop.permute.xlu0 %4887
        %4889 = vrot.lane.b32.xlu0 %v4881, 60
        %v4890 = vpop.permute.xlu0 %4889
        %v4891 = vrot.slane %v4886, 4
        %v4892 = vrot.slane %v4888, 4
        %v4893 = vrot.slane %v4890, 4
        %v4894 = vsel %vm265, %v4891, %v4892
        %v4895 = vsel %vm459, %v4886, %v4894
        %v4896 = vsel %vm265, %v4892, %v4893
        %v4897 = vsel %vm459, %v4888, %v4896
        %4900 = vst [vmem:[#allocation2 + $0x90] sm:$0xff] %v4895
        %4901 = vst [vmem:[#allocation2 + $0x98] sm:$0xff] %v4897
        %v4902 = vld [vmem:[%s214 + $0x48] sm:$0xff]
        %v4903 = vld [vmem:[%s214 + $0x50] sm:$0xff]
        %v4904 = vld [vmem:[%s214 + $0x58] sm:$0xf]
        %4908 = vrot.lane.b32.xlu0 %v4902, 59
        %v4909 = vpop.permute.xlu0 %4908
        %4910 = vrot.lane.b32.xlu0 %v4903, 59
        %v4911 = vpop.permute.xlu0 %4910
        %4912 = vrot.lane.b32.xlu0 %v4904, 59
        %v4913 = vpop.permute.xlu0 %4912
        %v4914 = vrot.slane %v4909, 4
        %v4915 = vrot.slane %v4911, 4
        %v4916 = vrot.slane %v4913, 4
        %v4917 = vsel %vm265, %v4914, %v4915
        %v4918 = vsel %vm483, %v4909, %v4917
        %v4919 = vsel %vm265, %v4915, %v4916
        %v4920 = vsel %vm483, %v4911, %v4919
        %4923 = vst [vmem:[#allocation2 + $0xa0] sm:$0xff] %v4918
        %4924 = vst [vmem:[#allocation2 + $0xa8] sm:$0xff] %v4920
        %v4925 = vld [vmem:[%s214 + $0x48] sm:$0xff]
        %v4926 = vld [vmem:[%s214 + $0x50] sm:$0xff]
        %v4927 = vld [vmem:[%s214 + $0x58] sm:$0xf]
        %4931 = vrot.lane.b32.xlu0 %v4925, 58
        %v4932 = vpop.permute.xlu0 %4931
        %4933 = vrot.lane.b32.xlu0 %v4926, 58
        %v4934 = vpop.permute.xlu0 %4933
        %4935 = vrot.lane.b32.xlu0 %v4927, 58
        %v4936 = vpop.permute.xlu0 %4935
        %v4937 = vrot.slane %v4932, 4
        %v4938 = vrot.slane %v4934, 4
        %v4939 = vrot.slane %v4936, 4
        %v4940 = vsel %vm265, %v4937, %v4938
        %v4941 = vsel %vm507, %v4932, %v4940
        %v4942 = vsel %vm265, %v4938, %v4939
        %v4943 = vsel %vm507, %v4934, %v4942
        %4946 = vst [vmem:[#allocation2 + $0xb0] sm:$0xff] %v4941
        %4947 = vst [vmem:[#allocation2 + $0xb8] sm:$0xff] %v4943
        %v4948 = vld [vmem:[%s214 + $0x48] sm:$0xff]
        %v4949 = vld [vmem:[%s214 + $0x50] sm:$0xff]
        %v4950 = vld [vmem:[%s214 + $0x58] sm:$0xf]
        %4954 = vrot.lane.b32.xlu0 %v4948, 42
        %v4955 = vpop.permute.xlu0 %4954
        %4956 = vrot.lane.b32.xlu0 %v4949, 42
        %v4957 = vpop.permute.xlu0 %4956
        %4958 = vrot.lane.b32.xlu0 %v4950, 42
        %v4959 = vpop.permute.xlu0 %4958
        %v4960 = vrot.slane %v4955, 4
        %v4961 = vrot.slane %v4957, 4
        %v4962 = vrot.slane %v4959, 4
        %v4963 = vsel %vm265, %v4960, %v4961
        %v4964 = vsel %vm531, %v4955, %v4963
        %v4965 = vsel %vm265, %v4961, %v4962
        %v4966 = vsel %vm531, %v4957, %v4965
        %4969 = vst [vmem:[#allocation2 + $0xc0] sm:$0xff] %v4964
        %4970 = vst [vmem:[#allocation2 + $0xc8] sm:$0xff] %v4966
        %v4971 = vld [vmem:[%s214 + $0x48] sm:$0xff]
        %v4972 = vld [vmem:[%s214 + $0x50] sm:$0xff]
        %v4973 = vld [vmem:[%s214 + $0x58] sm:$0xf]
        %4977 = vrot.lane.b32.xlu0 %v4971, 41
        %v4978 = vpop.permute.xlu0 %4977
        %4979 = vrot.lane.b32.xlu0 %v4972, 41
        %v4980 = vpop.permute.xlu0 %4979
        %4981 = vrot.lane.b32.xlu0 %v4973, 41
        %v4982 = vpop.permute.xlu0 %4981
        %v4983 = vrot.slane %v4978, 4
        %v4984 = vrot.slane %v4980, 4
        %v4985 = vrot.slane %v4982, 4
        %v4986 = vsel %vm265, %v4983, %v4984
        %v4987 = vsel %vm555, %v4978, %v4986
        %v4988 = vsel %vm265, %v4984, %v4985
        %v4989 = vsel %vm555, %v4980, %v4988
        %4992 = vst [vmem:[#allocation2 + $0xd0] sm:$0xff] %v4987
        %4993 = vst [vmem:[#allocation2 + $0xd8] sm:$0xff] %v4989
        %v4994 = vld [vmem:[%s214 + $0x48] sm:$0xff]
        %v4995 = vld [vmem:[%s214 + $0x50] sm:$0xff]
        %v4996 = vld [vmem:[%s214 + $0x58] sm:$0xf]
        %5000 = vrot.lane.b32.xlu0 %v4994, 40
        %v5001 = vpop.permute.xlu0 %5000
        %5002 = vrot.lane.b32.xlu0 %v4995, 40
        %v5003 = vpop.permute.xlu0 %5002
        %5004 = vrot.lane.b32.xlu0 %v4996, 40
        %v5005 = vpop.permute.xlu0 %5004
        %v5006 = vrot.slane %v5001, 4
        %v5007 = vrot.slane %v5003, 4
        %v5008 = vrot.slane %v5005, 4
        %v5009 = vsel %vm265, %v5006, %v5007
        %v5010 = vsel %vm579, %v5001, %v5009
        %v5011 = vsel %vm265, %v5007, %v5008
        %v5012 = vsel %vm579, %v5003, %v5011
        %5015 = vst [vmem:[#allocation2 + $0xe0] sm:$0xff] %v5010
        %5016 = vst [vmem:[#allocation2 + $0xe8] sm:$0xff] %v5012
        %v5017 = vld [vmem:[%s214 + $0x48] sm:$0xff]
        %v5018 = vld [vmem:[%s214 + $0x50] sm:$0xff]
        %v5019 = vld [vmem:[%s214 + $0x58] sm:$0xf]
        %5023 = vrot.lane.b32.xlu0 %v5017, 24
        %v5024 = vpop.permute.xlu0 %5023
        %5025 = vrot.lane.b32.xlu0 %v5018, 24
        %v5026 = vpop.permute.xlu0 %5025
        %5027 = vrot.lane.b32.xlu0 %v5019, 24
        %v5028 = vpop.permute.xlu0 %5027
        %v5029 = vrot.slane %v5024, 4
        %v5030 = vrot.slane %v5026, 4
        %v5031 = vrot.slane %v5028, 4
        %v5032 = vsel %vm265, %v5029, %v5030
        %v5033 = vsel %vm603, %v5024, %v5032
        %v5034 = vsel %vm265, %v5030, %v5031
        %v5035 = vsel %vm603, %v5026, %v5034
        %5038 = vst [vmem:[#allocation2 + $0xf0] sm:$0xff] %v5033
        %5039 = vst [vmem:[#allocation2 + $0xf8] sm:$0xff] %v5035
        %v5040 = vld [vmem:[%s214 + $0x48] sm:$0xff]
        %v5041 = vld [vmem:[%s214 + $0x50] sm:$0xff]
        %v5042 = vld [vmem:[%s214 + $0x58] sm:$0xf]
        %5046 = vrot.lane.b32.xlu0 %v5040, 23
        %v5047 = vpop.permute.xlu0 %5046
        %5048 = vrot.lane.b32.xlu0 %v5041, 23
        %v5049 = vpop.permute.xlu0 %5048
        %5050 = vrot.lane.b32.xlu0 %v5042, 23
        %v5051 = vpop.permute.xlu0 %5050
        %v5052 = vrot.slane %v5047, 4
        %v5053 = vrot.slane %v5049, 4
        %v5054 = vrot.slane %v5051, 4
        %v5055 = vsel %vm265, %v5052, %v5053
        %v5056 = vsel %vm627, %v5047, %v5055
        %v5057 = vsel %vm265, %v5053, %v5054
        %v5058 = vsel %vm627, %v5049, %v5057
        %5061 = vst [vmem:[#allocation2 + $0x100] sm:$0xff] %v5056
        %5062 = vst [vmem:[#allocation2 + $0x108] sm:$0xff] %v5058
        %v5063 = vld [vmem:[%s214 + $0x48] sm:$0xff]
        %v5064 = vld [vmem:[%s214 + $0x50] sm:$0xff]
        %v5065 = vld [vmem:[%s214 + $0x58] sm:$0xf]
        %5069 = vrot.lane.b32.xlu0 %v5063, 22
        %v5070 = vpop.permute.xlu0 %5069
        %5071 = vrot.lane.b32.xlu0 %v5064, 22
        %v5072 = vpop.permute.xlu0 %5071
        %5073 = vrot.lane.b32.xlu0 %v5065, 22
        %v5074 = vpop.permute.xlu0 %5073
        %v5075 = vrot.slane %v5070, 4
        %v5076 = vrot.slane %v5072, 4
        %v5077 = vrot.slane %v5074, 4
        %v5078 = vsel %vm265, %v5075, %v5076
        %v5079 = vsel %vm651, %v5070, %v5078
        %v5080 = vsel %vm265, %v5076, %v5077
        %v5081 = vsel %vm651, %v5072, %v5080
        %5084 = vst [vmem:[#allocation2 + $0x110] sm:$0xff] %v5079
        %5085 = vst [vmem:[#allocation2 + $0x118] sm:$0xff] %v5081
        %v5086 = vld [vmem:[%s214 + $0x54] sm:$0xff]
        %v5087 = vld [vmem:[%s214 + $0x5c] sm:$0xff]
        %v5088 = vld [vmem:[%s214 + $0x64] sm:$0xf]
        %5092 = vrot.lane.b32.xlu0 %v5086, 120
        %v5093 = vpop.permute.xlu0 %5092
        %5094 = vrot.lane.b32.xlu0 %v5087, 120
        %v5095 = vpop.permute.xlu0 %5094
        %5096 = vrot.lane.b32.xlu0 %v5088, 120
        %v5097 = vpop.permute.xlu0 %5096
        %v5098 = vrot.slane %v5093, 4
        %v5099 = vrot.slane %v5095, 4
        %v5100 = vrot.slane %v5097, 4
        %v5101 = vsel %vm265, %v5098, %v5099
        %v5102 = vsel %vm675, %v5093, %v5101
        %v5103 = vsel %vm265, %v5099, %v5100
        %v5104 = vsel %vm675, %v5095, %v5103
        %5107 = vst [vmem:[#allocation2 + $0x120] sm:$0xff] %v5102
        %5108 = vst [vmem:[#allocation2 + $0x128] sm:$0xff] %v5104
        %v5109 = vld [vmem:[%s214 + $0x54] sm:$0xff]
        %v5110 = vld [vmem:[%s214 + $0x5c] sm:$0xff]
        %v5111 = vld [vmem:[%s214 + $0x64] sm:$0xf]
        %5115 = vrot.lane.b32.xlu0 %v5109, 119
        %v5116 = vpop.permute.xlu0 %5115
        %5117 = vrot.lane.b32.xlu0 %v5110, 119
        %v5118 = vpop.permute.xlu0 %5117
        %5119 = vrot.lane.b32.xlu0 %v5111, 119
        %v5120 = vpop.permute.xlu0 %5119
        %v5121 = vrot.slane %v5116, 4
        %v5122 = vrot.slane %v5118, 4
        %v5123 = vrot.slane %v5120, 4
        %v5124 = vsel %vm265, %v5121, %v5122
        %v5125 = vsel %vm699, %v5116, %v5124
        %v5126 = vsel %vm265, %v5122, %v5123
        %v5127 = vsel %vm699, %v5118, %v5126
        %5130 = vst [vmem:[#allocation2 + $0x130] sm:$0xff] %v5125
        %5131 = vst [vmem:[#allocation2 + $0x138] sm:$0xff] %v5127
        %v5132 = vld [vmem:[%s214 + $0x54] sm:$0xff]
        %v5133 = vld [vmem:[%s214 + $0x5c] sm:$0xff]
        %v5134 = vld [vmem:[%s214 + $0x64] sm:$0xf]
        %5138 = vrot.lane.b32.xlu0 %v5132, 118
        %v5139 = vpop.permute.xlu0 %5138
        %5140 = vrot.lane.b32.xlu0 %v5133, 118
        %v5141 = vpop.permute.xlu0 %5140
        %5142 = vrot.lane.b32.xlu0 %v5134, 118
        %v5143 = vpop.permute.xlu0 %5142
        %v5144 = vrot.slane %v5139, 4
        %v5145 = vrot.slane %v5141, 4
        %v5146 = vrot.slane %v5143, 4
        %v5147 = vsel %vm265, %v5144, %v5145
        %v5148 = vsel %vm723, %v5139, %v5147
        %v5149 = vsel %vm265, %v5145, %v5146
        %v5150 = vsel %vm723, %v5141, %v5149
        %5153 = vst [vmem:[#allocation2 + $0x140] sm:$0xff] %v5148
        %5154 = vst [vmem:[#allocation2 + $0x148] sm:$0xff] %v5150
        %v5155 = vld [vmem:[%s214 + $0x54] sm:$0xff]
        %v5156 = vld [vmem:[%s214 + $0x5c] sm:$0xff]
        %v5157 = vld [vmem:[%s214 + $0x64] sm:$0xf]
        %5161 = vrot.lane.b32.xlu0 %v5155, 102
        %v5162 = vpop.permute.xlu0 %5161
        %5163 = vrot.lane.b32.xlu0 %v5156, 102
        %v5164 = vpop.permute.xlu0 %5163
        %5165 = vrot.lane.b32.xlu0 %v5157, 102
        %v5166 = vpop.permute.xlu0 %5165
        %v5167 = vrot.slane %v5162, 4
        %v5168 = vrot.slane %v5164, 4
        %v5169 = vrot.slane %v5166, 4
        %v5170 = vsel %vm265, %v5167, %v5168
        %v5171 = vsel %vm747, %v5162, %v5170
        %v5172 = vsel %vm265, %v5168, %v5169
        %v5173 = vsel %vm747, %v5164, %v5172
        %5176 = vst [vmem:[#allocation2 + $0x150] sm:$0xff] %v5171
        %5177 = vst [vmem:[#allocation2 + $0x158] sm:$0xff] %v5173
        %v5178 = vld [vmem:[%s214 + $0x54] sm:$0xff]
        %v5179 = vld [vmem:[%s214 + $0x5c] sm:$0xff]
        %v5180 = vld [vmem:[%s214 + $0x64] sm:$0xf]
        %5184 = vrot.lane.b32.xlu0 %v5178, 101
        %v5185 = vpop.permute.xlu0 %5184
        %5186 = vrot.lane.b32.xlu0 %v5179, 101
        %v5187 = vpop.permute.xlu0 %5186
        %5188 = vrot.lane.b32.xlu0 %v5180, 101
        %v5189 = vpop.permute.xlu0 %5188
        %v5190 = vrot.slane %v5185, 4
        %v5191 = vrot.slane %v5187, 4
        %v5192 = vrot.slane %v5189, 4
        %v5193 = vsel %vm265, %v5190, %v5191
        %v5194 = vsel %vm771, %v5185, %v5193
        %v5195 = vsel %vm265, %v5191, %v5192
        %v5196 = vsel %vm771, %v5187, %v5195
        %5199 = vst [vmem:[#allocation2 + $0x160] sm:$0xff] %v5194
        %5200 = vst [vmem:[#allocation2 + $0x168] sm:$0xff] %v5196
        %v5201 = vld [vmem:[%s214 + $0x54] sm:$0xff]
        %v5202 = vld [vmem:[%s214 + $0x5c] sm:$0xff]
        %v5203 = vld [vmem:[%s214 + $0x64] sm:$0xf]
        %5207 = vrot.lane.b32.xlu0 %v5201, 100
        %v5208 = vpop.permute.xlu0 %5207
        %5209 = vrot.lane.b32.xlu0 %v5202, 100
        %v5210 = vpop.permute.xlu0 %5209
        %5211 = vrot.lane.b32.xlu0 %v5203, 100
        %v5212 = vpop.permute.xlu0 %5211
        %v5213 = vrot.slane %v5208, 4
        %v5214 = vrot.slane %v5210, 4
        %v5215 = vrot.slane %v5212, 4
        %v5216 = vsel %vm265, %v5213, %v5214
        %v5217 = vsel %vm795, %v5208, %v5216
        %v5218 = vsel %vm265, %v5214, %v5215
        %v5219 = vsel %vm795, %v5210, %v5218
        %5222 = vst [vmem:[#allocation2 + $0x170] sm:$0xff] %v5217
        %5223 = vst [vmem:[#allocation2 + $0x178] sm:$0xff] %v5219
        %v5224 = vld [vmem:[%s214 + $0x54] sm:$0xff]
        %v5225 = vld [vmem:[%s214 + $0x5c] sm:$0xff]
        %v5226 = vld [vmem:[%s214 + $0x64] sm:$0xf]
        %5230 = vrot.lane.b32.xlu0 %v5224, 84
        %v5231 = vpop.permute.xlu0 %5230
        %5232 = vrot.lane.b32.xlu0 %v5225, 84
        %v5233 = vpop.permute.xlu0 %5232
        %5234 = vrot.lane.b32.xlu0 %v5226, 84
        %v5235 = vpop.permute.xlu0 %5234
        %v5236 = vrot.slane %v5231, 4
        %v5237 = vrot.slane %v5233, 4
        %v5238 = vrot.slane %v5235, 4
        %v5239 = vsel %vm265, %v5236, %v5237
        %v5240 = vsel %vm819, %v5231, %v5239
        %v5241 = vsel %vm265, %v5237, %v5238
        %v5242 = vsel %vm819, %v5233, %v5241
        %5245 = vst [vmem:[#allocation2 + $0x180] sm:$0xff] %v5240
        %5246 = vst [vmem:[#allocation2 + $0x188] sm:$0xff] %v5242
        %v5247 = vld [vmem:[%s214 + $0x54] sm:$0xff]
        %v5248 = vld [vmem:[%s214 + $0x5c] sm:$0xff]
        %v5249 = vld [vmem:[%s214 + $0x64] sm:$0xf]
        %5253 = vrot.lane.b32.xlu0 %v5247, 83
        %v5254 = vpop.permute.xlu0 %5253
        %5255 = vrot.lane.b32.xlu0 %v5248, 83
        %v5256 = vpop.permute.xlu0 %5255
        %5257 = vrot.lane.b32.xlu0 %v5249, 83
        %v5258 = vpop.permute.xlu0 %5257
        %v5259 = vrot.slane %v5254, 4
        %v5260 = vrot.slane %v5256, 4
        %v5261 = vrot.slane %v5258, 4
        %v5262 = vsel %vm265, %v5259, %v5260
        %v5263 = vsel %vm843, %v5254, %v5262
        %v5264 = vsel %vm265, %v5260, %v5261
        %v5265 = vsel %vm843, %v5256, %v5264
        %5268 = vst [vmem:[#allocation2 + $0x190] sm:$0xff] %v5263
        %5269 = vst [vmem:[#allocation2 + $0x198] sm:$0xff] %v5265
        %v5270 = vld [vmem:[%s214 + $0x54] sm:$0xff]
        %v5271 = vld [vmem:[%s214 + $0x5c] sm:$0xff]
        %v5272 = vld [vmem:[%s214 + $0x64] sm:$0xf]
        %5276 = vrot.lane.b32.xlu0 %v5270, 82
        %v5277 = vpop.permute.xlu0 %5276
        %5278 = vrot.lane.b32.xlu0 %v5271, 82
        %v5279 = vpop.permute.xlu0 %5278
        %5280 = vrot.lane.b32.xlu0 %v5272, 82
        %v5281 = vpop.permute.xlu0 %5280
        %v5282 = vrot.slane %v5277, 4
        %v5283 = vrot.slane %v5279, 4
        %v5284 = vrot.slane %v5281, 4
        %v5285 = vsel %vm265, %v5282, %v5283
        %v5286 = vsel %vm867, %v5277, %v5285
        %v5287 = vsel %vm265, %v5283, %v5284
        %v5288 = vsel %vm867, %v5279, %v5287
        %5291 = vst [vmem:[#allocation2 + $0x1a0] sm:$0xff] %v5286
        %5292 = vst [vmem:[#allocation2 + $0x1a8] sm:$0xff] %v5288
        %v5293 = vld [vmem:[#allocation2] sm:$0xff]
        %v5294 = vld [vmem:[#allocation2 + $0x8] sm:$0xff]
        %v5295 = vld [vmem:[#allocation2 + $0x10] sm:$0xff]
        %v5296 = vld [vmem:[#allocation2 + $0x18] sm:$0xff]
        %v5297 = vld [vmem:[#allocation2 + $0x20] sm:$0xff]
        %v5298 = vld [vmem:[#allocation2 + $0x28] sm:$0xff]
        %v5299 = vld [vmem:[#allocation2 + $0x30] sm:$0xff]
        %v5300 = vld [vmem:[#allocation2 + $0x38] sm:$0xff]
        %v5301 = vld [vmem:[#allocation2 + $0x40] sm:$0xff]
        %v5302 = vld [vmem:[#allocation2 + $0x48] sm:$0xff]
        %v5303 = vld [vmem:[#allocation2 + $0x50] sm:$0xff]
        %v5304 = vld [vmem:[#allocation2 + $0x58] sm:$0xff]
        %v5305 = vld [vmem:[#allocation2 + $0x60] sm:$0xff]
        %v5306 = vld [vmem:[#allocation2 + $0x68] sm:$0xff]
        %v5307 = vld [vmem:[#allocation2 + $0x70] sm:$0xff]
        %v5308 = vld [vmem:[#allocation2 + $0x78] sm:$0xff]
        %v5309 = vld [vmem:[#allocation2 + $0x80] sm:$0xff]
        %v5310 = vld [vmem:[#allocation2 + $0x88] sm:$0xff]
        %v5311 = vld [vmem:[#allocation2 + $0x90] sm:$0xff]
        %v5312 = vld [vmem:[#allocation2 + $0x98] sm:$0xff]
        %v5313 = vld [vmem:[#allocation2 + $0xa0] sm:$0xff]
        %v5314 = vld [vmem:[#allocation2 + $0xa8] sm:$0xff]
        %v5315 = vld [vmem:[#allocation2 + $0xb0] sm:$0xff]
        %v5316 = vld [vmem:[#allocation2 + $0xb8] sm:$0xff]
        %v5317 = vld [vmem:[#allocation2 + $0xc0] sm:$0xff]
        %v5318 = vld [vmem:[#allocation2 + $0xc8] sm:$0xff]
        %v5319 = vld [vmem:[#allocation2 + $0xd0] sm:$0xff]
        %v5320 = vld [vmem:[#allocation2 + $0xd8] sm:$0xff]
        %v5321 = vld [vmem:[#allocation2 + $0xe0] sm:$0xff]
        %v5322 = vld [vmem:[#allocation2 + $0xe8] sm:$0xff]
        %v5323 = vld [vmem:[#allocation2 + $0xf0] sm:$0xff]
        %v5324 = vld [vmem:[#allocation2 + $0xf8] sm:$0xff]
        %v5325 = vld [vmem:[#allocation2 + $0x100] sm:$0xff]
        %v5326 = vld [vmem:[#allocation2 + $0x108] sm:$0xff]
        %v5327 = vld [vmem:[#allocation2 + $0x110] sm:$0xff]
        %v5328 = vld [vmem:[#allocation2 + $0x118] sm:$0xff]
        %v5329 = vld [vmem:[#allocation2 + $0x120] sm:$0xff]
        %v5330 = vld [vmem:[#allocation2 + $0x128] sm:$0xff]
        %v5331 = vld [vmem:[#allocation2 + $0x130] sm:$0xff]
        %v5332 = vld [vmem:[#allocation2 + $0x138] sm:$0xff]
        %v5333 = vld [vmem:[#allocation2 + $0x140] sm:$0xff]
        %v5334 = vld [vmem:[#allocation2 + $0x148] sm:$0xff]
        %v5335 = vld [vmem:[#allocation2 + $0x150] sm:$0xff]
        %v5336 = vld [vmem:[#allocation2 + $0x158] sm:$0xff]
        %v5337 = vld [vmem:[#allocation2 + $0x160] sm:$0xff]
        %v5338 = vld [vmem:[#allocation2 + $0x168] sm:$0xff]
        %v5339 = vld [vmem:[#allocation2 + $0x170] sm:$0xff]
        %v5340 = vld [vmem:[#allocation2 + $0x178] sm:$0xff]
        %v5341 = vld [vmem:[#allocation2 + $0x180] sm:$0xff]
        %v5342 = vld [vmem:[#allocation2 + $0x188] sm:$0xff]
        %v5343 = vld [vmem:[#allocation2 + $0x190] sm:$0xff]
        %v5344 = vld [vmem:[#allocation2 + $0x198] sm:$0xff]
        %v5345 = vld [vmem:[#allocation2 + $0x1a0] sm:$0xff]
        %v5346 = vld [vmem:[#allocation2 + $0x1a8] sm:$0xff]
        %v5401 = vunpack.c.l.b16 %v5293
        %v5402 = vunpack.c.h.b16 %v5293
        %v5403 = vunpack.c.l.b16 %v5294
        %v5404 = vunpack.c.h.b16 %v5294
        %v5405 = vunpack.c.l.b16 %v5295
        %v5406 = vunpack.c.h.b16 %v5295
        %v5407 = vunpack.c.l.b16 %v5296
        %v5408 = vunpack.c.h.b16 %v5296
        %v5409 = vunpack.c.l.b16 %v5297
        %v5410 = vunpack.c.h.b16 %v5297
        %v5411 = vunpack.c.l.b16 %v5298
        %v5412 = vunpack.c.h.b16 %v5298
        %v5413 = vunpack.c.l.b16 %v5299
        %v5414 = vunpack.c.h.b16 %v5299
        %v5415 = vunpack.c.l.b16 %v5300
        %v5416 = vunpack.c.h.b16 %v5300
        %v5417 = vunpack.c.l.b16 %v5301
        %v5418 = vunpack.c.h.b16 %v5301
        %v5419 = vunpack.c.l.b16 %v5302
        %v5420 = vunpack.c.h.b16 %v5302
        %v5421 = vunpack.c.l.b16 %v5303
        %v5422 = vunpack.c.h.b16 %v5303
        %v5423 = vunpack.c.l.b16 %v5304
        %v5424 = vunpack.c.h.b16 %v5304
        %v5425 = vunpack.c.l.b16 %v5305
        %v5426 = vunpack.c.h.b16 %v5305
        %v5427 = vunpack.c.l.b16 %v5306
        %v5428 = vunpack.c.h.b16 %v5306
        %v5429 = vunpack.c.l.b16 %v5307
        %v5430 = vunpack.c.h.b16 %v5307
        %v5431 = vunpack.c.l.b16 %v5308
        %v5432 = vunpack.c.h.b16 %v5308
        %v5433 = vunpack.c.l.b16 %v5309
        %v5434 = vunpack.c.h.b16 %v5309
        %v5435 = vunpack.c.l.b16 %v5310
        %v5436 = vunpack.c.h.b16 %v5310
        %v5437 = vunpack.c.l.b16 %v5311
        %v5438 = vunpack.c.h.b16 %v5311
        %v5439 = vunpack.c.l.b16 %v5312
        %v5440 = vunpack.c.h.b16 %v5312
        %v5441 = vunpack.c.l.b16 %v5313
        %v5442 = vunpack.c.h.b16 %v5313
        %v5443 = vunpack.c.l.b16 %v5314
        %v5444 = vunpack.c.h.b16 %v5314
        %v5445 = vunpack.c.l.b16 %v5315
        %v5446 = vunpack.c.h.b16 %v5315
        %v5447 = vunpack.c.l.b16 %v5316
        %v5448 = vunpack.c.h.b16 %v5316
        %v5449 = vunpack.c.l.b16 %v5317
        %v5450 = vunpack.c.h.b16 %v5317
        %v5451 = vunpack.c.l.b16 %v5318
        %v5452 = vunpack.c.h.b16 %v5318
        %v5453 = vunpack.c.l.b16 %v5319
        %v5454 = vunpack.c.h.b16 %v5319
        %v5455 = vunpack.c.l.b16 %v5320
        %v5456 = vunpack.c.h.b16 %v5320
        %v5457 = vunpack.c.l.b16 %v5321
        %v5458 = vunpack.c.h.b16 %v5321
        %v5459 = vunpack.c.l.b16 %v5322
        %v5460 = vunpack.c.h.b16 %v5322
        %v5461 = vunpack.c.l.b16 %v5323
        %v5462 = vunpack.c.h.b16 %v5323
        %v5463 = vunpack.c.l.b16 %v5324
        %v5464 = vunpack.c.h.b16 %v5324
        %v5465 = vunpack.c.l.b16 %v5325
        %v5466 = vunpack.c.h.b16 %v5325
        %v5467 = vunpack.c.l.b16 %v5326
        %v5468 = vunpack.c.h.b16 %v5326
        %v5469 = vunpack.c.l.b16 %v5327
        %v5470 = vunpack.c.h.b16 %v5327
        %v5471 = vunpack.c.l.b16 %v5328
        %v5472 = vunpack.c.h.b16 %v5328
        %v5473 = vunpack.c.l.b16 %v5329
        %v5474 = vunpack.c.h.b16 %v5329
        %v5475 = vunpack.c.l.b16 %v5330
        %v5476 = vunpack.c.h.b16 %v5330
        %v5477 = vunpack.c.l.b16 %v5331
        %v5478 = vunpack.c.h.b16 %v5331
        %v5479 = vunpack.c.l.b16 %v5332
        %v5480 = vunpack.c.h.b16 %v5332
        %v5481 = vunpack.c.l.b16 %v5333
        %v5482 = vunpack.c.h.b16 %v5333
        %v5483 = vunpack.c.l.b16 %v5334
        %v5484 = vunpack.c.h.b16 %v5334
        %v5485 = vunpack.c.l.b16 %v5335
        %v5486 = vunpack.c.h.b16 %v5335
        %v5487 = vunpack.c.l.b16 %v5336
        %v5488 = vunpack.c.h.b16 %v5336
        %v5489 = vunpack.c.l.b16 %v5337
        %v5490 = vunpack.c.h.b16 %v5337
        %v5491 = vunpack.c.l.b16 %v5338
        %v5492 = vunpack.c.h.b16 %v5338
        %v5493 = vunpack.c.l.b16 %v5339
        %v5494 = vunpack.c.h.b16 %v5339
        %v5495 = vunpack.c.l.b16 %v5340
        %v5496 = vunpack.c.h.b16 %v5340
        %v5497 = vunpack.c.l.b16 %v5341
        %v5498 = vunpack.c.h.b16 %v5341
        %v5499 = vunpack.c.l.b16 %v5342
        %v5500 = vunpack.c.h.b16 %v5342
        %v5501 = vunpack.c.l.b16 %v5343
        %v5502 = vunpack.c.h.b16 %v5343
        %v5503 = vunpack.c.l.b16 %v5344
        %v5504 = vunpack.c.h.b16 %v5344
        %v5505 = vunpack.c.l.b16 %v5345
        %v5506 = vunpack.c.h.b16 %v5345
        %v5507 = vunpack.c.l.b16 %v5346
        %v5508 = vunpack.c.h.b16 %v5346
        %v5509 = vpack.c.b16 %v5405, %v5401
        %v5510 = vpack.c.b16 %v5406, %v5402
        %v5511 = vpack.c.b16 %v5407, %v5403
        %v5512 = vpack.c.b16 %v5408, %v5404
        %v5513 = vpack.c.b16 %v5413, %v5409
        %v5514 = vpack.c.b16 %v5414, %v5410
        %v5515 = vpack.c.b16 %v5415, %v5411
        %v5516 = vpack.c.b16 %v5416, %v5412
        %v5517 = vpack.c.b16 %v5421, %v5417
        %v5518 = vpack.c.b16 %v5422, %v5418
        %v5519 = vpack.c.b16 %v5423, %v5419
        %v5520 = vpack.c.b16 %v5424, %v5420
        %v5521 = vpack.c.b16 %v5429, %v5425
        %v5522 = vpack.c.b16 %v5430, %v5426
        %v5523 = vpack.c.b16 %v5431, %v5427
        %v5524 = vpack.c.b16 %v5432, %v5428
        %v5525 = vpack.c.b16 %v5437, %v5433
        %v5526 = vpack.c.b16 %v5438, %v5434
        %v5527 = vpack.c.b16 %v5439, %v5435
        %v5528 = vpack.c.b16 %v5440, %v5436
        %v5529 = vpack.c.b16 %v5445, %v5441
        %v5530 = vpack.c.b16 %v5446, %v5442
        %v5531 = vpack.c.b16 %v5447, %v5443
        %v5532 = vpack.c.b16 %v5448, %v5444
        %v5533 = vpack.c.b16 %v5453, %v5449
        %v5534 = vpack.c.b16 %v5454, %v5450
        %v5535 = vpack.c.b16 %v5455, %v5451
        %v5536 = vpack.c.b16 %v5456, %v5452
        %v5537 = vpack.c.b16 %v5461, %v5457
        %v5538 = vpack.c.b16 %v5462, %v5458
        %v5539 = vpack.c.b16 %v5463, %v5459
        %v5540 = vpack.c.b16 %v5464, %v5460
        %v5541 = vpack.c.b16 %v5469, %v5465
        %v5542 = vpack.c.b16 %v5470, %v5466
        %v5543 = vpack.c.b16 %v5471, %v5467
        %v5544 = vpack.c.b16 %v5472, %v5468
        %v5545 = vpack.c.b16 %v5477, %v5473
        %v5546 = vpack.c.b16 %v5478, %v5474
        %v5547 = vpack.c.b16 %v5479, %v5475
        %v5548 = vpack.c.b16 %v5480, %v5476
        %v5549 = vpack.c.b16 %v5485, %v5481
        %v5550 = vpack.c.b16 %v5486, %v5482
        %v5551 = vpack.c.b16 %v5487, %v5483
        %v5552 = vpack.c.b16 %v5488, %v5484
        %v5553 = vpack.c.b16 %v5493, %v5489
        %v5554 = vpack.c.b16 %v5494, %v5490
        %v5555 = vpack.c.b16 %v5495, %v5491
        %v5556 = vpack.c.b16 %v5496, %v5492
        %v5557 = vpack.c.b16 %v5501, %v5497
        %v5558 = vpack.c.b16 %v5502, %v5498
        %v5559 = vpack.c.b16 %v5503, %v5499
        %v5560 = vpack.c.b16 %v5504, %v5500
        %v5561 = vpack.c.b16 %v5505, %v5505
        %v5562 = vpack.c.b16 %v5506, %v5506
        %v5563 = vpack.c.b16 %v5507, %v5507
        %v5564 = vpack.c.b16 %v5508, %v5508
        %v5618 = vsel %vm1224, %v5561, 0
        %v5621 = vsel %vm1224, %v5562, 0
        %v5624 = vsel %vm1224, %v5563, 0
        %v5627 = vsel %vm1224, %v5564, 0
        %5629 = vmatprep.subr.bf16.mxu0 %v5510
        %5630 = vmatpush1.bf16.msra.mxu0 %v5509
        %5631 = vmatprep.subr.bf16.mxu0 %v5514
        %5632 = vmatpush1.bf16.msra.mxu0 %v5513
        %5633 = vmatprep.subr.bf16.mxu0 %v5518
        %5634 = vmatpush1.bf16.msra.mxu0 %v5517
        %5635 = vmatprep.subr.bf16.mxu0 %v5522
        %5636 = vmatpush1.bf16.msra.mxu0 %v5521
        %5637 = vmatprep.subr.bf16.mxu0 %v5526
        %5638 = vmatpush1.bf16.msra.mxu0 %v5525
        %5639 = vmatprep.subr.bf16.mxu0 %v5530
        %5640 = vmatpush1.bf16.msra.mxu0 %v5529
        %5641 = vmatprep.subr.bf16.mxu0 %v5534
        %5642 = vmatpush1.bf16.msra.mxu0 %v5533
        %5643 = vmatprep.subr.bf16.mxu0 %v5538
        %5644 = vmatpush1.bf16.msra.mxu0 %v5537
        %5645 = vmatprep.subr.bf16.mxu0 %v5542
        %5646 = vmatpush1.bf16.msra.mxu0 %v5541
        %5647 = vmatprep.subr.bf16.mxu0 %v5546
        %5648 = vmatpush1.bf16.msra.mxu0 %v5545
        %5649 = vmatprep.subr.bf16.mxu0 %v5550
        %5650 = vmatpush1.bf16.msra.mxu0 %v5549
        %5651 = vmatprep.subr.bf16.mxu0 %v5554
        %5652 = vmatpush1.bf16.msra.mxu0 %v5553
        %5653 = vmatprep.subr.bf16.mxu0 %v5558
        %5654 = vmatpush1.bf16.msra.mxu0 %v5557
        %5655 = vmatprep.subr.bf16.mxu0 %v5621
        %5656 = vmatpush1.bf16.msra.mxu0 %v5618
        %5657 = vmatprep.subr.bf16.mxu0 0
        %5658 = vmatpush1.bf16.msra.mxu0 0
        %5659 = vmatprep.subr.bf16.mxu0 0
        %5660 = vmatpush1.bf16.msra.mxu0 0
        %5661 = vmatprep.mubr.bf16.mxu0 %v1219
        %5662 = vmatmul.mubr.bf16.gmra.mrb[0].mxu0 %v941
        %v5663 = vpop.f32.mrb[0].mxu0
        %v5664 = vadd.f32 0.0, %v5663
        %v5665 = vpop.f32.mrb[0].mxu0
        %v5666 = vadd.f32 0.0, %v5665
        %v5667 = vpop.f32.mrb[0].mxu0
        %v5668 = vadd.f32 0.0, %v5667
        %v5669 = vpop.f32.mrb[0].mxu0
        %v5670 = vadd.f32 0.0, %v5669
        %5671 = vmatprep.mubr.bf16.mxu0 %v1222
        %5672 = vmatmul.mubr.bf16.gmra.mrb[0].mxu0 %v943
        %v5673 = vpop.f32.mrb[0].mxu0
        %v5674 = vadd.f32 0.0, %v5673
        %v5675 = vpop.f32.mrb[0].mxu0
        %v5676 = vadd.f32 0.0, %v5675
        %v5677 = vpop.f32.mrb[0].mxu0
        %v5678 = vadd.f32 0.0, %v5677
        %v5679 = vpop.f32.mrb[0].mxu0
        %v5680 = vadd.f32 0.0, %v5679
        %5681 = vdwg.mxu0
        %5682 = vmatprep.subr.bf16.mxu0 %v5512
        %5683 = vmatpush1.bf16.msra.mxu0 %v5511
        %5684 = vmatprep.subr.bf16.mxu0 %v5516
        %5685 = vmatpush1.bf16.msra.mxu0 %v5515
        %5686 = vmatprep.subr.bf16.mxu0 %v5520
        %5687 = vmatpush1.bf16.msra.mxu0 %v5519
        %5688 = vmatprep.subr.bf16.mxu0 %v5524
        %5689 = vmatpush1.bf16.msra.mxu0 %v5523
        %5690 = vmatprep.subr.bf16.mxu0 %v5528
        %5691 = vmatpush1.bf16.msra.mxu0 %v5527
        %5692 = vmatprep.subr.bf16.mxu0 %v5532
        %5693 = vmatpush1.bf16.msra.mxu0 %v5531
        %5694 = vmatprep.subr.bf16.mxu0 %v5536
        %5695 = vmatpush1.bf16.msra.mxu0 %v5535
        %5696 = vmatprep.subr.bf16.mxu0 %v5540
        %5697 = vmatpush1.bf16.msra.mxu0 %v5539
        %5698 = vmatprep.subr.bf16.mxu0 %v5544
        %5699 = vmatpush1.bf16.msra.mxu0 %v5543
        %5700 = vmatprep.subr.bf16.mxu0 %v5548
        %5701 = vmatpush1.bf16.msra.mxu0 %v5547
        %5702 = vmatprep.subr.bf16.mxu0 %v5552
        %5703 = vmatpush1.bf16.msra.mxu0 %v5551
        %5704 = vmatprep.subr.bf16.mxu0 %v5556
        %5705 = vmatpush1.bf16.msra.mxu0 %v5555
        %5706 = vmatprep.subr.bf16.mxu0 %v5560
        %5707 = vmatpush1.bf16.msra.mxu0 %v5559
        %5708 = vmatprep.subr.bf16.mxu0 %v5627
        %5709 = vmatpush1.bf16.msra.mxu0 %v5624
        %5710 = vmatprep.subr.bf16.mxu0 0
        %5711 = vmatpush1.bf16.msra.mxu0 0
        %5712 = vmatprep.subr.bf16.mxu0 0
        %5713 = vmatpush1.bf16.msra.mxu0 0
        %5714 = vmatprep.mubr.bf16.mxu0 %v1219
        %5715 = vmatmul.mubr.bf16.gmra.mrb[0].mxu0 %v941
        %v5716 = vpop.f32.mrb[0].mxu0
        %v5717 = vadd.f32 0.0, %v5716
        %v5718 = vpop.f32.mrb[0].mxu0
        %v5719 = vadd.f32 0.0, %v5718
        %v5720 = vpop.f32.mrb[0].mxu0
        %v5721 = vadd.f32 0.0, %v5720
        %v5722 = vpop.f32.mrb[0].mxu0
        %v5723 = vadd.f32 0.0, %v5722
        %5724 = vmatprep.mubr.bf16.mxu0 %v1222
        %5725 = vmatmul.mubr.bf16.gmra.mrb[0].mxu0 %v943
        %v5726 = vpop.f32.mrb[0].mxu0
        %v5727 = vadd.f32 0.0, %v5726
        %v5728 = vpop.f32.mrb[0].mxu0
        %v5729 = vadd.f32 0.0, %v5728
        %v5730 = vpop.f32.mrb[0].mxu0
        %v5731 = vadd.f32 0.0, %v5730
        %v5732 = vpop.f32.mrb[0].mxu0
        %v5733 = vadd.f32 0.0, %v5732
        %5734 = vdwg.mxu0
        %v5735 = vld [vmem:[%s4 + $0x10] sm:$0xf]
        %v5737 = vlaneseq
        %v5738 = vshrl.u32 %v5737, 7
        %v5739 = vsub.s32 0, %v5738
        %v5740 = vrot.slane %v5735, %v5739
        %v5741 = vlaneseq
        %v5742 = vshrl.u32 %v5741, 7
        %v5743 = vsub.s32 1, %v5742
        %v5744 = vrot.slane %v5735, %v5743
        %v5745 = vlaneseq
        %v5746 = vshrl.u32 %v5745, 7
        %v5747 = vsub.s32 2, %v5746
        %v5748 = vrot.slane %v5735, %v5747
        %v5749 = vlaneseq
        %v5750 = vshrl.u32 %v5749, 7
        %v5751 = vsub.s32 3, %v5750
        %v5752 = vrot.slane %v5735, %v5751
        %v5757 = vmul.f32 %v5664, %v5740
        %v5758 = vmul.f32 %v5666, %v5744
        %v5759 = vmul.f32 %v5717, %v5748
        %v5760 = vmul.f32 %v5719, %v5752
        %v5761 = vmul.f32 %v5668, %v5740
        %v5762 = vmul.f32 %v5670, %v5744
        %v5763 = vmul.f32 %v5721, %v5748
        %v5764 = vmul.f32 %v5723, %v5752
        %v5765 = vmul.f32 %v5674, %v5740
        %v5766 = vmul.f32 %v5676, %v5744
        %v5767 = vmul.f32 %v5727, %v5748
        %v5768 = vmul.f32 %v5729, %v5752
        %v5769 = vmul.f32 %v5678, %v5740
        %v5770 = vmul.f32 %v5680, %v5744
        %v5771 = vmul.f32 %v5731, %v5748
        %v5772 = vmul.f32 %v5733, %v5752
        %5773 = vst [vmem:[%s240 + $0x80] sm:$0xff] %v5757
        %5774 = vst [vmem:[%s240 + $0x88] sm:$0xff] %v5758
        %5775 = vst [vmem:[%s240 + $0x90] sm:$0xff] %v5759
        %5776 = vst [vmem:[%s240 + $0x98] sm:$0xff] %v5760
        %5777 = vst [vmem:[%s240 + $0x150] sm:$0xff] %v5761
        %5778 = vst [vmem:[%s240 + $0x158] sm:$0xff] %v5762
        %5779 = vst [vmem:[%s240 + $0x160] sm:$0xff] %v5763
        %5780 = vst [vmem:[%s240 + $0x168] sm:$0xff] %v5764
        %5781 = vst [vmem:[%s240 + $0x220] sm:$0xff] %v5765
        %5782 = vst [vmem:[%s240 + $0x228] sm:$0xff] %v5766
        %5783 = vst [vmem:[%s240 + $0x230] sm:$0xff] %v5767
        %5784 = vst [vmem:[%s240 + $0x238] sm:$0xff] %v5768
        %5785 = vst [vmem:[%s240 + $0x2f0] sm:$0xff] %v5769
        %5786 = vst [vmem:[%s240 + $0x2f8] sm:$0xff] %v5770
        %5787 = vst [vmem:[%s240 + $0x300] sm:$0xff] %v5771
        %5788 = vst [vmem:[%s240 + $0x308] sm:$0xff] %v5772
        %v5789 = vld [vmem:[%s214 + $0x50] sm:$0xff]
        %v5790 = vld [vmem:[%s214 + $0x58] sm:$0xff]
        %5791 = vst [vmem:[#allocation2] sm:$0xff] %v5789
        %5792 = vst [vmem:[#allocation2 + $0x8] sm:$0xff] %v5790
        %v5793 = vld [vmem:[%s214 + $0x50] sm:$0xff]
        %v5794 = vld [vmem:[%s214 + $0x58] sm:$0xff]
        %v5795 = vld [vmem:[%s214 + $0x60] sm:$0xf]
        %5799 = vrot.lane.b32.xlu0 %v5793, 127
        %v5800 = vpop.permute.xlu0 %5799
        %5801 = vrot.lane.b32.xlu0 %v5794, 127
        %v5802 = vpop.permute.xlu0 %5801
        %5803 = vrot.lane.b32.xlu0 %v5795, 127
        %v5804 = vpop.permute.xlu0 %5803
        %v5805 = vrot.slane %v5800, 4
        %v5806 = vrot.slane %v5802, 4
        %v5807 = vrot.slane %v5804, 4
        %v5808 = vsel %vm265, %v5805, %v5806
        %v5809 = vsel %vm267, %v5800, %v5808
        %v5810 = vsel %vm265, %v5806, %v5807
        %v5811 = vsel %vm267, %v5802, %v5810
        %5814 = vst [vmem:[#allocation2 + $0x10] sm:$0xff] %v5809
        %5815 = vst [vmem:[#allocation2 + $0x18] sm:$0xff] %v5811
        %v5816 = vld [vmem:[%s214 + $0x50] sm:$0xff]
        %v5817 = vld [vmem:[%s214 + $0x58] sm:$0xff]
        %v5818 = vld [vmem:[%s214 + $0x60] sm:$0xf]
        %5822 = vrot.lane.b32.xlu0 %v5816, 126
        %v5823 = vpop.permute.xlu0 %5822
        %5824 = vrot.lane.b32.xlu0 %v5817, 126
        %v5825 = vpop.permute.xlu0 %5824
        %5826 = vrot.lane.b32.xlu0 %v5818, 126
        %v5827 = vpop.permute.xlu0 %5826
        %v5828 = vrot.slane %v5823, 4
        %v5829 = vrot.slane %v5825, 4
        %v5830 = vrot.slane %v5827, 4
        %v5831 = vsel %vm265, %v5828, %v5829
        %v5832 = vsel %vm291, %v5823, %v5831
        %v5833 = vsel %vm265, %v5829, %v5830
        %v5834 = vsel %vm291, %v5825, %v5833
        %5837 = vst [vmem:[#allocation2 + $0x20] sm:$0xff] %v5832
        %5838 = vst [vmem:[#allocation2 + $0x28] sm:$0xff] %v5834
        %v5839 = vld [vmem:[%s214 + $0x50] sm:$0xff]
        %v5840 = vld [vmem:[%s214 + $0x58] sm:$0xff]
        %v5841 = vld [vmem:[%s214 + $0x60] sm:$0xf]
        %5845 = vrot.lane.b32.xlu0 %v5839, 110
        %v5846 = vpop.permute.xlu0 %5845
        %5847 = vrot.lane.b32.xlu0 %v5840, 110
        %v5848 = vpop.permute.xlu0 %5847
        %5849 = vrot.lane.b32.xlu0 %v5841, 110
        %v5850 = vpop.permute.xlu0 %5849
        %v5851 = vrot.slane %v5846, 4
        %v5852 = vrot.slane %v5848, 4
        %v5853 = vrot.slane %v5850, 4
        %v5854 = vsel %vm265, %v5851, %v5852
        %v5855 = vsel %vm315, %v5846, %v5854
        %v5856 = vsel %vm265, %v5852, %v5853
        %v5857 = vsel %vm315, %v5848, %v5856
        %5860 = vst [vmem:[#allocation2 + $0x30] sm:$0xff] %v5855
        %5861 = vst [vmem:[#allocation2 + $0x38] sm:$0xff] %v5857
        %v5862 = vld [vmem:[%s214 + $0x50] sm:$0xff]
        %v5863 = vld [vmem:[%s214 + $0x58] sm:$0xff]
        %v5864 = vld [vmem:[%s214 + $0x60] sm:$0xf]
        %5868 = vrot.lane.b32.xlu0 %v5862, 109
        %v5869 = vpop.permute.xlu0 %5868
        %5870 = vrot.lane.b32.xlu0 %v5863, 109
        %v5871 = vpop.permute.xlu0 %5870
        %5872 = vrot.lane.b32.xlu0 %v5864, 109
        %v5873 = vpop.permute.xlu0 %5872
        %v5874 = vrot.slane %v5869, 4
        %v5875 = vrot.slane %v5871, 4
        %v5876 = vrot.slane %v5873, 4
        %v5877 = vsel %vm265, %v5874, %v5875
        %v5878 = vsel %vm339, %v5869, %v5877
        %v5879 = vsel %vm265, %v5875, %v5876
        %v5880 = vsel %vm339, %v5871, %v5879
        %5883 = vst [vmem:[#allocation2 + $0x40] sm:$0xff] %v5878
        %5884 = vst [vmem:[#allocation2 + $0x48] sm:$0xff] %v5880
        %v5885 = vld [vmem:[%s214 + $0x50] sm:$0xff]
        %v5886 = vld [vmem:[%s214 + $0x58] sm:$0xff]
        %v5887 = vld [vmem:[%s214 + $0x60] sm:$0xf]
        %5891 = vrot.lane.b32.xlu0 %v5885, 108
        %v5892 = vpop.permute.xlu0 %5891
        %5893 = vrot.lane.b32.xlu0 %v5886, 108
        %v5894 = vpop.permute.xlu0 %5893
        %5895 = vrot.lane.b32.xlu0 %v5887, 108
        %v5896 = vpop.permute.xlu0 %5895
        %v5897 = vrot.slane %v5892, 4
        %v5898 = vrot.slane %v5894, 4
        %v5899 = vrot.slane %v5896, 4
        %v5900 = vsel %vm265, %v5897, %v5898
        %v5901 = vsel %vm363, %v5892, %v5900
        %v5902 = vsel %vm265, %v5898, %v5899
        %v5903 = vsel %vm363, %v5894, %v5902
        %5906 = vst [vmem:[#allocation2 + $0x50] sm:$0xff] %v5901
        %5907 = vst [vmem:[#allocation2 + $0x58] sm:$0xff] %v5903
        %v5908 = vld [vmem:[%s214 + $0x50] sm:$0xff]
        %v5909 = vld [vmem:[%s214 + $0x58] sm:$0xff]
        %v5910 = vld [vmem:[%s214 + $0x60] sm:$0xf]
        %5914 = vrot.lane.b32.xlu0 %v5908, 92
        %v5915 = vpop.permute.xlu0 %5914
        %5916 = vrot.lane.b32.xlu0 %v5909, 92
        %v5917 = vpop.permute.xlu0 %5916
        %5918 = vrot.lane.b32.xlu0 %v5910, 92
        %v5919 = vpop.permute.xlu0 %5918
        %v5920 = vrot.slane %v5915, 4
        %v5921 = vrot.slane %v5917, 4
        %v5922 = vrot.slane %v5919, 4
        %v5923 = vsel %vm265, %v5920, %v5921
        %v5924 = vsel %vm387, %v5915, %v5923
        %v5925 = vsel %vm265, %v5921, %v5922
        %v5926 = vsel %vm387, %v5917, %v5925
        %5929 = vst [vmem:[#allocation2 + $0x60] sm:$0xff] %v5924
        %5930 = vst [vmem:[#allocation2 + $0x68] sm:$0xff] %v5926
        %v5931 = vld [vmem:[%s214 + $0x50] sm:$0xff]
        %v5932 = vld [vmem:[%s214 + $0x58] sm:$0xff]
        %v5933 = vld [vmem:[%s214 + $0x60] sm:$0xf]
        %5937 = vrot.lane.b32.xlu0 %v5931, 91
        %v5938 = vpop.permute.xlu0 %5937
        %5939 = vrot.lane.b32.xlu0 %v5932, 91
        %v5940 = vpop.permute.xlu0 %5939
        %5941 = vrot.lane.b32.xlu0 %v5933, 91
        %v5942 = vpop.permute.xlu0 %5941
        %v5943 = vrot.slane %v5938, 4
        %v5944 = vrot.slane %v5940, 4
        %v5945 = vrot.slane %v5942, 4
        %v5946 = vsel %vm265, %v5943, %v5944
        %v5947 = vsel %vm411, %v5938, %v5946
        %v5948 = vsel %vm265, %v5944, %v5945
        %v5949 = vsel %vm411, %v5940, %v5948
        %5952 = vst [vmem:[#allocation2 + $0x70] sm:$0xff] %v5947
        %5953 = vst [vmem:[#allocation2 + $0x78] sm:$0xff] %v5949
        %v5954 = vld [vmem:[%s214 + $0x50] sm:$0xff]
        %v5955 = vld [vmem:[%s214 + $0x58] sm:$0xff]
        %v5956 = vld [vmem:[%s214 + $0x60] sm:$0xf]
        %5960 = vrot.lane.b32.xlu0 %v5954, 90
        %v5961 = vpop.permute.xlu0 %5960
        %5962 = vrot.lane.b32.xlu0 %v5955, 90
        %v5963 = vpop.permute.xlu0 %5962
        %5964 = vrot.lane.b32.xlu0 %v5956, 90
        %v5965 = vpop.permute.xlu0 %5964
        %v5966 = vrot.slane %v5961, 4
        %v5967 = vrot.slane %v5963, 4
        %v5968 = vrot.slane %v5965, 4
        %v5969 = vsel %vm265, %v5966, %v5967
        %v5970 = vsel %vm435, %v5961, %v5969
        %v5971 = vsel %vm265, %v5967, %v5968
        %v5972 = vsel %vm435, %v5963, %v5971
        %5975 = vst [vmem:[#allocation2 + $0x80] sm:$0xff] %v5970
        %5976 = vst [vmem:[#allocation2 + $0x88] sm:$0xff] %v5972
        %v5977 = vld [vmem:[%s214 + $0x58] sm:$0xff]
        %v5978 = vld [vmem:[%s214 + $0x60] sm:$0xff]
        %v5979 = vld [vmem:[%s214 + $0x68] sm:$0xf]
        %5983 = vrot.lane.b32.xlu0 %v5977, 60
        %v5984 = vpop.permute.xlu0 %5983
        %5985 = vrot.lane.b32.xlu0 %v5978, 60
        %v5986 = vpop.permute.xlu0 %5985
        %5987 = vrot.lane.b32.xlu0 %v5979, 60
        %v5988 = vpop.permute.xlu0 %5987
        %v5989 = vrot.slane %v5984, 4
        %v5990 = vrot.slane %v5986, 4
        %v5991 = vrot.slane %v5988, 4
        %v5992 = vsel %vm265, %v5989, %v5990
        %v5993 = vsel %vm459, %v5984, %v5992
        %v5994 = vsel %vm265, %v5990, %v5991
        %v5995 = vsel %vm459, %v5986, %v5994
        %5998 = vst [vmem:[#allocation2 + $0x90] sm:$0xff] %v5993
        %5999 = vst [vmem:[#allocation2 + $0x98] sm:$0xff] %v5995
        %v6000 = vld [vmem:[%s214 + $0x58] sm:$0xff]
        %v6001 = vld [vmem:[%s214 + $0x60] sm:$0xff]
        %v6002 = vld [vmem:[%s214 + $0x68] sm:$0xf]
        %6006 = vrot.lane.b32.xlu0 %v6000, 59
        %v6007 = vpop.permute.xlu0 %6006
        %6008 = vrot.lane.b32.xlu0 %v6001, 59
        %v6009 = vpop.permute.xlu0 %6008
        %6010 = vrot.lane.b32.xlu0 %v6002, 59
        %v6011 = vpop.permute.xlu0 %6010
        %v6012 = vrot.slane %v6007, 4
        %v6013 = vrot.slane %v6009, 4
        %v6014 = vrot.slane %v6011, 4
        %v6015 = vsel %vm265, %v6012, %v6013
        %v6016 = vsel %vm483, %v6007, %v6015
        %v6017 = vsel %vm265, %v6013, %v6014
        %v6018 = vsel %vm483, %v6009, %v6017
        %6021 = vst [vmem:[#allocation2 + $0xa0] sm:$0xff] %v6016
        %6022 = vst [vmem:[#allocation2 + $0xa8] sm:$0xff] %v6018
        %v6023 = vld [vmem:[%s214 + $0x58] sm:$0xff]
        %v6024 = vld [vmem:[%s214 + $0x60] sm:$0xff]
        %v6025 = vld [vmem:[%s214 + $0x68] sm:$0xf]
        %6029 = vrot.lane.b32.xlu0 %v6023, 58
        %v6030 = vpop.permute.xlu0 %6029
        %6031 = vrot.lane.b32.xlu0 %v6024, 58
        %v6032 = vpop.permute.xlu0 %6031
        %6033 = vrot.lane.b32.xlu0 %v6025, 58
        %v6034 = vpop.permute.xlu0 %6033
        %v6035 = vrot.slane %v6030, 4
        %v6036 = vrot.slane %v6032, 4
        %v6037 = vrot.slane %v6034, 4
        %v6038 = vsel %vm265, %v6035, %v6036
        %v6039 = vsel %vm507, %v6030, %v6038
        %v6040 = vsel %vm265, %v6036, %v6037
        %v6041 = vsel %vm507, %v6032, %v6040
        %6044 = vst [vmem:[#allocation2 + $0xb0] sm:$0xff] %v6039
        %6045 = vst [vmem:[#allocation2 + $0xb8] sm:$0xff] %v6041
        %v6046 = vld [vmem:[%s214 + $0x58] sm:$0xff]
        %v6047 = vld [vmem:[%s214 + $0x60] sm:$0xff]
        %v6048 = vld [vmem:[%s214 + $0x68] sm:$0xf]
        %6052 = vrot.lane.b32.xlu0 %v6046, 42
        %v6053 = vpop.permute.xlu0 %6052
        %6054 = vrot.lane.b32.xlu0 %v6047, 42
        %v6055 = vpop.permute.xlu0 %6054
        %6056 = vrot.lane.b32.xlu0 %v6048, 42
        %v6057 = vpop.permute.xlu0 %6056
        %v6058 = vrot.slane %v6053, 4
        %v6059 = vrot.slane %v6055, 4
        %v6060 = vrot.slane %v6057, 4
        %v6061 = vsel %vm265, %v6058, %v6059
        %v6062 = vsel %vm531, %v6053, %v6061
        %v6063 = vsel %vm265, %v6059, %v6060
        %v6064 = vsel %vm531, %v6055, %v6063
        %6067 = vst [vmem:[#allocation2 + $0xc0] sm:$0xff] %v6062
        %6068 = vst [vmem:[#allocation2 + $0xc8] sm:$0xff] %v6064
        %v6069 = vld [vmem:[%s214 + $0x58] sm:$0xff]
        %v6070 = vld [vmem:[%s214 + $0x60] sm:$0xff]
        %v6071 = vld [vmem:[%s214 + $0x68] sm:$0xf]
        %6075 = vrot.lane.b32.xlu0 %v6069, 41
        %v6076 = vpop.permute.xlu0 %6075
        %6077 = vrot.lane.b32.xlu0 %v6070, 41
        %v6078 = vpop.permute.xlu0 %6077
        %6079 = vrot.lane.b32.xlu0 %v6071, 41
        %v6080 = vpop.permute.xlu0 %6079
        %v6081 = vrot.slane %v6076, 4
        %v6082 = vrot.slane %v6078, 4
        %v6083 = vrot.slane %v6080, 4
        %v6084 = vsel %vm265, %v6081, %v6082
        %v6085 = vsel %vm555, %v6076, %v6084
        %v6086 = vsel %vm265, %v6082, %v6083
        %v6087 = vsel %vm555, %v6078, %v6086
        %6090 = vst [vmem:[#allocation2 + $0xd0] sm:$0xff] %v6085
        %6091 = vst [vmem:[#allocation2 + $0xd8] sm:$0xff] %v6087
        %v6092 = vld [vmem:[%s214 + $0x58] sm:$0xff]
        %v6093 = vld [vmem:[%s214 + $0x60] sm:$0xff]
        %v6094 = vld [vmem:[%s214 + $0x68] sm:$0xf]
        %6098 = vrot.lane.b32.xlu0 %v6092, 40
        %v6099 = vpop.permute.xlu0 %6098
        %6100 = vrot.lane.b32.xlu0 %v6093, 40
        %v6101 = vpop.permute.xlu0 %6100
        %6102 = vrot.lane.b32.xlu0 %v6094, 40
        %v6103 = vpop.permute.xlu0 %6102
        %v6104 = vrot.slane %v6099, 4
        %v6105 = vrot.slane %v6101, 4
        %v6106 = vrot.slane %v6103, 4
        %v6107 = vsel %vm265, %v6104, %v6105
        %v6108 = vsel %vm579, %v6099, %v6107
        %v6109 = vsel %vm265, %v6105, %v6106
        %v6110 = vsel %vm579, %v6101, %v6109
        %6113 = vst [vmem:[#allocation2 + $0xe0] sm:$0xff] %v6108
        %6114 = vst [vmem:[#allocation2 + $0xe8] sm:$0xff] %v6110
        %v6115 = vld [vmem:[%s214 + $0x58] sm:$0xff]
        %v6116 = vld [vmem:[%s214 + $0x60] sm:$0xff]
        %v6117 = vld [vmem:[%s214 + $0x68] sm:$0xf]
        %6121 = vrot.lane.b32.xlu0 %v6115, 24
        %v6122 = vpop.permute.xlu0 %6121
        %6123 = vrot.lane.b32.xlu0 %v6116, 24
        %v6124 = vpop.permute.xlu0 %6123
        %6125 = vrot.lane.b32.xlu0 %v6117, 24
        %v6126 = vpop.permute.xlu0 %6125
        %v6127 = vrot.slane %v6122, 4
        %v6128 = vrot.slane %v6124, 4
        %v6129 = vrot.slane %v6126, 4
        %v6130 = vsel %vm265, %v6127, %v6128
        %v6131 = vsel %vm603, %v6122, %v6130
        %v6132 = vsel %vm265, %v6128, %v6129
        %v6133 = vsel %vm603, %v6124, %v6132
        %6136 = vst [vmem:[#allocation2 + $0xf0] sm:$0xff] %v6131
        %6137 = vst [vmem:[#allocation2 + $0xf8] sm:$0xff] %v6133
        %v6138 = vld [vmem:[%s214 + $0x58] sm:$0xff]
        %v6139 = vld [vmem:[%s214 + $0x60] sm:$0xff]
        %v6140 = vld [vmem:[%s214 + $0x68] sm:$0xf]
        %6144 = vrot.lane.b32.xlu0 %v6138, 23
        %v6145 = vpop.permute.xlu0 %6144
        %6146 = vrot.lane.b32.xlu0 %v6139, 23
        %v6147 = vpop.permute.xlu0 %6146
        %6148 = vrot.lane.b32.xlu0 %v6140, 23
        %v6149 = vpop.permute.xlu0 %6148
        %v6150 = vrot.slane %v6145, 4
        %v6151 = vrot.slane %v6147, 4
        %v6152 = vrot.slane %v6149, 4
        %v6153 = vsel %vm265, %v6150, %v6151
        %v6154 = vsel %vm627, %v6145, %v6153
        %v6155 = vsel %vm265, %v6151, %v6152
        %v6156 = vsel %vm627, %v6147, %v6155
        %6159 = vst [vmem:[#allocation2 + $0x100] sm:$0xff] %v6154
        %6160 = vst [vmem:[#allocation2 + $0x108] sm:$0xff] %v6156
        %v6161 = vld [vmem:[%s214 + $0x58] sm:$0xff]
        %v6162 = vld [vmem:[%s214 + $0x60] sm:$0xff]
        %v6163 = vld [vmem:[%s214 + $0x68] sm:$0xf]
        %6167 = vrot.lane.b32.xlu0 %v6161, 22
        %v6168 = vpop.permute.xlu0 %6167
        %6169 = vrot.lane.b32.xlu0 %v6162, 22
        %v6170 = vpop.permute.xlu0 %6169
        %6171 = vrot.lane.b32.xlu0 %v6163, 22
        %v6172 = vpop.permute.xlu0 %6171
        %v6173 = vrot.slane %v6168, 4
        %v6174 = vrot.slane %v6170, 4
        %v6175 = vrot.slane %v6172, 4
        %v6176 = vsel %vm265, %v6173, %v6174
        %v6177 = vsel %vm651, %v6168, %v6176
        %v6178 = vsel %vm265, %v6174, %v6175
        %v6179 = vsel %vm651, %v6170, %v6178
        %6182 = vst [vmem:[#allocation2 + $0x110] sm:$0xff] %v6177
        %6183 = vst [vmem:[#allocation2 + $0x118] sm:$0xff] %v6179
        %v6184 = vld [vmem:[%s214 + $0x64] sm:$0xff]
        %v6185 = vld [vmem:[%s214 + $0x6c] sm:$0xff]
        %v6186 = vld [vmem:[%s214 + $0x74] sm:$0xf]
        %6190 = vrot.lane.b32.xlu0 %v6184, 120
        %v6191 = vpop.permute.xlu0 %6190
        %6192 = vrot.lane.b32.xlu0 %v6185, 120
        %v6193 = vpop.permute.xlu0 %6192
        %6194 = vrot.lane.b32.xlu0 %v6186, 120
        %v6195 = vpop.permute.xlu0 %6194
        %v6196 = vrot.slane %v6191, 4
        %v6197 = vrot.slane %v6193, 4
        %v6198 = vrot.slane %v6195, 4
        %v6199 = vsel %vm265, %v6196, %v6197
        %v6200 = vsel %vm675, %v6191, %v6199
        %v6201 = vsel %vm265, %v6197, %v6198
        %v6202 = vsel %vm675, %v6193, %v6201
        %6205 = vst [vmem:[#allocation2 + $0x120] sm:$0xff] %v6200
        %6206 = vst [vmem:[#allocation2 + $0x128] sm:$0xff] %v6202
        %v6207 = vld [vmem:[%s214 + $0x64] sm:$0xff]
        %v6208 = vld [vmem:[%s214 + $0x6c] sm:$0xff]
        %v6209 = vld [vmem:[%s214 + $0x74] sm:$0xf]
        %6213 = vrot.lane.b32.xlu0 %v6207, 119
        %v6214 = vpop.permute.xlu0 %6213
        %6215 = vrot.lane.b32.xlu0 %v6208, 119
        %v6216 = vpop.permute.xlu0 %6215
        %6217 = vrot.lane.b32.xlu0 %v6209, 119
        %v6218 = vpop.permute.xlu0 %6217
        %v6219 = vrot.slane %v6214, 4
        %v6220 = vrot.slane %v6216, 4
        %v6221 = vrot.slane %v6218, 4
        %v6222 = vsel %vm265, %v6219, %v6220
        %v6223 = vsel %vm699, %v6214, %v6222
        %v6224 = vsel %vm265, %v6220, %v6221
        %v6225 = vsel %vm699, %v6216, %v6224
        %6228 = vst [vmem:[#allocation2 + $0x130] sm:$0xff] %v6223
        %6229 = vst [vmem:[#allocation2 + $0x138] sm:$0xff] %v6225
        %v6230 = vld [vmem:[%s214 + $0x64] sm:$0xff]
        %v6231 = vld [vmem:[%s214 + $0x6c] sm:$0xff]
        %v6232 = vld [vmem:[%s214 + $0x74] sm:$0xf]
        %6236 = vrot.lane.b32.xlu0 %v6230, 118
        %v6237 = vpop.permute.xlu0 %6236
        %6238 = vrot.lane.b32.xlu0 %v6231, 118
        %v6239 = vpop.permute.xlu0 %6238
        %6240 = vrot.lane.b32.xlu0 %v6232, 118
        %v6241 = vpop.permute.xlu0 %6240
        %v6242 = vrot.slane %v6237, 4
        %v6243 = vrot.slane %v6239, 4
        %v6244 = vrot.slane %v6241, 4
        %v6245 = vsel %vm265, %v6242, %v6243
        %v6246 = vsel %vm723, %v6237, %v6245
        %v6247 = vsel %vm265, %v6243, %v6244
        %v6248 = vsel %vm723, %v6239, %v6247
        %6251 = vst [vmem:[#allocation2 + $0x140] sm:$0xff] %v6246
        %6252 = vst [vmem:[#allocation2 + $0x148] sm:$0xff] %v6248
        %v6253 = vld [vmem:[%s214 + $0x64] sm:$0xff]
        %v6254 = vld [vmem:[%s214 + $0x6c] sm:$0xff]
        %v6255 = vld [vmem:[%s214 + $0x74] sm:$0xf]
        %6259 = vrot.lane.b32.xlu0 %v6253, 102
        %v6260 = vpop.permute.xlu0 %6259
        %6261 = vrot.lane.b32.xlu0 %v6254, 102
        %v6262 = vpop.permute.xlu0 %6261
        %6263 = vrot.lane.b32.xlu0 %v6255, 102
        %v6264 = vpop.permute.xlu0 %6263
        %v6265 = vrot.slane %v6260, 4
        %v6266 = vrot.slane %v6262, 4
        %v6267 = vrot.slane %v6264, 4
        %v6268 = vsel %vm265, %v6265, %v6266
        %v6269 = vsel %vm747, %v6260, %v6268
        %v6270 = vsel %vm265, %v6266, %v6267
        %v6271 = vsel %vm747, %v6262, %v6270
        %6274 = vst [vmem:[#allocation2 + $0x150] sm:$0xff] %v6269
        %6275 = vst [vmem:[#allocation2 + $0x158] sm:$0xff] %v6271
        %v6276 = vld [vmem:[%s214 + $0x64] sm:$0xff]
        %v6277 = vld [vmem:[%s214 + $0x6c] sm:$0xff]
        %v6278 = vld [vmem:[%s214 + $0x74] sm:$0xf]
        %6282 = vrot.lane.b32.xlu0 %v6276, 101
        %v6283 = vpop.permute.xlu0 %6282
        %6284 = vrot.lane.b32.xlu0 %v6277, 101
        %v6285 = vpop.permute.xlu0 %6284
        %6286 = vrot.lane.b32.xlu0 %v6278, 101
        %v6287 = vpop.permute.xlu0 %6286
        %v6288 = vrot.slane %v6283, 4
        %v6289 = vrot.slane %v6285, 4
        %v6290 = vrot.slane %v6287, 4
        %v6291 = vsel %vm265, %v6288, %v6289
        %v6292 = vsel %vm771, %v6283, %v6291
        %v6293 = vsel %vm265, %v6289, %v6290
        %v6294 = vsel %vm771, %v6285, %v6293
        %6297 = vst [vmem:[#allocation2 + $0x160] sm:$0xff] %v6292
        %6298 = vst [vmem:[#allocation2 + $0x168] sm:$0xff] %v6294
        %v6299 = vld [vmem:[%s214 + $0x64] sm:$0xff]
        %v6300 = vld [vmem:[%s214 + $0x6c] sm:$0xff]
        %v6301 = vld [vmem:[%s214 + $0x74] sm:$0xf]
        %6305 = vrot.lane.b32.xlu0 %v6299, 100
        %v6306 = vpop.permute.xlu0 %6305
        %6307 = vrot.lane.b32.xlu0 %v6300, 100
        %v6308 = vpop.permute.xlu0 %6307
        %6309 = vrot.lane.b32.xlu0 %v6301, 100
        %v6310 = vpop.permute.xlu0 %6309
        %v6311 = vrot.slane %v6306, 4
        %v6312 = vrot.slane %v6308, 4
        %v6313 = vrot.slane %v6310, 4
        %v6314 = vsel %vm265, %v6311, %v6312
        %v6315 = vsel %vm795, %v6306, %v6314
        %v6316 = vsel %vm265, %v6312, %v6313
        %v6317 = vsel %vm795, %v6308, %v6316
        %6320 = vst [vmem:[#allocation2 + $0x170] sm:$0xff] %v6315
        %6321 = vst [vmem:[#allocation2 + $0x178] sm:$0xff] %v6317
        %v6322 = vld [vmem:[%s214 + $0x64] sm:$0xff]
        %v6323 = vld [vmem:[%s214 + $0x6c] sm:$0xff]
        %v6324 = vld [vmem:[%s214 + $0x74] sm:$0xf]
        %6328 = vrot.lane.b32.xlu0 %v6322, 84
        %v6329 = vpop.permute.xlu0 %6328
        %6330 = vrot.lane.b32.xlu0 %v6323, 84
        %v6331 = vpop.permute.xlu0 %6330
        %6332 = vrot.lane.b32.xlu0 %v6324, 84
        %v6333 = vpop.permute.xlu0 %6332
        %v6334 = vrot.slane %v6329, 4
        %v6335 = vrot.slane %v6331, 4
        %v6336 = vrot.slane %v6333, 4
        %v6337 = vsel %vm265, %v6334, %v6335
        %v6338 = vsel %vm819, %v6329, %v6337
        %v6339 = vsel %vm265, %v6335, %v6336
        %v6340 = vsel %vm819, %v6331, %v6339
        %6343 = vst [vmem:[#allocation2 + $0x180] sm:$0xff] %v6338
        %6344 = vst [vmem:[#allocation2 + $0x188] sm:$0xff] %v6340
        %v6345 = vld [vmem:[%s214 + $0x64] sm:$0xff]
        %v6346 = vld [vmem:[%s214 + $0x6c] sm:$0xff]
        %v6347 = vld [vmem:[%s214 + $0x74] sm:$0xf]
        %6351 = vrot.lane.b32.xlu0 %v6345, 83
        %v6352 = vpop.permute.xlu0 %6351
        %6353 = vrot.lane.b32.xlu0 %v6346, 83
        %v6354 = vpop.permute.xlu0 %6353
        %6355 = vrot.lane.b32.xlu0 %v6347, 83
        %v6356 = vpop.permute.xlu0 %6355
        %v6357 = vrot.slane %v6352, 4
        %v6358 = vrot.slane %v6354, 4
        %v6359 = vrot.slane %v6356, 4
        %v6360 = vsel %vm265, %v6357, %v6358
        %v6361 = vsel %vm843, %v6352, %v6360
        %v6362 = vsel %vm265, %v6358, %v6359
        %v6363 = vsel %vm843, %v6354, %v6362
        %6366 = vst [vmem:[#allocation2 + $0x190] sm:$0xff] %v6361
        %6367 = vst [vmem:[#allocation2 + $0x198] sm:$0xff] %v6363
        %v6368 = vld [vmem:[%s214 + $0x64] sm:$0xff]
        %v6369 = vld [vmem:[%s214 + $0x6c] sm:$0xff]
        %v6370 = vld [vmem:[%s214 + $0x74] sm:$0xf]
        %6374 = vrot.lane.b32.xlu0 %v6368, 82
        %v6375 = vpop.permute.xlu0 %6374
        %6376 = vrot.lane.b32.xlu0 %v6369, 82
        %v6377 = vpop.permute.xlu0 %6376
        %6378 = vrot.lane.b32.xlu0 %v6370, 82
        %v6379 = vpop.permute.xlu0 %6378
        %v6380 = vrot.slane %v6375, 4
        %v6381 = vrot.slane %v6377, 4
        %v6382 = vrot.slane %v6379, 4
        %v6383 = vsel %vm265, %v6380, %v6381
        %v6384 = vsel %vm867, %v6375, %v6383
        %v6385 = vsel %vm265, %v6381, %v6382
        %v6386 = vsel %vm867, %v6377, %v6385
        %6389 = vst [vmem:[#allocation2 + $0x1a0] sm:$0xff] %v6384
        %6390 = vst [vmem:[#allocation2 + $0x1a8] sm:$0xff] %v6386
        %v6391 = vld [vmem:[#allocation2] sm:$0xff]
        %v6392 = vld [vmem:[#allocation2 + $0x8] sm:$0xff]
        %v6393 = vld [vmem:[#allocation2 + $0x10] sm:$0xff]
        %v6394 = vld [vmem:[#allocation2 + $0x18] sm:$0xff]
        %v6395 = vld [vmem:[#allocation2 + $0x20] sm:$0xff]
        %v6396 = vld [vmem:[#allocation2 + $0x28] sm:$0xff]
        %v6397 = vld [vmem:[#allocation2 + $0x30] sm:$0xff]
        %v6398 = vld [vmem:[#allocation2 + $0x38] sm:$0xff]
        %v6399 = vld [vmem:[#allocation2 + $0x40] sm:$0xff]
        %v6400 = vld [vmem:[#allocation2 + $0x48] sm:$0xff]
        %v6401 = vld [vmem:[#allocation2 + $0x50] sm:$0xff]
        %v6402 = vld [vmem:[#allocation2 + $0x58] sm:$0xff]
        %v6403 = vld [vmem:[#allocation2 + $0x60] sm:$0xff]
        %v6404 = vld [vmem:[#allocation2 + $0x68] sm:$0xff]
        %v6405 = vld [vmem:[#allocation2 + $0x70] sm:$0xff]
        %v6406 = vld [vmem:[#allocation2 + $0x78] sm:$0xff]
        %v6407 = vld [vmem:[#allocation2 + $0x80] sm:$0xff]
        %v6408 = vld [vmem:[#allocation2 + $0x88] sm:$0xff]
        %v6409 = vld [vmem:[#allocation2 + $0x90] sm:$0xff]
        %v6410 = vld [vmem:[#allocation2 + $0x98] sm:$0xff]
        %v6411 = vld [vmem:[#allocation2 + $0xa0] sm:$0xff]
        %v6412 = vld [vmem:[#allocation2 + $0xa8] sm:$0xff]
        %v6413 = vld [vmem:[#allocation2 + $0xb0] sm:$0xff]
        %v6414 = vld [vmem:[#allocation2 + $0xb8] sm:$0xff]
        %v6415 = vld [vmem:[#allocation2 + $0xc0] sm:$0xff]
        %v6416 = vld [vmem:[#allocation2 + $0xc8] sm:$0xff]
        %v6417 = vld [vmem:[#allocation2 + $0xd0] sm:$0xff]
        %v6418 = vld [vmem:[#allocation2 + $0xd8] sm:$0xff]
        %v6419 = vld [vmem:[#allocation2 + $0xe0] sm:$0xff]
        %v6420 = vld [vmem:[#allocation2 + $0xe8] sm:$0xff]
        %v6421 = vld [vmem:[#allocation2 + $0xf0] sm:$0xff]
        %v6422 = vld [vmem:[#allocation2 + $0xf8] sm:$0xff]
        %v6423 = vld [vmem:[#allocation2 + $0x100] sm:$0xff]
        %v6424 = vld [vmem:[#allocation2 + $0x108] sm:$0xff]
        %v6425 = vld [vmem:[#allocation2 + $0x110] sm:$0xff]
        %v6426 = vld [vmem:[#allocation2 + $0x118] sm:$0xff]
        %v6427 = vld [vmem:[#allocation2 + $0x120] sm:$0xff]
        %v6428 = vld [vmem:[#allocation2 + $0x128] sm:$0xff]
        %v6429 = vld [vmem:[#allocation2 + $0x130] sm:$0xff]
        %v6430 = vld [vmem:[#allocation2 + $0x138] sm:$0xff]
        %v6431 = vld [vmem:[#allocation2 + $0x140] sm:$0xff]
        %v6432 = vld [vmem:[#allocation2 + $0x148] sm:$0xff]
        %v6433 = vld [vmem:[#allocation2 + $0x150] sm:$0xff]
        %v6434 = vld [vmem:[#allocation2 + $0x158] sm:$0xff]
        %v6435 = vld [vmem:[#allocation2 + $0x160] sm:$0xff]
        %v6436 = vld [vmem:[#allocation2 + $0x168] sm:$0xff]
        %v6437 = vld [vmem:[#allocation2 + $0x170] sm:$0xff]
        %v6438 = vld [vmem:[#allocation2 + $0x178] sm:$0xff]
        %v6439 = vld [vmem:[#allocation2 + $0x180] sm:$0xff]
        %v6440 = vld [vmem:[#allocation2 + $0x188] sm:$0xff]
        %v6441 = vld [vmem:[#allocation2 + $0x190] sm:$0xff]
        %v6442 = vld [vmem:[#allocation2 + $0x198] sm:$0xff]
        %v6443 = vld [vmem:[#allocation2 + $0x1a0] sm:$0xff]
        %v6444 = vld [vmem:[#allocation2 + $0x1a8] sm:$0xff]
        %v6499 = vunpack.c.l.b16 %v6391
        %v6500 = vunpack.c.h.b16 %v6391
        %v6501 = vunpack.c.l.b16 %v6392
        %v6502 = vunpack.c.h.b16 %v6392
        %v6503 = vunpack.c.l.b16 %v6393
        %v6504 = vunpack.c.h.b16 %v6393
        %v6505 = vunpack.c.l.b16 %v6394
        %v6506 = vunpack.c.h.b16 %v6394
        %v6507 = vunpack.c.l.b16 %v6395
        %v6508 = vunpack.c.h.b16 %v6395
        %v6509 = vunpack.c.l.b16 %v6396
        %v6510 = vunpack.c.h.b16 %v6396
        %v6511 = vunpack.c.l.b16 %v6397
        %v6512 = vunpack.c.h.b16 %v6397
        %v6513 = vunpack.c.l.b16 %v6398
        %v6514 = vunpack.c.h.b16 %v6398
        %v6515 = vunpack.c.l.b16 %v6399
        %v6516 = vunpack.c.h.b16 %v6399
        %v6517 = vunpack.c.l.b16 %v6400
        %v6518 = vunpack.c.h.b16 %v6400
        %v6519 = vunpack.c.l.b16 %v6401
        %v6520 = vunpack.c.h.b16 %v6401
        %v6521 = vunpack.c.l.b16 %v6402
        %v6522 = vunpack.c.h.b16 %v6402
        %v6523 = vunpack.c.l.b16 %v6403
        %v6524 = vunpack.c.h.b16 %v6403
        %v6525 = vunpack.c.l.b16 %v6404
        %v6526 = vunpack.c.h.b16 %v6404
        %v6527 = vunpack.c.l.b16 %v6405
        %v6528 = vunpack.c.h.b16 %v6405
        %v6529 = vunpack.c.l.b16 %v6406
        %v6530 = vunpack.c.h.b16 %v6406
        %v6531 = vunpack.c.l.b16 %v6407
        %v6532 = vunpack.c.h.b16 %v6407
        %v6533 = vunpack.c.l.b16 %v6408
        %v6534 = vunpack.c.h.b16 %v6408
        %v6535 = vunpack.c.l.b16 %v6409
        %v6536 = vunpack.c.h.b16 %v6409
        %v6537 = vunpack.c.l.b16 %v6410
        %v6538 = vunpack.c.h.b16 %v6410
        %v6539 = vunpack.c.l.b16 %v6411
        %v6540 = vunpack.c.h.b16 %v6411
        %v6541 = vunpack.c.l.b16 %v6412
        %v6542 = vunpack.c.h.b16 %v6412
        %v6543 = vunpack.c.l.b16 %v6413
        %v6544 = vunpack.c.h.b16 %v6413
        %v6545 = vunpack.c.l.b16 %v6414
        %v6546 = vunpack.c.h.b16 %v6414
        %v6547 = vunpack.c.l.b16 %v6415
        %v6548 = vunpack.c.h.b16 %v6415
        %v6549 = vunpack.c.l.b16 %v6416
        %v6550 = vunpack.c.h.b16 %v6416
        %v6551 = vunpack.c.l.b16 %v6417
        %v6552 = vunpack.c.h.b16 %v6417
        %v6553 = vunpack.c.l.b16 %v6418
        %v6554 = vunpack.c.h.b16 %v6418
        %v6555 = vunpack.c.l.b16 %v6419
        %v6556 = vunpack.c.h.b16 %v6419
        %v6557 = vunpack.c.l.b16 %v6420
        %v6558 = vunpack.c.h.b16 %v6420
        %v6559 = vunpack.c.l.b16 %v6421
        %v6560 = vunpack.c.h.b16 %v6421
        %v6561 = vunpack.c.l.b16 %v6422
        %v6562 = vunpack.c.h.b16 %v6422
        %v6563 = vunpack.c.l.b16 %v6423
        %v6564 = vunpack.c.h.b16 %v6423
        %v6565 = vunpack.c.l.b16 %v6424
        %v6566 = vunpack.c.h.b16 %v6424
        %v6567 = vunpack.c.l.b16 %v6425
        %v6568 = vunpack.c.h.b16 %v6425
        %v6569 = vunpack.c.l.b16 %v6426
        %v6570 = vunpack.c.h.b16 %v6426
        %v6571 = vunpack.c.l.b16 %v6427
        %v6572 = vunpack.c.h.b16 %v6427
        %v6573 = vunpack.c.l.b16 %v6428
        %v6574 = vunpack.c.h.b16 %v6428
        %v6575 = vunpack.c.l.b16 %v6429
        %v6576 = vunpack.c.h.b16 %v6429
        %v6577 = vunpack.c.l.b16 %v6430
        %v6578 = vunpack.c.h.b16 %v6430
        %v6579 = vunpack.c.l.b16 %v6431
        %v6580 = vunpack.c.h.b16 %v6431
        %v6581 = vunpack.c.l.b16 %v6432
        %v6582 = vunpack.c.h.b16 %v6432
        %v6583 = vunpack.c.l.b16 %v6433
        %v6584 = vunpack.c.h.b16 %v6433
        %v6585 = vunpack.c.l.b16 %v6434
        %v6586 = vunpack.c.h.b16 %v6434
        %v6587 = vunpack.c.l.b16 %v6435
        %v6588 = vunpack.c.h.b16 %v6435
        %v6589 = vunpack.c.l.b16 %v6436
        %v6590 = vunpack.c.h.b16 %v6436
        %v6591 = vunpack.c.l.b16 %v6437
        %v6592 = vunpack.c.h.b16 %v6437
        %v6593 = vunpack.c.l.b16 %v6438
        %v6594 = vunpack.c.h.b16 %v6438
        %v6595 = vunpack.c.l.b16 %v6439
        %v6596 = vunpack.c.h.b16 %v6439
        %v6597 = vunpack.c.l.b16 %v6440
        %v6598 = vunpack.c.h.b16 %v6440
        %v6599 = vunpack.c.l.b16 %v6441
        %v6600 = vunpack.c.h.b16 %v6441
        %v6601 = vunpack.c.l.b16 %v6442
        %v6602 = vunpack.c.h.b16 %v6442
        %v6603 = vunpack.c.l.b16 %v6443
        %v6604 = vunpack.c.h.b16 %v6443
        %v6605 = vunpack.c.l.b16 %v6444
        %v6606 = vunpack.c.h.b16 %v6444
        %v6607 = vpack.c.b16 %v6503, %v6499
        %v6608 = vpack.c.b16 %v6504, %v6500
        %v6609 = vpack.c.b16 %v6505, %v6501
        %v6610 = vpack.c.b16 %v6506, %v6502
        %v6611 = vpack.c.b16 %v6511, %v6507
        %v6612 = vpack.c.b16 %v6512, %v6508
        %v6613 = vpack.c.b16 %v6513, %v6509
        %v6614 = vpack.c.b16 %v6514, %v6510
        %v6615 = vpack.c.b16 %v6519, %v6515
        %v6616 = vpack.c.b16 %v6520, %v6516
        %v6617 = vpack.c.b16 %v6521, %v6517
        %v6618 = vpack.c.b16 %v6522, %v6518
        %v6619 = vpack.c.b16 %v6527, %v6523
        %v6620 = vpack.c.b16 %v6528, %v6524
        %v6621 = vpack.c.b16 %v6529, %v6525
        %v6622 = vpack.c.b16 %v6530, %v6526
        %v6623 = vpack.c.b16 %v6535, %v6531
        %v6624 = vpack.c.b16 %v6536, %v6532
        %v6625 = vpack.c.b16 %v6537, %v6533
        %v6626 = vpack.c.b16 %v6538, %v6534
        %v6627 = vpack.c.b16 %v6543, %v6539
        %v6628 = vpack.c.b16 %v6544, %v6540
        %v6629 = vpack.c.b16 %v6545, %v6541
        %v6630 = vpack.c.b16 %v6546, %v6542
        %v6631 = vpack.c.b16 %v6551, %v6547
        %v6632 = vpack.c.b16 %v6552, %v6548
        %v6633 = vpack.c.b16 %v6553, %v6549
        %v6634 = vpack.c.b16 %v6554, %v6550
        %v6635 = vpack.c.b16 %v6559, %v6555
        %v6636 = vpack.c.b16 %v6560, %v6556
        %v6637 = vpack.c.b16 %v6561, %v6557
        %v6638 = vpack.c.b16 %v6562, %v6558
        %v6639 = vpack.c.b16 %v6567, %v6563
        %v6640 = vpack.c.b16 %v6568, %v6564
        %v6641 = vpack.c.b16 %v6569, %v6565
        %v6642 = vpack.c.b16 %v6570, %v6566
        %v6643 = vpack.c.b16 %v6575, %v6571
        %v6644 = vpack.c.b16 %v6576, %v6572
        %v6645 = vpack.c.b16 %v6577, %v6573
        %v6646 = vpack.c.b16 %v6578, %v6574
        %v6647 = vpack.c.b16 %v6583, %v6579
        %v6648 = vpack.c.b16 %v6584, %v6580
        %v6649 = vpack.c.b16 %v6585, %v6581
        %v6650 = vpack.c.b16 %v6586, %v6582
        %v6651 = vpack.c.b16 %v6591, %v6587
        %v6652 = vpack.c.b16 %v6592, %v6588
        %v6653 = vpack.c.b16 %v6593, %v6589
        %v6654 = vpack.c.b16 %v6594, %v6590
        %v6655 = vpack.c.b16 %v6599, %v6595
        %v6656 = vpack.c.b16 %v6600, %v6596
        %v6657 = vpack.c.b16 %v6601, %v6597
        %v6658 = vpack.c.b16 %v6602, %v6598
        %v6659 = vpack.c.b16 %v6603, %v6603
        %v6660 = vpack.c.b16 %v6604, %v6604
        %v6661 = vpack.c.b16 %v6605, %v6605
        %v6662 = vpack.c.b16 %v6606, %v6606
        %v6716 = vsel %vm1224, %v6659, 0
        %v6719 = vsel %vm1224, %v6660, 0
        %v6722 = vsel %vm1224, %v6661, 0
        %v6725 = vsel %vm1224, %v6662, 0
        %6727 = vmatprep.subr.bf16.mxu0 %v6608
        %6728 = vmatpush1.bf16.msra.mxu0 %v6607
        %6729 = vmatprep.subr.bf16.mxu0 %v6612
        %6730 = vmatpush1.bf16.msra.mxu0 %v6611
        %6731 = vmatprep.subr.bf16.mxu0 %v6616
        %6732 = vmatpush1.bf16.msra.mxu0 %v6615
        %6733 = vmatprep.subr.bf16.mxu0 %v6620
        %6734 = vmatpush1.bf16.msra.mxu0 %v6619
        %6735 = vmatprep.subr.bf16.mxu0 %v6624
        %6736 = vmatpush1.bf16.msra.mxu0 %v6623
        %6737 = vmatprep.subr.bf16.mxu0 %v6628
        %6738 = vmatpush1.bf16.msra.mxu0 %v6627
        %6739 = vmatprep.subr.bf16.mxu0 %v6632
        %6740 = vmatpush1.bf16.msra.mxu0 %v6631
        %6741 = vmatprep.subr.bf16.mxu0 %v6636
        %6742 = vmatpush1.bf16.msra.mxu0 %v6635
        %6743 = vmatprep.subr.bf16.mxu0 %v6640
        %6744 = vmatpush1.bf16.msra.mxu0 %v6639
        %6745 = vmatprep.subr.bf16.mxu0 %v6644
        %6746 = vmatpush1.bf16.msra.mxu0 %v6643
        %6747 = vmatprep.subr.bf16.mxu0 %v6648
        %6748 = vmatpush1.bf16.msra.mxu0 %v6647
        %6749 = vmatprep.subr.bf16.mxu0 %v6652
        %6750 = vmatpush1.bf16.msra.mxu0 %v6651
        %6751 = vmatprep.subr.bf16.mxu0 %v6656
        %6752 = vmatpush1.bf16.msra.mxu0 %v6655
        %6753 = vmatprep.subr.bf16.mxu0 %v6719
        %6754 = vmatpush1.bf16.msra.mxu0 %v6716
        %6755 = vmatprep.subr.bf16.mxu0 0
        %6756 = vmatpush1.bf16.msra.mxu0 0
        %6757 = vmatprep.subr.bf16.mxu0 0
        %6758 = vmatpush1.bf16.msra.mxu0 0
        %6759 = vmatprep.mubr.bf16.mxu0 %v1219
        %6760 = vmatmul.mubr.bf16.gmra.mrb[0].mxu0 %v941
        %v6761 = vpop.f32.mrb[0].mxu0
        %v6762 = vadd.f32 0.0, %v6761
        %v6763 = vpop.f32.mrb[0].mxu0
        %v6764 = vadd.f32 0.0, %v6763
        %v6765 = vpop.f32.mrb[0].mxu0
        %v6766 = vadd.f32 0.0, %v6765
        %v6767 = vpop.f32.mrb[0].mxu0
        %v6768 = vadd.f32 0.0, %v6767
        %6769 = vmatprep.mubr.bf16.mxu0 %v1222
        %6770 = vmatmul.mubr.bf16.gmra.mrb[0].mxu0 %v943
        %v6771 = vpop.f32.mrb[0].mxu0
        %v6772 = vadd.f32 0.0, %v6771
        %v6773 = vpop.f32.mrb[0].mxu0
        %v6774 = vadd.f32 0.0, %v6773
        %v6775 = vpop.f32.mrb[0].mxu0
        %v6776 = vadd.f32 0.0, %v6775
        %v6777 = vpop.f32.mrb[0].mxu0
        %v6778 = vadd.f32 0.0, %v6777
        %6779 = vdwg.mxu0
        %6780 = vmatprep.subr.bf16.mxu0 %v6610
        %6781 = vmatpush1.bf16.msra.mxu0 %v6609
        %6782 = vmatprep.subr.bf16.mxu0 %v6614
        %6783 = vmatpush1.bf16.msra.mxu0 %v6613
        %6784 = vmatprep.subr.bf16.mxu0 %v6618
        %6785 = vmatpush1.bf16.msra.mxu0 %v6617
        %6786 = vmatprep.subr.bf16.mxu0 %v6622
        %6787 = vmatpush1.bf16.msra.mxu0 %v6621
        %6788 = vmatprep.subr.bf16.mxu0 %v6626
        %6789 = vmatpush1.bf16.msra.mxu0 %v6625
        %6790 = vmatprep.subr.bf16.mxu0 %v6630
        %6791 = vmatpush1.bf16.msra.mxu0 %v6629
        %6792 = vmatprep.subr.bf16.mxu0 %v6634
        %6793 = vmatpush1.bf16.msra.mxu0 %v6633
        %6794 = vmatprep.subr.bf16.mxu0 %v6638
        %6795 = vmatpush1.bf16.msra.mxu0 %v6637
        %6796 = vmatprep.subr.bf16.mxu0 %v6642
        %6797 = vmatpush1.bf16.msra.mxu0 %v6641
        %6798 = vmatprep.subr.bf16.mxu0 %v6646
        %6799 = vmatpush1.bf16.msra.mxu0 %v6645
        %6800 = vmatprep.subr.bf16.mxu0 %v6650
        %6801 = vmatpush1.bf16.msra.mxu0 %v6649
        %6802 = vmatprep.subr.bf16.mxu0 %v6654
        %6803 = vmatpush1.bf16.msra.mxu0 %v6653
        %6804 = vmatprep.subr.bf16.mxu0 %v6658
        %6805 = vmatpush1.bf16.msra.mxu0 %v6657
        %6806 = vmatprep.subr.bf16.mxu0 %v6725
        %6807 = vmatpush1.bf16.msra.mxu0 %v6722
        %6808 = vmatprep.subr.bf16.mxu0 0
        %6809 = vmatpush1.bf16.msra.mxu0 0
        %6810 = vmatprep.subr.bf16.mxu0 0
        %6811 = vmatpush1.bf16.msra.mxu0 0
        %6812 = vmatprep.mubr.bf16.mxu0 %v1219
        %6813 = vmatmul.mubr.bf16.gmra.mrb[0].mxu0 %v941
        %v6814 = vpop.f32.mrb[0].mxu0
        %v6815 = vadd.f32 0.0, %v6814
        %v6816 = vpop.f32.mrb[0].mxu0
        %v6817 = vadd.f32 0.0, %v6816
        %v6818 = vpop.f32.mrb[0].mxu0
        %v6819 = vadd.f32 0.0, %v6818
        %v6820 = vpop.f32.mrb[0].mxu0
        %v6821 = vadd.f32 0.0, %v6820
        %6822 = vmatprep.mubr.bf16.mxu0 %v1222
        %6823 = vmatmul.mubr.bf16.gmra.mrb[0].mxu0 %v943
        %v6824 = vpop.f32.mrb[0].mxu0
        %v6825 = vadd.f32 0.0, %v6824
        %v6826 = vpop.f32.mrb[0].mxu0
        %v6827 = vadd.f32 0.0, %v6826
        %v6828 = vpop.f32.mrb[0].mxu0
        %v6829 = vadd.f32 0.0, %v6828
        %v6830 = vpop.f32.mrb[0].mxu0
        %v6831 = vadd.f32 0.0, %v6830
        %6832 = vdwg.mxu0
        %v6833 = vld [vmem:[%s4 + $0x14] sm:$0xf]
        %v6835 = vlaneseq
        %v6836 = vshrl.u32 %v6835, 7
        %v6837 = vsub.s32 0, %v6836
        %v6838 = vrot.slane %v6833, %v6837
        %v6839 = vlaneseq
        %v6840 = vshrl.u32 %v6839, 7
        %v6841 = vsub.s32 1, %v6840
        %v6842 = vrot.slane %v6833, %v6841
        %v6843 = vlaneseq
        %v6844 = vshrl.u32 %v6843, 7
        %v6845 = vsub.s32 2, %v6844
        %v6846 = vrot.slane %v6833, %v6845
        %v6847 = vlaneseq
        %v6848 = vshrl.u32 %v6847, 7
        %v6849 = vsub.s32 3, %v6848
        %v6850 = vrot.slane %v6833, %v6849
        %v6855 = vmul.f32 %v6762, %v6838
        %v6856 = vmul.f32 %v6764, %v6842
        %v6857 = vmul.f32 %v6815, %v6846
        %v6858 = vmul.f32 %v6817, %v6850
        %v6859 = vmul.f32 %v6766, %v6838
        %v6860 = vmul.f32 %v6768, %v6842
        %v6861 = vmul.f32 %v6819, %v6846
        %v6862 = vmul.f32 %v6821, %v6850
        %v6863 = vmul.f32 %v6772, %v6838
        %v6864 = vmul.f32 %v6774, %v6842
        %v6865 = vmul.f32 %v6825, %v6846
        %v6866 = vmul.f32 %v6827, %v6850
        %v6867 = vmul.f32 %v6776, %v6838
        %v6868 = vmul.f32 %v6778, %v6842
        %v6869 = vmul.f32 %v6829, %v6846
        %v6870 = vmul.f32 %v6831, %v6850
        %6871 = vst [vmem:[%s240 + $0xa0] sm:$0xff] %v6855
        %6872 = vst [vmem:[%s240 + $0xa8] sm:$0xff] %v6856
        %6873 = vst [vmem:[%s240 + $0xb0] sm:$0xff] %v6857
        %6874 = vst [vmem:[%s240 + $0xb8] sm:$0xff] %v6858
        %6875 = vst [vmem:[%s240 + $0x170] sm:$0xff] %v6859
        %6876 = vst [vmem:[%s240 + $0x178] sm:$0xff] %v6860
        %6877 = vst [vmem:[%s240 + $0x180] sm:$0xff] %v6861
        %6878 = vst [vmem:[%s240 + $0x188] sm:$0xff] %v6862
        %6879 = vst [vmem:[%s240 + $0x240] sm:$0xff] %v6863
        %6880 = vst [vmem:[%s240 + $0x248] sm:$0xff] %v6864
        %6881 = vst [vmem:[%s240 + $0x250] sm:$0xff] %v6865
        %6882 = vst [vmem:[%s240 + $0x258] sm:$0xff] %v6866
        %6883 = vst [vmem:[%s240 + $0x310] sm:$0xff] %v6867
        %6884 = vst [vmem:[%s240 + $0x318] sm:$0xff] %v6868
        %6885 = vst [vmem:[%s240 + $0x320] sm:$0xff] %v6869
        %6886 = vst [vmem:[%s240 + $0x328] sm:$0xff] %v6870
        %v6887 = vld [vmem:[%s214 + $0x60] sm:$0xff]
        %6888 = vst [vmem:[#allocation2] sm:$0xff] %v6887
        %v6889 = vld [vmem:[%s214 + $0x60] sm:$0xff]
        %v6890 = vld [vmem:[%s214 + $0x68] sm:$0xf]
        %6893 = vrot.lane.b32.xlu0 %v6889, 127
        %v6894 = vpop.permute.xlu0 %6893
        %6895 = vrot.lane.b32.xlu0 %v6890, 127
        %v6896 = vpop.permute.xlu0 %6895
        %v6897 = vrot.slane %v6894, 4
        %v6898 = vrot.slane %v6896, 4
        %v6899 = vsel %vm265, %v6897, %v6898
        %v6900 = vsel %vm267, %v6894, %v6899
        %6902 = vst [vmem:[#allocation2 + $0x10] sm:$0xff] %v6900
        %v6903 = vld [vmem:[%s214 + $0x60] sm:$0xff]
        %v6904 = vld [vmem:[%s214 + $0x68] sm:$0xf]
        %6907 = vrot.lane.b32.xlu0 %v6903, 126
        %v6908 = vpop.permute.xlu0 %6907
        %6909 = vrot.lane.b32.xlu0 %v6904, 126
        %v6910 = vpop.permute.xlu0 %6909
        %v6911 = vrot.slane %v6908, 4
        %v6912 = vrot.slane %v6910, 4
        %v6913 = vsel %vm265, %v6911, %v6912
        %v6914 = vsel %vm291, %v6908, %v6913
        %6916 = vst [vmem:[#allocation2 + $0x20] sm:$0xff] %v6914
        %v6917 = vld [vmem:[%s214 + $0x60] sm:$0xff]
        %v6918 = vld [vmem:[%s214 + $0x68] sm:$0xf]
        %6921 = vrot.lane.b32.xlu0 %v6917, 110
        %v6922 = vpop.permute.xlu0 %6921
        %6923 = vrot.lane.b32.xlu0 %v6918, 110
        %v6924 = vpop.permute.xlu0 %6923
        %v6925 = vrot.slane %v6922, 4
        %v6926 = vrot.slane %v6924, 4
        %v6927 = vsel %vm265, %v6925, %v6926
        %v6928 = vsel %vm315, %v6922, %v6927
        %6930 = vst [vmem:[#allocation2 + $0x30] sm:$0xff] %v6928
        %v6931 = vld [vmem:[%s214 + $0x60] sm:$0xff]
        %v6932 = vld [vmem:[%s214 + $0x68] sm:$0xf]
        %6935 = vrot.lane.b32.xlu0 %v6931, 109
        %v6936 = vpop.permute.xlu0 %6935
        %6937 = vrot.lane.b32.xlu0 %v6932, 109
        %v6938 = vpop.permute.xlu0 %6937
        %v6939 = vrot.slane %v6936, 4
        %v6940 = vrot.slane %v6938, 4
        %v6941 = vsel %vm265, %v6939, %v6940
        %v6942 = vsel %vm339, %v6936, %v6941
        %6944 = vst [vmem:[#allocation2 + $0x40] sm:$0xff] %v6942
        %v6945 = vld [vmem:[%s214 + $0x60] sm:$0xff]
        %v6946 = vld [vmem:[%s214 + $0x68] sm:$0xf]
        %6949 = vrot.lane.b32.xlu0 %v6945, 108
        %v6950 = vpop.permute.xlu0 %6949
        %6951 = vrot.lane.b32.xlu0 %v6946, 108
        %v6952 = vpop.permute.xlu0 %6951
        %v6953 = vrot.slane %v6950, 4
        %v6954 = vrot.slane %v6952, 4
        %v6955 = vsel %vm265, %v6953, %v6954
        %v6956 = vsel %vm363, %v6950, %v6955
        %6958 = vst [vmem:[#allocation2 + $0x50] sm:$0xff] %v6956
        %v6959 = vld [vmem:[%s214 + $0x60] sm:$0xff]
        %v6960 = vld [vmem:[%s214 + $0x68] sm:$0xf]
        %6963 = vrot.lane.b32.xlu0 %v6959, 92
        %v6964 = vpop.permute.xlu0 %6963
        %6965 = vrot.lane.b32.xlu0 %v6960, 92
        %v6966 = vpop.permute.xlu0 %6965
        %v6967 = vrot.slane %v6964, 4
        %v6968 = vrot.slane %v6966, 4
        %v6969 = vsel %vm265, %v6967, %v6968
        %v6970 = vsel %vm387, %v6964, %v6969
        %6972 = vst [vmem:[#allocation2 + $0x60] sm:$0xff] %v6970
        %v6973 = vld [vmem:[%s214 + $0x60] sm:$0xff]
        %v6974 = vld [vmem:[%s214 + $0x68] sm:$0xf]
        %6977 = vrot.lane.b32.xlu0 %v6973, 91
        %v6978 = vpop.permute.xlu0 %6977
        %6979 = vrot.lane.b32.xlu0 %v6974, 91
        %v6980 = vpop.permute.xlu0 %6979
        %v6981 = vrot.slane %v6978, 4
        %v6982 = vrot.slane %v6980, 4
        %v6983 = vsel %vm265, %v6981, %v6982
        %v6984 = vsel %vm411, %v6978, %v6983
        %6986 = vst [vmem:[#allocation2 + $0x70] sm:$0xff] %v6984
        %v6987 = vld [vmem:[%s214 + $0x60] sm:$0xff]
        %v6988 = vld [vmem:[%s214 + $0x68] sm:$0xf]
        %6991 = vrot.lane.b32.xlu0 %v6987, 90
        %v6992 = vpop.permute.xlu0 %6991
        %6993 = vrot.lane.b32.xlu0 %v6988, 90
        %v6994 = vpop.permute.xlu0 %6993
        %v6995 = vrot.slane %v6992, 4
        %v6996 = vrot.slane %v6994, 4
        %v6997 = vsel %vm265, %v6995, %v6996
        %v6998 = vsel %vm435, %v6992, %v6997
        %7000 = vst [vmem:[#allocation2 + $0x80] sm:$0xff] %v6998
        %v7001 = vld [vmem:[%s214 + $0x68] sm:$0xff]
        %v7002 = vld [vmem:[%s214 + $0x70] sm:$0xf]
        %7005 = vrot.lane.b32.xlu0 %v7001, 60
        %v7006 = vpop.permute.xlu0 %7005
        %7007 = vrot.lane.b32.xlu0 %v7002, 60
        %v7008 = vpop.permute.xlu0 %7007
        %v7009 = vrot.slane %v7006, 4
        %v7010 = vrot.slane %v7008, 4
        %v7011 = vsel %vm265, %v7009, %v7010
        %v7012 = vsel %vm459, %v7006, %v7011
        %7014 = vst [vmem:[#allocation2 + $0x90] sm:$0xff] %v7012
        %v7015 = vld [vmem:[%s214 + $0x68] sm:$0xff]
        %v7016 = vld [vmem:[%s214 + $0x70] sm:$0xf]
        %7019 = vrot.lane.b32.xlu0 %v7015, 59
        %v7020 = vpop.permute.xlu0 %7019
        %7021 = vrot.lane.b32.xlu0 %v7016, 59
        %v7022 = vpop.permute.xlu0 %7021
        %v7023 = vrot.slane %v7020, 4
        %v7024 = vrot.slane %v7022, 4
        %v7025 = vsel %vm265, %v7023, %v7024
        %v7026 = vsel %vm483, %v7020, %v7025
        %7028 = vst [vmem:[#allocation2 + $0xa0] sm:$0xff] %v7026
        %v7029 = vld [vmem:[%s214 + $0x68] sm:$0xff]
        %v7030 = vld [vmem:[%s214 + $0x70] sm:$0xf]
        %7033 = vrot.lane.b32.xlu0 %v7029, 58
        %v7034 = vpop.permute.xlu0 %7033
        %7035 = vrot.lane.b32.xlu0 %v7030, 58
        %v7036 = vpop.permute.xlu0 %7035
        %v7037 = vrot.slane %v7034, 4
        %v7038 = vrot.slane %v7036, 4
        %v7039 = vsel %vm265, %v7037, %v7038
        %v7040 = vsel %vm507, %v7034, %v7039
        %7042 = vst [vmem:[#allocation2 + $0xb0] sm:$0xff] %v7040
        %v7043 = vld [vmem:[%s214 + $0x68] sm:$0xff]
        %v7044 = vld [vmem:[%s214 + $0x70] sm:$0xf]
        %7047 = vrot.lane.b32.xlu0 %v7043, 42
        %v7048 = vpop.permute.xlu0 %7047
        %7049 = vrot.lane.b32.xlu0 %v7044, 42
        %v7050 = vpop.permute.xlu0 %7049
        %v7051 = vrot.slane %v7048, 4
        %v7052 = vrot.slane %v7050, 4
        %v7053 = vsel %vm265, %v7051, %v7052
        %v7054 = vsel %vm531, %v7048, %v7053
        %7056 = vst [vmem:[#allocation2 + $0xc0] sm:$0xff] %v7054
        %v7057 = vld [vmem:[%s214 + $0x68] sm:$0xff]
        %v7058 = vld [vmem:[%s214 + $0x70] sm:$0xf]
        %7061 = vrot.lane.b32.xlu0 %v7057, 41
        %v7062 = vpop.permute.xlu0 %7061
        %7063 = vrot.lane.b32.xlu0 %v7058, 41
        %v7064 = vpop.permute.xlu0 %7063
        %v7065 = vrot.slane %v7062, 4
        %v7066 = vrot.slane %v7064, 4
        %v7067 = vsel %vm265, %v7065, %v7066
        %v7068 = vsel %vm555, %v7062, %v7067
        %7070 = vst [vmem:[#allocation2 + $0xd0] sm:$0xff] %v7068
        %v7071 = vld [vmem:[%s214 + $0x68] sm:$0xff]
        %v7072 = vld [vmem:[%s214 + $0x70] sm:$0xf]
        %7075 = vrot.lane.b32.xlu0 %v7071, 40
        %v7076 = vpop.permute.xlu0 %7075
        %7077 = vrot.lane.b32.xlu0 %v7072, 40
        %v7078 = vpop.permute.xlu0 %7077
        %v7079 = vrot.slane %v7076, 4
        %v7080 = vrot.slane %v7078, 4
        %v7081 = vsel %vm265, %v7079, %v7080
        %v7082 = vsel %vm579, %v7076, %v7081
        %7084 = vst [vmem:[#allocation2 + $0xe0] sm:$0xff] %v7082
        %v7085 = vld [vmem:[%s214 + $0x68] sm:$0xff]
        %v7086 = vld [vmem:[%s214 + $0x70] sm:$0xf]
        %7089 = vrot.lane.b32.xlu0 %v7085, 24
        %v7090 = vpop.permute.xlu0 %7089
        %7091 = vrot.lane.b32.xlu0 %v7086, 24
        %v7092 = vpop.permute.xlu0 %7091
        %v7093 = vrot.slane %v7090, 4
        %v7094 = vrot.slane %v7092, 4
        %v7095 = vsel %vm265, %v7093, %v7094
        %v7096 = vsel %vm603, %v7090, %v7095
        %7098 = vst [vmem:[#allocation2 + $0xf0] sm:$0xff] %v7096
        %v7099 = vld [vmem:[%s214 + $0x68] sm:$0xff]
        %v7100 = vld [vmem:[%s214 + $0x70] sm:$0xf]
        %7103 = vrot.lane.b32.xlu0 %v7099, 23
        %v7104 = vpop.permute.xlu0 %7103
        %7105 = vrot.lane.b32.xlu0 %v7100, 23
        %v7106 = vpop.permute.xlu0 %7105
        %v7107 = vrot.slane %v7104, 4
        %v7108 = vrot.slane %v7106, 4
        %v7109 = vsel %vm265, %v7107, %v7108
        %v7110 = vsel %vm627, %v7104, %v7109
        %7112 = vst [vmem:[#allocation2 + $0x100] sm:$0xff] %v7110
        %v7113 = vld [vmem:[%s214 + $0x68] sm:$0xff]
        %v7114 = vld [vmem:[%s214 + $0x70] sm:$0xf]
        %7117 = vrot.lane.b32.xlu0 %v7113, 22
        %v7118 = vpop.permute.xlu0 %7117
        %7119 = vrot.lane.b32.xlu0 %v7114, 22
        %v7120 = vpop.permute.xlu0 %7119
        %v7121 = vrot.slane %v7118, 4
        %v7122 = vrot.slane %v7120, 4
        %v7123 = vsel %vm265, %v7121, %v7122
        %v7124 = vsel %vm651, %v7118, %v7123
        %7126 = vst [vmem:[#allocation2 + $0x110] sm:$0xff] %v7124
        %v7127 = vld [vmem:[%s214 + $0x74] sm:$0xff]
        %v7128 = vld [vmem:[%s214 + $0x7c] sm:$0xf]
        %7131 = vrot.lane.b32.xlu0 %v7127, 120
        %v7132 = vpop.permute.xlu0 %7131
        %7133 = vrot.lane.b32.xlu0 %v7128, 120
        %v7134 = vpop.permute.xlu0 %7133
        %v7135 = vrot.slane %v7132, 4
        %v7136 = vrot.slane %v7134, 4
        %v7137 = vsel %vm265, %v7135, %v7136
        %v7138 = vsel %vm675, %v7132, %v7137
        %7140 = vst [vmem:[#allocation2 + $0x120] sm:$0xff] %v7138
        %v7141 = vld [vmem:[%s214 + $0x74] sm:$0xff]
        %v7142 = vld [vmem:[%s214 + $0x7c] sm:$0xf]
        %7145 = vrot.lane.b32.xlu0 %v7141, 119
        %v7146 = vpop.permute.xlu0 %7145
        %7147 = vrot.lane.b32.xlu0 %v7142, 119
        %v7148 = vpop.permute.xlu0 %7147
        %v7149 = vrot.slane %v7146, 4
        %v7150 = vrot.slane %v7148, 4
        %v7151 = vsel %vm265, %v7149, %v7150
        %v7152 = vsel %vm699, %v7146, %v7151
        %7154 = vst [vmem:[#allocation2 + $0x130] sm:$0xff] %v7152
        %v7155 = vld [vmem:[%s214 + $0x74] sm:$0xff]
        %v7156 = vld [vmem:[%s214 + $0x7c] sm:$0xf]
        %7159 = vrot.lane.b32.xlu0 %v7155, 118
        %v7160 = vpop.permute.xlu0 %7159
        %7161 = vrot.lane.b32.xlu0 %v7156, 118
        %v7162 = vpop.permute.xlu0 %7161
        %v7163 = vrot.slane %v7160, 4
        %v7164 = vrot.slane %v7162, 4
        %v7165 = vsel %vm265, %v7163, %v7164
        %v7166 = vsel %vm723, %v7160, %v7165
        %7168 = vst [vmem:[#allocation2 + $0x140] sm:$0xff] %v7166
        %v7169 = vld [vmem:[%s214 + $0x74] sm:$0xff]
        %v7170 = vld [vmem:[%s214 + $0x7c] sm:$0xf]
        %7173 = vrot.lane.b32.xlu0 %v7169, 102
        %v7174 = vpop.permute.xlu0 %7173
        %7175 = vrot.lane.b32.xlu0 %v7170, 102
        %v7176 = vpop.permute.xlu0 %7175
        %v7177 = vrot.slane %v7174, 4
        %v7178 = vrot.slane %v7176, 4
        %v7179 = vsel %vm265, %v7177, %v7178
        %v7180 = vsel %vm747, %v7174, %v7179
        %7182 = vst [vmem:[#allocation2 + $0x150] sm:$0xff] %v7180
        %v7183 = vld [vmem:[%s214 + $0x74] sm:$0xff]
        %v7184 = vld [vmem:[%s214 + $0x7c] sm:$0xf]
        %7187 = vrot.lane.b32.xlu0 %v7183, 101
        %v7188 = vpop.permute.xlu0 %7187
        %7189 = vrot.lane.b32.xlu0 %v7184, 101
        %v7190 = vpop.permute.xlu0 %7189
        %v7191 = vrot.slane %v7188, 4
        %v7192 = vrot.slane %v7190, 4
        %v7193 = vsel %vm265, %v7191, %v7192
        %v7194 = vsel %vm771, %v7188, %v7193
        %7196 = vst [vmem:[#allocation2 + $0x160] sm:$0xff] %v7194
        %v7197 = vld [vmem:[%s214 + $0x74] sm:$0xff]
        %v7198 = vld [vmem:[%s214 + $0x7c] sm:$0xf]
        %7201 = vrot.lane.b32.xlu0 %v7197, 100
        %v7202 = vpop.permute.xlu0 %7201
        %7203 = vrot.lane.b32.xlu0 %v7198, 100
        %v7204 = vpop.permute.xlu0 %7203
        %v7205 = vrot.slane %v7202, 4
        %v7206 = vrot.slane %v7204, 4
        %v7207 = vsel %vm265, %v7205, %v7206
        %v7208 = vsel %vm795, %v7202, %v7207
        %7210 = vst [vmem:[#allocation2 + $0x170] sm:$0xff] %v7208
        %v7211 = vld [vmem:[%s214 + $0x74] sm:$0xff]
        %v7212 = vld [vmem:[%s214 + $0x7c] sm:$0xf]
        %7215 = vrot.lane.b32.xlu0 %v7211, 84
        %v7216 = vpop.permute.xlu0 %7215
        %7217 = vrot.lane.b32.xlu0 %v7212, 84
        %v7218 = vpop.permute.xlu0 %7217
        %v7219 = vrot.slane %v7216, 4
        %v7220 = vrot.slane %v7218, 4
        %v7221 = vsel %vm265, %v7219, %v7220
        %v7222 = vsel %vm819, %v7216, %v7221
        %7224 = vst [vmem:[#allocation2 + $0x180] sm:$0xff] %v7222
        %v7225 = vld [vmem:[%s214 + $0x74] sm:$0xff]
        %v7226 = vld [vmem:[%s214 + $0x7c] sm:$0xf]
        %7229 = vrot.lane.b32.xlu0 %v7225, 83
        %v7230 = vpop.permute.xlu0 %7229
        %7231 = vrot.lane.b32.xlu0 %v7226, 83
        %v7232 = vpop.permute.xlu0 %7231
        %v7233 = vrot.slane %v7230, 4
        %v7234 = vrot.slane %v7232, 4
        %v7235 = vsel %vm265, %v7233, %v7234
        %v7236 = vsel %vm843, %v7230, %v7235
        %7238 = vst [vmem:[#allocation2 + $0x190] sm:$0xff] %v7236
        %v7239 = vld [vmem:[%s214 + $0x74] sm:$0xff]
        %v7240 = vld [vmem:[%s214 + $0x7c] sm:$0xf]
        %7243 = vrot.lane.b32.xlu0 %v7239, 82
        %v7244 = vpop.permute.xlu0 %7243
        %7245 = vrot.lane.b32.xlu0 %v7240, 82
        %v7246 = vpop.permute.xlu0 %7245
        %v7247 = vrot.slane %v7244, 4
        %v7248 = vrot.slane %v7246, 4
        %v7249 = vsel %vm265, %v7247, %v7248
        %v7250 = vsel %vm867, %v7244, %v7249
        %7252 = vst [vmem:[#allocation2 + $0x1a0] sm:$0xff] %v7250
        %v7253 = vld [vmem:[#allocation2] sm:$0xff]
        %v7254 = vld [vmem:[#allocation2 + $0x10] sm:$0xff]
        %v7255 = vld [vmem:[#allocation2 + $0x20] sm:$0xff]
        %v7256 = vld [vmem:[#allocation2 + $0x30] sm:$0xff]
        %v7257 = vld [vmem:[#allocation2 + $0x40] sm:$0xff]
        %v7258 = vld [vmem:[#allocation2 + $0x50] sm:$0xff]
        %v7259 = vld [vmem:[#allocation2 + $0x60] sm:$0xff]
        %v7260 = vld [vmem:[#allocation2 + $0x70] sm:$0xff]
        %v7261 = vld [vmem:[#allocation2 + $0x80] sm:$0xff]
        %v7262 = vld [vmem:[#allocation2 + $0x90] sm:$0xff]
        %v7263 = vld [vmem:[#allocation2 + $0xa0] sm:$0xff]
        %v7264 = vld [vmem:[#allocation2 + $0xb0] sm:$0xff]
        %v7265 = vld [vmem:[#allocation2 + $0xc0] sm:$0xff]
        %v7266 = vld [vmem:[#allocation2 + $0xd0] sm:$0xff]
        %v7267 = vld [vmem:[#allocation2 + $0xe0] sm:$0xff]
        %v7268 = vld [vmem:[#allocation2 + $0xf0] sm:$0xff]
        %v7269 = vld [vmem:[#allocation2 + $0x100] sm:$0xff]
        %v7270 = vld [vmem:[#allocation2 + $0x110] sm:$0xff]
        %v7271 = vld [vmem:[#allocation2 + $0x120] sm:$0xff]
        %v7272 = vld [vmem:[#allocation2 + $0x130] sm:$0xff]
        %v7273 = vld [vmem:[#allocation2 + $0x140] sm:$0xff]
        %v7274 = vld [vmem:[#allocation2 + $0x150] sm:$0xff]
        %v7275 = vld [vmem:[#allocation2 + $0x160] sm:$0xff]
        %v7276 = vld [vmem:[#allocation2 + $0x170] sm:$0xff]
        %v7277 = vld [vmem:[#allocation2 + $0x180] sm:$0xff]
        %v7278 = vld [vmem:[#allocation2 + $0x190] sm:$0xff]
        %v7279 = vld [vmem:[#allocation2 + $0x1a0] sm:$0xff]
        %v7307 = vunpack.c.l.b16 %v7253
        %v7308 = vunpack.c.h.b16 %v7253
        %v7309 = vunpack.c.l.b16 %v7254
        %v7310 = vunpack.c.h.b16 %v7254
        %v7311 = vunpack.c.l.b16 %v7255
        %v7312 = vunpack.c.h.b16 %v7255
        %v7313 = vunpack.c.l.b16 %v7256
        %v7314 = vunpack.c.h.b16 %v7256
        %v7315 = vunpack.c.l.b16 %v7257
        %v7316 = vunpack.c.h.b16 %v7257
        %v7317 = vunpack.c.l.b16 %v7258
        %v7318 = vunpack.c.h.b16 %v7258
        %v7319 = vunpack.c.l.b16 %v7259
        %v7320 = vunpack.c.h.b16 %v7259
        %v7321 = vunpack.c.l.b16 %v7260
        %v7322 = vunpack.c.h.b16 %v7260
        %v7323 = vunpack.c.l.b16 %v7261
        %v7324 = vunpack.c.h.b16 %v7261
        %v7325 = vunpack.c.l.b16 %v7262
        %v7326 = vunpack.c.h.b16 %v7262
        %v7327 = vunpack.c.l.b16 %v7263
        %v7328 = vunpack.c.h.b16 %v7263
        %v7329 = vunpack.c.l.b16 %v7264
        %v7330 = vunpack.c.h.b16 %v7264
        %v7331 = vunpack.c.l.b16 %v7265
        %v7332 = vunpack.c.h.b16 %v7265
        %v7333 = vunpack.c.l.b16 %v7266
        %v7334 = vunpack.c.h.b16 %v7266
        %v7335 = vunpack.c.l.b16 %v7267
        %v7336 = vunpack.c.h.b16 %v7267
        %v7337 = vunpack.c.l.b16 %v7268
        %v7338 = vunpack.c.h.b16 %v7268
        %v7339 = vunpack.c.l.b16 %v7269
        %v7340 = vunpack.c.h.b16 %v7269
        %v7341 = vunpack.c.l.b16 %v7270
        %v7342 = vunpack.c.h.b16 %v7270
        %v7343 = vunpack.c.l.b16 %v7271
        %v7344 = vunpack.c.h.b16 %v7271
        %v7345 = vunpack.c.l.b16 %v7272
        %v7346 = vunpack.c.h.b16 %v7272
        %v7347 = vunpack.c.l.b16 %v7273
        %v7348 = vunpack.c.h.b16 %v7273
        %v7349 = vunpack.c.l.b16 %v7274
        %v7350 = vunpack.c.h.b16 %v7274
        %v7351 = vunpack.c.l.b16 %v7275
        %v7352 = vunpack.c.h.b16 %v7275
        %v7353 = vunpack.c.l.b16 %v7276
        %v7354 = vunpack.c.h.b16 %v7276
        %v7355 = vunpack.c.l.b16 %v7277
        %v7356 = vunpack.c.h.b16 %v7277
        %v7357 = vunpack.c.l.b16 %v7278
        %v7358 = vunpack.c.h.b16 %v7278
        %v7359 = vunpack.c.l.b16 %v7279
        %v7360 = vunpack.c.h.b16 %v7279
        %v7361 = vpack.c.b16 %v7309, %v7307
        %v7362 = vpack.c.b16 %v7310, %v7308
        %v7363 = vpack.c.b16 %v7313, %v7311
        %v7364 = vpack.c.b16 %v7314, %v7312
        %v7365 = vpack.c.b16 %v7317, %v7315
        %v7366 = vpack.c.b16 %v7318, %v7316
        %v7367 = vpack.c.b16 %v7321, %v7319
        %v7368 = vpack.c.b16 %v7322, %v7320
        %v7369 = vpack.c.b16 %v7325, %v7323
        %v7370 = vpack.c.b16 %v7326, %v7324
        %v7371 = vpack.c.b16 %v7329, %v7327
        %v7372 = vpack.c.b16 %v7330, %v7328
        %v7373 = vpack.c.b16 %v7333, %v7331
        %v7374 = vpack.c.b16 %v7334, %v7332
        %v7375 = vpack.c.b16 %v7337, %v7335
        %v7376 = vpack.c.b16 %v7338, %v7336
        %v7377 = vpack.c.b16 %v7341, %v7339
        %v7378 = vpack.c.b16 %v7342, %v7340
        %v7379 = vpack.c.b16 %v7345, %v7343
        %v7380 = vpack.c.b16 %v7346, %v7344
        %v7381 = vpack.c.b16 %v7349, %v7347
        %v7382 = vpack.c.b16 %v7350, %v7348
        %v7383 = vpack.c.b16 %v7353, %v7351
        %v7384 = vpack.c.b16 %v7354, %v7352
        %v7385 = vpack.c.b16 %v7357, %v7355
        %v7386 = vpack.c.b16 %v7358, %v7356
        %v7387 = vpack.c.b16 %v7359, %v7359
        %v7388 = vpack.c.b16 %v7360, %v7360
        %v7416 = vsel %vm1224, %v7387, 0
        %v7419 = vsel %vm1224, %v7388, 0
        %7421 = vmatprep.subr.bf16.mxu0 %v7362
        %7422 = vmatpush1.bf16.msra.mxu0 %v7361
        %7423 = vmatprep.subr.bf16.mxu0 %v7364
        %7424 = vmatpush1.bf16.msra.mxu0 %v7363
        %7425 = vmatprep.subr.bf16.mxu0 %v7366
        %7426 = vmatpush1.bf16.msra.mxu0 %v7365
        %7427 = vmatprep.subr.bf16.mxu0 %v7368
        %7428 = vmatpush1.bf16.msra.mxu0 %v7367
        %7429 = vmatprep.subr.bf16.mxu0 %v7370
        %7430 = vmatpush1.bf16.msra.mxu0 %v7369
        %7431 = vmatprep.subr.bf16.mxu0 %v7372
        %7432 = vmatpush1.bf16.msra.mxu0 %v7371
        %7433 = vmatprep.subr.bf16.mxu0 %v7374
        %7434 = vmatpush1.bf16.msra.mxu0 %v7373
        %7435 = vmatprep.subr.bf16.mxu0 %v7376
        %7436 = vmatpush1.bf16.msra.mxu0 %v7375
        %7437 = vmatprep.subr.bf16.mxu0 %v7378
        %7438 = vmatpush1.bf16.msra.mxu0 %v7377
        %7439 = vmatprep.subr.bf16.mxu0 %v7380
        %7440 = vmatpush1.bf16.msra.mxu0 %v7379
        %7441 = vmatprep.subr.bf16.mxu0 %v7382
        %7442 = vmatpush1.bf16.msra.mxu0 %v7381
        %7443 = vmatprep.subr.bf16.mxu0 %v7384
        %7444 = vmatpush1.bf16.msra.mxu0 %v7383
        %7445 = vmatprep.subr.bf16.mxu0 %v7386
        %7446 = vmatpush1.bf16.msra.mxu0 %v7385
        %7447 = vmatprep.subr.bf16.mxu0 %v7419
        %7448 = vmatpush1.bf16.msra.mxu0 %v7416
        %7449 = vmatprep.subr.bf16.mxu0 0
        %7450 = vmatpush1.bf16.msra.mxu0 0
        %7451 = vmatprep.subr.bf16.mxu0 0
        %7452 = vmatpush1.bf16.msra.mxu0 0
        %7453 = vmatprep.mubr.bf16.mxu0 %v1219
        %7454 = vmatmul.mubr.bf16.gmra.mrb[0].mxu0 %v941
        %v7455 = vpop.f32.mrb[0].mxu0
        %v7456 = vadd.f32 0.0, %v7455
        %v7457 = vpop.f32.mrb[0].mxu0
        %v7458 = vadd.f32 0.0, %v7457
        %v7459 = vpop.f32.mrb[0].mxu0
        %v7460 = vadd.f32 0.0, %v7459
        %v7461 = vpop.f32.mrb[0].mxu0
        %v7462 = vadd.f32 0.0, %v7461
        %7463 = vmatprep.mubr.bf16.mxu0 %v1222
        %7464 = vmatmul.mubr.bf16.gmra.mrb[0].mxu0 %v943
        %v7465 = vpop.f32.mrb[0].mxu0
        %v7466 = vadd.f32 0.0, %v7465
        %v7467 = vpop.f32.mrb[0].mxu0
        %v7468 = vadd.f32 0.0, %v7467
        %v7469 = vpop.f32.mrb[0].mxu0
        %v7470 = vadd.f32 0.0, %v7469
        %v7471 = vpop.f32.mrb[0].mxu0
        %v7472 = vadd.f32 0.0, %v7471
        %7473 = vdwg.mxu0
        %v7474 = vld [vmem:[%s4 + $0x18] sm:$0x3]
        %v7476 = vlaneseq
        %v7477 = vshrl.u32 %v7476, 7
        %v7478 = vsub.s32 0, %v7477
        %v7479 = vrot.slane %v7474, %v7478
        %v7480 = vlaneseq
        %v7481 = vshrl.u32 %v7480, 7
        %v7482 = vsub.s32 1, %v7481
        %v7483 = vrot.slane %v7474, %v7482
        %v7486 = vmul.f32 %v7456, %v7479
        %v7487 = vmul.f32 %v7458, %v7483
        %v7488 = vmul.f32 %v7460, %v7479
        %v7489 = vmul.f32 %v7462, %v7483
        %v7490 = vmul.f32 %v7466, %v7479
        %v7491 = vmul.f32 %v7468, %v7483
        %v7492 = vmul.f32 %v7470, %v7479
        %v7493 = vmul.f32 %v7472, %v7483
        %7494 = vst [vmem:[%s240 + $0xc0] sm:$0xff] %v7486
        %7495 = vst [vmem:[%s240 + $0xc8] sm:$0xff] %v7487
        %7496 = vst [vmem:[%s240 + $0x190] sm:$0xff] %v7488
        %7497 = vst [vmem:[%s240 + $0x198] sm:$0xff] %v7489
        %7498 = vst [vmem:[%s240 + $0x260] sm:$0xff] %v7490
        %7499 = vst [vmem:[%s240 + $0x268] sm:$0xff] %v7491
        %7500 = vst [vmem:[%s240 + $0x330] sm:$0xff] %v7492
        %7501 = vst [vmem:[%s240 + $0x338] sm:$0xff] %v7493
        %v7502 = vld [vmem:[%s240] sm:$0xff]
        %v7503 = vld [vmem:[%s240 + $0x8] sm:$0xff]
        %v7504 = vld [vmem:[%s240 + $0x10] sm:$0xff]
        %v7505 = vld [vmem:[%s240 + $0x18] sm:$0xff]
        %v7506 = vld [vmem:[%s240 + $0x20] sm:$0xff]
        %v7507 = vld [vmem:[%s240 + $0x28] sm:$0xff]
        %v7508 = vld [vmem:[%s240 + $0x30] sm:$0xff]
        %v7509 = vld [vmem:[%s240 + $0x38] sm:$0xff]
        %v7510 = vld [vmem:[%s240 + $0x40] sm:$0xff]
        %v7511 = vld [vmem:[%s240 + $0x48] sm:$0xff]
        %v7512 = vld [vmem:[%s240 + $0x50] sm:$0xff]
        %v7513 = vld [vmem:[%s240 + $0x58] sm:$0xff]
        %v7514 = vld [vmem:[%s240 + $0x60] sm:$0xff]
        %v7515 = vld [vmem:[%s240 + $0x68] sm:$0xff]
        %v7516 = vld [vmem:[%s240 + $0x70] sm:$0xff]
        %v7517 = vld [vmem:[%s240 + $0x78] sm:$0xff]
        %v7518 = vld [vmem:[%s240 + $0x80] sm:$0xff]
        %v7519 = vld [vmem:[%s240 + $0x88] sm:$0xff]
        %v7520 = vld [vmem:[%s240 + $0x90] sm:$0xff]
        %v7521 = vld [vmem:[%s240 + $0x98] sm:$0xff]
        %v7522 = vld [vmem:[%s240 + $0xa0] sm:$0xff]
        %v7523 = vld [vmem:[%s240 + $0xa8] sm:$0xff]
        %v7524 = vld [vmem:[%s240 + $0xb0] sm:$0xff]
        %v7525 = vld [vmem:[%s240 + $0xb8] sm:$0xff]
        %v7526 = vld [vmem:[%s240 + $0xc0] sm:$0xff]
        %v7527 = vld [vmem:[%s240 + $0xc8] sm:$0xff]
        %v7528 = vld [vmem:[%s240 + $0xd0] sm:$0xff]
        %v7529 = vld [vmem:[%s240 + $0xd8] sm:$0xff]
        %v7530 = vld [vmem:[%s240 + $0xe0] sm:$0xff]
        %v7531 = vld [vmem:[%s240 + $0xe8] sm:$0xff]
        %v7532 = vld [vmem:[%s240 + $0xf0] sm:$0xff]
        %v7533 = vld [vmem:[%s240 + $0xf8] sm:$0xff]
        %v7534 = vld [vmem:[%s240 + $0x100] sm:$0xff]
        %v7535 = vld [vmem:[%s240 + $0x108] sm:$0xff]
        %v7536 = vld [vmem:[%s240 + $0x110] sm:$0xff]
        %v7537 = vld [vmem:[%s240 + $0x118] sm:$0xff]
        %v7538 = vld [vmem:[%s240 + $0x120] sm:$0xff]
        %v7539 = vld [vmem:[%s240 + $0x128] sm:$0xff]
        %v7540 = vld [vmem:[%s240 + $0x130] sm:$0xff]
        %v7541 = vld [vmem:[%s240 + $0x138] sm:$0xff]
        %v7542 = vld [vmem:[%s240 + $0x140] sm:$0xff]
        %v7543 = vld [vmem:[%s240 + $0x148] sm:$0xff]
        %v7544 = vld [vmem:[%s240 + $0x150] sm:$0xff]
        %v7545 = vld [vmem:[%s240 + $0x158] sm:$0xff]
        %v7546 = vld [vmem:[%s240 + $0x160] sm:$0xff]
        %v7547 = vld [vmem:[%s240 + $0x168] sm:$0xff]
        %v7548 = vld [vmem:[%s240 + $0x170] sm:$0xff]
        %v7549 = vld [vmem:[%s240 + $0x178] sm:$0xff]
        %v7550 = vld [vmem:[%s240 + $0x180] sm:$0xff]
        %v7551 = vld [vmem:[%s240 + $0x188] sm:$0xff]
        %v7552 = vld [vmem:[%s240 + $0x190] sm:$0xff]
        %v7553 = vld [vmem:[%s240 + $0x198] sm:$0xff]
        %v7554 = vld [vmem:[%s240 + $0x1a0] sm:$0xff]
        %v7555 = vld [vmem:[%s240 + $0x1a8] sm:$0xff]
        %v7556 = vld [vmem:[%s240 + $0x1b0] sm:$0xff]
        %v7557 = vld [vmem:[%s240 + $0x1b8] sm:$0xff]
        %v7558 = vld [vmem:[%s240 + $0x1c0] sm:$0xff]
        %v7559 = vld [vmem:[%s240 + $0x1c8] sm:$0xff]
        %v7560 = vld [vmem:[%s240 + $0x1d0] sm:$0xff]
        %v7561 = vld [vmem:[%s240 + $0x1d8] sm:$0xff]
        %v7562 = vld [vmem:[%s240 + $0x1e0] sm:$0xff]
        %v7563 = vld [vmem:[%s240 + $0x1e8] sm:$0xff]
        %v7564 = vld [vmem:[%s240 + $0x1f0] sm:$0xff]
        %v7565 = vld [vmem:[%s240 + $0x1f8] sm:$0xff]
        %v7566 = vld [vmem:[%s240 + $0x200] sm:$0xff]
        %v7567 = vld [vmem:[%s240 + $0x208] sm:$0xff]
        %v7568 = vld [vmem:[%s240 + $0x210] sm:$0xff]
        %v7569 = vld [vmem:[%s240 + $0x218] sm:$0xff]
        %v7570 = vld [vmem:[%s240 + $0x220] sm:$0xff]
        %v7571 = vld [vmem:[%s240 + $0x228] sm:$0xff]
        %v7572 = vld [vmem:[%s240 + $0x230] sm:$0xff]
        %v7573 = vld [vmem:[%s240 + $0x238] sm:$0xff]
        %v7574 = vld [vmem:[%s240 + $0x240] sm:$0xff]
        %v7575 = vld [vmem:[%s240 + $0x248] sm:$0xff]
        %v7576 = vld [vmem:[%s240 + $0x250] sm:$0xff]
        %v7577 = vld [vmem:[%s240 + $0x258] sm:$0xff]
        %v7578 = vld [vmem:[%s240 + $0x260] sm:$0xff]
        %v7579 = vld [vmem:[%s240 + $0x268] sm:$0xff]
        %v7580 = vld [vmem:[%s240 + $0x270] sm:$0xff]
        %v7581 = vld [vmem:[%s240 + $0x278] sm:$0xff]
        %v7582 = vld [vmem:[%s240 + $0x280] sm:$0xff]
        %v7583 = vld [vmem:[%s240 + $0x288] sm:$0xff]
        %v7584 = vld [vmem:[%s240 + $0x290] sm:$0xff]
        %v7585 = vld [vmem:[%s240 + $0x298] sm:$0xff]
        %v7586 = vld [vmem:[%s240 + $0x2a0] sm:$0xff]
        %v7587 = vld [vmem:[%s240 + $0x2a8] sm:$0xff]
        %v7588 = vld [vmem:[%s240 + $0x2b0] sm:$0xff]
        %v7589 = vld [vmem:[%s240 + $0x2b8] sm:$0xff]
        %v7590 = vld [vmem:[%s240 + $0x2c0] sm:$0xff]
        %v7591 = vld [vmem:[%s240 + $0x2c8] sm:$0xff]
        %v7592 = vld [vmem:[%s240 + $0x2d0] sm:$0xff]
        %v7593 = vld [vmem:[%s240 + $0x2d8] sm:$0xff]
        %v7594 = vld [vmem:[%s240 + $0x2e0] sm:$0xff]
        %v7595 = vld [vmem:[%s240 + $0x2e8] sm:$0xff]
        %v7596 = vld [vmem:[%s240 + $0x2f0] sm:$0xff]
        %v7597 = vld [vmem:[%s240 + $0x2f8] sm:$0xff]
        %v7598 = vld [vmem:[%s240 + $0x300] sm:$0xff]
        %v7599 = vld [vmem:[%s240 + $0x308] sm:$0xff]
        %v7600 = vld [vmem:[%s240 + $0x310] sm:$0xff]
        %v7601 = vld [vmem:[%s240 + $0x318] sm:$0xff]
        %v7602 = vld [vmem:[%s240 + $0x320] sm:$0xff]
        %v7603 = vld [vmem:[%s240 + $0x328] sm:$0xff]
        %v7604 = vld [vmem:[%s240 + $0x330] sm:$0xff]
        %v7605 = vld [vmem:[%s240 + $0x338] sm:$0xff]
        %v7606 = vadd.f32 %v7502, %v7503
        %v7607 = vadd.f32 %v7606, %v7504
        %v7608 = vadd.f32 %v7607, %v7505
        %v7609 = vadd.f32 %v7608, %v7506
        %v7610 = vadd.f32 %v7609, %v7507
        %v7611 = vadd.f32 %v7610, %v7508
        %v7612 = vadd.f32 %v7611, %v7509
        %v7613 = vadd.f32 %v7612, %v7510
        %v7614 = vadd.f32 %v7613, %v7511
        %v7615 = vadd.f32 %v7614, %v7512
        %v7616 = vadd.f32 %v7615, %v7513
        %v7617 = vadd.f32 %v7616, %v7514
        %v7618 = vadd.f32 %v7617, %v7515
        %v7619 = vadd.f32 %v7618, %v7516
        %v7620 = vadd.f32 %v7619, %v7517
        %v7621 = vadd.f32 %v7620, %v7518
        %v7622 = vadd.f32 %v7621, %v7519
        %v7623 = vadd.f32 %v7622, %v7520
        %v7624 = vadd.f32 %v7623, %v7521
        %v7625 = vadd.f32 %v7624, %v7522
        %v7626 = vadd.f32 %v7625, %v7523
        %v7627 = vadd.f32 %v7626, %v7524
        %v7628 = vadd.f32 %v7627, %v7525
        %v7629 = vadd.f32 %v7628, %v7526
        %v7630 = vadd.f32 %v7629, %v7527
        %7631 = vadd.xlane.f32.xlu0 %v7630
        %v7632 = vpop.xlane.xlu0 %7631
        %v7633 = vadd.f32 %v7528, %v7529
        %v7634 = vadd.f32 %v7633, %v7530
        %v7635 = vadd.f32 %v7634, %v7531
        %v7636 = vadd.f32 %v7635, %v7532
        %v7637 = vadd.f32 %v7636, %v7533
        %v7638 = vadd.f32 %v7637, %v7534
        %v7639 = vadd.f32 %v7638, %v7535
        %v7640 = vadd.f32 %v7639, %v7536
        %v7641 = vadd.f32 %v7640, %v7537
        %v7642 = vadd.f32 %v7641, %v7538
        %v7643 = vadd.f32 %v7642, %v7539
        %v7644 = vadd.f32 %v7643, %v7540
        %v7645 = vadd.f32 %v7644, %v7541
        %v7646 = vadd.f32 %v7645, %v7542
        %v7647 = vadd.f32 %v7646, %v7543
        %v7648 = vadd.f32 %v7647, %v7544
        %v7649 = vadd.f32 %v7648, %v7545
        %v7650 = vadd.f32 %v7649, %v7546
        %v7651 = vadd.f32 %v7650, %v7547
        %v7652 = vadd.f32 %v7651, %v7548
        %v7653 = vadd.f32 %v7652, %v7549
        %v7654 = vadd.f32 %v7653, %v7550
        %v7655 = vadd.f32 %v7654, %v7551
        %v7656 = vadd.f32 %v7655, %v7552
        %v7657 = vadd.f32 %v7656, %v7553
        %7658 = vadd.xlane.f32.xlu0 %v7657
        %v7659 = vpop.xlane.xlu0 %7658
        %v7660 = vadd.f32 %v7554, %v7555
        %v7661 = vadd.f32 %v7660, %v7556
        %v7662 = vadd.f32 %v7661, %v7557
        %v7663 = vadd.f32 %v7662, %v7558
        %v7664 = vadd.f32 %v7663, %v7559
        %v7665 = vadd.f32 %v7664, %v7560
        %v7666 = vadd.f32 %v7665, %v7561
        %v7667 = vadd.f32 %v7666, %v7562
        %v7668 = vadd.f32 %v7667, %v7563
        %v7669 = vadd.f32 %v7668, %v7564
        %v7670 = vadd.f32 %v7669, %v7565
        %v7671 = vadd.f32 %v7670, %v7566
        %v7672 = vadd.f32 %v7671, %v7567
        %v7673 = vadd.f32 %v7672, %v7568
        %v7674 = vadd.f32 %v7673, %v7569
        %v7675 = vadd.f32 %v7674, %v7570
        %v7676 = vadd.f32 %v7675, %v7571
        %v7677 = vadd.f32 %v7676, %v7572
        %v7678 = vadd.f32 %v7677, %v7573
        %v7679 = vadd.f32 %v7678, %v7574
        %v7680 = vadd.f32 %v7679, %v7575
        %v7681 = vadd.f32 %v7680, %v7576
        %v7682 = vadd.f32 %v7681, %v7577
        %v7683 = vadd.f32 %v7682, %v7578
        %v7684 = vadd.f32 %v7683, %v7579
        %7685 = vadd.xlane.f32.xlu0 %v7684
        %v7686 = vpop.xlane.xlu0 %7685
        %v7687 = vadd.f32 %v7580, %v7581
        %v7688 = vadd.f32 %v7687, %v7582
        %v7689 = vadd.f32 %v7688, %v7583
        %v7690 = vadd.f32 %v7689, %v7584
        %v7691 = vadd.f32 %v7690, %v7585
        %v7692 = vadd.f32 %v7691, %v7586
        %v7693 = vadd.f32 %v7692, %v7587
        %v7694 = vadd.f32 %v7693, %v7588
        %v7695 = vadd.f32 %v7694, %v7589
        %v7696 = vadd.f32 %v7695, %v7590
        %v7697 = vadd.f32 %v7696, %v7591
        %v7698 = vadd.f32 %v7697, %v7592
        %v7699 = vadd.f32 %v7698, %v7593
        %v7700 = vadd.f32 %v7699, %v7594
        %v7701 = vadd.f32 %v7700, %v7595
        %v7702 = vadd.f32 %v7701, %v7596
        %v7703 = vadd.f32 %v7702, %v7597
        %v7704 = vadd.f32 %v7703, %v7598
        %v7705 = vadd.f32 %v7704, %v7599
        %v7706 = vadd.f32 %v7705, %v7600
        %v7707 = vadd.f32 %v7706, %v7601
        %v7708 = vadd.f32 %v7707, %v7602
        %v7709 = vadd.f32 %v7708, %v7603
        %v7710 = vadd.f32 %v7709, %v7604
        %v7711 = vadd.f32 %v7710, %v7605
        %7712 = vadd.xlane.f32.xlu0 %v7711
        %v7713 = vpop.xlane.xlu0 %7712
        %v7714 = vmul.f32 %v7632, 0.00048828125
        %v7715 = vmul.f32 %v7659, 0.00048828125
        %v7716 = vmul.f32 %v7686, 0.00048828125
        %v7717 = vmul.f32 %v7713, 0.00048828125
        %v7718 = vsub.f32 %v7502, %v7714
        %v7719 = vsub.f32 %v7503, %v7714
        %v7720 = vsub.f32 %v7504, %v7714
        %v7721 = vsub.f32 %v7505, %v7714
        %v7722 = vsub.f32 %v7506, %v7714
        %v7723 = vsub.f32 %v7507, %v7714
        %v7724 = vsub.f32 %v7508, %v7714
        %v7725 = vsub.f32 %v7509, %v7714
        %v7726 = vsub.f32 %v7510, %v7714
        %v7727 = vsub.f32 %v7511, %v7714
        %v7728 = vsub.f32 %v7512, %v7714
        %v7729 = vsub.f32 %v7513, %v7714
        %v7730 = vsub.f32 %v7514, %v7714
        %v7731 = vsub.f32 %v7515, %v7714
        %v7732 = vsub.f32 %v7516, %v7714
        %v7733 = vsub.f32 %v7517, %v7714
        %v7734 = vsub.f32 %v7518, %v7714
        %v7735 = vsub.f32 %v7519, %v7714
        %v7736 = vsub.f32 %v7520, %v7714
        %v7737 = vsub.f32 %v7521, %v7714
        %v7738 = vsub.f32 %v7522, %v7714
        %v7739 = vsub.f32 %v7523, %v7714
        %v7740 = vsub.f32 %v7524, %v7714
        %v7741 = vsub.f32 %v7525, %v7714
        %v7742 = vsub.f32 %v7526, %v7714
        %v7743 = vsub.f32 %v7527, %v7714
        %v7744 = vsub.f32 %v7528, %v7715
        %v7745 = vsub.f32 %v7529, %v7715
        %v7746 = vsub.f32 %v7530, %v7715
        %v7747 = vsub.f32 %v7531, %v7715
        %v7748 = vsub.f32 %v7532, %v7715
        %v7749 = vsub.f32 %v7533, %v7715
        %v7750 = vsub.f32 %v7534, %v7715
        %v7751 = vsub.f32 %v7535, %v7715
        %v7752 = vsub.f32 %v7536, %v7715
        %v7753 = vsub.f32 %v7537, %v7715
        %v7754 = vsub.f32 %v7538, %v7715
        %v7755 = vsub.f32 %v7539, %v7715
        %v7756 = vsub.f32 %v7540, %v7715
        %v7757 = vsub.f32 %v7541, %v7715
        %v7758 = vsub.f32 %v7542, %v7715
        %v7759 = vsub.f32 %v7543, %v7715
        %v7760 = vsub.f32 %v7544, %v7715
        %v7761 = vsub.f32 %v7545, %v7715
        %v7762 = vsub.f32 %v7546, %v7715
        %v7763 = vsub.f32 %v7547, %v7715
        %v7764 = vsub.f32 %v7548, %v7715
        %v7765 = vsub.f32 %v7549, %v7715
        %v7766 = vsub.f32 %v7550, %v7715
        %v7767 = vsub.f32 %v7551, %v7715
        %v7768 = vsub.f32 %v7552, %v7715
        %v7769 = vsub.f32 %v7553, %v7715
        %v7770 = vsub.f32 %v7554, %v7716
        %v7771 = vsub.f32 %v7555, %v7716
        %v7772 = vsub.f32 %v7556, %v7716
        %v7773 = vsub.f32 %v7557, %v7716
        %v7774 = vsub.f32 %v7558, %v7716
        %v7775 = vsub.f32 %v7559, %v7716
        %v7776 = vsub.f32 %v7560, %v7716
        %v7777 = vsub.f32 %v7561, %v7716
        %v7778 = vsub.f32 %v7562, %v7716
        %v7779 = vsub.f32 %v7563, %v7716
        %v7780 = vsub.f32 %v7564, %v7716
        %v7781 = vsub.f32 %v7565, %v7716
        %v7782 = vsub.f32 %v7566, %v7716
        %v7783 = vsub.f32 %v7567, %v7716
        %v7784 = vsub.f32 %v7568, %v7716
        %v7785 = vsub.f32 %v7569, %v7716
        %v7786 = vsub.f32 %v7570, %v7716
        %v7787 = vsub.f32 %v7571, %v7716
        %v7788 = vsub.f32 %v7572, %v7716
        %v7789 = vsub.f32 %v7573, %v7716
        %v7790 = vsub.f32 %v7574, %v7716
        %v7791 = vsub.f32 %v7575, %v7716
        %v7792 = vsub.f32 %v7576, %v7716
        %v7793 = vsub.f32 %v7577, %v7716
        %v7794 = vsub.f32 %v7578, %v7716
        %v7795 = vsub.f32 %v7579, %v7716
        %v7796 = vsub.f32 %v7580, %v7717
        %v7797 = vsub.f32 %v7581, %v7717
        %v7798 = vsub.f32 %v7582, %v7717
        %v7799 = vsub.f32 %v7583, %v7717
        %v7800 = vsub.f32 %v7584, %v7717
        %v7801 = vsub.f32 %v7585, %v7717
        %v7802 = vsub.f32 %v7586, %v7717
        %v7803 = vsub.f32 %v7587, %v7717
        %v7804 = vsub.f32 %v7588, %v7717
        %v7805 = vsub.f32 %v7589, %v7717
        %v7806 = vsub.f32 %v7590, %v7717
        %v7807 = vsub.f32 %v7591, %v7717
        %v7808 = vsub.f32 %v7592, %v7717
        %v7809 = vsub.f32 %v7593, %v7717
        %v7810 = vsub.f32 %v7594, %v7717
        %v7811 = vsub.f32 %v7595, %v7717
        %v7812 = vsub.f32 %v7596, %v7717
        %v7813 = vsub.f32 %v7597, %v7717
        %v7814 = vsub.f32 %v7598, %v7717
        %v7815 = vsub.f32 %v7599, %v7717
        %v7816 = vsub.f32 %v7600, %v7717
        %v7817 = vsub.f32 %v7601, %v7717
        %v7818 = vsub.f32 %v7602, %v7717
        %v7819 = vsub.f32 %v7603, %v7717
        %v7820 = vsub.f32 %v7604, %v7717
        %v7821 = vsub.f32 %v7605, %v7717
        %v7822 = vmul.f32 %v7718, %v7718
        %v7823 = vmul.f32 %v7719, %v7719
        %v7824 = vmul.f32 %v7720, %v7720
        %v7825 = vmul.f32 %v7721, %v7721
        %v7826 = vmul.f32 %v7722, %v7722
        %v7827 = vmul.f32 %v7723, %v7723
        %v7828 = vmul.f32 %v7724, %v7724
        %v7829 = vmul.f32 %v7725, %v7725
        %v7830 = vmul.f32 %v7726, %v7726
        %v7831 = vmul.f32 %v7727, %v7727
        %v7832 = vmul.f32 %v7728, %v7728
        %v7833 = vmul.f32 %v7729, %v7729
        %v7834 = vmul.f32 %v7730, %v7730
        %v7835 = vmul.f32 %v7731, %v7731
        %v7836 = vmul.f32 %v7732, %v7732
        %v7837 = vmul.f32 %v7733, %v7733
        %v7838 = vmul.f32 %v7734, %v7734
        %v7839 = vmul.f32 %v7735, %v7735
        %v7840 = vmul.f32 %v7736, %v7736
        %v7841 = vmul.f32 %v7737, %v7737
        %v7842 = vmul.f32 %v7738, %v7738
        %v7843 = vmul.f32 %v7739, %v7739
        %v7844 = vmul.f32 %v7740, %v7740
        %v7845 = vmul.f32 %v7741, %v7741
        %v7846 = vmul.f32 %v7742, %v7742
        %v7847 = vmul.f32 %v7743, %v7743
        %v7848 = vmul.f32 %v7744, %v7744
        %v7849 = vmul.f32 %v7745, %v7745
        %v7850 = vmul.f32 %v7746, %v7746
        %v7851 = vmul.f32 %v7747, %v7747
        %v7852 = vmul.f32 %v7748, %v7748
        %v7853 = vmul.f32 %v7749, %v7749
        %v7854 = vmul.f32 %v7750, %v7750
        %v7855 = vmul.f32 %v7751, %v7751
        %v7856 = vmul.f32 %v7752, %v7752
        %v7857 = vmul.f32 %v7753, %v7753
        %v7858 = vmul.f32 %v7754, %v7754
        %v7859 = vmul.f32 %v7755, %v7755
        %v7860 = vmul.f32 %v7756, %v7756
        %v7861 = vmul.f32 %v7757, %v7757
        %v7862 = vmul.f32 %v7758, %v7758
        %v7863 = vmul.f32 %v7759, %v7759
        %v7864 = vmul.f32 %v7760, %v7760
        %v7865 = vmul.f32 %v7761, %v7761
        %v7866 = vmul.f32 %v7762, %v7762
        %v7867 = vmul.f32 %v7763, %v7763
        %v7868 = vmul.f32 %v7764, %v7764
        %v7869 = vmul.f32 %v7765, %v7765
        %v7870 = vmul.f32 %v7766, %v7766
        %v7871 = vmul.f32 %v7767, %v7767
        %v7872 = vmul.f32 %v7768, %v7768
        %v7873 = vmul.f32 %v7769, %v7769
        %v7874 = vmul.f32 %v7770, %v7770
        %v7875 = vmul.f32 %v7771, %v7771
        %v7876 = vmul.f32 %v7772, %v7772
        %v7877 = vmul.f32 %v7773, %v7773
        %v7878 = vmul.f32 %v7774, %v7774
        %v7879 = vmul.f32 %v7775, %v7775
        %v7880 = vmul.f32 %v7776, %v7776
        %v7881 = vmul.f32 %v7777, %v7777
        %v7882 = vmul.f32 %v7778, %v7778
        %v7883 = vmul.f32 %v7779, %v7779
        %v7884 = vmul.f32 %v7780, %v7780
        %v7885 = vmul.f32 %v7781, %v7781
        %v7886 = vmul.f32 %v7782, %v7782
        %v7887 = vmul.f32 %v7783, %v7783
        %v7888 = vmul.f32 %v7784, %v7784
        %v7889 = vmul.f32 %v7785, %v7785
        %v7890 = vmul.f32 %v7786, %v7786
        %v7891 = vmul.f32 %v7787, %v7787
        %v7892 = vmul.f32 %v7788, %v7788
        %v7893 = vmul.f32 %v7789, %v7789
        %v7894 = vmul.f32 %v7790, %v7790
        %v7895 = vmul.f32 %v7791, %v7791
        %v7896 = vmul.f32 %v7792, %v7792
        %v7897 = vmul.f32 %v7793, %v7793
        %v7898 = vmul.f32 %v7794, %v7794
        %v7899 = vmul.f32 %v7795, %v7795
        %v7900 = vmul.f32 %v7796, %v7796
        %v7901 = vmul.f32 %v7797, %v7797
        %v7902 = vmul.f32 %v7798, %v7798
        %v7903 = vmul.f32 %v7799, %v7799
        %v7904 = vmul.f32 %v7800, %v7800
        %v7905 = vmul.f32 %v7801, %v7801
        %v7906 = vmul.f32 %v7802, %v7802
        %v7907 = vmul.f32 %v7803, %v7803
        %v7908 = vmul.f32 %v7804, %v7804
        %v7909 = vmul.f32 %v7805, %v7805
        %v7910 = vmul.f32 %v7806, %v7806
        %v7911 = vmul.f32 %v7807, %v7807
        %v7912 = vmul.f32 %v7808, %v7808
        %v7913 = vmul.f32 %v7809, %v7809
        %v7914 = vmul.f32 %v7810, %v7810
        %v7915 = vmul.f32 %v7811, %v7811
        %v7916 = vmul.f32 %v7812, %v7812
        %v7917 = vmul.f32 %v7813, %v7813
        %v7918 = vmul.f32 %v7814, %v7814
        %v7919 = vmul.f32 %v7815, %v7815
        %v7920 = vmul.f32 %v7816, %v7816
        %v7921 = vmul.f32 %v7817, %v7817
        %v7922 = vmul.f32 %v7818, %v7818
        %v7923 = vmul.f32 %v7819, %v7819
        %v7924 = vmul.f32 %v7820, %v7820
        %v7925 = vmul.f32 %v7821, %v7821
        %v7926 = vadd.f32 %v7822, %v7823
        %v7927 = vadd.f32 %v7926, %v7824
        %v7928 = vadd.f32 %v7927, %v7825
        %v7929 = vadd.f32 %v7928, %v7826
        %v7930 = vadd.f32 %v7929, %v7827
        %v7931 = vadd.f32 %v7930, %v7828
        %v7932 = vadd.f32 %v7931, %v7829
        %v7933 = vadd.f32 %v7932, %v7830
        %v7934 = vadd.f32 %v7933, %v7831
        %v7935 = vadd.f32 %v7934, %v7832
        %v7936 = vadd.f32 %v7935, %v7833
        %v7937 = vadd.f32 %v7936, %v7834
        %v7938 = vadd.f32 %v7937, %v7835
        %v7939 = vadd.f32 %v7938, %v7836
        %v7940 = vadd.f32 %v7939, %v7837
        %v7941 = vadd.f32 %v7940, %v7838
        %v7942 = vadd.f32 %v7941, %v7839
        %v7943 = vadd.f32 %v7942, %v7840
        %v7944 = vadd.f32 %v7943, %v7841
        %v7945 = vadd.f32 %v7944, %v7842
        %v7946 = vadd.f32 %v7945, %v7843
        %v7947 = vadd.f32 %v7946, %v7844
        %v7948 = vadd.f32 %v7947, %v7845
        %v7949 = vadd.f32 %v7948, %v7846
        %v7950 = vadd.f32 %v7949, %v7847
        %7951 = vadd.xlane.f32.xlu0 %v7950
        %v7952 = vpop.xlane.xlu0 %7951
        %v7953 = vadd.f32 %v7848, %v7849
        %v7954 = vadd.f32 %v7953, %v7850
        %v7955 = vadd.f32 %v7954, %v7851
        %v7956 = vadd.f32 %v7955, %v7852
        %v7957 = vadd.f32 %v7956, %v7853
        %v7958 = vadd.f32 %v7957, %v7854
        %v7959 = vadd.f32 %v7958, %v7855
        %v7960 = vadd.f32 %v7959, %v7856
        %v7961 = vadd.f32 %v7960, %v7857
        %v7962 = vadd.f32 %v7961, %v7858
        %v7963 = vadd.f32 %v7962, %v7859
        %v7964 = vadd.f32 %v7963, %v7860
        %v7965 = vadd.f32 %v7964, %v7861
        %v7966 = vadd.f32 %v7965, %v7862
        %v7967 = vadd.f32 %v7966, %v7863
        %v7968 = vadd.f32 %v7967, %v7864
        %v7969 = vadd.f32 %v7968, %v7865
        %v7970 = vadd.f32 %v7969, %v7866
        %v7971 = vadd.f32 %v7970, %v7867
        %v7972 = vadd.f32 %v7971, %v7868
        %v7973 = vadd.f32 %v7972, %v7869
        %v7974 = vadd.f32 %v7973, %v7870
        %v7975 = vadd.f32 %v7974, %v7871
        %v7976 = vadd.f32 %v7975, %v7872
        %v7977 = vadd.f32 %v7976, %v7873
        %7978 = vadd.xlane.f32.xlu0 %v7977
        %v7979 = vpop.xlane.xlu0 %7978
        %v7980 = vadd.f32 %v7874, %v7875
        %v7981 = vadd.f32 %v7980, %v7876
        %v7982 = vadd.f32 %v7981, %v7877
        %v7983 = vadd.f32 %v7982, %v7878
        %v7984 = vadd.f32 %v7983, %v7879
        %v7985 = vadd.f32 %v7984, %v7880
        %v7986 = vadd.f32 %v7985, %v7881
        %v7987 = vadd.f32 %v7986, %v7882
        %v7988 = vadd.f32 %v7987, %v7883
        %v7989 = vadd.f32 %v7988, %v7884
        %v7990 = vadd.f32 %v7989, %v7885
        %v7991 = vadd.f32 %v7990, %v7886
        %v7992 = vadd.f32 %v7991, %v7887
        %v7993 = vadd.f32 %v7992, %v7888
        %v7994 = vadd.f32 %v7993, %v7889
        %v7995 = vadd.f32 %v7994, %v7890
        %v7996 = vadd.f32 %v7995, %v7891
        %v7997 = vadd.f32 %v7996, %v7892
        %v7998 = vadd.f32 %v7997, %v7893
        %v7999 = vadd.f32 %v7998, %v7894
        %v8000 = vadd.f32 %v7999, %v7895
        %v8001 = vadd.f32 %v8000, %v7896
        %v8002 = vadd.f32 %v8001, %v7897
        %v8003 = vadd.f32 %v8002, %v7898
        %v8004 = vadd.f32 %v8003, %v7899
        %8005 = vadd.xlane.f32.xlu0 %v8004
        %v8006 = vpop.xlane.xlu0 %8005
        %v8007 = vadd.f32 %v7900, %v7901
        %v8008 = vadd.f32 %v8007, %v7902
        %v8009 = vadd.f32 %v8008, %v7903
        %v8010 = vadd.f32 %v8009, %v7904
        %v8011 = vadd.f32 %v8010, %v7905
        %v8012 = vadd.f32 %v8011, %v7906
        %v8013 = vadd.f32 %v8012, %v7907
        %v8014 = vadd.f32 %v8013, %v7908
        %v8015 = vadd.f32 %v8014, %v7909
        %v8016 = vadd.f32 %v8015, %v7910
        %v8017 = vadd.f32 %v8016, %v7911
        %v8018 = vadd.f32 %v8017, %v7912
        %v8019 = vadd.f32 %v8018, %v7913
        %v8020 = vadd.f32 %v8019, %v7914
        %v8021 = vadd.f32 %v8020, %v7915
        %v8022 = vadd.f32 %v8021, %v7916
        %v8023 = vadd.f32 %v8022, %v7917
        %v8024 = vadd.f32 %v8023, %v7918
        %v8025 = vadd.f32 %v8024, %v7919
        %v8026 = vadd.f32 %v8025, %v7920
        %v8027 = vadd.f32 %v8026, %v7921
        %v8028 = vadd.f32 %v8027, %v7922
        %v8029 = vadd.f32 %v8028, %v7923
        %v8030 = vadd.f32 %v8029, %v7924
        %v8031 = vadd.f32 %v8030, %v7925
        %8032 = vadd.xlane.f32.xlu0 %v8031
        %v8033 = vpop.xlane.xlu0 %8032
        %v8034 = vmul.f32 %v7714, 1280.0
        %v8035 = vmul.f32 %v7715, 1280.0
        %v8036 = vmul.f32 %v7716, 1280.0
        %v8037 = vmul.f32 %v7717, 1280.0
        %v8038 = vmul.f32 %v8034, %v7714
        %v8039 = vmul.f32 %v8035, %v7715
        %v8040 = vmul.f32 %v8036, %v7716
        %v8041 = vmul.f32 %v8037, %v7717
        %v8042 = vsub.f32 %v7952, %v8038
        %v8043 = vsub.f32 %v7979, %v8039
        %v8044 = vsub.f32 %v8006, %v8040
        %v8045 = vsub.f32 %v8033, %v8041
        %v8046 = vmul.f32 %v8042, 0.00048828125
        %v8047 = vmul.f32 %v8043, 0.00048828125
        %v8048 = vmul.f32 %v8044, 0.00048828125
        %v8049 = vmul.f32 %v8045, 0.00048828125
        %v8050 = vmax.f32 %v8046, 0.0
        %v8051 = vmax.f32 %v8047, 0.0
        %v8052 = vmax.f32 %v8048, 0.0
        %v8053 = vmax.f32 %v8049, 0.0
        %v8054 = vadd.f32 %v8050, 1e-05
        %v8055 = vadd.f32 %v8051, 1e-05
        %v8056 = vadd.f32 %v8052, 1e-05
        %v8057 = vadd.f32 %v8053, 1e-05
        %v8058 = vrsqrt.pop %v8054
        %v8059 = vrsqrt.pop %v8055
        %v8060 = vrsqrt.pop %v8056
        %v8061 = vrsqrt.pop %v8057
        %v8062 = vld [vmem:[%s2] sm:$0xff]
        %v8063 = vld [vmem:[%s2 + $0x8] sm:$0xff]
        %v8064 = vld [vmem:[%s2 + $0x10] sm:$0xff]
        %v8065 = vld [vmem:[%s2 + $0x18] sm:$0xff]
        %v8066 = vmul.f32 %v8058, %v8062
        %v8067 = vmul.f32 %v8059, %v8063
        %v8068 = vmul.f32 %v8060, %v8064
        %v8069 = vmul.f32 %v8061, %v8065
        %8071 = vset.pattern.permute.xlu0 0
        %8072 = vperm.xlu0 %8071, %v8066
        %v8073 = vpop.permute.xlu0 %8072
        %8076 = vset.pattern.permute.xlu0 0
        %8077 = vperm.xlu0 %8076, %v8067
        %v8078 = vpop.permute.xlu0 %8077
        %8081 = vset.pattern.permute.xlu0 0
        %8082 = vperm.xlu0 %8081, %v8068
        %v8083 = vpop.permute.xlu0 %8082
        %8086 = vset.pattern.permute.xlu0 0
        %8087 = vperm.xlu0 %8086, %v8069
        %v8088 = vpop.permute.xlu0 %8087
        %v8090 = vmul.f32 %v7718, %v8073
        %v8091 = vmul.f32 %v7719, %v8073
        %v8092 = vmul.f32 %v7720, %v8073
        %v8093 = vmul.f32 %v7721, %v8073
        %v8094 = vmul.f32 %v7722, %v8073
        %v8095 = vmul.f32 %v7723, %v8073
        %v8096 = vmul.f32 %v7724, %v8073
        %v8097 = vmul.f32 %v7725, %v8073
        %v8098 = vmul.f32 %v7726, %v8073
        %v8099 = vmul.f32 %v7727, %v8073
        %v8100 = vmul.f32 %v7728, %v8073
        %v8101 = vmul.f32 %v7729, %v8073
        %v8102 = vmul.f32 %v7730, %v8073
        %v8103 = vmul.f32 %v7731, %v8073
        %v8104 = vmul.f32 %v7732, %v8073
        %v8105 = vmul.f32 %v7733, %v8073
        %v8106 = vmul.f32 %v7734, %v8073
        %v8107 = vmul.f32 %v7735, %v8073
        %v8108 = vmul.f32 %v7736, %v8073
        %v8109 = vmul.f32 %v7737, %v8073
        %v8110 = vmul.f32 %v7738, %v8073
        %v8111 = vmul.f32 %v7739, %v8073
        %v8112 = vmul.f32 %v7740, %v8073
        %v8113 = vmul.f32 %v7741, %v8073
        %v8114 = vmul.f32 %v7742, %v8073
        %v8115 = vmul.f32 %v7743, %v8073
        %v8116 = vmul.f32 %v7744, %v8078
        %v8117 = vmul.f32 %v7745, %v8078
        %v8118 = vmul.f32 %v7746, %v8078
        %v8119 = vmul.f32 %v7747, %v8078
        %v8120 = vmul.f32 %v7748, %v8078
        %v8121 = vmul.f32 %v7749, %v8078
        %v8122 = vmul.f32 %v7750, %v8078
        %v8123 = vmul.f32 %v7751, %v8078
        %v8124 = vmul.f32 %v7752, %v8078
        %v8125 = vmul.f32 %v7753, %v8078
        %v8126 = vmul.f32 %v7754, %v8078
        %v8127 = vmul.f32 %v7755, %v8078
        %v8128 = vmul.f32 %v7756, %v8078
        %v8129 = vmul.f32 %v7757, %v8078
        %v8130 = vmul.f32 %v7758, %v8078
        %v8131 = vmul.f32 %v7759, %v8078
        %v8132 = vmul.f32 %v7760, %v8078
        %v8133 = vmul.f32 %v7761, %v8078
        %v8134 = vmul.f32 %v7762, %v8078
        %v8135 = vmul.f32 %v7763, %v8078
        %v8136 = vmul.f32 %v7764, %v8078
        %v8137 = vmul.f32 %v7765, %v8078
        %v8138 = vmul.f32 %v7766, %v8078
        %v8139 = vmul.f32 %v7767, %v8078
        %v8140 = vmul.f32 %v7768, %v8078
        %v8141 = vmul.f32 %v7769, %v8078
        %v8142 = vmul.f32 %v7770, %v8083
        %v8143 = vmul.f32 %v7771, %v8083
        %v8144 = vmul.f32 %v7772, %v8083
        %v8145 = vmul.f32 %v7773, %v8083
        %v8146 = vmul.f32 %v7774, %v8083
        %v8147 = vmul.f32 %v7775, %v8083
        %v8148 = vmul.f32 %v7776, %v8083
        %v8149 = vmul.f32 %v7777, %v8083
        %v8150 = vmul.f32 %v7778, %v8083
        %v8151 = vmul.f32 %v7779, %v8083
        %v8152 = vmul.f32 %v7780, %v8083
        %v8153 = vmul.f32 %v7781, %v8083
        %v8154 = vmul.f32 %v7782, %v8083
        %v8155 = vmul.f32 %v7783, %v8083
        %v8156 = vmul.f32 %v7784, %v8083
        %v8157 = vmul.f32 %v7785, %v8083
        %v8158 = vmul.f32 %v7786, %v8083
        %v8159 = vmul.f32 %v7787, %v8083
        %v8160 = vmul.f32 %v7788, %v8083
        %v8161 = vmul.f32 %v7789, %v8083
        %v8162 = vmul.f32 %v7790, %v8083
        %v8163 = vmul.f32 %v7791, %v8083
        %v8164 = vmul.f32 %v7792, %v8083
        %v8165 = vmul.f32 %v7793, %v8083
        %v8166 = vmul.f32 %v7794, %v8083
        %v8167 = vmul.f32 %v7795, %v8083
        %v8168 = vmul.f32 %v7796, %v8088
        %v8169 = vmul.f32 %v7797, %v8088
        %v8170 = vmul.f32 %v7798, %v8088
        %v8171 = vmul.f32 %v7799, %v8088
        %v8172 = vmul.f32 %v7800, %v8088
        %v8173 = vmul.f32 %v7801, %v8088
        %v8174 = vmul.f32 %v7802, %v8088
        %v8175 = vmul.f32 %v7803, %v8088
        %v8176 = vmul.f32 %v7804, %v8088
        %v8177 = vmul.f32 %v7805, %v8088
        %v8178 = vmul.f32 %v7806, %v8088
        %v8179 = vmul.f32 %v7807, %v8088
        %v8180 = vmul.f32 %v7808, %v8088
        %v8181 = vmul.f32 %v7809, %v8088
        %v8182 = vmul.f32 %v7810, %v8088
        %v8183 = vmul.f32 %v7811, %v8088
        %v8184 = vmul.f32 %v7812, %v8088
        %v8185 = vmul.f32 %v7813, %v8088
        %v8186 = vmul.f32 %v7814, %v8088
        %v8187 = vmul.f32 %v7815, %v8088
        %v8188 = vmul.f32 %v7816, %v8088
        %v8189 = vmul.f32 %v7817, %v8088
        %v8190 = vmul.f32 %v7818, %v8088
        %v8191 = vmul.f32 %v7819, %v8088
        %v8192 = vmul.f32 %v7820, %v8088
        %v8193 = vmul.f32 %v7821, %v8088
        %v8194 = vld [vmem:[%s3] sm:$0xff]
        %v8195 = vld [vmem:[%s3 + $0x8] sm:$0xff]
        %v8196 = vld [vmem:[%s3 + $0x10] sm:$0xff]
        %v8197 = vld [vmem:[%s3 + $0x18] sm:$0xff]
        %8199 = vset.pattern.permute.xlu0 0
        %8200 = vperm.xlu0 %8199, %v8194
        %v8201 = vpop.permute.xlu0 %8200
        %8204 = vset.pattern.permute.xlu0 0
        %8205 = vperm.xlu0 %8204, %v8195
        %v8206 = vpop.permute.xlu0 %8205
        %8209 = vset.pattern.permute.xlu0 0
        %8210 = vperm.xlu0 %8209, %v8196
        %v8211 = vpop.permute.xlu0 %8210
        %8214 = vset.pattern.permute.xlu0 0
        %8215 = vperm.xlu0 %8214, %v8197
        %v8216 = vpop.permute.xlu0 %8215
        %v8218 = vadd.f32 %v8090, %v8201
        %v8219 = vadd.f32 %v8091, %v8201
        %v8220 = vadd.f32 %v8092, %v8201
        %v8221 = vadd.f32 %v8093, %v8201
        %v8222 = vadd.f32 %v8094, %v8201
        %v8223 = vadd.f32 %v8095, %v8201
        %v8224 = vadd.f32 %v8096, %v8201
        %v8225 = vadd.f32 %v8097, %v8201
        %v8226 = vadd.f32 %v8098, %v8201
        %v8227 = vadd.f32 %v8099, %v8201
        %v8228 = vadd.f32 %v8100, %v8201
        %v8229 = vadd.f32 %v8101, %v8201
        %v8230 = vadd.f32 %v8102, %v8201
        %v8231 = vadd.f32 %v8103, %v8201
        %v8232 = vadd.f32 %v8104, %v8201
        %v8233 = vadd.f32 %v8105, %v8201
        %v8234 = vadd.f32 %v8106, %v8201
        %v8235 = vadd.f32 %v8107, %v8201
        %v8236 = vadd.f32 %v8108, %v8201
        %v8237 = vadd.f32 %v8109, %v8201
        %v8238 = vadd.f32 %v8110, %v8201
        %v8239 = vadd.f32 %v8111, %v8201
        %v8240 = vadd.f32 %v8112, %v8201
        %v8241 = vadd.f32 %v8113, %v8201
        %v8242 = vadd.f32 %v8114, %v8201
        %v8243 = vadd.f32 %v8115, %v8201
        %v8244 = vadd.f32 %v8116, %v8206
        %v8245 = vadd.f32 %v8117, %v8206
        %v8246 = vadd.f32 %v8118, %v8206
        %v8247 = vadd.f32 %v8119, %v8206
        %v8248 = vadd.f32 %v8120, %v8206
        %v8249 = vadd.f32 %v8121, %v8206
        %v8250 = vadd.f32 %v8122, %v8206
        %v8251 = vadd.f32 %v8123, %v8206
        %v8252 = vadd.f32 %v8124, %v8206
        %v8253 = vadd.f32 %v8125, %v8206
        %v8254 = vadd.f32 %v8126, %v8206
        %v8255 = vadd.f32 %v8127, %v8206
        %v8256 = vadd.f32 %v8128, %v8206
        %v8257 = vadd.f32 %v8129, %v8206
        %v8258 = vadd.f32 %v8130, %v8206
        %v8259 = vadd.f32 %v8131, %v8206
        %v8260 = vadd.f32 %v8132, %v8206
        %v8261 = vadd.f32 %v8133, %v8206
        %v8262 = vadd.f32 %v8134, %v8206
        %v8263 = vadd.f32 %v8135, %v8206
        %v8264 = vadd.f32 %v8136, %v8206
        %v8265 = vadd.f32 %v8137, %v8206
        %v8266 = vadd.f32 %v8138, %v8206
        %v8267 = vadd.f32 %v8139, %v8206
        %v8268 = vadd.f32 %v8140, %v8206
        %v8269 = vadd.f32 %v8141, %v8206
        %v8270 = vadd.f32 %v8142, %v8211
        %v8271 = vadd.f32 %v8143, %v8211
        %v8272 = vadd.f32 %v8144, %v8211
        %v8273 = vadd.f32 %v8145, %v8211
        %v8274 = vadd.f32 %v8146, %v8211
        %v8275 = vadd.f32 %v8147, %v8211
        %v8276 = vadd.f32 %v8148, %v8211
        %v8277 = vadd.f32 %v8149, %v8211
        %v8278 = vadd.f32 %v8150, %v8211
        %v8279 = vadd.f32 %v8151, %v8211
        %v8280 = vadd.f32 %v8152, %v8211
        %v8281 = vadd.f32 %v8153, %v8211
        %v8282 = vadd.f32 %v8154, %v8211
        %v8283 = vadd.f32 %v8155, %v8211
        %v8284 = vadd.f32 %v8156, %v8211
        %v8285 = vadd.f32 %v8157, %v8211
        %v8286 = vadd.f32 %v8158, %v8211
        %v8287 = vadd.f32 %v8159, %v8211
        %v8288 = vadd.f32 %v8160, %v8211
        %v8289 = vadd.f32 %v8161, %v8211
        %v8290 = vadd.f32 %v8162, %v8211
        %v8291 = vadd.f32 %v8163, %v8211
        %v8292 = vadd.f32 %v8164, %v8211
        %v8293 = vadd.f32 %v8165, %v8211
        %v8294 = vadd.f32 %v8166, %v8211
        %v8295 = vadd.f32 %v8167, %v8211
        %v8296 = vadd.f32 %v8168, %v8216
        %v8297 = vadd.f32 %v8169, %v8216
        %v8298 = vadd.f32 %v8170, %v8216
        %v8299 = vadd.f32 %v8171, %v8216
        %v8300 = vadd.f32 %v8172, %v8216
        %v8301 = vadd.f32 %v8173, %v8216
        %v8302 = vadd.f32 %v8174, %v8216
        %v8303 = vadd.f32 %v8175, %v8216
        %v8304 = vadd.f32 %v8176, %v8216
        %v8305 = vadd.f32 %v8177, %v8216
        %v8306 = vadd.f32 %v8178, %v8216
        %v8307 = vadd.f32 %v8179, %v8216
        %v8308 = vadd.f32 %v8180, %v8216
        %v8309 = vadd.f32 %v8181, %v8216
        %v8310 = vadd.f32 %v8182, %v8216
        %v8311 = vadd.f32 %v8183, %v8216
        %v8312 = vadd.f32 %v8184, %v8216
        %v8313 = vadd.f32 %v8185, %v8216
        %v8314 = vadd.f32 %v8186, %v8216
        %v8315 = vadd.f32 %v8187, %v8216
        %v8316 = vadd.f32 %v8188, %v8216
        %v8317 = vadd.f32 %v8189, %v8216
        %v8318 = vadd.f32 %v8190, %v8216
        %v8319 = vadd.f32 %v8191, %v8216
        %v8320 = vadd.f32 %v8192, %v8216
        %v8321 = vadd.f32 %v8193, %v8216
        %v8322 = vmax.f32 %v8218, 0.0
        %v8323 = vmax.f32 %v8219, 0.0
        %v8324 = vmax.f32 %v8220, 0.0
        %v8325 = vmax.f32 %v8221, 0.0
        %v8326 = vmax.f32 %v8222, 0.0
        %v8327 = vmax.f32 %v8223, 0.0
        %v8328 = vmax.f32 %v8224, 0.0
        %v8329 = vmax.f32 %v8225, 0.0
        %v8330 = vmax.f32 %v8226, 0.0
        %v8331 = vmax.f32 %v8227, 0.0
        %v8332 = vmax.f32 %v8228, 0.0
        %v8333 = vmax.f32 %v8229, 0.0
        %v8334 = vmax.f32 %v8230, 0.0
        %v8335 = vmax.f32 %v8231, 0.0
        %v8336 = vmax.f32 %v8232, 0.0
        %v8337 = vmax.f32 %v8233, 0.0
        %v8338 = vmax.f32 %v8234, 0.0
        %v8339 = vmax.f32 %v8235, 0.0
        %v8340 = vmax.f32 %v8236, 0.0
        %v8341 = vmax.f32 %v8237, 0.0
        %v8342 = vmax.f32 %v8238, 0.0
        %v8343 = vmax.f32 %v8239, 0.0
        %v8344 = vmax.f32 %v8240, 0.0
        %v8345 = vmax.f32 %v8241, 0.0
        %v8346 = vmax.f32 %v8242, 0.0
        %v8347 = vmax.f32 %v8243, 0.0
        %v8348 = vmax.f32 %v8244, 0.0
        %v8349 = vmax.f32 %v8245, 0.0
        %v8350 = vmax.f32 %v8246, 0.0
        %v8351 = vmax.f32 %v8247, 0.0
        %v8352 = vmax.f32 %v8248, 0.0
        %v8353 = vmax.f32 %v8249, 0.0
        %v8354 = vmax.f32 %v8250, 0.0
        %v8355 = vmax.f32 %v8251, 0.0
        %v8356 = vmax.f32 %v8252, 0.0
        %v8357 = vmax.f32 %v8253, 0.0
        %v8358 = vmax.f32 %v8254, 0.0
        %v8359 = vmax.f32 %v8255, 0.0
        %v8360 = vmax.f32 %v8256, 0.0
        %v8361 = vmax.f32 %v8257, 0.0
        %v8362 = vmax.f32 %v8258, 0.0
        %v8363 = vmax.f32 %v8259, 0.0
        %v8364 = vmax.f32 %v8260, 0.0
        %v8365 = vmax.f32 %v8261, 0.0
        %v8366 = vmax.f32 %v8262, 0.0
        %v8367 = vmax.f32 %v8263, 0.0
        %v8368 = vmax.f32 %v8264, 0.0
        %v8369 = vmax.f32 %v8265, 0.0
        %v8370 = vmax.f32 %v8266, 0.0
        %v8371 = vmax.f32 %v8267, 0.0
        %v8372 = vmax.f32 %v8268, 0.0
        %v8373 = vmax.f32 %v8269, 0.0
        %v8374 = vmax.f32 %v8270, 0.0
        %v8375 = vmax.f32 %v8271, 0.0
        %v8376 = vmax.f32 %v8272, 0.0
        %v8377 = vmax.f32 %v8273, 0.0
        %v8378 = vmax.f32 %v8274, 0.0
        %v8379 = vmax.f32 %v8275, 0.0
        %v8380 = vmax.f32 %v8276, 0.0
        %v8381 = vmax.f32 %v8277, 0.0
        %v8382 = vmax.f32 %v8278, 0.0
        %v8383 = vmax.f32 %v8279, 0.0
        %v8384 = vmax.f32 %v8280, 0.0
        %v8385 = vmax.f32 %v8281, 0.0
        %v8386 = vmax.f32 %v8282, 0.0
        %v8387 = vmax.f32 %v8283, 0.0
        %v8388 = vmax.f32 %v8284, 0.0
        %v8389 = vmax.f32 %v8285, 0.0
        %v8390 = vmax.f32 %v8286, 0.0
        %v8391 = vmax.f32 %v8287, 0.0
        %v8392 = vmax.f32 %v8288, 0.0
        %v8393 = vmax.f32 %v8289, 0.0
        %v8394 = vmax.f32 %v8290, 0.0
        %v8395 = vmax.f32 %v8291, 0.0
        %v8396 = vmax.f32 %v8292, 0.0
        %v8397 = vmax.f32 %v8293, 0.0
        %v8398 = vmax.f32 %v8294, 0.0
        %v8399 = vmax.f32 %v8295, 0.0
        %v8400 = vmax.f32 %v8296, 0.0
        %v8401 = vmax.f32 %v8297, 0.0
        %v8402 = vmax.f32 %v8298, 0.0
        %v8403 = vmax.f32 %v8299, 0.0
        %v8404 = vmax.f32 %v8300, 0.0
        %v8405 = vmax.f32 %v8301, 0.0
        %v8406 = vmax.f32 %v8302, 0.0
        %v8407 = vmax.f32 %v8303, 0.0
        %v8408 = vmax.f32 %v8304, 0.0
        %v8409 = vmax.f32 %v8305, 0.0
        %v8410 = vmax.f32 %v8306, 0.0
        %v8411 = vmax.f32 %v8307, 0.0
        %v8412 = vmax.f32 %v8308, 0.0
        %v8413 = vmax.f32 %v8309, 0.0
        %v8414 = vmax.f32 %v8310, 0.0
        %v8415 = vmax.f32 %v8311, 0.0
        %v8416 = vmax.f32 %v8312, 0.0
        %v8417 = vmax.f32 %v8313, 0.0
        %v8418 = vmax.f32 %v8314, 0.0
        %v8419 = vmax.f32 %v8315, 0.0
        %v8420 = vmax.f32 %v8316, 0.0
        %v8421 = vmax.f32 %v8317, 0.0
        %v8422 = vmax.f32 %v8318, 0.0
        %v8423 = vmax.f32 %v8319, 0.0
        %v8424 = vmax.f32 %v8320, 0.0
        %v8425 = vmax.f32 %v8321, 0.0
        %8426 = vst [vmem:[%s240] sm:$0xff] %v8322
        %8427 = vst [vmem:[%s240 + $0x8] sm:$0xff] %v8323
        %8428 = vst [vmem:[%s240 + $0x10] sm:$0xff] %v8324
        %8429 = vst [vmem:[%s240 + $0x18] sm:$0xff] %v8325
        %8430 = vst [vmem:[%s240 + $0x20] sm:$0xff] %v8326
        %8431 = vst [vmem:[%s240 + $0x28] sm:$0xff] %v8327
        %8432 = vst [vmem:[%s240 + $0x30] sm:$0xff] %v8328
        %8433 = vst [vmem:[%s240 + $0x38] sm:$0xff] %v8329
        %8434 = vst [vmem:[%s240 + $0x40] sm:$0xff] %v8330
        %8435 = vst [vmem:[%s240 + $0x48] sm:$0xff] %v8331
        %8436 = vst [vmem:[%s240 + $0x50] sm:$0xff] %v8332
        %8437 = vst [vmem:[%s240 + $0x58] sm:$0xff] %v8333
        %8438 = vst [vmem:[%s240 + $0x60] sm:$0xff] %v8334
        %8439 = vst [vmem:[%s240 + $0x68] sm:$0xff] %v8335
        %8440 = vst [vmem:[%s240 + $0x70] sm:$0xff] %v8336
        %8441 = vst [vmem:[%s240 + $0x78] sm:$0xff] %v8337
        %8442 = vst [vmem:[%s240 + $0x80] sm:$0xff] %v8338
        %8443 = vst [vmem:[%s240 + $0x88] sm:$0xff] %v8339
        %8444 = vst [vmem:[%s240 + $0x90] sm:$0xff] %v8340
        %8445 = vst [vmem:[%s240 + $0x98] sm:$0xff] %v8341
        %8446 = vst [vmem:[%s240 + $0xa0] sm:$0xff] %v8342
        %8447 = vst [vmem:[%s240 + $0xa8] sm:$0xff] %v8343
        %8448 = vst [vmem:[%s240 + $0xb0] sm:$0xff] %v8344
        %8449 = vst [vmem:[%s240 + $0xb8] sm:$0xff] %v8345
        %8450 = vst [vmem:[%s240 + $0xc0] sm:$0xff] %v8346
        %8451 = vst [vmem:[%s240 + $0xc8] sm:$0xff] %v8347
        %8452 = vst [vmem:[%s240 + $0xd0] sm:$0xff] %v8348
        %8453 = vst [vmem:[%s240 + $0xd8] sm:$0xff] %v8349
        %8454 = vst [vmem:[%s240 + $0xe0] sm:$0xff] %v8350
        %8455 = vst [vmem:[%s240 + $0xe8] sm:$0xff] %v8351
        %8456 = vst [vmem:[%s240 + $0xf0] sm:$0xff] %v8352
        %8457 = vst [vmem:[%s240 + $0xf8] sm:$0xff] %v8353
        %8458 = vst [vmem:[%s240 + $0x100] sm:$0xff] %v8354
        %8459 = vst [vmem:[%s240 + $0x108] sm:$0xff] %v8355
        %8460 = vst [vmem:[%s240 + $0x110] sm:$0xff] %v8356
        %8461 = vst [vmem:[%s240 + $0x118] sm:$0xff] %v8357
        %8462 = vst [vmem:[%s240 + $0x120] sm:$0xff] %v8358
        %8463 = vst [vmem:[%s240 + $0x128] sm:$0xff] %v8359
        %8464 = vst [vmem:[%s240 + $0x130] sm:$0xff] %v8360
        %8465 = vst [vmem:[%s240 + $0x138] sm:$0xff] %v8361
        %8466 = vst [vmem:[%s240 + $0x140] sm:$0xff] %v8362
        %8467 = vst [vmem:[%s240 + $0x148] sm:$0xff] %v8363
        %8468 = vst [vmem:[%s240 + $0x150] sm:$0xff] %v8364
        %8469 = vst [vmem:[%s240 + $0x158] sm:$0xff] %v8365
        %8470 = vst [vmem:[%s240 + $0x160] sm:$0xff] %v8366
        %8471 = vst [vmem:[%s240 + $0x168] sm:$0xff] %v8367
        %8472 = vst [vmem:[%s240 + $0x170] sm:$0xff] %v8368
        %8473 = vst [vmem:[%s240 + $0x178] sm:$0xff] %v8369
        %8474 = vst [vmem:[%s240 + $0x180] sm:$0xff] %v8370
        %8475 = vst [vmem:[%s240 + $0x188] sm:$0xff] %v8371
        %8476 = vst [vmem:[%s240 + $0x190] sm:$0xff] %v8372
        %8477 = vst [vmem:[%s240 + $0x198] sm:$0xff] %v8373
        %8478 = vst [vmem:[%s240 + $0x1a0] sm:$0xff] %v8374
        %8479 = vst [vmem:[%s240 + $0x1a8] sm:$0xff] %v8375
        %8480 = vst [vmem:[%s240 + $0x1b0] sm:$0xff] %v8376
        %8481 = vst [vmem:[%s240 + $0x1b8] sm:$0xff] %v8377
        %8482 = vst [vmem:[%s240 + $0x1c0] sm:$0xff] %v8378
        %8483 = vst [vmem:[%s240 + $0x1c8] sm:$0xff] %v8379
        %8484 = vst [vmem:[%s240 + $0x1d0] sm:$0xff] %v8380
        %8485 = vst [vmem:[%s240 + $0x1d8] sm:$0xff] %v8381
        %8486 = vst [vmem:[%s240 + $0x1e0] sm:$0xff] %v8382
        %8487 = vst [vmem:[%s240 + $0x1e8] sm:$0xff] %v8383
        %8488 = vst [vmem:[%s240 + $0x1f0] sm:$0xff] %v8384
        %8489 = vst [vmem:[%s240 + $0x1f8] sm:$0xff] %v8385
        %8490 = vst [vmem:[%s240 + $0x200] sm:$0xff] %v8386
        %8491 = vst [vmem:[%s240 + $0x208] sm:$0xff] %v8387
        %8492 = vst [vmem:[%s240 + $0x210] sm:$0xff] %v8388
        %8493 = vst [vmem:[%s240 + $0x218] sm:$0xff] %v8389
        %8494 = vst [vmem:[%s240 + $0x220] sm:$0xff] %v8390
        %8495 = vst [vmem:[%s240 + $0x228] sm:$0xff] %v8391
        %8496 = vst [vmem:[%s240 + $0x230] sm:$0xff] %v8392
        %8497 = vst [vmem:[%s240 + $0x238] sm:$0xff] %v8393
        %8498 = vst [vmem:[%s240 + $0x240] sm:$0xff] %v8394
        %8499 = vst [vmem:[%s240 + $0x248] sm:$0xff] %v8395
        %8500 = vst [vmem:[%s240 + $0x250] sm:$0xff] %v8396
        %8501 = vst [vmem:[%s240 + $0x258] sm:$0xff] %v8397
        %8502 = vst [vmem:[%s240 + $0x260] sm:$0xff] %v8398
        %8503 = vst [vmem:[%s240 + $0x268] sm:$0xff] %v8399
        %8504 = vst [vmem:[%s240 + $0x270] sm:$0xff] %v8400
        %8505 = vst [vmem:[%s240 + $0x278] sm:$0xff] %v8401
        %8506 = vst [vmem:[%s240 + $0x280] sm:$0xff] %v8402
        %8507 = vst [vmem:[%s240 + $0x288] sm:$0xff] %v8403
        %8508 = vst [vmem:[%s240 + $0x290] sm:$0xff] %v8404
        %8509 = vst [vmem:[%s240 + $0x298] sm:$0xff] %v8405
        %8510 = vst [vmem:[%s240 + $0x2a0] sm:$0xff] %v8406
        %8511 = vst [vmem:[%s240 + $0x2a8] sm:$0xff] %v8407
        %8512 = vst [vmem:[%s240 + $0x2b0] sm:$0xff] %v8408
        %8513 = vst [vmem:[%s240 + $0x2b8] sm:$0xff] %v8409
        %8514 = vst [vmem:[%s240 + $0x2c0] sm:$0xff] %v8410
        %8515 = vst [vmem:[%s240 + $0x2c8] sm:$0xff] %v8411
        %8516 = vst [vmem:[%s240 + $0x2d0] sm:$0xff] %v8412
        %8517 = vst [vmem:[%s240 + $0x2d8] sm:$0xff] %v8413
        %8518 = vst [vmem:[%s240 + $0x2e0] sm:$0xff] %v8414
        %8519 = vst [vmem:[%s240 + $0x2e8] sm:$0xff] %v8415
        %8520 = vst [vmem:[%s240 + $0x2f0] sm:$0xff] %v8416
        %8521 = vst [vmem:[%s240 + $0x2f8] sm:$0xff] %v8417
        %8522 = vst [vmem:[%s240 + $0x300] sm:$0xff] %v8418
        %8523 = vst [vmem:[%s240 + $0x308] sm:$0xff] %v8419
        %8524 = vst [vmem:[%s240 + $0x310] sm:$0xff] %v8420
        %8525 = vst [vmem:[%s240 + $0x318] sm:$0xff] %v8421
        %8526 = vst [vmem:[%s240 + $0x320] sm:$0xff] %v8422
        %8527 = vst [vmem:[%s240 + $0x328] sm:$0xff] %v8423
        %8528 = vst [vmem:[%s240 + $0x330] sm:$0xff] %v8424
        %8529 = vst [vmem:[%s240 + $0x338] sm:$0xff] %v8425
        %s8530 = sand.u32 %s140, 1
        %s8531 = scalar_lea.sflag [#allocation5], %s8530
        %s8532 = sand.u32 %s140, 1
        %s8533 = smul.addr %s8532, 832
        %s8534 = scalar_lea.vmem [#allocation6], %s8533
        // Predicated region
        $region45: #{tpu_custom_call.1} parent=39 // pred_check
          %p8535 = pneg %p150
        $region46: #{tpu_custom_call.1} parent=39 // pred_check_branch
          %8537 = sbr.rel (%p8535) target = $region48
        $region47: #{tpu_custom_call.1} parent=39 // pred_region
          %s8539 = ssub.s32 13312, 13312
          %8540 = vsyncadd %s8531, %s8539
          %s8541 = smul.addr %s22, 104
          %s8542 = smul.addr %s8541, 128
          %s8543 = scalar_lea.hbm %s5, %s8542
          %s8544 = sshll.u32 %s8534, 4
          %s8545 = int_to_ptr.vmem [resolvable:$true] %s8544
          %8550 = dma.vmem_to_hbm [thread:$0]  %s8545, 13312, %s8543, %s8531, 3328, 3328, 208
        $region48: #{tpu_custom_call.1} parent=39 // pred_fallthru
          _
      $region40: #{tpu_custom_call.1} parent=5 // pred_fallthru
        _
      %p8551 = scmp.le.s32.totalorder 2, %s17
      // Predicated region
      $region49: #{tpu_custom_call.1} parent=5 // pred_check
        %p8552 = pneg %p8551
      $region50: #{tpu_custom_call.1} parent=5 // pred_check_branch
        %8554 = sbr.rel (%p8552) target = $region52
      $region51: #{tpu_custom_call.1} parent=5 // pred_region
        %s8555 = ssub.s32 %s17, 2
        // Predicated region
        $region53: #{tpu_custom_call.1} parent=51 // pred_check
          %p8556 = pneg %p156
        $region54: #{tpu_custom_call.1} parent=51 // pred_check_branch
          %8558 = sbr.rel (%p8556) target = $region56
        $region55: #{tpu_custom_call.1} parent=51 // pred_region
          %s8559 = sand.u32 %s141, 1
          %s8560 = scalar_lea.sflag [#allocation5], %s8559
          %s8561 = sand.u32 %s141, 1
          %s8562 = smul.addr %s8561, 832
          %s8563 = scalar_lea.vmem [#allocation6], %s8562
          %8564 = dma.done %s8560, 13312
        $region56: #{tpu_custom_call.1} parent=51 // pred_fallthru
          _
      $region52: #{tpu_custom_call.1} parent=5 // pred_fallthru
        _
    $region6: #{tpu_custom_call.1} parent=1 // loop_footer
      %s21 = sadd.s32 1, %s17
    $region7: #{tpu_custom_call.1} parent=1 // loop_footer_branch
      %16 = sbr.rel target = $region3
    $region8: #{tpu_custom_call.1} parent=1 // loop_exit
      _
    %8565 = vsyncpa [#allocation4], 1
    %s8566 = scalar_lea.sflag [#allocation4], 1
    %8567 = vsyncpa %s8566, 1
    %8568 = vsyncpa [#allocation5], 1
    %s8569 = scalar_lea.sflag [#allocation5], 1
    %8570 = vsyncpa %s8569, 1

</llo_original>
